<compile_context>
chip_gen: v5e
topology: v5e:2x2
jax: 0.10.0
libtpu: 0.0.40
codegen_flags: <defaults>
</compile_context>

<pallas_src>
import functools

import jax
import jax.numpy as jnp
import numpy as np
from jax.experimental import pallas as pl
from jax.experimental.pallas import tpu as pltpu


def _round_up(x, m):
    return ((x + m - 1) // m) * m


def _cvblock_kernel(x_ref, w1_ref, w2_ref, o_ref, xpad_ref, mid_ref,
                    *, NB, H, W, Cin, Cout):
    # x_ref   : (NB, H, W, Cin)       bf16, unpadded NHWC input tile
    # w1_ref  : (9, Cin, Cout)        bf16, tap-major conv1 weights (kh*3+kw)
    # w2_ref  : (9, Cout, Cout)       bf16, tap-major conv2 weights
    # o_ref   : (NB, H, W, Cout)      f32 output tile
    # xpad_ref: (NB, H+2, W+2, Cin)   bf16 scratch, zero border = padding=1
    # mid_ref : (NB, H+2, W+2, Cout)  bf16 scratch, conv1+ReLU (padded)
    cdt = xpad_ref.dtype
    M = NB * H * W

    # Zero only the 1-pixel borders (interiors are fully overwritten below).
    # Done every step so correctness never depends on grid->core assignment.
    xpad_ref[:, 0:1, :, :] = jnp.zeros((NB, 1, W + 2, Cin), cdt)
    xpad_ref[:, H + 1:H + 2, :, :] = jnp.zeros((NB, 1, W + 2, Cin), cdt)
    xpad_ref[:, :, 0:1, :] = jnp.zeros((NB, H + 2, 1, Cin), cdt)
    xpad_ref[:, :, W + 1:W + 2, :] = jnp.zeros((NB, H + 2, 1, Cin), cdt)
    mid_ref[:, 0:1, :, :] = jnp.zeros((NB, 1, W + 2, Cout), cdt)
    mid_ref[:, H + 1:H + 2, :, :] = jnp.zeros((NB, 1, W + 2, Cout), cdt)
    mid_ref[:, :, 0:1, :] = jnp.zeros((NB, H + 2, 1, Cout), cdt)
    mid_ref[:, :, W + 1:W + 2, :] = jnp.zeros((NB, H + 2, 1, Cout), cdt)

    # ---- conv1 (3x3, pad=1, no bias) + ReLU: per-tap accumulate, no im2col ----
    xpad_ref[:, 1:H + 1, 1:W + 1, :] = x_ref[...]
    acc1 = jnp.zeros((M, Cout), jnp.float32)
    for kh in range(3):
        for kw in range(3):
            lhs = xpad_ref[:, kh:kh + H, kw:kw + W, :].reshape(M, Cin)
            acc1 = acc1 + jnp.dot(lhs, w1_ref[kh * 3 + kw],
                                  preferred_element_type=jnp.float32)
    mid_ref[:, 1:H + 1, 1:W + 1, :] = (
        jnp.maximum(acc1, 0.0).reshape(NB, H, W, Cout).astype(cdt))

    # ---- conv2 (3x3, pad=1, no bias) + ReLU ----
    acc2 = jnp.zeros((M, Cout), jnp.float32)
    for kh in range(3):
        for kw in range(3):
            lhs = mid_ref[:, kh:kh + H, kw:kw + W, :].reshape(M, Cout)
            acc2 = acc2 + jnp.dot(lhs, w2_ref[kh * 3 + kw],
                                  preferred_element_type=jnp.float32)
    o_ref[...] = (
        jnp.maximum(acc2, 0.0).reshape(NB, H, W, Cout).astype(o_ref.dtype))


def _buf_bytes(shape, elem_bytes):
    """Conservative VMEM footprint of a buffer ((8,128)-tiled last two dims)."""
    lead = int(np.prod(shape[:-2], dtype=np.int64)) if len(shape) > 2 else 1
    return lead * _round_up(shape[-2], 8) * _round_up(shape[-1], 128) * elem_bytes


def _footprint_bytes(nb, H, W, Cin, Cout):
    bf2, f4 = 2, 4
    x_tile = _buf_bytes((nb, H, W, Cin), bf2)
    o_tile = _buf_bytes((nb, H, W, Cout), f4)
    w_b = _buf_bytes((9, Cin, Cout), bf2) + _buf_bytes((9, Cout, Cout), bf2)
    xpad = _buf_bytes((nb, H + 2, W + 2, Cin), bf2)
    mid = _buf_bytes((nb, H + 2, W + 2, Cout), bf2)
    # f32 matmul accumulators / relayout temporaries staged through VMEM.
    acc = 2 * _buf_bytes((nb * H * W, Cout), f4)
    # Input/output tiles are double-buffered by the pipeline; weights are
    # fetched once (constant index_map) so no double-count.
    return 2 * (x_tile + o_tile) + w_b + xpad + mid + acc


def _pick_batch_block(N, H, W, Cin, Cout, budget_bytes, min_steps):
    """Largest divisor of N fitting the VMEM budget with >= min_steps grid steps."""
    best = 1
    for nb in range(1, N + 1):
        if N % nb != 0:
            continue
        if N // nb < min_steps:
            continue
        if _footprint_bytes(nb, H, W, Cin, Cout) <= budget_bytes:
            best = max(best, nb)
    return best


def cvblock_forward(x_nchw, w1_oihw, w2_oihw, compute_dtype=jnp.bfloat16):
    """Pallas implementation of CvBlock.forward. Input/output are NCHW."""
    N, Cin, H, W = x_nchw.shape
    Cout = w1_oihw.shape[0]

    # NCHW -> NHWC (no channel padding in HBM), cast to bf16 for the MXU.
    x_in = jnp.transpose(x_nchw, (0, 2, 3, 1)).astype(compute_dtype)

    # OIHW -> (kh, kw, Cin, Cout) -> (9, Cin, Cout), tap index = kh*3 + kw.
    w1r = jnp.transpose(w1_oihw, (2, 3, 1, 0)).reshape(9, Cin, Cout)
    w1r = w1r.astype(compute_dtype)
    w2r = jnp.transpose(w2_oihw, (2, 3, 1, 0)).reshape(9, Cout, Cout)
    w2r = w2r.astype(compute_dtype)

    # Generation-aware VMEM sizing (v5e/v6e: 128 MiB, v7x: 64 MiB).
    try:
        vmem_phys = int(pltpu.get_tpu_info().vmem_capacity_bytes)
    except Exception:
        vmem_phys = 64 * 1024 * 1024
    budget_bytes = vmem_phys // 3
    vmem_limit = max(32 * 1024 * 1024, vmem_phys // 2)

    # Keep at least min(N, 4) grid steps so v7x's two TensorCores both get
    # work and the pipeline can overlap DMA with compute.
    NB = _pick_batch_block(N, H, W, Cin, Cout, budget_bytes,
                           min_steps=min(N, 4))
    # For very large H/W an H-strip grid axis with a 1-row halo would be
    # needed instead of whole-image blocks (not required at these shapes).

    kernel = functools.partial(
        _cvblock_kernel, NB=NB, H=H, W=W, Cin=Cin, Cout=Cout)

    out_nhwc = pl.pallas_call(
        kernel,
        out_shape=jax.ShapeDtypeStruct((N, H, W, Cout), jnp.float32),
        grid_spec=pltpu.PrefetchScalarGridSpec(
            num_scalar_prefetch=0,
            grid=(N // NB,),  # one grid step per batch block (parallel axis)
            in_specs=[
                pl.BlockSpec((NB, H, W, Cin), lambda n: (n, 0, 0, 0)),
                # Constant index maps -> weights fetched once by the pipeline.
                pl.BlockSpec((9, Cin, Cout), lambda n: (0, 0, 0)),
                pl.BlockSpec((9, Cout, Cout), lambda n: (0, 0, 0)),
            ],
            out_specs=pl.BlockSpec((NB, H, W, Cout), lambda n: (n, 0, 0, 0)),
            scratch_shapes=[
                pltpu.VMEM((NB, H + 2, W + 2, Cin), compute_dtype),
                pltpu.VMEM((NB, H + 2, W + 2, Cout), compute_dtype),
            ],
        ),
        compiler_params=pltpu.CompilerParams(
            dimension_semantics=("parallel",),
            vmem_limit_bytes=vmem_limit,
        ),
    )(x_in, w1r, w2r)

    # NHWC -> NCHW to match PyTorch output convention.
    return jnp.transpose(out_nhwc, (0, 3, 1, 2)).astype(x_nchw.dtype)


def _reference_forward(x_nchw, w1_oihw, w2_oihw):
    """Pure-JAX f32 reference: conv -> relu -> conv -> relu (NCHW, OIHW)."""
    dn = jax.lax.conv_dimension_numbers(
        x_nchw.shape, w1_oihw.shape, ("NCHW", "OIHW", "NCHW"))
    y = jax.lax.conv_general_dilated(
        x_nchw, w1_oihw, (1, 1), ((1, 1), (1, 1)), dimension_numbers=dn)
    y = jnp.maximum(y, 0.0)
    y = jax.lax.conv_general_dilated(
        y, w2_oihw, (1, 1), ((1, 1), (1, 1)), dimension_numbers=dn)
    return jnp.maximum(y, 0.0)


if __name__ == "__main__":
    # Small shapes consistent with CvBlock(in_ch=4, out_ch=8) on NCHW input.
    N, Cin, Cout, H, W = 2, 4, 8, 16, 16

    key = jax.random.PRNGKey(0)
    kx, k1, k2 = jax.random.split(key, 3)
    x = jax.random.normal(kx, (N, Cin, H, W), dtype=jnp.float32)
    # Deterministic synthetic weights (PyTorch conv weight layout: OIHW).
    w1 = 0.1 * jax.random.normal(k1, (Cout, Cin, 3, 3), dtype=jnp.float32)
    w2 = 0.1 * jax.random.normal(k2, (Cout, Cout, 3, 3), dtype=jnp.float32)

    out = cvblock_forward(x, w1, w2)
    out = jax.block_until_ready(out)

    ref = jax.block_until_ready(_reference_forward(x, w1, w2))
    # bf16 MXU operands + f32 accumulation vs pure-f32 reference.
    np.testing.assert_allclose(np.asarray(out), np.asarray(ref),
                               rtol=2e-2, atol=2e-2)
    print("KERNEL_OK")
</pallas_src>

<mosaic_0001>
module attributes {stable_mosaic.version = 11 : i64} {
  func.func @_cvblock_kernel(%arg0: i32, %arg1: memref<1x16x16x4xbf16, #tpu.memory_space<vmem>>, %arg2: memref<9x4x8xbf16, #tpu.memory_space<vmem>>, %arg3: memref<9x8x8xbf16, #tpu.memory_space<vmem>>, %arg4: memref<1x16x16x8xf32, #tpu.memory_space<vmem>>, %arg5: memref<1x18x18x4xbf16, #tpu.memory_space<vmem>>, %arg6: memref<1x18x18x8xbf16, #tpu.memory_space<vmem>>) attributes {dimension_semantics = [#tpu.dimension_semantics<parallel>], iteration_bounds = array<i64: 2>, scalar_prefetch = 0 : i64, scratch_operands = 2 : i64, tpu.core_type = #tpu.core_type<tc>, window_params = [{transform_indices = @transform_0, window_bounds = array<i64: 1, 16, 16, 4>}, {pipeline_mode = #tpu.pipeline_mode<synchronous>, transform_indices = @transform_1, window_bounds = array<i64: 9, 4, 8>}, {pipeline_mode = #tpu.pipeline_mode<synchronous>, transform_indices = @transform_2, window_bounds = array<i64: 9, 8, 8>}, {transform_indices = @transform_3, window_bounds = array<i64: 1, 16, 16, 8>}]} {
    %cst = arith.constant 0.000000e+00 : bf16
    %0 = vector.broadcast %cst : bf16 to vector<1x1x18x4xbf16>
    %c0 = arith.constant 0 : index
    %c0_0 = arith.constant 0 : index
    %c0_1 = arith.constant 0 : index
    %c0_2 = arith.constant 0 : index
    %1 = vector.load %arg5[%c0, %c0_0, %c0_1, %c0_2] : memref<1x18x18x4xbf16, #tpu.memory_space<vmem>>, vector<1x1x18x4xbf16>
    tpu.vector_store %arg5[%c0, %c0_0, %c0_1, %c0_2], %0 {strides = array<i32>} : memref<1x18x18x4xbf16, #tpu.memory_space<vmem>>, vector<1x1x18x4xbf16>,
    %cst_3 = arith.constant 0.000000e+00 : bf16
    %2 = vector.broadcast %cst_3 : bf16 to vector<1x1x18x4xbf16>
    %c0_4 = arith.constant 0 : index
    %c17 = arith.constant 17 : index
    %c0_5 = arith.constant 0 : index
    %c0_6 = arith.constant 0 : index
    %3 = vector.load %arg5[%c0_4, %c17, %c0_5, %c0_6] : memref<1x18x18x4xbf16, #tpu.memory_space<vmem>>, vector<1x1x18x4xbf16>
    tpu.vector_store %arg5[%c0_4, %c17, %c0_5, %c0_6], %2 {strides = array<i32>} : memref<1x18x18x4xbf16, #tpu.memory_space<vmem>>, vector<1x1x18x4xbf16>,
    %cst_7 = arith.constant 0.000000e+00 : bf16
    %4 = vector.broadcast %cst_7 : bf16 to vector<1x18x1x4xbf16>
    %c0_8 = arith.constant 0 : index
    %c0_9 = arith.constant 0 : index
    %c0_10 = arith.constant 0 : index
    %c0_11 = arith.constant 0 : index
    %5 = vector.load %arg5[%c0_8, %c0_9, %c0_10, %c0_11] : memref<1x18x18x4xbf16, #tpu.memory_space<vmem>>, vector<1x18x1x4xbf16>
    tpu.vector_store %arg5[%c0_8, %c0_9, %c0_10, %c0_11], %4 {strides = array<i32>} : memref<1x18x18x4xbf16, #tpu.memory_space<vmem>>, vector<1x18x1x4xbf16>,
    %cst_12 = arith.constant 0.000000e+00 : bf16
    %6 = vector.broadcast %cst_12 : bf16 to vector<1x18x1x4xbf16>
    %c0_13 = arith.constant 0 : index
    %c0_14 = arith.constant 0 : index
    %c17_15 = arith.constant 17 : index
    %c0_16 = arith.constant 0 : index
    %7 = vector.load %arg5[%c0_13, %c0_14, %c17_15, %c0_16] : memref<1x18x18x4xbf16, #tpu.memory_space<vmem>>, vector<1x18x1x4xbf16>
    tpu.vector_store %arg5[%c0_13, %c0_14, %c17_15, %c0_16], %6 {strides = array<i32>} : memref<1x18x18x4xbf16, #tpu.memory_space<vmem>>, vector<1x18x1x4xbf16>,
    %cst_17 = arith.constant 0.000000e+00 : bf16
    %8 = vector.broadcast %cst_17 : bf16 to vector<1x1x18x8xbf16>
    %c0_18 = arith.constant 0 : index
    %c0_19 = arith.constant 0 : index
    %c0_20 = arith.constant 0 : index
    %c0_21 = arith.constant 0 : index
    %9 = vector.load %arg6[%c0_18, %c0_19, %c0_20, %c0_21] : memref<1x18x18x8xbf16, #tpu.memory_space<vmem>>, vector<1x1x18x8xbf16>
    tpu.vector_store %arg6[%c0_18, %c0_19, %c0_20, %c0_21], %8 {strides = array<i32>} : memref<1x18x18x8xbf16, #tpu.memory_space<vmem>>, vector<1x1x18x8xbf16>,
    %cst_22 = arith.constant 0.000000e+00 : bf16
    %10 = vector.broadcast %cst_22 : bf16 to vector<1x1x18x8xbf16>
    %c0_23 = arith.constant 0 : index
    %c17_24 = arith.constant 17 : index
    %c0_25 = arith.constant 0 : index
    %c0_26 = arith.constant 0 : index
    %11 = vector.load %arg6[%c0_23, %c17_24, %c0_25, %c0_26] : memref<1x18x18x8xbf16, #tpu.memory_space<vmem>>, vector<1x1x18x8xbf16>
    tpu.vector_store %arg6[%c0_23, %c17_24, %c0_25, %c0_26], %10 {strides = array<i32>} : memref<1x18x18x8xbf16, #tpu.memory_space<vmem>>, vector<1x1x18x8xbf16>,
    %cst_27 = arith.constant 0.000000e+00 : bf16
    %12 = vector.broadcast %cst_27 : bf16 to vector<1x18x1x8xbf16>
    %c0_28 = arith.constant 0 : index
    %c0_29 = arith.constant 0 : index
    %c0_30 = arith.constant 0 : index
    %c0_31 = arith.constant 0 : index
    %13 = vector.load %arg6[%c0_28, %c0_29, %c0_30, %c0_31] : memref<1x18x18x8xbf16, #tpu.memory_space<vmem>>, vector<1x18x1x8xbf16>
    tpu.vector_store %arg6[%c0_28, %c0_29, %c0_30, %c0_31], %12 {strides = array<i32>} : memref<1x18x18x8xbf16, #tpu.memory_space<vmem>>, vector<1x18x1x8xbf16>,
    %cst_32 = arith.constant 0.000000e+00 : bf16
    %14 = vector.broadcast %cst_32 : bf16 to vector<1x18x1x8xbf16>
    %c0_33 = arith.constant 0 : index
    %c0_34 = arith.constant 0 : index
    %c17_35 = arith.constant 17 : index
    %c0_36 = arith.constant 0 : index
    %15 = vector.load %arg6[%c0_33, %c0_34, %c17_35, %c0_36] : memref<1x18x18x8xbf16, #tpu.memory_space<vmem>>, vector<1x18x1x8xbf16>
    tpu.vector_store %arg6[%c0_33, %c0_34, %c17_35, %c0_36], %14 {strides = array<i32>} : memref<1x18x18x8xbf16, #tpu.memory_space<vmem>>, vector<1x18x1x8xbf16>,
    %c0_37 = arith.constant 0 : index
    %c0_38 = arith.constant 0 : index
    %c0_39 = arith.constant 0 : index
    %c0_40 = arith.constant 0 : index
    %16 = vector.load %arg1[%c0_37, %c0_38, %c0_39, %c0_40] : memref<1x16x16x4xbf16, #tpu.memory_space<vmem>>, vector<1x16x16x4xbf16>
    %c0_41 = arith.constant 0 : index
    %c1 = arith.constant 1 : index
    %c1_42 = arith.constant 1 : index
    %c0_43 = arith.constant 0 : index
    %17 = vector.load %arg5[%c0_41, %c1, %c1_42, %c0_43] : memref<1x18x18x4xbf16, #tpu.memory_space<vmem>>, vector<1x16x16x4xbf16>
    tpu.vector_store %arg5[%c0_41, %c1, %c1_42, %c0_43], %16 {strides = array<i32>} : memref<1x18x18x4xbf16, #tpu.memory_space<vmem>>, vector<1x16x16x4xbf16>,
    %cst_44 = arith.constant 0.000000e+00 : f32
    %18 = vector.broadcast %cst_44 : f32 to vector<256x8xf32>
    %c0_45 = arith.constant 0 : index
    %c0_46 = arith.constant 0 : index
    %c0_47 = arith.constant 0 : index
    %c0_48 = arith.constant 0 : index
    %19 = vector.load %arg5[%c0_45, %c0_46, %c0_47, %c0_48] : memref<1x18x18x4xbf16, #tpu.memory_space<vmem>>, vector<1x16x16x4xbf16>
    %20 = vector.shape_cast %19 : vector<1x16x16x4xbf16> to vector<256x4xbf16>
    %c0_49 = arith.constant 0 : index
    %c0_50 = arith.constant 0 : index
    %c0_51 = arith.constant 0 : index
    %21 = vector.load %arg2[%c0_49, %c0_50, %c0_51] : memref<9x4x8xbf16, #tpu.memory_space<vmem>>, vector<1x4x8xbf16>
    %22 = vector.shape_cast %21 : vector<1x4x8xbf16> to vector<4x8xbf16>
    %cst_52 = arith.constant dense<0.000000e+00> : vector<256x8xf32>
    %23 = tpu.matmul %20, %22, %cst_52 {dimension_numbers = #tpu.dot_dimension_numbers<[1], [0], [0], [1], [0, 0, 1, 1], [], []>} : vector<256x4xbf16>, vector<4x8xbf16>, vector<256x8xf32> -> vector<256x8xf32>
    %24 = arith.addf %18, %23 : vector<256x8xf32>
    %c0_53 = arith.constant 0 : index
    %c0_54 = arith.constant 0 : index
    %c1_55 = arith.constant 1 : index
    %c0_56 = arith.constant 0 : index
    %25 = vector.load %arg5[%c0_53, %c0_54, %c1_55, %c0_56] : memref<1x18x18x4xbf16, #tpu.memory_space<vmem>>, vector<1x16x16x4xbf16>
    %26 = vector.shape_cast %25 : vector<1x16x16x4xbf16> to vector<256x4xbf16>
    %c1_57 = arith.constant 1 : index
    %c0_58 = arith.constant 0 : index
    %c0_59 = arith.constant 0 : index
    %27 = vector.load %arg2[%c1_57, %c0_58, %c0_59] : memref<9x4x8xbf16, #tpu.memory_space<vmem>>, vector<1x4x8xbf16>
    %28 = vector.shape_cast %27 : vector<1x4x8xbf16> to vector<4x8xbf16>
    %cst_60 = arith.constant dense<0.000000e+00> : vector<256x8xf32>
    %29 = tpu.matmul %26, %28, %cst_60 {dimension_numbers = #tpu.dot_dimension_numbers<[1], [0], [0], [1], [0, 0, 1, 1], [], []>} : vector<256x4xbf16>, vector<4x8xbf16>, vector<256x8xf32> -> vector<256x8xf32>
    %30 = arith.addf %24, %29 : vector<256x8xf32>
    %c0_61 = arith.constant 0 : index
    %c0_62 = arith.constant 0 : index
    %c2 = arith.constant 2 : index
    %c0_63 = arith.constant 0 : index
    %31 = vector.load %arg5[%c0_61, %c0_62, %c2, %c0_63] : memref<1x18x18x4xbf16, #tpu.memory_space<vmem>>, vector<1x16x16x4xbf16>
    %32 = vector.shape_cast %31 : vector<1x16x16x4xbf16> to vector<256x4xbf16>
    %c2_64 = arith.constant 2 : index
    %c0_65 = arith.constant 0 : index
    %c0_66 = arith.constant 0 : index
    %33 = vector.load %arg2[%c2_64, %c0_65, %c0_66] : memref<9x4x8xbf16, #tpu.memory_space<vmem>>, vector<1x4x8xbf16>
    %34 = vector.shape_cast %33 : vector<1x4x8xbf16> to vector<4x8xbf16>
    %cst_67 = arith.constant dense<0.000000e+00> : vector<256x8xf32>
    %35 = tpu.matmul %32, %34, %cst_67 {dimension_numbers = #tpu.dot_dimension_numbers<[1], [0], [0], [1], [0, 0, 1, 1], [], []>} : vector<256x4xbf16>, vector<4x8xbf16>, vector<256x8xf32> -> vector<256x8xf32>
    %36 = arith.addf %30, %35 : vector<256x8xf32>
    %c0_68 = arith.constant 0 : index
    %c1_69 = arith.constant 1 : index
    %c0_70 = arith.constant 0 : index
    %c0_71 = arith.constant 0 : index
    %37 = vector.load %arg5[%c0_68, %c1_69, %c0_70, %c0_71] : memref<1x18x18x4xbf16, #tpu.memory_space<vmem>>, vector<1x16x16x4xbf16>
    %38 = vector.shape_cast %37 : vector<1x16x16x4xbf16> to vector<256x4xbf16>
    %c3 = arith.constant 3 : index
    %c0_72 = arith.constant 0 : index
    %c0_73 = arith.constant 0 : index
    %39 = vector.load %arg2[%c3, %c0_72, %c0_73] : memref<9x4x8xbf16, #tpu.memory_space<vmem>>, vector<1x4x8xbf16>
    %40 = vector.shape_cast %39 : vector<1x4x8xbf16> to vector<4x8xbf16>
    %cst_74 = arith.constant dense<0.000000e+00> : vector<256x8xf32>
    %41 = tpu.matmul %38, %40, %cst_74 {dimension_numbers = #tpu.dot_dimension_numbers<[1], [0], [0], [1], [0, 0, 1, 1], [], []>} : vector<256x4xbf16>, vector<4x8xbf16>, vector<256x8xf32> -> vector<256x8xf32>
    %42 = arith.addf %36, %41 : vector<256x8xf32>
    %c0_75 = arith.constant 0 : index
    %c1_76 = arith.constant 1 : index
    %c1_77 = arith.constant 1 : index
    %c0_78 = arith.constant 0 : index
    %43 = vector.load %arg5[%c0_75, %c1_76, %c1_77, %c0_78] : memref<1x18x18x4xbf16, #tpu.memory_space<vmem>>, vector<1x16x16x4xbf16>
    %44 = vector.shape_cast %43 : vector<1x16x16x4xbf16> to vector<256x4xbf16>
    %c4 = arith.constant 4 : index
    %c0_79 = arith.constant 0 : index
    %c0_80 = arith.constant 0 : index
    %45 = vector.load %arg2[%c4, %c0_79, %c0_80] : memref<9x4x8xbf16, #tpu.memory_space<vmem>>, vector<1x4x8xbf16>
    %46 = vector.shape_cast %45 : vector<1x4x8xbf16> to vector<4x8xbf16>
    %cst_81 = arith.constant dense<0.000000e+00> : vector<256x8xf32>
    %47 = tpu.matmul %44, %46, %cst_81 {dimension_numbers = #tpu.dot_dimension_numbers<[1], [0], [0], [1], [0, 0, 1, 1], [], []>} : vector<256x4xbf16>, vector<4x8xbf16>, vector<256x8xf32> -> vector<256x8xf32>
    %48 = arith.addf %42, %47 : vector<256x8xf32>
    %c0_82 = arith.constant 0 : index
    %c1_83 = arith.constant 1 : index
    %c2_84 = arith.constant 2 : index
    %c0_85 = arith.constant 0 : index
    %49 = vector.load %arg5[%c0_82, %c1_83, %c2_84, %c0_85] : memref<1x18x18x4xbf16, #tpu.memory_space<vmem>>, vector<1x16x16x4xbf16>
    %50 = vector.shape_cast %49 : vector<1x16x16x4xbf16> to vector<256x4xbf16>
    %c5 = arith.constant 5 : index
    %c0_86 = arith.constant 0 : index
    %c0_87 = arith.constant 0 : index
    %51 = vector.load %arg2[%c5, %c0_86, %c0_87] : memref<9x4x8xbf16, #tpu.memory_space<vmem>>, vector<1x4x8xbf16>
    %52 = vector.shape_cast %51 : vector<1x4x8xbf16> to vector<4x8xbf16>
    %cst_88 = arith.constant dense<0.000000e+00> : vector<256x8xf32>
    %53 = tpu.matmul %50, %52, %cst_88 {dimension_numbers = #tpu.dot_dimension_numbers<[1], [0], [0], [1], [0, 0, 1, 1], [], []>} : vector<256x4xbf16>, vector<4x8xbf16>, vector<256x8xf32> -> vector<256x8xf32>
    %54 = arith.addf %48, %53 : vector<256x8xf32>
    %c0_89 = arith.constant 0 : index
    %c2_90 = arith.constant 2 : index
    %c0_91 = arith.constant 0 : index
    %c0_92 = arith.constant 0 : index
    %55 = vector.load %arg5[%c0_89, %c2_90, %c0_91, %c0_92] : memref<1x18x18x4xbf16, #tpu.memory_space<vmem>>, vector<1x16x16x4xbf16>
    %56 = vector.shape_cast %55 : vector<1x16x16x4xbf16> to vector<256x4xbf16>
    %c6 = arith.constant 6 : index
    %c0_93 = arith.constant 0 : index
    %c0_94 = arith.constant 0 : index
    %57 = vector.load %arg2[%c6, %c0_93, %c0_94] : memref<9x4x8xbf16, #tpu.memory_space<vmem>>, vector<1x4x8xbf16>
    %58 = vector.shape_cast %57 : vector<1x4x8xbf16> to vector<4x8xbf16>
    %cst_95 = arith.constant dense<0.000000e+00> : vector<256x8xf32>
    %59 = tpu.matmul %56, %58, %cst_95 {dimension_numbers = #tpu.dot_dimension_numbers<[1], [0], [0], [1], [0, 0, 1, 1], [], []>} : vector<256x4xbf16>, vector<4x8xbf16>, vector<256x8xf32> -> vector<256x8xf32>
    %60 = arith.addf %54, %59 : vector<256x8xf32>
    %c0_96 = arith.constant 0 : index
    %c2_97 = arith.constant 2 : index
    %c1_98 = arith.constant 1 : index
    %c0_99 = arith.constant 0 : index
    %61 = vector.load %arg5[%c0_96, %c2_97, %c1_98, %c0_99] : memref<1x18x18x4xbf16, #tpu.memory_space<vmem>>, vector<1x16x16x4xbf16>
    %62 = vector.shape_cast %61 : vector<1x16x16x4xbf16> to vector<256x4xbf16>
    %c7 = arith.constant 7 : index
    %c0_100 = arith.constant 0 : index
    %c0_101 = arith.constant 0 : index
    %63 = vector.load %arg2[%c7, %c0_100, %c0_101] : memref<9x4x8xbf16, #tpu.memory_space<vmem>>, vector<1x4x8xbf16>
    %64 = vector.shape_cast %63 : vector<1x4x8xbf16> to vector<4x8xbf16>
    %cst_102 = arith.constant dense<0.000000e+00> : vector<256x8xf32>
    %65 = tpu.matmul %62, %64, %cst_102 {dimension_numbers = #tpu.dot_dimension_numbers<[1], [0], [0], [1], [0, 0, 1, 1], [], []>} : vector<256x4xbf16>, vector<4x8xbf16>, vector<256x8xf32> -> vector<256x8xf32>
    %66 = arith.addf %60, %65 : vector<256x8xf32>
    %c0_103 = arith.constant 0 : index
    %c2_104 = arith.constant 2 : index
    %c2_105 = arith.constant 2 : index
    %c0_106 = arith.constant 0 : index
    %67 = vector.load %arg5[%c0_103, %c2_104, %c2_105, %c0_106] : memref<1x18x18x4xbf16, #tpu.memory_space<vmem>>, vector<1x16x16x4xbf16>
    %68 = vector.shape_cast %67 : vector<1x16x16x4xbf16> to vector<256x4xbf16>
    %c8 = arith.constant 8 : index
    %c0_107 = arith.constant 0 : index
    %c0_108 = arith.constant 0 : index
    %69 = vector.load %arg2[%c8, %c0_107, %c0_108] : memref<9x4x8xbf16, #tpu.memory_space<vmem>>, vector<1x4x8xbf16>
    %70 = vector.shape_cast %69 : vector<1x4x8xbf16> to vector<4x8xbf16>
    %cst_109 = arith.constant dense<0.000000e+00> : vector<256x8xf32>
    %71 = tpu.matmul %68, %70, %cst_109 {dimension_numbers = #tpu.dot_dimension_numbers<[1], [0], [0], [1], [0, 0, 1, 1], [], []>} : vector<256x4xbf16>, vector<4x8xbf16>, vector<256x8xf32> -> vector<256x8xf32>
    %72 = arith.addf %66, %71 : vector<256x8xf32>
    %cst_110 = arith.constant 0.000000e+00 : f32
    %73 = vector.broadcast %cst_110 : f32 to vector<256x8xf32>
    %74 = arith.maximumf %72, %73 : vector<256x8xf32>
    %75 = vector.shape_cast %74 : vector<256x8xf32> to vector<1x16x16x8xf32>
    %76 = arith.truncf %75 : vector<1x16x16x8xf32> to vector<1x16x16x8xbf16>
    %c0_111 = arith.constant 0 : index
    %c1_112 = arith.constant 1 : index
    %c1_113 = arith.constant 1 : index
    %c0_114 = arith.constant 0 : index
    %77 = vector.load %arg6[%c0_111, %c1_112, %c1_113, %c0_114] : memref<1x18x18x8xbf16, #tpu.memory_space<vmem>>, vector<1x16x16x8xbf16>
    tpu.vector_store %arg6[%c0_111, %c1_112, %c1_113, %c0_114], %76 {strides = array<i32>} : memref<1x18x18x8xbf16, #tpu.memory_space<vmem>>, vector<1x16x16x8xbf16>,
    %cst_115 = arith.constant 0.000000e+00 : f32
    %78 = vector.broadcast %cst_115 : f32 to vector<256x8xf32>
    %c0_116 = arith.constant 0 : index
    %c0_117 = arith.constant 0 : index
    %c0_118 = arith.constant 0 : index
    %c0_119 = arith.constant 0 : index
    %79 = vector.load %arg6[%c0_116, %c0_117, %c0_118, %c0_119] : memref<1x18x18x8xbf16, #tpu.memory_space<vmem>>, vector<1x16x16x8xbf16>
    %80 = vector.shape_cast %79 : vector<1x16x16x8xbf16> to vector<256x8xbf16>
    %c0_120 = arith.constant 0 : index
    %c0_121 = arith.constant 0 : index
    %c0_122 = arith.constant 0 : index
    %81 = vector.load %arg3[%c0_120, %c0_121, %c0_122] : memref<9x8x8xbf16, #tpu.memory_space<vmem>>, vector<1x8x8xbf16>
    %82 = vector.shape_cast %81 : vector<1x8x8xbf16> to vector<8x8xbf16>
    %cst_123 = arith.constant dense<0.000000e+00> : vector<256x8xf32>
    %83 = tpu.matmul %80, %82, %cst_123 {dimension_numbers = #tpu.dot_dimension_numbers<[1], [0], [0], [1], [0, 0, 1, 1], [], []>} : vector<256x8xbf16>, vector<8x8xbf16>, vector<256x8xf32> -> vector<256x8xf32>
    %84 = arith.addf %78, %83 : vector<256x8xf32>
    %c0_124 = arith.constant 0 : index
    %c0_125 = arith.constant 0 : index
    %c1_126 = arith.constant 1 : index
    %c0_127 = arith.constant 0 : index
    %85 = vector.load %arg6[%c0_124, %c0_125, %c1_126, %c0_127] : memref<1x18x18x8xbf16, #tpu.memory_space<vmem>>, vector<1x16x16x8xbf16>
    %86 = vector.shape_cast %85 : vector<1x16x16x8xbf16> to vector<256x8xbf16>
    %c1_128 = arith.constant 1 : index
    %c0_129 = arith.constant 0 : index
    %c0_130 = arith.constant 0 : index
    %87 = vector.load %arg3[%c1_128, %c0_129, %c0_130] : memref<9x8x8xbf16, #tpu.memory_space<vmem>>, vector<1x8x8xbf16>
    %88 = vector.shape_cast %87 : vector<1x8x8xbf16> to vector<8x8xbf16>
    %cst_131 = arith.constant dense<0.000000e+00> : vector<256x8xf32>
    %89 = tpu.matmul %86, %88, %cst_131 {dimension_numbers = #tpu.dot_dimension_numbers<[1], [0], [0], [1], [0, 0, 1, 1], [], []>} : vector<256x8xbf16>, vector<8x8xbf16>, vector<256x8xf32> -> vector<256x8xf32>
    %90 = arith.addf %84, %89 : vector<256x8xf32>
    %c0_132 = arith.constant 0 : index
    %c0_133 = arith.constant 0 : index
    %c2_134 = arith.constant 2 : index
    %c0_135 = arith.constant 0 : index
    %91 = vector.load %arg6[%c0_132, %c0_133, %c2_134, %c0_135] : memref<1x18x18x8xbf16, #tpu.memory_space<vmem>>, vector<1x16x16x8xbf16>
    %92 = vector.shape_cast %91 : vector<1x16x16x8xbf16> to vector<256x8xbf16>
    %c2_136 = arith.constant 2 : index
    %c0_137 = arith.constant 0 : index
    %c0_138 = arith.constant 0 : index
    %93 = vector.load %arg3[%c2_136, %c0_137, %c0_138] : memref<9x8x8xbf16, #tpu.memory_space<vmem>>, vector<1x8x8xbf16>
    %94 = vector.shape_cast %93 : vector<1x8x8xbf16> to vector<8x8xbf16>
    %cst_139 = arith.constant dense<0.000000e+00> : vector<256x8xf32>
    %95 = tpu.matmul %92, %94, %cst_139 {dimension_numbers = #tpu.dot_dimension_numbers<[1], [0], [0], [1], [0, 0, 1, 1], [], []>} : vector<256x8xbf16>, vector<8x8xbf16>, vector<256x8xf32> -> vector<256x8xf32>
    %96 = arith.addf %90, %95 : vector<256x8xf32>
    %c0_140 = arith.constant 0 : index
    %c1_141 = arith.constant 1 : index
    %c0_142 = arith.constant 0 : index
    %c0_143 = arith.constant 0 : index
    %97 = vector.load %arg6[%c0_140, %c1_141, %c0_142, %c0_143] : memref<1x18x18x8xbf16, #tpu.memory_space<vmem>>, vector<1x16x16x8xbf16>
    %98 = vector.shape_cast %97 : vector<1x16x16x8xbf16> to vector<256x8xbf16>
    %c3_144 = arith.constant 3 : index
    %c0_145 = arith.constant 0 : index
    %c0_146 = arith.constant 0 : index
    %99 = vector.load %arg3[%c3_144, %c0_145, %c0_146] : memref<9x8x8xbf16, #tpu.memory_space<vmem>>, vector<1x8x8xbf16>
    %100 = vector.shape_cast %99 : vector<1x8x8xbf16> to vector<8x8xbf16>
    %cst_147 = arith.constant dense<0.000000e+00> : vector<256x8xf32>
    %101 = tpu.matmul %98, %100, %cst_147 {dimension_numbers = #tpu.dot_dimension_numbers<[1], [0], [0], [1], [0, 0, 1, 1], [], []>} : vector<256x8xbf16>, vector<8x8xbf16>, vector<256x8xf32> -> vector<256x8xf32>
    %102 = arith.addf %96, %101 : vector<256x8xf32>
    %c0_148 = arith.constant 0 : index
    %c1_149 = arith.constant 1 : index
    %c1_150 = arith.constant 1 : index
    %c0_151 = arith.constant 0 : index
    %103 = vector.load %arg6[%c0_148, %c1_149, %c1_150, %c0_151] : memref<1x18x18x8xbf16, #tpu.memory_space<vmem>>, vector<1x16x16x8xbf16>
    %104 = vector.shape_cast %103 : vector<1x16x16x8xbf16> to vector<256x8xbf16>
    %c4_152 = arith.constant 4 : index
    %c0_153 = arith.constant 0 : index
    %c0_154 = arith.constant 0 : index
    %105 = vector.load %arg3[%c4_152, %c0_153, %c0_154] : memref<9x8x8xbf16, #tpu.memory_space<vmem>>, vector<1x8x8xbf16>
    %106 = vector.shape_cast %105 : vector<1x8x8xbf16> to vector<8x8xbf16>
    %cst_155 = arith.constant dense<0.000000e+00> : vector<256x8xf32>
    %107 = tpu.matmul %104, %106, %cst_155 {dimension_numbers = #tpu.dot_dimension_numbers<[1], [0], [0], [1], [0, 0, 1, 1], [], []>} : vector<256x8xbf16>, vector<8x8xbf16>, vector<256x8xf32> -> vector<256x8xf32>
    %108 = arith.addf %102, %107 : vector<256x8xf32>
    %c0_156 = arith.constant 0 : index
    %c1_157 = arith.constant 1 : index
    %c2_158 = arith.constant 2 : index
    %c0_159 = arith.constant 0 : index
    %109 = vector.load %arg6[%c0_156, %c1_157, %c2_158, %c0_159] : memref<1x18x18x8xbf16, #tpu.memory_space<vmem>>, vector<1x16x16x8xbf16>
    %110 = vector.shape_cast %109 : vector<1x16x16x8xbf16> to vector<256x8xbf16>
    %c5_160 = arith.constant 5 : index
    %c0_161 = arith.constant 0 : index
    %c0_162 = arith.constant 0 : index
    %111 = vector.load %arg3[%c5_160, %c0_161, %c0_162] : memref<9x8x8xbf16, #tpu.memory_space<vmem>>, vector<1x8x8xbf16>
    %112 = vector.shape_cast %111 : vector<1x8x8xbf16> to vector<8x8xbf16>
    %cst_163 = arith.constant dense<0.000000e+00> : vector<256x8xf32>
    %113 = tpu.matmul %110, %112, %cst_163 {dimension_numbers = #tpu.dot_dimension_numbers<[1], [0], [0], [1], [0, 0, 1, 1], [], []>} : vector<256x8xbf16>, vector<8x8xbf16>, vector<256x8xf32> -> vector<256x8xf32>
    %114 = arith.addf %108, %113 : vector<256x8xf32>
    %c0_164 = arith.constant 0 : index
    %c2_165 = arith.constant 2 : index
    %c0_166 = arith.constant 0 : index
    %c0_167 = arith.constant 0 : index
    %115 = vector.load %arg6[%c0_164, %c2_165, %c0_166, %c0_167] : memref<1x18x18x8xbf16, #tpu.memory_space<vmem>>, vector<1x16x16x8xbf16>
    %116 = vector.shape_cast %115 : vector<1x16x16x8xbf16> to vector<256x8xbf16>
    %c6_168 = arith.constant 6 : index
    %c0_169 = arith.constant 0 : index
    %c0_170 = arith.constant 0 : index
    %117 = vector.load %arg3[%c6_168, %c0_169, %c0_170] : memref<9x8x8xbf16, #tpu.memory_space<vmem>>, vector<1x8x8xbf16>
    %118 = vector.shape_cast %117 : vector<1x8x8xbf16> to vector<8x8xbf16>
    %cst_171 = arith.constant dense<0.000000e+00> : vector<256x8xf32>
    %119 = tpu.matmul %116, %118, %cst_171 {dimension_numbers = #tpu.dot_dimension_numbers<[1], [0], [0], [1], [0, 0, 1, 1], [], []>} : vector<256x8xbf16>, vector<8x8xbf16>, vector<256x8xf32> -> vector<256x8xf32>
    %120 = arith.addf %114, %119 : vector<256x8xf32>
    %c0_172 = arith.constant 0 : index
    %c2_173 = arith.constant 2 : index
    %c1_174 = arith.constant 1 : index
    %c0_175 = arith.constant 0 : index
    %121 = vector.load %arg6[%c0_172, %c2_173, %c1_174, %c0_175] : memref<1x18x18x8xbf16, #tpu.memory_space<vmem>>, vector<1x16x16x8xbf16>
    %122 = vector.shape_cast %121 : vector<1x16x16x8xbf16> to vector<256x8xbf16>
    %c7_176 = arith.constant 7 : index
    %c0_177 = arith.constant 0 : index
    %c0_178 = arith.constant 0 : index
    %123 = vector.load %arg3[%c7_176, %c0_177, %c0_178] : memref<9x8x8xbf16, #tpu.memory_space<vmem>>, vector<1x8x8xbf16>
    %124 = vector.shape_cast %123 : vector<1x8x8xbf16> to vector<8x8xbf16>
    %cst_179 = arith.constant dense<0.000000e+00> : vector<256x8xf32>
    %125 = tpu.matmul %122, %124, %cst_179 {dimension_numbers = #tpu.dot_dimension_numbers<[1], [0], [0], [1], [0, 0, 1, 1], [], []>} : vector<256x8xbf16>, vector<8x8xbf16>, vector<256x8xf32> -> vector<256x8xf32>
    %126 = arith.addf %120, %125 : vector<256x8xf32>
    %c0_180 = arith.constant 0 : index
    %c2_181 = arith.constant 2 : index
    %c2_182 = arith.constant 2 : index
    %c0_183 = arith.constant 0 : index
    %127 = vector.load %arg6[%c0_180, %c2_181, %c2_182, %c0_183] : memref<1x18x18x8xbf16, #tpu.memory_space<vmem>>, vector<1x16x16x8xbf16>
    %128 = vector.shape_cast %127 : vector<1x16x16x8xbf16> to vector<256x8xbf16>
    %c8_184 = arith.constant 8 : index
    %c0_185 = arith.constant 0 : index
    %c0_186 = arith.constant 0 : index
    %129 = vector.load %arg3[%c8_184, %c0_185, %c0_186] : memref<9x8x8xbf16, #tpu.memory_space<vmem>>, vector<1x8x8xbf16>
    %130 = vector.shape_cast %129 : vector<1x8x8xbf16> to vector<8x8xbf16>
    %cst_187 = arith.constant dense<0.000000e+00> : vector<256x8xf32>
    %131 = tpu.matmul %128, %130, %cst_187 {dimension_numbers = #tpu.dot_dimension_numbers<[1], [0], [0], [1], [0, 0, 1, 1], [], []>} : vector<256x8xbf16>, vector<8x8xbf16>, vector<256x8xf32> -> vector<256x8xf32>
    %132 = arith.addf %126, %131 : vector<256x8xf32>
    %cst_188 = arith.constant 0.000000e+00 : f32
    %133 = vector.broadcast %cst_188 : f32 to vector<256x8xf32>
    %134 = arith.maximumf %132, %133 : vector<256x8xf32>
    %135 = vector.shape_cast %134 : vector<256x8xf32> to vector<1x16x16x8xf32>
    %c0_189 = arith.constant 0 : index
    %c0_190 = arith.constant 0 : index
    %c0_191 = arith.constant 0 : index
    %c0_192 = arith.constant 0 : index
    %136 = vector.load %arg4[%c0_189, %c0_190, %c0_191, %c0_192] : memref<1x16x16x8xf32, #tpu.memory_space<vmem>>, vector<1x16x16x8xf32>
    tpu.vector_store %arg4[%c0_189, %c0_190, %c0_191, %c0_192], %135 {strides = array<i32>} : memref<1x16x16x8xf32, #tpu.memory_space<vmem>>, vector<1x16x16x8xf32>,
    return
  }
  func.func @transform_0(%arg0: i32) -> (i32, i32, i32, i32) {
    %c0_i32 = arith.constant 0 : i32
    %c0_i32_0 = arith.constant 0 : i32
    %c0_i32_1 = arith.constant 0 : i32
    %c0_i32_2 = arith.constant 0 : i32
    return %arg0, %c0_i32, %c0_i32_0, %c0_i32_1 : i32, i32, i32, i32
  }
  func.func @transform_1(%arg0: i32) -> (i32, i32, i32) {
    %c0_i32 = arith.constant 0 : i32
    %c0_i32_0 = arith.constant 0 : i32
    %c0_i32_1 = arith.constant 0 : i32
    %c0_i32_2 = arith.constant 0 : i32
    return %c0_i32, %c0_i32_0, %c0_i32_1 : i32, i32, i32
  }
  func.func @transform_2(%arg0: i32) -> (i32, i32, i32) {
    %c0_i32 = arith.constant 0 : i32
    %c0_i32_0 = arith.constant 0 : i32
    %c0_i32_1 = arith.constant 0 : i32
    %c0_i32_2 = arith.constant 0 : i32
    return %c0_i32, %c0_i32_0, %c0_i32_1 : i32, i32, i32
  }
  func.func @transform_3(%arg0: i32) -> (i32, i32, i32, i32) {
    %c0_i32 = arith.constant 0 : i32
    %c0_i32_0 = arith.constant 0 : i32
    %c0_i32_1 = arith.constant 0 : i32
    %c0_i32_2 = arith.constant 0 : i32
    return %arg0, %c0_i32, %c0_i32_0, %c0_i32_1 : i32, i32, i32, i32
  }
}

</mosaic_0001>

<llo_original>
// kernel: tpu_custom_call.1
$region0: #{tpu_custom_call.1}
  #allocation0 [shape = 'u32[]', space=smem, size = 0x4, offset = 0x4, fixed_abs, tag = 'smem constant byte address 0x4 - core index']
  #allocation1 [shape = 'u32[72,128]{1,0:T(1,128)}', space=vmem, size = 0x9000, scoped, tag = 'internal scratch']
  #allocation2 [shape = 'bf16[1,18,18,4]{3,2,1,0:T(8,128)(2,1)}', space=vmem, size = 0x1b000, scoped, tag = 'scratch operand']
  #allocation3 [shape = 'bf16[1,18,18,8]{3,2,1,0:T(8,128)(2,1)}', space=vmem, size = 0x1b000, scoped, tag = 'scratch operand']
  %s0 = inlined_call_operand.vmem [shape: bf16[2,16,16,4], index: 0, kind: input, shape index: {}]
  %s1 = inlined_call_operand.vmem [shape: bf16[9,4,8], index: 1, kind: input, shape index: {}]
  %s2 = inlined_call_operand.vmem [shape: bf16[9,8,8], index: 2, kind: input, shape index: {}]
  %s3 = inlined_call_operand.vmem [shape: f32[2,16,16,8], index: 3, kind: output, shape index: {}]
  %s4 = sld [smem:[#allocation0]]
  $region45: #{tpu_custom_call.1} parent=0
    _
  %s6 = ssub.s32 1, %s4
  %s7 = scalar_select 0, %s6, %s4
  loop: start=0, step=1, limit=4
  $region2: #{tpu_custom_call.1} parent=0 // loop_pre_header
    _
  $region3: #{tpu_custom_call.1} parent=0 // loop_header
    %s9 = sphi 0, %s13
    %p10 = scmp.ge.s32.totalorder %s9, 4
    %s19 = sphi 0, %s21
    %s22 = sphi 0, %s19
    %s23 = sphi 0, %s22
    %s39 = sphi 0, %s23
    %s43 = sphi 0, %s43
    %s45 = sphi 0, %s43
    %s46 = sphi 0, %s45
    %s60 = sphi 0, %s46
    %s64 = sphi 0, %s64
    %s66 = sphi 0, %s64
    %s67 = sphi 0, %s66
    %s81 = sphi 0, %s67
    %s87 = sphi 0, %s89
    %s90 = sphi 0, %s87
    %s91 = sphi 0, %s90
    %s107 = sphi 0, %s91
  $region4: #{tpu_custom_call.1} parent=0 // loop_header_branch
    %12 = sbr.rel (%p10) target = $region8
  $region5: #{tpu_custom_call.1} parent=0 // loop_body
    %s14 = ssub.s32 %s9, 1
    %s15 = ssub.s32 %s9, 2
    %s16 = sadd.s32 %s9, 1
    %s17 = ssub.s32 %s9, %s16
    %p18 = scmp.eq.s32.totalorder %s17, 0
    %s20 = sadd.s32 %s19, 1
    %s21 = scalar_select %p18, %s19, %s20
    %p24 = pneg %p18
    %p25 = scmp.eq.s32.totalorder %s9, 1
    %p26 = por %p24, %p25
    %p27 = scmp.ne.s32.totalorder %s19, %s22
    %p28 = scmp.eq.s32.totalorder %s9, 0
    %p29 = por %p27, %p28
    %p30 = scmp.ne.s32.totalorder %s19, %s22
    %p31 = scmp.eq.s32.totalorder %s14, 1
    %p32 = por %p30, %p31
    %p33 = scmp.ne.s32.totalorder %s22, %s23
    %p34 = scmp.eq.s32.totalorder %s14, 0
    %p35 = por %p33, %p34
    %p36 = scmp.ne.s32.totalorder %s22, %s23
    %p37 = scmp.eq.s32.totalorder %s15, 1
    %p38 = por %p36, %p37
    %p40 = scmp.ne.s32.totalorder %s23, %s39
    %p41 = scmp.eq.s32.totalorder %s15, 0
    %p42 = por %p40, %p41
    %s44 = sadd.s32 %s43, 1
    %p47 = scmp.eq.s32.totalorder %s9, 1
    %p48 = scmp.ne.s32.totalorder %s43, %s45
    %p49 = scmp.eq.s32.totalorder %s9, 0
    %p50 = por %p48, %p49
    %p51 = scmp.ne.s32.totalorder %s43, %s45
    %p52 = scmp.eq.s32.totalorder %s14, 1
    %p53 = por %p51, %p52
    %p54 = scmp.ne.s32.totalorder %s45, %s46
    %p55 = scmp.eq.s32.totalorder %s14, 0
    %p56 = por %p54, %p55
    %p57 = scmp.ne.s32.totalorder %s45, %s46
    %p58 = scmp.eq.s32.totalorder %s15, 1
    %p59 = por %p57, %p58
    %p61 = scmp.ne.s32.totalorder %s46, %s60
    %p62 = scmp.eq.s32.totalorder %s15, 0
    %p63 = por %p61, %p62
    %s65 = sadd.s32 %s64, 1
    %p68 = scmp.eq.s32.totalorder %s9, 1
    %p69 = scmp.ne.s32.totalorder %s64, %s66
    %p70 = scmp.eq.s32.totalorder %s9, 0
    %p71 = por %p69, %p70
    %p72 = scmp.ne.s32.totalorder %s64, %s66
    %p73 = scmp.eq.s32.totalorder %s14, 1
    %p74 = por %p72, %p73
    %p75 = scmp.ne.s32.totalorder %s66, %s67
    %p76 = scmp.eq.s32.totalorder %s14, 0
    %p77 = por %p75, %p76
    %p78 = scmp.ne.s32.totalorder %s66, %s67
    %p79 = scmp.eq.s32.totalorder %s15, 1
    %p80 = por %p78, %p79
    %p82 = scmp.ne.s32.totalorder %s67, %s81
    %p83 = scmp.eq.s32.totalorder %s15, 0
    %p84 = por %p82, %p83
    %s85 = ssub.s32 %s9, %s16
    %p86 = scmp.eq.s32.totalorder %s85, 0
    %s88 = sadd.s32 %s87, 1
    %s89 = scalar_select %p86, %s87, %s88
    %p92 = pneg %p86
    %p93 = scmp.eq.s32.totalorder %s9, 1
    %p94 = por %p92, %p93
    %p95 = scmp.ne.s32.totalorder %s87, %s90
    %p96 = scmp.eq.s32.totalorder %s9, 0
    %p97 = por %p95, %p96
    %p98 = scmp.ne.s32.totalorder %s87, %s90
    %p99 = scmp.eq.s32.totalorder %s14, 1
    %p100 = por %p98, %p99
    %p101 = scmp.ne.s32.totalorder %s90, %s91
    %p102 = scmp.eq.s32.totalorder %s14, 0
    %p103 = por %p101, %p102
    %p104 = scmp.ne.s32.totalorder %s90, %s91
    %p105 = scmp.eq.s32.totalorder %s15, 1
    %p106 = por %p104, %p105
    %p108 = scmp.ne.s32.totalorder %s91, %s107
    %p109 = scmp.eq.s32.totalorder %s15, 0
    %p110 = por %p108, %p109
    %p111 = scmp.le.s32.totalorder 1, %s9
    %p112 = scmp.lt.s32.totalorder %s9, 3
    %p113 = pnand %p111, %p112
    %p114 = pneg %p113
    // Predicated region
    $region9: #{tpu_custom_call.1} parent=5 // pred_check
      _
    $region10: #{tpu_custom_call.1} parent=5 // pred_check_branch
      %116 = sbr.rel (%p113) target = $region12
    $region11: #{tpu_custom_call.1} parent=5 // pred_region
      %s117 = ssub.s32 %s9, 1
      // Predicated region
      $region13: #{tpu_custom_call.1} parent=11 // pred_check
        %p118 = pneg %p56
      $region14: #{tpu_custom_call.1} parent=11 // pred_check_branch
        %120 = sbr.rel (%p118) target = $region16
      $region15: #{tpu_custom_call.1} parent=11 // pred_region
        _
      $region16: #{tpu_custom_call.1} parent=11 // pred_fallthru
        _
      // Predicated region
      $region17: #{tpu_custom_call.1} parent=11 // pred_check
        %p121 = pneg %p77
      $region18: #{tpu_custom_call.1} parent=11 // pred_check_branch
        %123 = sbr.rel (%p121) target = $region20
      $region19: #{tpu_custom_call.1} parent=11 // pred_region
        _
      $region20: #{tpu_custom_call.1} parent=11 // pred_fallthru
        _
    $region12: #{tpu_custom_call.1} parent=5 // pred_fallthru
      _
    %p124 = scmp.lt.s32.totalorder %s9, 2
    // Predicated region
    $region21: #{tpu_custom_call.1} parent=5 // pred_check
      %p125 = pneg %p124
    $region22: #{tpu_custom_call.1} parent=5 // pred_check_branch
      %127 = sbr.rel (%p125) target = $region24
    $region23: #{tpu_custom_call.1} parent=5 // pred_region
      // Predicated region
      $region25: #{tpu_custom_call.1} parent=23 // pred_check
        %p128 = pneg %p29
      $region26: #{tpu_custom_call.1} parent=23 // pred_check_branch
        %130 = sbr.rel (%p128) target = $region28
      $region27: #{tpu_custom_call.1} parent=23 // pred_region
        %p131 = scmp.lt.s32.totalorder %s9, 1
        %s132 = scalar_select %p131, %s9, 1
        %s133 = smul.addr %s132, 32
        %s134 = smul.addr %s133, 4
        %s135 = scalar_lea.vmem %s0, %s134
      $region28: #{tpu_custom_call.1} parent=23 // pred_fallthru
        _
    $region24: #{tpu_custom_call.1} parent=5 // pred_fallthru
      _
    %p136 = scmp.le.s32.totalorder 1, %s9
    %p137 = scmp.lt.s32.totalorder %s9, 3
    %p138 = pnand %p136, %p137
    %p139 = pneg %p138
    // Predicated region
    $region29: #{tpu_custom_call.1} parent=5 // pred_check
      _
    $region30: #{tpu_custom_call.1} parent=5 // pred_check_branch
      %141 = sbr.rel (%p138) target = $region32
    $region31: #{tpu_custom_call.1} parent=5 // pred_region
      %s142 = ssub.s32 %s9, 1
      %p143 = scmp.lt.s32.totalorder %s14, 1
      %s144 = scalar_select %p143, %s14, 1
      %s145 = smul.addr %s144, 32
      %s146 = smul.addr %s145, 4
      %s147 = scalar_lea.vmem %s0, %s146
      %p148 = pneg %p35
      %p149 = pneg %p32
      %p150 = pneg %p56
      %p151 = pneg %p53
      %p152 = pneg %p77
      %p153 = pneg %p74
      %p154 = pneg %p103
      %p155 = pneg %p100
      %p156 = scmp.lt.s32.totalorder %s14, 1
      %s157 = scalar_select %p156, %s14, 1
      %s158 = smul.addr %s157, 32
      %s159 = smul.addr %s158, 8
      %s160 = scalar_lea.vmem %s3, %s159
      %p161 = scmp.lt.s32.totalorder %s14, 1
      %s162 = scalar_select %p161, %s14, 1
      %s163 = smul.addr %s162, 32
      %s164 = smul.addr %s163, 4
      %s165 = scalar_lea.vmem %s0, %s164
      %p166 = scmp.lt.s32.totalorder %s14, 1
      %s167 = scalar_select %p166, %s14, 1
      %s168 = smul.addr %s167, 32
      %s169 = smul.addr %s168, 8
      %s170 = scalar_lea.vmem %s3, %s169
      %vm172 = vcmask 27648
      %173 = vst.msk [vmem:[#allocation2] sm:$0xf] %vm172, 0
      %174 = vst.msk [vmem:[#allocation2 + $0x4] sm:$0xf] %vm172, 0
      %vm175 = vcmask 24576
      %176 = vst.msk [vmem:[#allocation2 + $0x8] sm:$0x1] %vm175, 0
      %s177 = scalar_lea.vmem [#allocation2], 204
      %178 = vst.msk [vmem:[%s177] sm:$0xf] %vm172, 0
      %179 = vst.msk [vmem:[%s177 + $0x4] sm:$0xf] %vm172, 0
      %180 = vst.msk [vmem:[%s177 + $0x8] sm:$0x1] %vm175, 0
      %vm181 = vcmask 24576
      %vm182 = vsmask.f32 256
      %vm183 = vmand %vm181, %vm182
      %v184 = vld [vmem:[#allocation2] sm:$0x1]
      %v185 = vsel %vm183, 0, %v184
      %186 = vst [vmem:[#allocation2] sm:$0x1] %v185
      %v187 = vld [vmem:[#allocation2 + $0xc] sm:$0x1]
      %v188 = vsel %vm183, 0, %v187
      %189 = vst [vmem:[#allocation2 + $0xc] sm:$0x1] %v188
      %v190 = vld [vmem:[#allocation2 + $0x18] sm:$0x1]
      %v191 = vsel %vm183, 0, %v190
      %192 = vst [vmem:[#allocation2 + $0x18] sm:$0x1] %v191
      %v193 = vld [vmem:[#allocation2 + $0x24] sm:$0x1]
      %v194 = vsel %vm183, 0, %v193
      %195 = vst [vmem:[#allocation2 + $0x24] sm:$0x1] %v194
      %v196 = vld [vmem:[#allocation2 + $0x30] sm:$0x1]
      %v197 = vsel %vm183, 0, %v196
      %198 = vst [vmem:[#allocation2 + $0x30] sm:$0x1] %v197
      %v199 = vld [vmem:[#allocation2 + $0x3c] sm:$0x1]
      %v200 = vsel %vm183, 0, %v199
      %201 = vst [vmem:[#allocation2 + $0x3c] sm:$0x1] %v200
      %v202 = vld [vmem:[#allocation2 + $0x48] sm:$0x1]
      %v203 = vsel %vm183, 0, %v202
      %204 = vst [vmem:[#allocation2 + $0x48] sm:$0x1] %v203
      %v205 = vld [vmem:[#allocation2 + $0x54] sm:$0x1]
      %v206 = vsel %vm183, 0, %v205
      %207 = vst [vmem:[#allocation2 + $0x54] sm:$0x1] %v206
      %v208 = vld [vmem:[#allocation2 + $0x60] sm:$0x1]
      %v209 = vsel %vm183, 0, %v208
      %210 = vst [vmem:[#allocation2 + $0x60] sm:$0x1] %v209
      %v211 = vld [vmem:[#allocation2 + $0x6c] sm:$0x1]
      %v212 = vsel %vm183, 0, %v211
      %213 = vst [vmem:[#allocation2 + $0x6c] sm:$0x1] %v212
      %v214 = vld [vmem:[#allocation2 + $0x78] sm:$0x1]
      %v215 = vsel %vm183, 0, %v214
      %216 = vst [vmem:[#allocation2 + $0x78] sm:$0x1] %v215
      %v217 = vld [vmem:[#allocation2 + $0x84] sm:$0x1]
      %v218 = vsel %vm183, 0, %v217
      %219 = vst [vmem:[#allocation2 + $0x84] sm:$0x1] %v218
      %v220 = vld [vmem:[#allocation2 + $0x90] sm:$0x1]
      %v221 = vsel %vm183, 0, %v220
      %222 = vst [vmem:[#allocation2 + $0x90] sm:$0x1] %v221
      %v223 = vld [vmem:[#allocation2 + $0x9c] sm:$0x1]
      %v224 = vsel %vm183, 0, %v223
      %225 = vst [vmem:[#allocation2 + $0x9c] sm:$0x1] %v224
      %v226 = vld [vmem:[#allocation2 + $0xa8] sm:$0x1]
      %v227 = vsel %vm183, 0, %v226
      %228 = vst [vmem:[#allocation2 + $0xa8] sm:$0x1] %v227
      %v229 = vld [vmem:[#allocation2 + $0xb4] sm:$0x1]
      %v230 = vsel %vm183, 0, %v229
      %231 = vst [vmem:[#allocation2 + $0xb4] sm:$0x1] %v230
      %v232 = vld [vmem:[#allocation2 + $0xc0] sm:$0x1]
      %v233 = vsel %vm183, 0, %v232
      %234 = vst [vmem:[#allocation2 + $0xc0] sm:$0x1] %v233
      %v235 = vld [vmem:[#allocation2 + $0xcc] sm:$0x1]
      %v236 = vsel %vm183, 0, %v235
      %237 = vst [vmem:[#allocation2 + $0xcc] sm:$0x1] %v236
      %vm238 = vsmask.f32 7938
      %vm239 = vmand %vm181, %vm238
      %v240 = vld [vmem:[#allocation2 + $0x8] sm:$0x1]
      %v241 = vsel %vm239, 0, %v240
      %242 = vst [vmem:[#allocation2 + $0x8] sm:$0x1] %v241
      %v243 = vld [vmem:[#allocation2 + $0x14] sm:$0x1]
      %v244 = vsel %vm239, 0, %v243
      %245 = vst [vmem:[#allocation2 + $0x14] sm:$0x1] %v244
      %v246 = vld [vmem:[#allocation2 + $0x20] sm:$0x1]
      %v247 = vsel %vm239, 0, %v246
      %248 = vst [vmem:[#allocation2 + $0x20] sm:$0x1] %v247
      %v249 = vld [vmem:[#allocation2 + $0x2c] sm:$0x1]
      %v250 = vsel %vm239, 0, %v249
      %251 = vst [vmem:[#allocation2 + $0x2c] sm:$0x1] %v250
      %v252 = vld [vmem:[#allocation2 + $0x38] sm:$0x1]
      %v253 = vsel %vm239, 0, %v252
      %254 = vst [vmem:[#allocation2 + $0x38] sm:$0x1] %v253
      %v255 = vld [vmem:[#allocation2 + $0x44] sm:$0x1]
      %v256 = vsel %vm239, 0, %v255
      %257 = vst [vmem:[#allocation2 + $0x44] sm:$0x1] %v256
      %v258 = vld [vmem:[#allocation2 + $0x50] sm:$0x1]
      %v259 = vsel %vm239, 0, %v258
      %260 = vst [vmem:[#allocation2 + $0x50] sm:$0x1] %v259
      %v261 = vld [vmem:[#allocation2 + $0x5c] sm:$0x1]
      %v262 = vsel %vm239, 0, %v261
      %263 = vst [vmem:[#allocation2 + $0x5c] sm:$0x1] %v262
      %v264 = vld [vmem:[#allocation2 + $0x68] sm:$0x1]
      %v265 = vsel %vm239, 0, %v264
      %266 = vst [vmem:[#allocation2 + $0x68] sm:$0x1] %v265
      %v267 = vld [vmem:[#allocation2 + $0x74] sm:$0x1]
      %v268 = vsel %vm239, 0, %v267
      %269 = vst [vmem:[#allocation2 + $0x74] sm:$0x1] %v268
      %v270 = vld [vmem:[#allocation2 + $0x80] sm:$0x1]
      %v271 = vsel %vm239, 0, %v270
      %272 = vst [vmem:[#allocation2 + $0x80] sm:$0x1] %v271
      %v273 = vld [vmem:[#allocation2 + $0x8c] sm:$0x1]
      %v274 = vsel %vm239, 0, %v273
      %275 = vst [vmem:[#allocation2 + $0x8c] sm:$0x1] %v274
      %v276 = vld [vmem:[#allocation2 + $0x98] sm:$0x1]
      %v277 = vsel %vm239, 0, %v276
      %278 = vst [vmem:[#allocation2 + $0x98] sm:$0x1] %v277
      %v279 = vld [vmem:[#allocation2 + $0xa4] sm:$0x1]
      %v280 = vsel %vm239, 0, %v279
      %281 = vst [vmem:[#allocation2 + $0xa4] sm:$0x1] %v280
      %v282 = vld [vmem:[#allocation2 + $0xb0] sm:$0x1]
      %v283 = vsel %vm239, 0, %v282
      %284 = vst [vmem:[#allocation2 + $0xb0] sm:$0x1] %v283
      %v285 = vld [vmem:[#allocation2 + $0xbc] sm:$0x1]
      %v286 = vsel %vm239, 0, %v285
      %287 = vst [vmem:[#allocation2 + $0xbc] sm:$0x1] %v286
      %v288 = vld [vmem:[#allocation2 + $0xc8] sm:$0x1]
      %v289 = vsel %vm239, 0, %v288
      %290 = vst [vmem:[#allocation2 + $0xc8] sm:$0x1] %v289
      %v291 = vld [vmem:[#allocation2 + $0xd4] sm:$0x1]
      %v292 = vsel %vm239, 0, %v291
      %293 = vst [vmem:[#allocation2 + $0xd4] sm:$0x1] %v292
      %vm294 = vcmask 60416
      %295 = vst.msk [vmem:[#allocation3] sm:$0xf] %vm294, 0
      %296 = vst.msk [vmem:[#allocation3 + $0x4] sm:$0xf] %vm294, 0
      %vm297 = vcmask 57344
      %298 = vst.msk [vmem:[#allocation3 + $0x8] sm:$0x1] %vm297, 0
      %s299 = scalar_lea.vmem [#allocation3], 204
      %300 = vst.msk [vmem:[%s299] sm:$0xf] %vm294, 0
      %301 = vst.msk [vmem:[%s299 + $0x4] sm:$0xf] %vm294, 0
      %302 = vst.msk [vmem:[%s299 + $0x8] sm:$0x1] %vm297, 0
      %vm303 = vcmask 57344
      %vm304 = vmand %vm303, %vm182
      %v305 = vld [vmem:[#allocation3] sm:$0x1]
      %v306 = vsel %vm304, 0, %v305
      %307 = vst [vmem:[#allocation3] sm:$0x1] %v306
      %v308 = vld [vmem:[#allocation3 + $0xc] sm:$0x1]
      %v309 = vsel %vm304, 0, %v308
      %310 = vst [vmem:[#allocation3 + $0xc] sm:$0x1] %v309
      %v311 = vld [vmem:[#allocation3 + $0x18] sm:$0x1]
      %v312 = vsel %vm304, 0, %v311
      %313 = vst [vmem:[#allocation3 + $0x18] sm:$0x1] %v312
      %v314 = vld [vmem:[#allocation3 + $0x24] sm:$0x1]
      %v315 = vsel %vm304, 0, %v314
      %316 = vst [vmem:[#allocation3 + $0x24] sm:$0x1] %v315
      %v317 = vld [vmem:[#allocation3 + $0x30] sm:$0x1]
      %v318 = vsel %vm304, 0, %v317
      %319 = vst [vmem:[#allocation3 + $0x30] sm:$0x1] %v318
      %v320 = vld [vmem:[#allocation3 + $0x3c] sm:$0x1]
      %v321 = vsel %vm304, 0, %v320
      %322 = vst [vmem:[#allocation3 + $0x3c] sm:$0x1] %v321
      %v323 = vld [vmem:[#allocation3 + $0x48] sm:$0x1]
      %v324 = vsel %vm304, 0, %v323
      %325 = vst [vmem:[#allocation3 + $0x48] sm:$0x1] %v324
      %v326 = vld [vmem:[#allocation3 + $0x54] sm:$0x1]
      %v327 = vsel %vm304, 0, %v326
      %328 = vst [vmem:[#allocation3 + $0x54] sm:$0x1] %v327
      %v329 = vld [vmem:[#allocation3 + $0x60] sm:$0x1]
      %v330 = vsel %vm304, 0, %v329
      %331 = vst [vmem:[#allocation3 + $0x60] sm:$0x1] %v330
      %v332 = vld [vmem:[#allocation3 + $0x6c] sm:$0x1]
      %v333 = vsel %vm304, 0, %v332
      %334 = vst [vmem:[#allocation3 + $0x6c] sm:$0x1] %v333
      %v335 = vld [vmem:[#allocation3 + $0x78] sm:$0x1]
      %v336 = vsel %vm304, 0, %v335
      %337 = vst [vmem:[#allocation3 + $0x78] sm:$0x1] %v336
      %v338 = vld [vmem:[#allocation3 + $0x84] sm:$0x1]
      %v339 = vsel %vm304, 0, %v338
      %340 = vst [vmem:[#allocation3 + $0x84] sm:$0x1] %v339
      %v341 = vld [vmem:[#allocation3 + $0x90] sm:$0x1]
      %v342 = vsel %vm304, 0, %v341
      %343 = vst [vmem:[#allocation3 + $0x90] sm:$0x1] %v342
      %v344 = vld [vmem:[#allocation3 + $0x9c] sm:$0x1]
      %v345 = vsel %vm304, 0, %v344
      %346 = vst [vmem:[#allocation3 + $0x9c] sm:$0x1] %v345
      %v347 = vld [vmem:[#allocation3 + $0xa8] sm:$0x1]
      %v348 = vsel %vm304, 0, %v347
      %349 = vst [vmem:[#allocation3 + $0xa8] sm:$0x1] %v348
      %v350 = vld [vmem:[#allocation3 + $0xb4] sm:$0x1]
      %v351 = vsel %vm304, 0, %v350
      %352 = vst [vmem:[#allocation3 + $0xb4] sm:$0x1] %v351
      %v353 = vld [vmem:[#allocation3 + $0xc0] sm:$0x1]
      %v354 = vsel %vm304, 0, %v353
      %355 = vst [vmem:[#allocation3 + $0xc0] sm:$0x1] %v354
      %v356 = vld [vmem:[#allocation3 + $0xcc] sm:$0x1]
      %v357 = vsel %vm304, 0, %v356
      %358 = vst [vmem:[#allocation3 + $0xcc] sm:$0x1] %v357
      %vm359 = vmand %vm303, %vm238
      %v360 = vld [vmem:[#allocation3 + $0x8] sm:$0x1]
      %v361 = vsel %vm359, 0, %v360
      %362 = vst [vmem:[#allocation3 + $0x8] sm:$0x1] %v361
      %v363 = vld [vmem:[#allocation3 + $0x14] sm:$0x1]
      %v364 = vsel %vm359, 0, %v363
      %365 = vst [vmem:[#allocation3 + $0x14] sm:$0x1] %v364
      %v366 = vld [vmem:[#allocation3 + $0x20] sm:$0x1]
      %v367 = vsel %vm359, 0, %v366
      %368 = vst [vmem:[#allocation3 + $0x20] sm:$0x1] %v367
      %v369 = vld [vmem:[#allocation3 + $0x2c] sm:$0x1]
      %v370 = vsel %vm359, 0, %v369
      %371 = vst [vmem:[#allocation3 + $0x2c] sm:$0x1] %v370
      %v372 = vld [vmem:[#allocation3 + $0x38] sm:$0x1]
      %v373 = vsel %vm359, 0, %v372
      %374 = vst [vmem:[#allocation3 + $0x38] sm:$0x1] %v373
      %v375 = vld [vmem:[#allocation3 + $0x44] sm:$0x1]
      %v376 = vsel %vm359, 0, %v375
      %377 = vst [vmem:[#allocation3 + $0x44] sm:$0x1] %v376
      %v378 = vld [vmem:[#allocation3 + $0x50] sm:$0x1]
      %v379 = vsel %vm359, 0, %v378
      %380 = vst [vmem:[#allocation3 + $0x50] sm:$0x1] %v379
      %v381 = vld [vmem:[#allocation3 + $0x5c] sm:$0x1]
      %v382 = vsel %vm359, 0, %v381
      %383 = vst [vmem:[#allocation3 + $0x5c] sm:$0x1] %v382
      %v384 = vld [vmem:[#allocation3 + $0x68] sm:$0x1]
      %v385 = vsel %vm359, 0, %v384
      %386 = vst [vmem:[#allocation3 + $0x68] sm:$0x1] %v385
      %v387 = vld [vmem:[#allocation3 + $0x74] sm:$0x1]
      %v388 = vsel %vm359, 0, %v387
      %389 = vst [vmem:[#allocation3 + $0x74] sm:$0x1] %v388
      %v390 = vld [vmem:[#allocation3 + $0x80] sm:$0x1]
      %v391 = vsel %vm359, 0, %v390
      %392 = vst [vmem:[#allocation3 + $0x80] sm:$0x1] %v391
      %v393 = vld [vmem:[#allocation3 + $0x8c] sm:$0x1]
      %v394 = vsel %vm359, 0, %v393
      %395 = vst [vmem:[#allocation3 + $0x8c] sm:$0x1] %v394
      %v396 = vld [vmem:[#allocation3 + $0x98] sm:$0x1]
      %v397 = vsel %vm359, 0, %v396
      %398 = vst [vmem:[#allocation3 + $0x98] sm:$0x1] %v397
      %v399 = vld [vmem:[#allocation3 + $0xa4] sm:$0x1]
      %v400 = vsel %vm359, 0, %v399
      %401 = vst [vmem:[#allocation3 + $0xa4] sm:$0x1] %v400
      %v402 = vld [vmem:[#allocation3 + $0xb0] sm:$0x1]
      %v403 = vsel %vm359, 0, %v402
      %404 = vst [vmem:[#allocation3 + $0xb0] sm:$0x1] %v403
      %v405 = vld [vmem:[#allocation3 + $0xbc] sm:$0x1]
      %v406 = vsel %vm359, 0, %v405
      %407 = vst [vmem:[#allocation3 + $0xbc] sm:$0x1] %v406
      %v408 = vld [vmem:[#allocation3 + $0xc8] sm:$0x1]
      %v409 = vsel %vm359, 0, %v408
      %410 = vst [vmem:[#allocation3 + $0xc8] sm:$0x1] %v409
      %v411 = vld [vmem:[#allocation3 + $0xd4] sm:$0x1]
      %v412 = vsel %vm359, 0, %v411
      %413 = vst [vmem:[#allocation3 + $0xd4] sm:$0x1] %v412
      %v414 = vld [vmem:[%s165] sm:$0xf]
      %v415 = vld [vmem:[%s165 + $0x4] sm:$0xf]
      %v416 = vld [vmem:[%s165 + $0x8] sm:$0xf]
      %v417 = vld [vmem:[%s165 + $0xc] sm:$0xf]
      %v418 = vld [vmem:[%s165 + $0x10] sm:$0xf]
      %v419 = vld [vmem:[%s165 + $0x14] sm:$0xf]
      %v420 = vld [vmem:[%s165 + $0x18] sm:$0xf]
      %v421 = vld [vmem:[%s165 + $0x1c] sm:$0xf]
      %v422 = vld [vmem:[%s165 + $0x20] sm:$0xf]
      %v423 = vld [vmem:[%s165 + $0x24] sm:$0xf]
      %v424 = vld [vmem:[%s165 + $0x28] sm:$0xf]
      %v425 = vld [vmem:[%s165 + $0x2c] sm:$0xf]
      %v426 = vld [vmem:[%s165 + $0x30] sm:$0xf]
      %v427 = vld [vmem:[%s165 + $0x34] sm:$0xf]
      %v428 = vld [vmem:[%s165 + $0x38] sm:$0xf]
      %v429 = vld [vmem:[%s165 + $0x3c] sm:$0xf]
      %v430 = vld [vmem:[%s165 + $0x40] sm:$0xf]
      %v431 = vld [vmem:[%s165 + $0x44] sm:$0xf]
      %v432 = vld [vmem:[%s165 + $0x48] sm:$0xf]
      %v433 = vld [vmem:[%s165 + $0x4c] sm:$0xf]
      %v434 = vld [vmem:[%s165 + $0x50] sm:$0xf]
      %v435 = vld [vmem:[%s165 + $0x54] sm:$0xf]
      %v436 = vld [vmem:[%s165 + $0x58] sm:$0xf]
      %v437 = vld [vmem:[%s165 + $0x5c] sm:$0xf]
      %v438 = vld [vmem:[%s165 + $0x60] sm:$0xf]
      %v439 = vld [vmem:[%s165 + $0x64] sm:$0xf]
      %v440 = vld [vmem:[%s165 + $0x68] sm:$0xf]
      %v441 = vld [vmem:[%s165 + $0x6c] sm:$0xf]
      %v442 = vld [vmem:[%s165 + $0x70] sm:$0xf]
      %v443 = vld [vmem:[%s165 + $0x74] sm:$0xf]
      %v444 = vld [vmem:[%s165 + $0x78] sm:$0xf]
      %v445 = vld [vmem:[%s165 + $0x7c] sm:$0xf]
      %vm446 = vsmask.f32 4368
      %vm447 = vmor %vm182, %vm446
      %v449 = vshrl.u32 %v414, 16
      %v451 = vrot.slane %v449, 7
      %v452 = vshll.u32 %v414, 16
      %v454 = vor.u32 %v451, %v452
      %v455 = vrot.slane %v451, 4
      %v457 = vshrl.u32 %v415, 16
      %v459 = vrot.slane %v457, 7
      %v460 = vshll.u32 %v415, 16
      %v462 = vor.u32 %v459, %v460
      %v463 = vsel %vm447, %v455, %v462
      %v464 = vrot.slane %v459, 4
      %v466 = vshrl.u32 %v416, 16
      %v468 = vrot.slane %v466, 7
      %v469 = vshll.u32 %v416, 16
      %v471 = vor.u32 %v468, %v469
      %v472 = vrot.slane %v468, 4
      %v474 = vshrl.u32 %v417, 16
      %v476 = vrot.slane %v474, 7
      %v477 = vshll.u32 %v417, 16
      %v479 = vor.u32 %v476, %v477
      %v480 = vsel %vm447, %v472, %v479
      %v481 = vrot.slane %v476, 4
      %v483 = vshrl.u32 %v418, 16
      %v485 = vrot.slane %v483, 7
      %v486 = vshll.u32 %v418, 16
      %v488 = vor.u32 %v485, %v486
      %v489 = vrot.slane %v485, 4
      %v491 = vshrl.u32 %v419, 16
      %v493 = vrot.slane %v491, 7
      %v494 = vshll.u32 %v419, 16
      %v496 = vor.u32 %v493, %v494
      %v497 = vsel %vm447, %v489, %v496
      %v498 = vrot.slane %v493, 4
      %v500 = vshrl.u32 %v420, 16
      %v502 = vrot.slane %v500, 7
      %v503 = vshll.u32 %v420, 16
      %v505 = vor.u32 %v502, %v503
      %v506 = vrot.slane %v502, 4
      %v508 = vshrl.u32 %v421, 16
      %v510 = vrot.slane %v508, 7
      %v511 = vshll.u32 %v421, 16
      %v513 = vor.u32 %v510, %v511
      %v514 = vsel %vm447, %v506, %v513
      %v515 = vrot.slane %v510, 4
      %v517 = vshrl.u32 %v422, 16
      %v519 = vrot.slane %v517, 7
      %v520 = vshll.u32 %v422, 16
      %v522 = vor.u32 %v519, %v520
      %v523 = vrot.slane %v519, 4
      %v525 = vshrl.u32 %v423, 16
      %v527 = vrot.slane %v525, 7
      %v528 = vshll.u32 %v423, 16
      %v530 = vor.u32 %v527, %v528
      %v531 = vsel %vm447, %v523, %v530
      %v532 = vrot.slane %v527, 4
      %v534 = vshrl.u32 %v424, 16
      %v536 = vrot.slane %v534, 7
      %v537 = vshll.u32 %v424, 16
      %v539 = vor.u32 %v536, %v537
      %v540 = vrot.slane %v536, 4
      %v542 = vshrl.u32 %v425, 16
      %v544 = vrot.slane %v542, 7
      %v545 = vshll.u32 %v425, 16
      %v547 = vor.u32 %v544, %v545
      %v548 = vsel %vm447, %v540, %v547
      %v549 = vrot.slane %v544, 4
      %v551 = vshrl.u32 %v426, 16
      %v553 = vrot.slane %v551, 7
      %v554 = vshll.u32 %v426, 16
      %v556 = vor.u32 %v553, %v554
      %v557 = vrot.slane %v553, 4
      %v559 = vshrl.u32 %v427, 16
      %v561 = vrot.slane %v559, 7
      %v562 = vshll.u32 %v427, 16
      %v564 = vor.u32 %v561, %v562
      %v565 = vsel %vm447, %v557, %v564
      %v566 = vrot.slane %v561, 4
      %v568 = vshrl.u32 %v428, 16
      %v570 = vrot.slane %v568, 7
      %v571 = vshll.u32 %v428, 16
      %v573 = vor.u32 %v570, %v571
      %v574 = vrot.slane %v570, 4
      %v576 = vshrl.u32 %v429, 16
      %v578 = vrot.slane %v576, 7
      %v579 = vshll.u32 %v429, 16
      %v581 = vor.u32 %v578, %v579
      %v582 = vsel %vm447, %v574, %v581
      %v583 = vrot.slane %v578, 4
      %v585 = vshrl.u32 %v430, 16
      %v587 = vrot.slane %v585, 7
      %v588 = vshll.u32 %v430, 16
      %v590 = vor.u32 %v587, %v588
      %v591 = vrot.slane %v587, 4
      %v593 = vshrl.u32 %v431, 16
      %v595 = vrot.slane %v593, 7
      %v596 = vshll.u32 %v431, 16
      %v598 = vor.u32 %v595, %v596
      %v599 = vsel %vm447, %v591, %v598
      %v600 = vrot.slane %v595, 4
      %v602 = vshrl.u32 %v432, 16
      %v604 = vrot.slane %v602, 7
      %v605 = vshll.u32 %v432, 16
      %v607 = vor.u32 %v604, %v605
      %v608 = vrot.slane %v604, 4
      %v610 = vshrl.u32 %v433, 16
      %v612 = vrot.slane %v610, 7
      %v613 = vshll.u32 %v433, 16
      %v615 = vor.u32 %v612, %v613
      %v616 = vsel %vm447, %v608, %v615
      %v617 = vrot.slane %v612, 4
      %v619 = vshrl.u32 %v434, 16
      %v621 = vrot.slane %v619, 7
      %v622 = vshll.u32 %v434, 16
      %v624 = vor.u32 %v621, %v622
      %v625 = vrot.slane %v621, 4
      %v627 = vshrl.u32 %v435, 16
      %v629 = vrot.slane %v627, 7
      %v630 = vshll.u32 %v435, 16
      %v632 = vor.u32 %v629, %v630
      %v633 = vsel %vm447, %v625, %v632
      %v634 = vrot.slane %v629, 4
      %v636 = vshrl.u32 %v436, 16
      %v638 = vrot.slane %v636, 7
      %v639 = vshll.u32 %v436, 16
      %v641 = vor.u32 %v638, %v639
      %v642 = vrot.slane %v638, 4
      %v644 = vshrl.u32 %v437, 16
      %v646 = vrot.slane %v644, 7
      %v647 = vshll.u32 %v437, 16
      %v649 = vor.u32 %v646, %v647
      %v650 = vsel %vm447, %v642, %v649
      %v651 = vrot.slane %v646, 4
      %v653 = vshrl.u32 %v438, 16
      %v655 = vrot.slane %v653, 7
      %v656 = vshll.u32 %v438, 16
      %v658 = vor.u32 %v655, %v656
      %v659 = vrot.slane %v655, 4
      %v661 = vshrl.u32 %v439, 16
      %v663 = vrot.slane %v661, 7
      %v664 = vshll.u32 %v439, 16
      %v666 = vor.u32 %v663, %v664
      %v667 = vsel %vm447, %v659, %v666
      %v668 = vrot.slane %v663, 4
      %v670 = vshrl.u32 %v440, 16
      %v672 = vrot.slane %v670, 7
      %v673 = vshll.u32 %v440, 16
      %v675 = vor.u32 %v672, %v673
      %v676 = vrot.slane %v672, 4
      %v678 = vshrl.u32 %v441, 16
      %v680 = vrot.slane %v678, 7
      %v681 = vshll.u32 %v441, 16
      %v683 = vor.u32 %v680, %v681
      %v684 = vsel %vm447, %v676, %v683
      %v685 = vrot.slane %v680, 4
      %v687 = vshrl.u32 %v442, 16
      %v689 = vrot.slane %v687, 7
      %v690 = vshll.u32 %v442, 16
      %v692 = vor.u32 %v689, %v690
      %v693 = vrot.slane %v689, 4
      %v695 = vshrl.u32 %v443, 16
      %v697 = vrot.slane %v695, 7
      %v698 = vshll.u32 %v443, 16
      %v700 = vor.u32 %v697, %v698
      %v701 = vsel %vm447, %v693, %v700
      %v702 = vrot.slane %v697, 4
      %v704 = vshrl.u32 %v444, 16
      %v706 = vrot.slane %v704, 7
      %v707 = vshll.u32 %v444, 16
      %v709 = vor.u32 %v706, %v707
      %v710 = vrot.slane %v706, 4
      %v712 = vshrl.u32 %v445, 16
      %v714 = vrot.slane %v712, 7
      %v715 = vshll.u32 %v445, 16
      %v717 = vor.u32 %v714, %v715
      %v718 = vsel %vm447, %v710, %v717
      %v719 = vrot.slane %v714, 4
      %s768 = scalar_lea.vmem [#allocation2], 12
      %vm769 = vcmask 27648
      %vm770 = vmand %vm769, %vm238
      %v771 = vld [vmem:[%s768] sm:$0xf]
      %v772 = vsel %vm770, %v454, %v771
      %773 = vst [vmem:[%s768] sm:$0xf] %v772
      %774 = vst.msk [vmem:[%s768 + $0x4] sm:$0xf] %vm172, %v463
      %v775 = vld [vmem:[%s768 + $0x8] sm:$0x1]
      %v776 = vsel %vm183, %v464, %v775
      %777 = vst [vmem:[%s768 + $0x8] sm:$0x1] %v776
      %v778 = vld [vmem:[%s768 + $0xc] sm:$0xf]
      %v779 = vsel %vm770, %v471, %v778
      %780 = vst [vmem:[%s768 + $0xc] sm:$0xf] %v779
      %781 = vst.msk [vmem:[%s768 + $0x10] sm:$0xf] %vm172, %v480
      %v782 = vld [vmem:[%s768 + $0x14] sm:$0x1]
      %v783 = vsel %vm183, %v481, %v782
      %784 = vst [vmem:[%s768 + $0x14] sm:$0x1] %v783
      %v785 = vld [vmem:[%s768 + $0x18] sm:$0xf]
      %v786 = vsel %vm770, %v488, %v785
      %787 = vst [vmem:[%s768 + $0x18] sm:$0xf] %v786
      %788 = vst.msk [vmem:[%s768 + $0x1c] sm:$0xf] %vm172, %v497
      %v789 = vld [vmem:[%s768 + $0x20] sm:$0x1]
      %v790 = vsel %vm183, %v498, %v789
      %791 = vst [vmem:[%s768 + $0x20] sm:$0x1] %v790
      %v792 = vld [vmem:[%s768 + $0x24] sm:$0xf]
      %v793 = vsel %vm770, %v505, %v792
      %794 = vst [vmem:[%s768 + $0x24] sm:$0xf] %v793
      %795 = vst.msk [vmem:[%s768 + $0x28] sm:$0xf] %vm172, %v514
      %v796 = vld [vmem:[%s768 + $0x2c] sm:$0x1]
      %v797 = vsel %vm183, %v515, %v796
      %798 = vst [vmem:[%s768 + $0x2c] sm:$0x1] %v797
      %v799 = vld [vmem:[%s768 + $0x30] sm:$0xf]
      %v800 = vsel %vm770, %v522, %v799
      %801 = vst [vmem:[%s768 + $0x30] sm:$0xf] %v800
      %802 = vst.msk [vmem:[%s768 + $0x34] sm:$0xf] %vm172, %v531
      %v803 = vld [vmem:[%s768 + $0x38] sm:$0x1]
      %v804 = vsel %vm183, %v532, %v803
      %805 = vst [vmem:[%s768 + $0x38] sm:$0x1] %v804
      %v806 = vld [vmem:[%s768 + $0x3c] sm:$0xf]
      %v807 = vsel %vm770, %v539, %v806
      %808 = vst [vmem:[%s768 + $0x3c] sm:$0xf] %v807
      %809 = vst.msk [vmem:[%s768 + $0x40] sm:$0xf] %vm172, %v548
      %v810 = vld [vmem:[%s768 + $0x44] sm:$0x1]
      %v811 = vsel %vm183, %v549, %v810
      %812 = vst [vmem:[%s768 + $0x44] sm:$0x1] %v811
      %v813 = vld [vmem:[%s768 + $0x48] sm:$0xf]
      %v814 = vsel %vm770, %v556, %v813
      %815 = vst [vmem:[%s768 + $0x48] sm:$0xf] %v814
      %816 = vst.msk [vmem:[%s768 + $0x4c] sm:$0xf] %vm172, %v565
      %v817 = vld [vmem:[%s768 + $0x50] sm:$0x1]
      %v818 = vsel %vm183, %v566, %v817
      %819 = vst [vmem:[%s768 + $0x50] sm:$0x1] %v818
      %v820 = vld [vmem:[%s768 + $0x54] sm:$0xf]
      %v821 = vsel %vm770, %v573, %v820
      %822 = vst [vmem:[%s768 + $0x54] sm:$0xf] %v821
      %823 = vst.msk [vmem:[%s768 + $0x58] sm:$0xf] %vm172, %v582
      %v824 = vld [vmem:[%s768 + $0x5c] sm:$0x1]
      %v825 = vsel %vm183, %v583, %v824
      %826 = vst [vmem:[%s768 + $0x5c] sm:$0x1] %v825
      %v827 = vld [vmem:[%s768 + $0x60] sm:$0xf]
      %v828 = vsel %vm770, %v590, %v827
      %829 = vst [vmem:[%s768 + $0x60] sm:$0xf] %v828
      %830 = vst.msk [vmem:[%s768 + $0x64] sm:$0xf] %vm172, %v599
      %v831 = vld [vmem:[%s768 + $0x68] sm:$0x1]
      %v832 = vsel %vm183, %v600, %v831
      %833 = vst [vmem:[%s768 + $0x68] sm:$0x1] %v832
      %v834 = vld [vmem:[%s768 + $0x6c] sm:$0xf]
      %v835 = vsel %vm770, %v607, %v834
      %836 = vst [vmem:[%s768 + $0x6c] sm:$0xf] %v835
      %837 = vst.msk [vmem:[%s768 + $0x70] sm:$0xf] %vm172, %v616
      %v838 = vld [vmem:[%s768 + $0x74] sm:$0x1]
      %v839 = vsel %vm183, %v617, %v838
      %840 = vst [vmem:[%s768 + $0x74] sm:$0x1] %v839
      %v841 = vld [vmem:[%s768 + $0x78] sm:$0xf]
      %v842 = vsel %vm770, %v624, %v841
      %843 = vst [vmem:[%s768 + $0x78] sm:$0xf] %v842
      %844 = vst.msk [vmem:[%s768 + $0x7c] sm:$0xf] %vm172, %v633
      %v845 = vld [vmem:[%s768 + $0x80] sm:$0x1]
      %v846 = vsel %vm183, %v634, %v845
      %847 = vst [vmem:[%s768 + $0x80] sm:$0x1] %v846
      %v848 = vld [vmem:[%s768 + $0x84] sm:$0xf]
      %v849 = vsel %vm770, %v641, %v848
      %850 = vst [vmem:[%s768 + $0x84] sm:$0xf] %v849
      %851 = vst.msk [vmem:[%s768 + $0x88] sm:$0xf] %vm172, %v650
      %v852 = vld [vmem:[%s768 + $0x8c] sm:$0x1]
      %v853 = vsel %vm183, %v651, %v852
      %854 = vst [vmem:[%s768 + $0x8c] sm:$0x1] %v853
      %v855 = vld [vmem:[%s768 + $0x90] sm:$0xf]
      %v856 = vsel %vm770, %v658, %v855
      %857 = vst [vmem:[%s768 + $0x90] sm:$0xf] %v856
      %858 = vst.msk [vmem:[%s768 + $0x94] sm:$0xf] %vm172, %v667
      %v859 = vld [vmem:[%s768 + $0x98] sm:$0x1]
      %v860 = vsel %vm183, %v668, %v859
      %861 = vst [vmem:[%s768 + $0x98] sm:$0x1] %v860
      %v862 = vld [vmem:[%s768 + $0x9c] sm:$0xf]
      %v863 = vsel %vm770, %v675, %v862
      %864 = vst [vmem:[%s768 + $0x9c] sm:$0xf] %v863
      %865 = vst.msk [vmem:[%s768 + $0xa0] sm:$0xf] %vm172, %v684
      %v866 = vld [vmem:[%s768 + $0xa4] sm:$0x1]
      %v867 = vsel %vm183, %v685, %v866
      %868 = vst [vmem:[%s768 + $0xa4] sm:$0x1] %v867
      %v869 = vld [vmem:[%s768 + $0xa8] sm:$0xf]
      %v870 = vsel %vm770, %v692, %v869
      %871 = vst [vmem:[%s768 + $0xa8] sm:$0xf] %v870
      %872 = vst.msk [vmem:[%s768 + $0xac] sm:$0xf] %vm172, %v701
      %v873 = vld [vmem:[%s768 + $0xb0] sm:$0x1]
      %v874 = vsel %vm183, %v702, %v873
      %875 = vst [vmem:[%s768 + $0xb0] sm:$0x1] %v874
      %v876 = vld [vmem:[%s768 + $0xb4] sm:$0xf]
      %v877 = vsel %vm770, %v709, %v876
      %878 = vst [vmem:[%s768 + $0xb4] sm:$0xf] %v877
      %879 = vst.msk [vmem:[%s768 + $0xb8] sm:$0xf] %vm172, %v718
      %v880 = vld [vmem:[%s768 + $0xbc] sm:$0x1]
      %v881 = vsel %vm183, %v719, %v880
      %882 = vst [vmem:[%s768 + $0xbc] sm:$0x1] %v881
      %v883 = vld [vmem:[#allocation2] sm:$0xf]
      %v884 = vld [vmem:[#allocation2 + $0x4] sm:$0xf]
      %v885 = vld [vmem:[#allocation2 + $0xc] sm:$0xf]
      %v886 = vld [vmem:[#allocation2 + $0x10] sm:$0xf]
      %v887 = vld [vmem:[#allocation2 + $0x18] sm:$0xf]
      %v888 = vld [vmem:[#allocation2 + $0x1c] sm:$0xf]
      %v889 = vld [vmem:[#allocation2 + $0x24] sm:$0xf]
      %v890 = vld [vmem:[#allocation2 + $0x28] sm:$0xf]
      %v891 = vld [vmem:[#allocation2 + $0x30] sm:$0xf]
      %v892 = vld [vmem:[#allocation2 + $0x34] sm:$0xf]
      %v893 = vld [vmem:[#allocation2 + $0x3c] sm:$0xf]
      %v894 = vld [vmem:[#allocation2 + $0x40] sm:$0xf]
      %v895 = vld [vmem:[#allocation2 + $0x48] sm:$0xf]
      %v896 = vld [vmem:[#allocation2 + $0x4c] sm:$0xf]
      %v897 = vld [vmem:[#allocation2 + $0x54] sm:$0xf]
      %v898 = vld [vmem:[#allocation2 + $0x58] sm:$0xf]
      %v899 = vld [vmem:[#allocation2 + $0x60] sm:$0xf]
      %v900 = vld [vmem:[#allocation2 + $0x64] sm:$0xf]
      %v901 = vld [vmem:[#allocation2 + $0x6c] sm:$0xf]
      %v902 = vld [vmem:[#allocation2 + $0x70] sm:$0xf]
      %v903 = vld [vmem:[#allocation2 + $0x78] sm:$0xf]
      %v904 = vld [vmem:[#allocation2 + $0x7c] sm:$0xf]
      %v905 = vld [vmem:[#allocation2 + $0x84] sm:$0xf]
      %v906 = vld [vmem:[#allocation2 + $0x88] sm:$0xf]
      %v907 = vld [vmem:[#allocation2 + $0x90] sm:$0xf]
      %v908 = vld [vmem:[#allocation2 + $0x94] sm:$0xf]
      %v909 = vld [vmem:[#allocation2 + $0x9c] sm:$0xf]
      %v910 = vld [vmem:[#allocation2 + $0xa0] sm:$0xf]
      %v911 = vld [vmem:[#allocation2 + $0xa8] sm:$0xf]
      %v912 = vld [vmem:[#allocation2 + $0xac] sm:$0xf]
      %v913 = vld [vmem:[#allocation2 + $0xb4] sm:$0xf]
      %v914 = vld [vmem:[#allocation2 + $0xb8] sm:$0xf]
      %v915 = vld [vmem:[%s1] sm:$0x3]
      %v916 = vld [vmem:[#allocation2 + $0x8] sm:$0x1]
      %v917 = vld [vmem:[#allocation2 + $0x14] sm:$0x1]
      %v918 = vld [vmem:[#allocation2 + $0x20] sm:$0x1]
      %v919 = vld [vmem:[#allocation2 + $0x2c] sm:$0x1]
      %v920 = vld [vmem:[#allocation2 + $0x38] sm:$0x1]
      %v921 = vld [vmem:[#allocation2 + $0x44] sm:$0x1]
      %v922 = vld [vmem:[#allocation2 + $0x50] sm:$0x1]
      %v923 = vld [vmem:[#allocation2 + $0x5c] sm:$0x1]
      %v924 = vld [vmem:[#allocation2 + $0x68] sm:$0x1]
      %v925 = vld [vmem:[#allocation2 + $0x74] sm:$0x1]
      %v926 = vld [vmem:[#allocation2 + $0x80] sm:$0x1]
      %v927 = vld [vmem:[#allocation2 + $0x8c] sm:$0x1]
      %v928 = vld [vmem:[#allocation2 + $0x98] sm:$0x1]
      %v929 = vld [vmem:[#allocation2 + $0xa4] sm:$0x1]
      %v930 = vld [vmem:[#allocation2 + $0xb0] sm:$0x1]
      %v931 = vld [vmem:[#allocation2 + $0xbc] sm:$0x1]
      %vm932 = vsmask.f32 3328
      %vm933 = vsmask.f32 7440
      %vm934 = vmor %vm932, %vm933
      %v936 = vshrl.u32 %v883, 16
      %v938 = vrot.slane %v936, 4
      %v939 = vshll.u32 %v883, 16
      %v941 = vrot.slane %v939, 5
      %v942 = vor.u32 %v938, %v941
      %v943 = vrot.slane %v942, 4
      %v945 = vshll.u32 %v884, 16
      %v947 = vrot.slane %v945, 5
      %v948 = vsel %vm934, %v943, %v947
      %v949 = vshrl.u32 %v884, 16
      %v951 = vrot.slane %v949, 4
      %v952 = vor.u32 %v951, %v947
      %v953 = vrot.slane %v952, 4
      %v955 = vshll.u32 %v916, 16
      %v957 = vrot.slane %v955, 5
      %v958 = vsel %vm934, %v953, %v957
      %v960 = vshrl.u32 %v885, 16
      %v962 = vrot.slane %v960, 4
      %v963 = vshll.u32 %v885, 16
      %v965 = vrot.slane %v963, 5
      %v966 = vor.u32 %v962, %v965
      %v967 = vrot.slane %v966, 4
      %v969 = vshll.u32 %v886, 16
      %v971 = vrot.slane %v969, 5
      %v972 = vsel %vm934, %v967, %v971
      %v973 = vshrl.u32 %v886, 16
      %v975 = vrot.slane %v973, 4
      %v976 = vor.u32 %v975, %v971
      %v977 = vrot.slane %v976, 4
      %v979 = vshll.u32 %v917, 16
      %v981 = vrot.slane %v979, 5
      %v982 = vsel %vm934, %v977, %v981
      %v984 = vshrl.u32 %v887, 16
      %v986 = vrot.slane %v984, 4
      %v987 = vshll.u32 %v887, 16
      %v989 = vrot.slane %v987, 5
      %v990 = vor.u32 %v986, %v989
      %v991 = vrot.slane %v990, 4
      %v993 = vshll.u32 %v888, 16
      %v995 = vrot.slane %v993, 5
      %v996 = vsel %vm934, %v991, %v995
      %v997 = vshrl.u32 %v888, 16
      %v999 = vrot.slane %v997, 4
      %v1000 = vor.u32 %v999, %v995
      %v1001 = vrot.slane %v1000, 4
      %v1003 = vshll.u32 %v918, 16
      %v1005 = vrot.slane %v1003, 5
      %v1006 = vsel %vm934, %v1001, %v1005
      %v1008 = vshrl.u32 %v889, 16
      %v1010 = vrot.slane %v1008, 4
      %v1011 = vshll.u32 %v889, 16
      %v1013 = vrot.slane %v1011, 5
      %v1014 = vor.u32 %v1010, %v1013
      %v1015 = vrot.slane %v1014, 4
      %v1017 = vshll.u32 %v890, 16
      %v1019 = vrot.slane %v1017, 5
      %v1020 = vsel %vm934, %v1015, %v1019
      %v1021 = vshrl.u32 %v890, 16
      %v1023 = vrot.slane %v1021, 4
      %v1024 = vor.u32 %v1023, %v1019
      %v1025 = vrot.slane %v1024, 4
      %v1027 = vshll.u32 %v919, 16
      %v1029 = vrot.slane %v1027, 5
      %v1030 = vsel %vm934, %v1025, %v1029
      %v1032 = vshrl.u32 %v891, 16
      %v1034 = vrot.slane %v1032, 4
      %v1035 = vshll.u32 %v891, 16
      %v1037 = vrot.slane %v1035, 5
      %v1038 = vor.u32 %v1034, %v1037
      %v1039 = vrot.slane %v1038, 4
      %v1041 = vshll.u32 %v892, 16
      %v1043 = vrot.slane %v1041, 5
      %v1044 = vsel %vm934, %v1039, %v1043
      %v1045 = vshrl.u32 %v892, 16
      %v1047 = vrot.slane %v1045, 4
      %v1048 = vor.u32 %v1047, %v1043
      %v1049 = vrot.slane %v1048, 4
      %v1051 = vshll.u32 %v920, 16
      %v1053 = vrot.slane %v1051, 5
      %v1054 = vsel %vm934, %v1049, %v1053
      %v1056 = vshrl.u32 %v893, 16
      %v1058 = vrot.slane %v1056, 4
      %v1059 = vshll.u32 %v893, 16
      %v1061 = vrot.slane %v1059, 5
      %v1062 = vor.u32 %v1058, %v1061
      %v1063 = vrot.slane %v1062, 4
      %v1065 = vshll.u32 %v894, 16
      %v1067 = vrot.slane %v1065, 5
      %v1068 = vsel %vm934, %v1063, %v1067
      %v1069 = vshrl.u32 %v894, 16
      %v1071 = vrot.slane %v1069, 4
      %v1072 = vor.u32 %v1071, %v1067
      %v1073 = vrot.slane %v1072, 4
      %v1075 = vshll.u32 %v921, 16
      %v1077 = vrot.slane %v1075, 5
      %v1078 = vsel %vm934, %v1073, %v1077
      %v1080 = vshrl.u32 %v895, 16
      %v1082 = vrot.slane %v1080, 4
      %v1083 = vshll.u32 %v895, 16
      %v1085 = vrot.slane %v1083, 5
      %v1086 = vor.u32 %v1082, %v1085
      %v1087 = vrot.slane %v1086, 4
      %v1089 = vshll.u32 %v896, 16
      %v1091 = vrot.slane %v1089, 5
      %v1092 = vsel %vm934, %v1087, %v1091
      %v1093 = vshrl.u32 %v896, 16
      %v1095 = vrot.slane %v1093, 4
      %v1096 = vor.u32 %v1095, %v1091
      %v1097 = vrot.slane %v1096, 4
      %v1099 = vshll.u32 %v922, 16
      %v1101 = vrot.slane %v1099, 5
      %v1102 = vsel %vm934, %v1097, %v1101
      %v1104 = vshrl.u32 %v897, 16
      %v1106 = vrot.slane %v1104, 4
      %v1107 = vshll.u32 %v897, 16
      %v1109 = vrot.slane %v1107, 5
      %v1110 = vor.u32 %v1106, %v1109
      %v1111 = vrot.slane %v1110, 4
      %v1113 = vshll.u32 %v898, 16
      %v1115 = vrot.slane %v1113, 5
      %v1116 = vsel %vm934, %v1111, %v1115
      %v1117 = vshrl.u32 %v898, 16
      %v1119 = vrot.slane %v1117, 4
      %v1120 = vor.u32 %v1119, %v1115
      %v1121 = vrot.slane %v1120, 4
      %v1123 = vshll.u32 %v923, 16
      %v1125 = vrot.slane %v1123, 5
      %v1126 = vsel %vm934, %v1121, %v1125
      %v1128 = vshrl.u32 %v899, 16
      %v1130 = vrot.slane %v1128, 4
      %v1131 = vshll.u32 %v899, 16
      %v1133 = vrot.slane %v1131, 5
      %v1134 = vor.u32 %v1130, %v1133
      %v1135 = vrot.slane %v1134, 4
      %v1137 = vshll.u32 %v900, 16
      %v1139 = vrot.slane %v1137, 5
      %v1140 = vsel %vm934, %v1135, %v1139
      %v1141 = vshrl.u32 %v900, 16
      %v1143 = vrot.slane %v1141, 4
      %v1144 = vor.u32 %v1143, %v1139
      %v1145 = vrot.slane %v1144, 4
      %v1147 = vshll.u32 %v924, 16
      %v1149 = vrot.slane %v1147, 5
      %v1150 = vsel %vm934, %v1145, %v1149
      %v1152 = vshrl.u32 %v901, 16
      %v1154 = vrot.slane %v1152, 4
      %v1155 = vshll.u32 %v901, 16
      %v1157 = vrot.slane %v1155, 5
      %v1158 = vor.u32 %v1154, %v1157
      %v1159 = vrot.slane %v1158, 4
      %v1161 = vshll.u32 %v902, 16
      %v1163 = vrot.slane %v1161, 5
      %v1164 = vsel %vm934, %v1159, %v1163
      %v1165 = vshrl.u32 %v902, 16
      %v1167 = vrot.slane %v1165, 4
      %v1168 = vor.u32 %v1167, %v1163
      %v1169 = vrot.slane %v1168, 4
      %v1171 = vshll.u32 %v925, 16
      %v1173 = vrot.slane %v1171, 5
      %v1174 = vsel %vm934, %v1169, %v1173
      %v1176 = vshrl.u32 %v903, 16
      %v1178 = vrot.slane %v1176, 4
      %v1179 = vshll.u32 %v903, 16
      %v1181 = vrot.slane %v1179, 5
      %v1182 = vor.u32 %v1178, %v1181
      %v1183 = vrot.slane %v1182, 4
      %v1185 = vshll.u32 %v904, 16
      %v1187 = vrot.slane %v1185, 5
      %v1188 = vsel %vm934, %v1183, %v1187
      %v1189 = vshrl.u32 %v904, 16
      %v1191 = vrot.slane %v1189, 4
      %v1192 = vor.u32 %v1191, %v1187
      %v1193 = vrot.slane %v1192, 4
      %v1195 = vshll.u32 %v926, 16
      %v1197 = vrot.slane %v1195, 5
      %v1198 = vsel %vm934, %v1193, %v1197
      %v1200 = vshrl.u32 %v905, 16
      %v1202 = vrot.slane %v1200, 4
      %v1203 = vshll.u32 %v905, 16
      %v1205 = vrot.slane %v1203, 5
      %v1206 = vor.u32 %v1202, %v1205
      %v1207 = vrot.slane %v1206, 4
      %v1209 = vshll.u32 %v906, 16
      %v1211 = vrot.slane %v1209, 5
      %v1212 = vsel %vm934, %v1207, %v1211
      %v1213 = vshrl.u32 %v906, 16
      %v1215 = vrot.slane %v1213, 4
      %v1216 = vor.u32 %v1215, %v1211
      %v1217 = vrot.slane %v1216, 4
      %v1219 = vshll.u32 %v927, 16
      %v1221 = vrot.slane %v1219, 5
      %v1222 = vsel %vm934, %v1217, %v1221
      %v1224 = vshrl.u32 %v907, 16
      %v1226 = vrot.slane %v1224, 4
      %v1227 = vshll.u32 %v907, 16
      %v1229 = vrot.slane %v1227, 5
      %v1230 = vor.u32 %v1226, %v1229
      %v1231 = vrot.slane %v1230, 4
      %v1233 = vshll.u32 %v908, 16
      %v1235 = vrot.slane %v1233, 5
      %v1236 = vsel %vm934, %v1231, %v1235
      %v1237 = vshrl.u32 %v908, 16
      %v1239 = vrot.slane %v1237, 4
      %v1240 = vor.u32 %v1239, %v1235
      %v1241 = vrot.slane %v1240, 4
      %v1243 = vshll.u32 %v928, 16
      %v1245 = vrot.slane %v1243, 5
      %v1246 = vsel %vm934, %v1241, %v1245
      %v1248 = vshrl.u32 %v909, 16
      %v1250 = vrot.slane %v1248, 4
      %v1251 = vshll.u32 %v909, 16
      %v1253 = vrot.slane %v1251, 5
      %v1254 = vor.u32 %v1250, %v1253
      %v1255 = vrot.slane %v1254, 4
      %v1257 = vshll.u32 %v910, 16
      %v1259 = vrot.slane %v1257, 5
      %v1260 = vsel %vm934, %v1255, %v1259
      %v1261 = vshrl.u32 %v910, 16
      %v1263 = vrot.slane %v1261, 4
      %v1264 = vor.u32 %v1263, %v1259
      %v1265 = vrot.slane %v1264, 4
      %v1267 = vshll.u32 %v929, 16
      %v1269 = vrot.slane %v1267, 5
      %v1270 = vsel %vm934, %v1265, %v1269
      %v1272 = vshrl.u32 %v911, 16
      %v1274 = vrot.slane %v1272, 4
      %v1275 = vshll.u32 %v911, 16
      %v1277 = vrot.slane %v1275, 5
      %v1278 = vor.u32 %v1274, %v1277
      %v1279 = vrot.slane %v1278, 4
      %v1281 = vshll.u32 %v912, 16
      %v1283 = vrot.slane %v1281, 5
      %v1284 = vsel %vm934, %v1279, %v1283
      %v1285 = vshrl.u32 %v912, 16
      %v1287 = vrot.slane %v1285, 4
      %v1288 = vor.u32 %v1287, %v1283
      %v1289 = vrot.slane %v1288, 4
      %v1291 = vshll.u32 %v930, 16
      %v1293 = vrot.slane %v1291, 5
      %v1294 = vsel %vm934, %v1289, %v1293
      %v1296 = vshrl.u32 %v913, 16
      %v1298 = vrot.slane %v1296, 4
      %v1299 = vshll.u32 %v913, 16
      %v1301 = vrot.slane %v1299, 5
      %v1302 = vor.u32 %v1298, %v1301
      %v1303 = vrot.slane %v1302, 4
      %v1305 = vshll.u32 %v914, 16
      %v1307 = vrot.slane %v1305, 5
      %v1308 = vsel %vm934, %v1303, %v1307
      %v1309 = vshrl.u32 %v914, 16
      %v1311 = vrot.slane %v1309, 4
      %v1312 = vor.u32 %v1311, %v1307
      %v1313 = vrot.slane %v1312, 4
      %v1315 = vshll.u32 %v931, 16
      %v1317 = vrot.slane %v1315, 5
      %v1318 = vsel %vm934, %v1313, %v1317
      %s1319 = scalar_lea.vmem %s1, 2
      %v1320 = vld [vmem:[%s1319] sm:$0x3]
      %v1321 = vunpack.c.l.b16 %v948
      %v1322 = vunpack.c.l.b16 %v958
      %v1323 = vunpack.c.l.b16 %v972
      %v1324 = vunpack.c.l.b16 %v982
      %v1325 = vunpack.c.l.b16 %v996
      %v1326 = vunpack.c.l.b16 %v1006
      %v1327 = vunpack.c.l.b16 %v1020
      %v1328 = vunpack.c.l.b16 %v1030
      %v1329 = vunpack.c.l.b16 %v1044
      %v1330 = vunpack.c.l.b16 %v1054
      %v1331 = vunpack.c.l.b16 %v1068
      %v1332 = vunpack.c.l.b16 %v1078
      %v1333 = vunpack.c.l.b16 %v1092
      %v1334 = vunpack.c.l.b16 %v1102
      %v1335 = vunpack.c.l.b16 %v1116
      %v1336 = vunpack.c.l.b16 %v1126
      %v1337 = vunpack.c.l.b16 %v1140
      %v1338 = vunpack.c.l.b16 %v1150
      %v1339 = vunpack.c.l.b16 %v1164
      %v1340 = vunpack.c.l.b16 %v1174
      %v1341 = vunpack.c.l.b16 %v1188
      %v1342 = vunpack.c.l.b16 %v1198
      %v1343 = vunpack.c.l.b16 %v1212
      %v1344 = vunpack.c.l.b16 %v1222
      %v1345 = vunpack.c.l.b16 %v1236
      %v1346 = vunpack.c.l.b16 %v1246
      %v1347 = vunpack.c.l.b16 %v1260
      %v1348 = vunpack.c.l.b16 %v1270
      %v1349 = vunpack.c.l.b16 %v1284
      %v1350 = vunpack.c.l.b16 %v1294
      %v1351 = vunpack.c.l.b16 %v1308
      %v1352 = vunpack.c.l.b16 %v1318
      %v1353 = vpack.c.b16 %v1322, %v1321
      %v1354 = vpack.c.b16 %v1324, %v1323
      %v1355 = vpack.c.b16 %v1326, %v1325
      %v1356 = vpack.c.b16 %v1328, %v1327
      %v1357 = vpack.c.b16 %v1330, %v1329
      %v1358 = vpack.c.b16 %v1332, %v1331
      %v1359 = vpack.c.b16 %v1334, %v1333
      %v1360 = vpack.c.b16 %v1336, %v1335
      %v1361 = vpack.c.b16 %v1338, %v1337
      %v1362 = vpack.c.b16 %v1340, %v1339
      %v1363 = vpack.c.b16 %v1342, %v1341
      %v1364 = vpack.c.b16 %v1344, %v1343
      %v1365 = vpack.c.b16 %v1346, %v1345
      %v1366 = vpack.c.b16 %v1348, %v1347
      %v1367 = vpack.c.b16 %v1350, %v1349
      %v1368 = vpack.c.b16 %v1352, %v1351
      %vm1369 = vcmask 31744
      %v1371 = vsel %vm1369, %v1353, 0
      %v1374 = vsel %vm1369, %v1354, 0
      %v1377 = vsel %vm1369, %v1355, 0
      %v1380 = vsel %vm1369, %v1356, 0
      %v1383 = vsel %vm1369, %v1357, 0
      %v1386 = vsel %vm1369, %v1358, 0
      %v1389 = vsel %vm1369, %v1359, 0
      %v1392 = vsel %vm1369, %v1360, 0
      %v1395 = vsel %vm1369, %v1361, 0
      %v1398 = vsel %vm1369, %v1362, 0
      %v1401 = vsel %vm1369, %v1363, 0
      %v1404 = vsel %vm1369, %v1364, 0
      %v1407 = vsel %vm1369, %v1365, 0
      %v1410 = vsel %vm1369, %v1366, 0
      %v1413 = vsel %vm1369, %v1367, 0
      %v1416 = vsel %vm1369, %v1368, 0
      %vm1418 = vcmask 1041408
      %v1420 = vsel %vm1418, %v1320, 0
      %1422 = vmatpush.bf16.msra.mxu0 0
      %1423 = vmatpush.bf16.msra.mxu0 0
      %1424 = vmatpush.bf16.msra.mxu0 0
      %1425 = vmatpush.bf16.msra.mxu0 0
      %1426 = vmatpush.bf16.msra.mxu0 0
      %1427 = vmatpush.bf16.msra.mxu0 0
      %1428 = vmatpush.bf16.msra.mxu0 0
      %1429 = vmatpush.bf16.msra.mxu0 %v1420
      %1430 = vmatmul.bf16.gmra.mxu0 %v1371
      %v1431 = vpop.f32.mrf.mxu0
      %v1432 = vadd.f32 0.0, %v1431
      %v1433 = vpop.f32.mrf.mxu0
      %v1434 = vadd.f32 0.0, %v1433
      %1435 = vmatmul.bf16.gmra.mxu0 %v1374
      %v1436 = vpop.f32.mrf.mxu0
      %v1437 = vadd.f32 0.0, %v1436
      %v1438 = vpop.f32.mrf.mxu0
      %v1439 = vadd.f32 0.0, %v1438
      %1440 = vmatmul.bf16.gmra.mxu0 %v1377
      %v1441 = vpop.f32.mrf.mxu0
      %v1442 = vadd.f32 0.0, %v1441
      %v1443 = vpop.f32.mrf.mxu0
      %v1444 = vadd.f32 0.0, %v1443
      %1445 = vmatmul.bf16.gmra.mxu0 %v1380
      %v1446 = vpop.f32.mrf.mxu0
      %v1447 = vadd.f32 0.0, %v1446
      %v1448 = vpop.f32.mrf.mxu0
      %v1449 = vadd.f32 0.0, %v1448
      %1450 = vmatmul.bf16.gmra.mxu0 %v1383
      %v1451 = vpop.f32.mrf.mxu0
      %v1452 = vadd.f32 0.0, %v1451
      %v1453 = vpop.f32.mrf.mxu0
      %v1454 = vadd.f32 0.0, %v1453
      %1455 = vmatmul.bf16.gmra.mxu0 %v1386
      %v1456 = vpop.f32.mrf.mxu0
      %v1457 = vadd.f32 0.0, %v1456
      %v1458 = vpop.f32.mrf.mxu0
      %v1459 = vadd.f32 0.0, %v1458
      %1460 = vmatmul.bf16.gmra.mxu0 %v1389
      %v1461 = vpop.f32.mrf.mxu0
      %v1462 = vadd.f32 0.0, %v1461
      %v1463 = vpop.f32.mrf.mxu0
      %v1464 = vadd.f32 0.0, %v1463
      %1465 = vmatmul.bf16.gmra.mxu0 %v1392
      %v1466 = vpop.f32.mrf.mxu0
      %v1467 = vadd.f32 0.0, %v1466
      %v1468 = vpop.f32.mrf.mxu0
      %v1469 = vadd.f32 0.0, %v1468
      %1470 = vmatmul.bf16.gmra.mxu0 %v1395
      %v1471 = vpop.f32.mrf.mxu0
      %v1472 = vadd.f32 0.0, %v1471
      %v1473 = vpop.f32.mrf.mxu0
      %v1474 = vadd.f32 0.0, %v1473
      %1475 = vmatmul.bf16.gmra.mxu0 %v1398
      %v1476 = vpop.f32.mrf.mxu0
      %v1477 = vadd.f32 0.0, %v1476
      %v1478 = vpop.f32.mrf.mxu0
      %v1479 = vadd.f32 0.0, %v1478
      %1480 = vmatmul.bf16.gmra.mxu0 %v1401
      %v1481 = vpop.f32.mrf.mxu0
      %v1482 = vadd.f32 0.0, %v1481
      %v1483 = vpop.f32.mrf.mxu0
      %v1484 = vadd.f32 0.0, %v1483
      %1485 = vmatmul.bf16.gmra.mxu0 %v1404
      %v1486 = vpop.f32.mrf.mxu0
      %v1487 = vadd.f32 0.0, %v1486
      %v1488 = vpop.f32.mrf.mxu0
      %v1489 = vadd.f32 0.0, %v1488
      %1490 = vmatmul.bf16.gmra.mxu0 %v1407
      %v1491 = vpop.f32.mrf.mxu0
      %v1492 = vadd.f32 0.0, %v1491
      %v1493 = vpop.f32.mrf.mxu0
      %v1494 = vadd.f32 0.0, %v1493
      %1495 = vmatmul.bf16.gmra.mxu0 %v1410
      %v1496 = vpop.f32.mrf.mxu0
      %v1497 = vadd.f32 0.0, %v1496
      %v1498 = vpop.f32.mrf.mxu0
      %v1499 = vadd.f32 0.0, %v1498
      %1500 = vmatmul.bf16.gmra.mxu0 %v1413
      %v1501 = vpop.f32.mrf.mxu0
      %v1502 = vadd.f32 0.0, %v1501
      %v1503 = vpop.f32.mrf.mxu0
      %v1504 = vadd.f32 0.0, %v1503
      %1505 = vmatmul.bf16.gmra.mxu0 %v1416
      %v1506 = vpop.f32.mrf.mxu0
      %v1507 = vadd.f32 0.0, %v1506
      %v1508 = vpop.f32.mrf.mxu0
      %v1509 = vadd.f32 0.0, %v1508
      %1510 = vdwg.mxu0
      %v1543 = vunpack.c.l.b16 %v883
      %v1544 = vunpack.c.l.b16 %v884
      %v1545 = vunpack.c.l.b16 %v885
      %v1546 = vunpack.c.l.b16 %v886
      %v1547 = vunpack.c.l.b16 %v887
      %v1548 = vunpack.c.l.b16 %v888
      %v1549 = vunpack.c.l.b16 %v889
      %v1550 = vunpack.c.l.b16 %v890
      %v1551 = vunpack.c.l.b16 %v891
      %v1552 = vunpack.c.l.b16 %v892
      %v1553 = vunpack.c.l.b16 %v893
      %v1554 = vunpack.c.l.b16 %v894
      %v1555 = vunpack.c.l.b16 %v895
      %v1556 = vunpack.c.l.b16 %v896
      %v1557 = vunpack.c.l.b16 %v897
      %v1558 = vunpack.c.l.b16 %v898
      %v1559 = vunpack.c.l.b16 %v899
      %v1560 = vunpack.c.l.b16 %v900
      %v1561 = vunpack.c.l.b16 %v901
      %v1562 = vunpack.c.l.b16 %v902
      %v1563 = vunpack.c.l.b16 %v903
      %v1564 = vunpack.c.l.b16 %v904
      %v1565 = vunpack.c.l.b16 %v905
      %v1566 = vunpack.c.l.b16 %v906
      %v1567 = vunpack.c.l.b16 %v907
      %v1568 = vunpack.c.l.b16 %v908
      %v1569 = vunpack.c.l.b16 %v909
      %v1570 = vunpack.c.l.b16 %v910
      %v1571 = vunpack.c.l.b16 %v911
      %v1572 = vunpack.c.l.b16 %v912
      %v1573 = vunpack.c.l.b16 %v913
      %v1574 = vunpack.c.l.b16 %v914
      %v1575 = vpack.c.b16 %v1544, %v1543
      %v1576 = vpack.c.b16 %v1546, %v1545
      %v1577 = vpack.c.b16 %v1548, %v1547
      %v1578 = vpack.c.b16 %v1550, %v1549
      %v1579 = vpack.c.b16 %v1552, %v1551
      %v1580 = vpack.c.b16 %v1554, %v1553
      %v1581 = vpack.c.b16 %v1556, %v1555
      %v1582 = vpack.c.b16 %v1558, %v1557
      %v1583 = vpack.c.b16 %v1560, %v1559
      %v1584 = vpack.c.b16 %v1562, %v1561
      %v1585 = vpack.c.b16 %v1564, %v1563
      %v1586 = vpack.c.b16 %v1566, %v1565
      %v1587 = vpack.c.b16 %v1568, %v1567
      %v1588 = vpack.c.b16 %v1570, %v1569
      %v1589 = vpack.c.b16 %v1572, %v1571
      %v1590 = vpack.c.b16 %v1574, %v1573
      %v1592 = vsel %vm1369, %v1575, 0
      %v1595 = vsel %vm1369, %v1576, 0
      %v1598 = vsel %vm1369, %v1577, 0
      %v1601 = vsel %vm1369, %v1578, 0
      %v1604 = vsel %vm1369, %v1579, 0
      %v1607 = vsel %vm1369, %v1580, 0
      %v1610 = vsel %vm1369, %v1581, 0
      %v1613 = vsel %vm1369, %v1582, 0
      %v1616 = vsel %vm1369, %v1583, 0
      %v1619 = vsel %vm1369, %v1584, 0
      %v1622 = vsel %vm1369, %v1585, 0
      %v1625 = vsel %vm1369, %v1586, 0
      %v1628 = vsel %vm1369, %v1587, 0
      %v1631 = vsel %vm1369, %v1588, 0
      %v1634 = vsel %vm1369, %v1589, 0
      %v1637 = vsel %vm1369, %v1590, 0
      %v1640 = vsel %vm1418, %v915, 0
      %1642 = vmatpush.bf16.msra.mxu0 0
      %1643 = vmatpush.bf16.msra.mxu0 0
      %1644 = vmatpush.bf16.msra.mxu0 0
      %1645 = vmatpush.bf16.msra.mxu0 0
      %1646 = vmatpush.bf16.msra.mxu0 0
      %1647 = vmatpush.bf16.msra.mxu0 0
      %1648 = vmatpush.bf16.msra.mxu0 0
      %1649 = vmatpush.bf16.msra.mxu0 %v1640
      %1650 = vmatmul.bf16.gmra.mxu0 %v1592
      %v1651 = vpop.f32.mrf.mxu0
      %v1652 = vadd.f32 %v1432, %v1651
      %v1653 = vpop.f32.mrf.mxu0
      %v1654 = vadd.f32 %v1434, %v1653
      %1655 = vmatmul.bf16.gmra.mxu0 %v1595
      %v1656 = vpop.f32.mrf.mxu0
      %v1657 = vadd.f32 %v1437, %v1656
      %v1658 = vpop.f32.mrf.mxu0
      %v1659 = vadd.f32 %v1439, %v1658
      %1660 = vmatmul.bf16.gmra.mxu0 %v1598
      %v1661 = vpop.f32.mrf.mxu0
      %v1662 = vadd.f32 %v1442, %v1661
      %v1663 = vpop.f32.mrf.mxu0
      %v1664 = vadd.f32 %v1444, %v1663
      %1665 = vmatmul.bf16.gmra.mxu0 %v1601
      %v1666 = vpop.f32.mrf.mxu0
      %v1667 = vadd.f32 %v1447, %v1666
      %v1668 = vpop.f32.mrf.mxu0
      %v1669 = vadd.f32 %v1449, %v1668
      %1670 = vmatmul.bf16.gmra.mxu0 %v1604
      %v1671 = vpop.f32.mrf.mxu0
      %v1672 = vadd.f32 %v1452, %v1671
      %v1673 = vpop.f32.mrf.mxu0
      %v1674 = vadd.f32 %v1454, %v1673
      %1675 = vmatmul.bf16.gmra.mxu0 %v1607
      %v1676 = vpop.f32.mrf.mxu0
      %v1677 = vadd.f32 %v1457, %v1676
      %v1678 = vpop.f32.mrf.mxu0
      %v1679 = vadd.f32 %v1459, %v1678
      %1680 = vmatmul.bf16.gmra.mxu0 %v1610
      %v1681 = vpop.f32.mrf.mxu0
      %v1682 = vadd.f32 %v1462, %v1681
      %v1683 = vpop.f32.mrf.mxu0
      %v1684 = vadd.f32 %v1464, %v1683
      %1685 = vmatmul.bf16.gmra.mxu0 %v1613
      %v1686 = vpop.f32.mrf.mxu0
      %v1687 = vadd.f32 %v1467, %v1686
      %v1688 = vpop.f32.mrf.mxu0
      %v1689 = vadd.f32 %v1469, %v1688
      %1690 = vmatmul.bf16.gmra.mxu0 %v1616
      %v1691 = vpop.f32.mrf.mxu0
      %v1692 = vadd.f32 %v1472, %v1691
      %v1693 = vpop.f32.mrf.mxu0
      %v1694 = vadd.f32 %v1474, %v1693
      %1695 = vmatmul.bf16.gmra.mxu0 %v1619
      %v1696 = vpop.f32.mrf.mxu0
      %v1697 = vadd.f32 %v1477, %v1696
      %v1698 = vpop.f32.mrf.mxu0
      %v1699 = vadd.f32 %v1479, %v1698
      %1700 = vmatmul.bf16.gmra.mxu0 %v1622
      %v1701 = vpop.f32.mrf.mxu0
      %v1702 = vadd.f32 %v1482, %v1701
      %v1703 = vpop.f32.mrf.mxu0
      %v1704 = vadd.f32 %v1484, %v1703
      %1705 = vmatmul.bf16.gmra.mxu0 %v1625
      %v1706 = vpop.f32.mrf.mxu0
      %v1707 = vadd.f32 %v1487, %v1706
      %v1708 = vpop.f32.mrf.mxu0
      %v1709 = vadd.f32 %v1489, %v1708
      %1710 = vmatmul.bf16.gmra.mxu0 %v1628
      %v1711 = vpop.f32.mrf.mxu0
      %v1712 = vadd.f32 %v1492, %v1711
      %v1713 = vpop.f32.mrf.mxu0
      %v1714 = vadd.f32 %v1494, %v1713
      %1715 = vmatmul.bf16.gmra.mxu0 %v1631
      %v1716 = vpop.f32.mrf.mxu0
      %v1717 = vadd.f32 %v1497, %v1716
      %v1718 = vpop.f32.mrf.mxu0
      %v1719 = vadd.f32 %v1499, %v1718
      %1720 = vmatmul.bf16.gmra.mxu0 %v1634
      %v1721 = vpop.f32.mrf.mxu0
      %v1722 = vadd.f32 %v1502, %v1721
      %v1723 = vpop.f32.mrf.mxu0
      %v1724 = vadd.f32 %v1504, %v1723
      %1725 = vmatmul.bf16.gmra.mxu0 %v1637
      %v1726 = vpop.f32.mrf.mxu0
      %v1727 = vadd.f32 %v1507, %v1726
      %v1728 = vpop.f32.mrf.mxu0
      %v1729 = vadd.f32 %v1509, %v1728
      %1730 = vdwg.mxu0
      %v1731 = vld [vmem:[#allocation2] sm:$0xe]
      %v1732 = vld [vmem:[#allocation2 + $0xc] sm:$0xe]
      %v1733 = vld [vmem:[#allocation2 + $0x18] sm:$0xe]
      %v1734 = vld [vmem:[#allocation2 + $0x24] sm:$0xe]
      %v1735 = vld [vmem:[#allocation2 + $0x30] sm:$0xe]
      %v1736 = vld [vmem:[#allocation2 + $0x3c] sm:$0xe]
      %v1737 = vld [vmem:[#allocation2 + $0x48] sm:$0xe]
      %v1738 = vld [vmem:[#allocation2 + $0x54] sm:$0xe]
      %v1739 = vld [vmem:[#allocation2 + $0x60] sm:$0xe]
      %v1740 = vld [vmem:[#allocation2 + $0x6c] sm:$0xe]
      %v1741 = vld [vmem:[#allocation2 + $0x78] sm:$0xe]
      %v1742 = vld [vmem:[#allocation2 + $0x84] sm:$0xe]
      %v1743 = vld [vmem:[#allocation2 + $0x90] sm:$0xe]
      %v1744 = vld [vmem:[#allocation2 + $0x9c] sm:$0xe]
      %v1745 = vld [vmem:[#allocation2 + $0xa8] sm:$0xe]
      %v1746 = vld [vmem:[#allocation2 + $0xb4] sm:$0xe]
      %vm1779 = vcmask 1042432
      %vm1780 = vcmask 1046532
      %vm1781 = vmor %vm1779, %vm1780
      %v1782 = vrot.slane %v1731, 5
      %v1783 = vrot.slane %v1782, 4
      %v1784 = vrot.slane %v884, 5
      %v1785 = vsel %vm1781, %v1783, %v1784
      %v1786 = vrot.slane %v1784, 4
      %v1787 = vrot.slane %v916, 5
      %v1788 = vsel %vm1781, %v1786, %v1787
      %v1789 = vrot.slane %v1732, 5
      %v1790 = vrot.slane %v1789, 4
      %v1791 = vrot.slane %v886, 5
      %v1792 = vsel %vm1781, %v1790, %v1791
      %v1793 = vrot.slane %v1791, 4
      %v1794 = vrot.slane %v917, 5
      %v1795 = vsel %vm1781, %v1793, %v1794
      %v1796 = vrot.slane %v1733, 5
      %v1797 = vrot.slane %v1796, 4
      %v1798 = vrot.slane %v888, 5
      %v1799 = vsel %vm1781, %v1797, %v1798
      %v1800 = vrot.slane %v1798, 4
      %v1801 = vrot.slane %v918, 5
      %v1802 = vsel %vm1781, %v1800, %v1801
      %v1803 = vrot.slane %v1734, 5
      %v1804 = vrot.slane %v1803, 4
      %v1805 = vrot.slane %v890, 5
      %v1806 = vsel %vm1781, %v1804, %v1805
      %v1807 = vrot.slane %v1805, 4
      %v1808 = vrot.slane %v919, 5
      %v1809 = vsel %vm1781, %v1807, %v1808
      %v1810 = vrot.slane %v1735, 5
      %v1811 = vrot.slane %v1810, 4
      %v1812 = vrot.slane %v892, 5
      %v1813 = vsel %vm1781, %v1811, %v1812
      %v1814 = vrot.slane %v1812, 4
      %v1815 = vrot.slane %v920, 5
      %v1816 = vsel %vm1781, %v1814, %v1815
      %v1817 = vrot.slane %v1736, 5
      %v1818 = vrot.slane %v1817, 4
      %v1819 = vrot.slane %v894, 5
      %v1820 = vsel %vm1781, %v1818, %v1819
      %v1821 = vrot.slane %v1819, 4
      %v1822 = vrot.slane %v921, 5
      %v1823 = vsel %vm1781, %v1821, %v1822
      %v1824 = vrot.slane %v1737, 5
      %v1825 = vrot.slane %v1824, 4
      %v1826 = vrot.slane %v896, 5
      %v1827 = vsel %vm1781, %v1825, %v1826
      %v1828 = vrot.slane %v1826, 4
      %v1829 = vrot.slane %v922, 5
      %v1830 = vsel %vm1781, %v1828, %v1829
      %v1831 = vrot.slane %v1738, 5
      %v1832 = vrot.slane %v1831, 4
      %v1833 = vrot.slane %v898, 5
      %v1834 = vsel %vm1781, %v1832, %v1833
      %v1835 = vrot.slane %v1833, 4
      %v1836 = vrot.slane %v923, 5
      %v1837 = vsel %vm1781, %v1835, %v1836
      %v1838 = vrot.slane %v1739, 5
      %v1839 = vrot.slane %v1838, 4
      %v1840 = vrot.slane %v900, 5
      %v1841 = vsel %vm1781, %v1839, %v1840
      %v1842 = vrot.slane %v1840, 4
      %v1843 = vrot.slane %v924, 5
      %v1844 = vsel %vm1781, %v1842, %v1843
      %v1845 = vrot.slane %v1740, 5
      %v1846 = vrot.slane %v1845, 4
      %v1847 = vrot.slane %v902, 5
      %v1848 = vsel %vm1781, %v1846, %v1847
      %v1849 = vrot.slane %v1847, 4
      %v1850 = vrot.slane %v925, 5
      %v1851 = vsel %vm1781, %v1849, %v1850
      %v1852 = vrot.slane %v1741, 5
      %v1853 = vrot.slane %v1852, 4
      %v1854 = vrot.slane %v904, 5
      %v1855 = vsel %vm1781, %v1853, %v1854
      %v1856 = vrot.slane %v1854, 4
      %v1857 = vrot.slane %v926, 5
      %v1858 = vsel %vm1781, %v1856, %v1857
      %v1859 = vrot.slane %v1742, 5
      %v1860 = vrot.slane %v1859, 4
      %v1861 = vrot.slane %v906, 5
      %v1862 = vsel %vm1781, %v1860, %v1861
      %v1863 = vrot.slane %v1861, 4
      %v1864 = vrot.slane %v927, 5
      %v1865 = vsel %vm1781, %v1863, %v1864
      %v1866 = vrot.slane %v1743, 5
      %v1867 = vrot.slane %v1866, 4
      %v1868 = vrot.slane %v908, 5
      %v1869 = vsel %vm1781, %v1867, %v1868
      %v1870 = vrot.slane %v1868, 4
      %v1871 = vrot.slane %v928, 5
      %v1872 = vsel %vm1781, %v1870, %v1871
      %v1873 = vrot.slane %v1744, 5
      %v1874 = vrot.slane %v1873, 4
      %v1875 = vrot.slane %v910, 5
      %v1876 = vsel %vm1781, %v1874, %v1875
      %v1877 = vrot.slane %v1875, 4
      %v1878 = vrot.slane %v929, 5
      %v1879 = vsel %vm1781, %v1877, %v1878
      %v1880 = vrot.slane %v1745, 5
      %v1881 = vrot.slane %v1880, 4
      %v1882 = vrot.slane %v912, 5
      %v1883 = vsel %vm1781, %v1881, %v1882
      %v1884 = vrot.slane %v1882, 4
      %v1885 = vrot.slane %v930, 5
      %v1886 = vsel %vm1781, %v1884, %v1885
      %v1887 = vrot.slane %v1746, 5
      %v1888 = vrot.slane %v1887, 4
      %v1889 = vrot.slane %v914, 5
      %v1890 = vsel %vm1781, %v1888, %v1889
      %v1891 = vrot.slane %v1889, 4
      %v1892 = vrot.slane %v931, 5
      %v1893 = vsel %vm1781, %v1891, %v1892
      %s1894 = scalar_lea.vmem %s1, 4
      %v1895 = vld [vmem:[%s1894] sm:$0x3]
      %v1896 = vunpack.c.l.b16 %v1785
      %v1897 = vunpack.c.l.b16 %v1788
      %v1898 = vunpack.c.l.b16 %v1792
      %v1899 = vunpack.c.l.b16 %v1795
      %v1900 = vunpack.c.l.b16 %v1799
      %v1901 = vunpack.c.l.b16 %v1802
      %v1902 = vunpack.c.l.b16 %v1806
      %v1903 = vunpack.c.l.b16 %v1809
      %v1904 = vunpack.c.l.b16 %v1813
      %v1905 = vunpack.c.l.b16 %v1816
      %v1906 = vunpack.c.l.b16 %v1820
      %v1907 = vunpack.c.l.b16 %v1823
      %v1908 = vunpack.c.l.b16 %v1827
      %v1909 = vunpack.c.l.b16 %v1830
      %v1910 = vunpack.c.l.b16 %v1834
      %v1911 = vunpack.c.l.b16 %v1837
      %v1912 = vunpack.c.l.b16 %v1841
      %v1913 = vunpack.c.l.b16 %v1844
      %v1914 = vunpack.c.l.b16 %v1848
      %v1915 = vunpack.c.l.b16 %v1851
      %v1916 = vunpack.c.l.b16 %v1855
      %v1917 = vunpack.c.l.b16 %v1858
      %v1918 = vunpack.c.l.b16 %v1862
      %v1919 = vunpack.c.l.b16 %v1865
      %v1920 = vunpack.c.l.b16 %v1869
      %v1921 = vunpack.c.l.b16 %v1872
      %v1922 = vunpack.c.l.b16 %v1876
      %v1923 = vunpack.c.l.b16 %v1879
      %v1924 = vunpack.c.l.b16 %v1883
      %v1925 = vunpack.c.l.b16 %v1886
      %v1926 = vunpack.c.l.b16 %v1890
      %v1927 = vunpack.c.l.b16 %v1893
      %v1928 = vpack.c.b16 %v1897, %v1896
      %v1929 = vpack.c.b16 %v1899, %v1898
      %v1930 = vpack.c.b16 %v1901, %v1900
      %v1931 = vpack.c.b16 %v1903, %v1902
      %v1932 = vpack.c.b16 %v1905, %v1904
      %v1933 = vpack.c.b16 %v1907, %v1906
      %v1934 = vpack.c.b16 %v1909, %v1908
      %v1935 = vpack.c.b16 %v1911, %v1910
      %v1936 = vpack.c.b16 %v1913, %v1912
      %v1937 = vpack.c.b16 %v1915, %v1914
      %v1938 = vpack.c.b16 %v1917, %v1916
      %v1939 = vpack.c.b16 %v1919, %v1918
      %v1940 = vpack.c.b16 %v1921, %v1920
      %v1941 = vpack.c.b16 %v1923, %v1922
      %v1942 = vpack.c.b16 %v1925, %v1924
      %v1943 = vpack.c.b16 %v1927, %v1926
      %v1945 = vsel %vm1369, %v1928, 0
      %v1948 = vsel %vm1369, %v1929, 0
      %v1951 = vsel %vm1369, %v1930, 0
      %v1954 = vsel %vm1369, %v1931, 0
      %v1957 = vsel %vm1369, %v1932, 0
      %v1960 = vsel %vm1369, %v1933, 0
      %v1963 = vsel %vm1369, %v1934, 0
      %v1966 = vsel %vm1369, %v1935, 0
      %v1969 = vsel %vm1369, %v1936, 0
      %v1972 = vsel %vm1369, %v1937, 0
      %v1975 = vsel %vm1369, %v1938, 0
      %v1978 = vsel %vm1369, %v1939, 0
      %v1981 = vsel %vm1369, %v1940, 0
      %v1984 = vsel %vm1369, %v1941, 0
      %v1987 = vsel %vm1369, %v1942, 0
      %v1990 = vsel %vm1369, %v1943, 0
      %v1993 = vsel %vm1418, %v1895, 0
      %1995 = vmatpush.bf16.msra.mxu0 0
      %1996 = vmatpush.bf16.msra.mxu0 0
      %1997 = vmatpush.bf16.msra.mxu0 0
      %1998 = vmatpush.bf16.msra.mxu0 0
      %1999 = vmatpush.bf16.msra.mxu0 0
      %2000 = vmatpush.bf16.msra.mxu0 0
      %2001 = vmatpush.bf16.msra.mxu0 0
      %2002 = vmatpush.bf16.msra.mxu0 %v1993
      %2003 = vmatmul.bf16.gmra.mxu0 %v1945
      %v2004 = vpop.f32.mrf.mxu0
      %v2005 = vadd.f32 0.0, %v2004
      %v2006 = vpop.f32.mrf.mxu0
      %v2007 = vadd.f32 0.0, %v2006
      %2008 = vmatmul.bf16.gmra.mxu0 %v1948
      %v2009 = vpop.f32.mrf.mxu0
      %v2010 = vadd.f32 0.0, %v2009
      %v2011 = vpop.f32.mrf.mxu0
      %v2012 = vadd.f32 0.0, %v2011
      %2013 = vmatmul.bf16.gmra.mxu0 %v1951
      %v2014 = vpop.f32.mrf.mxu0
      %v2015 = vadd.f32 0.0, %v2014
      %v2016 = vpop.f32.mrf.mxu0
      %v2017 = vadd.f32 0.0, %v2016
      %2018 = vmatmul.bf16.gmra.mxu0 %v1954
      %v2019 = vpop.f32.mrf.mxu0
      %v2020 = vadd.f32 0.0, %v2019
      %v2021 = vpop.f32.mrf.mxu0
      %v2022 = vadd.f32 0.0, %v2021
      %2023 = vmatmul.bf16.gmra.mxu0 %v1957
      %v2024 = vpop.f32.mrf.mxu0
      %v2025 = vadd.f32 0.0, %v2024
      %v2026 = vpop.f32.mrf.mxu0
      %v2027 = vadd.f32 0.0, %v2026
      %2028 = vmatmul.bf16.gmra.mxu0 %v1960
      %v2029 = vpop.f32.mrf.mxu0
      %v2030 = vadd.f32 0.0, %v2029
      %v2031 = vpop.f32.mrf.mxu0
      %v2032 = vadd.f32 0.0, %v2031
      %2033 = vmatmul.bf16.gmra.mxu0 %v1963
      %v2034 = vpop.f32.mrf.mxu0
      %v2035 = vadd.f32 0.0, %v2034
      %v2036 = vpop.f32.mrf.mxu0
      %v2037 = vadd.f32 0.0, %v2036
      %2038 = vmatmul.bf16.gmra.mxu0 %v1966
      %v2039 = vpop.f32.mrf.mxu0
      %v2040 = vadd.f32 0.0, %v2039
      %v2041 = vpop.f32.mrf.mxu0
      %v2042 = vadd.f32 0.0, %v2041
      %2043 = vmatmul.bf16.gmra.mxu0 %v1969
      %v2044 = vpop.f32.mrf.mxu0
      %v2045 = vadd.f32 0.0, %v2044
      %v2046 = vpop.f32.mrf.mxu0
      %v2047 = vadd.f32 0.0, %v2046
      %2048 = vmatmul.bf16.gmra.mxu0 %v1972
      %v2049 = vpop.f32.mrf.mxu0
      %v2050 = vadd.f32 0.0, %v2049
      %v2051 = vpop.f32.mrf.mxu0
      %v2052 = vadd.f32 0.0, %v2051
      %2053 = vmatmul.bf16.gmra.mxu0 %v1975
      %v2054 = vpop.f32.mrf.mxu0
      %v2055 = vadd.f32 0.0, %v2054
      %v2056 = vpop.f32.mrf.mxu0
      %v2057 = vadd.f32 0.0, %v2056
      %2058 = vmatmul.bf16.gmra.mxu0 %v1978
      %v2059 = vpop.f32.mrf.mxu0
      %v2060 = vadd.f32 0.0, %v2059
      %v2061 = vpop.f32.mrf.mxu0
      %v2062 = vadd.f32 0.0, %v2061
      %2063 = vmatmul.bf16.gmra.mxu0 %v1981
      %v2064 = vpop.f32.mrf.mxu0
      %v2065 = vadd.f32 0.0, %v2064
      %v2066 = vpop.f32.mrf.mxu0
      %v2067 = vadd.f32 0.0, %v2066
      %2068 = vmatmul.bf16.gmra.mxu0 %v1984
      %v2069 = vpop.f32.mrf.mxu0
      %v2070 = vadd.f32 0.0, %v2069
      %v2071 = vpop.f32.mrf.mxu0
      %v2072 = vadd.f32 0.0, %v2071
      %2073 = vmatmul.bf16.gmra.mxu0 %v1987
      %v2074 = vpop.f32.mrf.mxu0
      %v2075 = vadd.f32 0.0, %v2074
      %v2076 = vpop.f32.mrf.mxu0
      %v2077 = vadd.f32 0.0, %v2076
      %2078 = vmatmul.bf16.gmra.mxu0 %v1990
      %v2079 = vpop.f32.mrf.mxu0
      %v2080 = vadd.f32 0.0, %v2079
      %v2081 = vpop.f32.mrf.mxu0
      %v2082 = vadd.f32 0.0, %v2081
      %2083 = vdwg.mxu0
      %v2084 = vadd.f32 %v1652, %v2005
      %v2085 = vadd.f32 %v1654, %v2007
      %v2086 = vadd.f32 %v1657, %v2010
      %v2087 = vadd.f32 %v1659, %v2012
      %v2088 = vadd.f32 %v1662, %v2015
      %v2089 = vadd.f32 %v1664, %v2017
      %v2090 = vadd.f32 %v1667, %v2020
      %v2091 = vadd.f32 %v1669, %v2022
      %v2092 = vadd.f32 %v1672, %v2025
      %v2093 = vadd.f32 %v1674, %v2027
      %v2094 = vadd.f32 %v1677, %v2030
      %v2095 = vadd.f32 %v1679, %v2032
      %v2096 = vadd.f32 %v1682, %v2035
      %v2097 = vadd.f32 %v1684, %v2037
      %v2098 = vadd.f32 %v1687, %v2040
      %v2099 = vadd.f32 %v1689, %v2042
      %v2100 = vadd.f32 %v1692, %v2045
      %v2101 = vadd.f32 %v1694, %v2047
      %v2102 = vadd.f32 %v1697, %v2050
      %v2103 = vadd.f32 %v1699, %v2052
      %v2104 = vadd.f32 %v1702, %v2055
      %v2105 = vadd.f32 %v1704, %v2057
      %v2106 = vadd.f32 %v1707, %v2060
      %v2107 = vadd.f32 %v1709, %v2062
      %v2108 = vadd.f32 %v1712, %v2065
      %v2109 = vadd.f32 %v1714, %v2067
      %v2110 = vadd.f32 %v1717, %v2070
      %v2111 = vadd.f32 %v1719, %v2072
      %v2112 = vadd.f32 %v1722, %v2075
      %v2113 = vadd.f32 %v1724, %v2077
      %v2114 = vadd.f32 %v1727, %v2080
      %v2115 = vadd.f32 %v1729, %v2082
      %v2116 = vld [vmem:[%s768] sm:$0xf]
      %v2117 = vld [vmem:[%s768 + $0x4] sm:$0xf]
      %v2118 = vld [vmem:[%s768 + $0xc] sm:$0xf]
      %v2119 = vld [vmem:[%s768 + $0x10] sm:$0xf]
      %v2120 = vld [vmem:[%s768 + $0x18] sm:$0xf]
      %v2121 = vld [vmem:[%s768 + $0x1c] sm:$0xf]
      %v2122 = vld [vmem:[%s768 + $0x24] sm:$0xf]
      %v2123 = vld [vmem:[%s768 + $0x28] sm:$0xf]
      %v2124 = vld [vmem:[%s768 + $0x30] sm:$0xf]
      %v2125 = vld [vmem:[%s768 + $0x34] sm:$0xf]
      %v2126 = vld [vmem:[%s768 + $0x3c] sm:$0xf]
      %v2127 = vld [vmem:[%s768 + $0x40] sm:$0xf]
      %v2128 = vld [vmem:[%s768 + $0x48] sm:$0xf]
      %v2129 = vld [vmem:[%s768 + $0x4c] sm:$0xf]
      %v2130 = vld [vmem:[%s768 + $0x54] sm:$0xf]
      %v2131 = vld [vmem:[%s768 + $0x58] sm:$0xf]
      %v2132 = vld [vmem:[%s768 + $0x60] sm:$0xf]
      %v2133 = vld [vmem:[%s768 + $0x64] sm:$0xf]
      %v2134 = vld [vmem:[%s768 + $0x6c] sm:$0xf]
      %v2135 = vld [vmem:[%s768 + $0x70] sm:$0xf]
      %v2136 = vld [vmem:[%s768 + $0x78] sm:$0xf]
      %v2137 = vld [vmem:[%s768 + $0x7c] sm:$0xf]
      %v2138 = vld [vmem:[%s768 + $0x84] sm:$0xf]
      %v2139 = vld [vmem:[%s768 + $0x88] sm:$0xf]
      %v2140 = vld [vmem:[%s768 + $0x90] sm:$0xf]
      %v2141 = vld [vmem:[%s768 + $0x94] sm:$0xf]
      %v2142 = vld [vmem:[%s768 + $0x9c] sm:$0xf]
      %v2143 = vld [vmem:[%s768 + $0xa0] sm:$0xf]
      %v2144 = vld [vmem:[%s768 + $0xa8] sm:$0xf]
      %v2145 = vld [vmem:[%s768 + $0xac] sm:$0xf]
      %v2146 = vld [vmem:[%s768 + $0xb4] sm:$0xf]
      %v2147 = vld [vmem:[%s768 + $0xb8] sm:$0xf]
      %s2148 = scalar_lea.vmem %s1, 6
      %v2149 = vld [vmem:[%s2148] sm:$0x3]
      %v2182 = vunpack.c.l.b16 %v2116
      %v2183 = vunpack.c.l.b16 %v2117
      %v2184 = vunpack.c.l.b16 %v2118
      %v2185 = vunpack.c.l.b16 %v2119
      %v2186 = vunpack.c.l.b16 %v2120
      %v2187 = vunpack.c.l.b16 %v2121
      %v2188 = vunpack.c.l.b16 %v2122
      %v2189 = vunpack.c.l.b16 %v2123
      %v2190 = vunpack.c.l.b16 %v2124
      %v2191 = vunpack.c.l.b16 %v2125
      %v2192 = vunpack.c.l.b16 %v2126
      %v2193 = vunpack.c.l.b16 %v2127
      %v2194 = vunpack.c.l.b16 %v2128
      %v2195 = vunpack.c.l.b16 %v2129
      %v2196 = vunpack.c.l.b16 %v2130
      %v2197 = vunpack.c.l.b16 %v2131
      %v2198 = vunpack.c.l.b16 %v2132
      %v2199 = vunpack.c.l.b16 %v2133
      %v2200 = vunpack.c.l.b16 %v2134
      %v2201 = vunpack.c.l.b16 %v2135
      %v2202 = vunpack.c.l.b16 %v2136
      %v2203 = vunpack.c.l.b16 %v2137
      %v2204 = vunpack.c.l.b16 %v2138
      %v2205 = vunpack.c.l.b16 %v2139
      %v2206 = vunpack.c.l.b16 %v2140
      %v2207 = vunpack.c.l.b16 %v2141
      %v2208 = vunpack.c.l.b16 %v2142
      %v2209 = vunpack.c.l.b16 %v2143
      %v2210 = vunpack.c.l.b16 %v2144
      %v2211 = vunpack.c.l.b16 %v2145
      %v2212 = vunpack.c.l.b16 %v2146
      %v2213 = vunpack.c.l.b16 %v2147
      %v2214 = vpack.c.b16 %v2183, %v2182
      %v2215 = vpack.c.b16 %v2185, %v2184
      %v2216 = vpack.c.b16 %v2187, %v2186
      %v2217 = vpack.c.b16 %v2189, %v2188
      %v2218 = vpack.c.b16 %v2191, %v2190
      %v2219 = vpack.c.b16 %v2193, %v2192
      %v2220 = vpack.c.b16 %v2195, %v2194
      %v2221 = vpack.c.b16 %v2197, %v2196
      %v2222 = vpack.c.b16 %v2199, %v2198
      %v2223 = vpack.c.b16 %v2201, %v2200
      %v2224 = vpack.c.b16 %v2203, %v2202
      %v2225 = vpack.c.b16 %v2205, %v2204
      %v2226 = vpack.c.b16 %v2207, %v2206
      %v2227 = vpack.c.b16 %v2209, %v2208
      %v2228 = vpack.c.b16 %v2211, %v2210
      %v2229 = vpack.c.b16 %v2213, %v2212
      %v2231 = vsel %vm1369, %v2214, 0
      %v2234 = vsel %vm1369, %v2215, 0
      %v2237 = vsel %vm1369, %v2216, 0
      %v2240 = vsel %vm1369, %v2217, 0
      %v2243 = vsel %vm1369, %v2218, 0
      %v2246 = vsel %vm1369, %v2219, 0
      %v2249 = vsel %vm1369, %v2220, 0
      %v2252 = vsel %vm1369, %v2221, 0
      %v2255 = vsel %vm1369, %v2222, 0
      %v2258 = vsel %vm1369, %v2223, 0
      %v2261 = vsel %vm1369, %v2224, 0
      %v2264 = vsel %vm1369, %v2225, 0
      %v2267 = vsel %vm1369, %v2226, 0
      %v2270 = vsel %vm1369, %v2227, 0
      %v2273 = vsel %vm1369, %v2228, 0
      %v2276 = vsel %vm1369, %v2229, 0
      %v2279 = vsel %vm1418, %v2149, 0
      %2281 = vmatpush.bf16.msra.mxu0 0
      %2282 = vmatpush.bf16.msra.mxu0 0
      %2283 = vmatpush.bf16.msra.mxu0 0
      %2284 = vmatpush.bf16.msra.mxu0 0
      %2285 = vmatpush.bf16.msra.mxu0 0
      %2286 = vmatpush.bf16.msra.mxu0 0
      %2287 = vmatpush.bf16.msra.mxu0 0
      %2288 = vmatpush.bf16.msra.mxu0 %v2279
      %2289 = vmatmul.bf16.gmra.mxu0 %v2231
      %v2290 = vpop.f32.mrf.mxu0
      %v2291 = vadd.f32 0.0, %v2290
      %v2292 = vpop.f32.mrf.mxu0
      %v2293 = vadd.f32 0.0, %v2292
      %2294 = vmatmul.bf16.gmra.mxu0 %v2234
      %v2295 = vpop.f32.mrf.mxu0
      %v2296 = vadd.f32 0.0, %v2295
      %v2297 = vpop.f32.mrf.mxu0
      %v2298 = vadd.f32 0.0, %v2297
      %2299 = vmatmul.bf16.gmra.mxu0 %v2237
      %v2300 = vpop.f32.mrf.mxu0
      %v2301 = vadd.f32 0.0, %v2300
      %v2302 = vpop.f32.mrf.mxu0
      %v2303 = vadd.f32 0.0, %v2302
      %2304 = vmatmul.bf16.gmra.mxu0 %v2240
      %v2305 = vpop.f32.mrf.mxu0
      %v2306 = vadd.f32 0.0, %v2305
      %v2307 = vpop.f32.mrf.mxu0
      %v2308 = vadd.f32 0.0, %v2307
      %2309 = vmatmul.bf16.gmra.mxu0 %v2243
      %v2310 = vpop.f32.mrf.mxu0
      %v2311 = vadd.f32 0.0, %v2310
      %v2312 = vpop.f32.mrf.mxu0
      %v2313 = vadd.f32 0.0, %v2312
      %2314 = vmatmul.bf16.gmra.mxu0 %v2246
      %v2315 = vpop.f32.mrf.mxu0
      %v2316 = vadd.f32 0.0, %v2315
      %v2317 = vpop.f32.mrf.mxu0
      %v2318 = vadd.f32 0.0, %v2317
      %2319 = vmatmul.bf16.gmra.mxu0 %v2249
      %v2320 = vpop.f32.mrf.mxu0
      %v2321 = vadd.f32 0.0, %v2320
      %v2322 = vpop.f32.mrf.mxu0
      %v2323 = vadd.f32 0.0, %v2322
      %2324 = vmatmul.bf16.gmra.mxu0 %v2252
      %v2325 = vpop.f32.mrf.mxu0
      %v2326 = vadd.f32 0.0, %v2325
      %v2327 = vpop.f32.mrf.mxu0
      %v2328 = vadd.f32 0.0, %v2327
      %2329 = vmatmul.bf16.gmra.mxu0 %v2255
      %v2330 = vpop.f32.mrf.mxu0
      %v2331 = vadd.f32 0.0, %v2330
      %v2332 = vpop.f32.mrf.mxu0
      %v2333 = vadd.f32 0.0, %v2332
      %2334 = vmatmul.bf16.gmra.mxu0 %v2258
      %v2335 = vpop.f32.mrf.mxu0
      %v2336 = vadd.f32 0.0, %v2335
      %v2337 = vpop.f32.mrf.mxu0
      %v2338 = vadd.f32 0.0, %v2337
      %2339 = vmatmul.bf16.gmra.mxu0 %v2261
      %v2340 = vpop.f32.mrf.mxu0
      %v2341 = vadd.f32 0.0, %v2340
      %v2342 = vpop.f32.mrf.mxu0
      %v2343 = vadd.f32 0.0, %v2342
      %2344 = vmatmul.bf16.gmra.mxu0 %v2264
      %v2345 = vpop.f32.mrf.mxu0
      %v2346 = vadd.f32 0.0, %v2345
      %v2347 = vpop.f32.mrf.mxu0
      %v2348 = vadd.f32 0.0, %v2347
      %2349 = vmatmul.bf16.gmra.mxu0 %v2267
      %v2350 = vpop.f32.mrf.mxu0
      %v2351 = vadd.f32 0.0, %v2350
      %v2352 = vpop.f32.mrf.mxu0
      %v2353 = vadd.f32 0.0, %v2352
      %2354 = vmatmul.bf16.gmra.mxu0 %v2270
      %v2355 = vpop.f32.mrf.mxu0
      %v2356 = vadd.f32 0.0, %v2355
      %v2357 = vpop.f32.mrf.mxu0
      %v2358 = vadd.f32 0.0, %v2357
      %2359 = vmatmul.bf16.gmra.mxu0 %v2273
      %v2360 = vpop.f32.mrf.mxu0
      %v2361 = vadd.f32 0.0, %v2360
      %v2362 = vpop.f32.mrf.mxu0
      %v2363 = vadd.f32 0.0, %v2362
      %2364 = vmatmul.bf16.gmra.mxu0 %v2276
      %v2365 = vpop.f32.mrf.mxu0
      %v2366 = vadd.f32 0.0, %v2365
      %v2367 = vpop.f32.mrf.mxu0
      %v2368 = vadd.f32 0.0, %v2367
      %2369 = vdwg.mxu0
      %v2370 = vadd.f32 %v2084, %v2291
      %v2371 = vadd.f32 %v2085, %v2293
      %v2372 = vadd.f32 %v2086, %v2296
      %v2373 = vadd.f32 %v2087, %v2298
      %v2374 = vadd.f32 %v2088, %v2301
      %v2375 = vadd.f32 %v2089, %v2303
      %v2376 = vadd.f32 %v2090, %v2306
      %v2377 = vadd.f32 %v2091, %v2308
      %v2378 = vadd.f32 %v2092, %v2311
      %v2379 = vadd.f32 %v2093, %v2313
      %v2380 = vadd.f32 %v2094, %v2316
      %v2381 = vadd.f32 %v2095, %v2318
      %v2382 = vadd.f32 %v2096, %v2321
      %v2383 = vadd.f32 %v2097, %v2323
      %v2384 = vadd.f32 %v2098, %v2326
      %v2385 = vadd.f32 %v2099, %v2328
      %v2386 = vadd.f32 %v2100, %v2331
      %v2387 = vadd.f32 %v2101, %v2333
      %v2388 = vadd.f32 %v2102, %v2336
      %v2389 = vadd.f32 %v2103, %v2338
      %v2390 = vadd.f32 %v2104, %v2341
      %v2391 = vadd.f32 %v2105, %v2343
      %v2392 = vadd.f32 %v2106, %v2346
      %v2393 = vadd.f32 %v2107, %v2348
      %v2394 = vadd.f32 %v2108, %v2351
      %v2395 = vadd.f32 %v2109, %v2353
      %v2396 = vadd.f32 %v2110, %v2356
      %v2397 = vadd.f32 %v2111, %v2358
      %v2398 = vadd.f32 %v2112, %v2361
      %v2399 = vadd.f32 %v2113, %v2363
      %v2400 = vadd.f32 %v2114, %v2366
      %v2401 = vadd.f32 %v2115, %v2368
      %v2402 = vld [vmem:[%s768] sm:$0xf]
      %v2403 = vld [vmem:[%s768 + $0x4] sm:$0xf]
      %v2404 = vld [vmem:[%s768 + $0x8] sm:$0x1]
      %v2405 = vld [vmem:[%s768 + $0xc] sm:$0xf]
      %v2406 = vld [vmem:[%s768 + $0x10] sm:$0xf]
      %v2407 = vld [vmem:[%s768 + $0x14] sm:$0x1]
      %v2408 = vld [vmem:[%s768 + $0x18] sm:$0xf]
      %v2409 = vld [vmem:[%s768 + $0x1c] sm:$0xf]
      %v2410 = vld [vmem:[%s768 + $0x20] sm:$0x1]
      %v2411 = vld [vmem:[%s768 + $0x24] sm:$0xf]
      %v2412 = vld [vmem:[%s768 + $0x28] sm:$0xf]
      %v2413 = vld [vmem:[%s768 + $0x2c] sm:$0x1]
      %v2414 = vld [vmem:[%s768 + $0x30] sm:$0xf]
      %v2415 = vld [vmem:[%s768 + $0x34] sm:$0xf]
      %v2416 = vld [vmem:[%s768 + $0x38] sm:$0x1]
      %v2417 = vld [vmem:[%s768 + $0x3c] sm:$0xf]
      %v2418 = vld [vmem:[%s768 + $0x40] sm:$0xf]
      %v2419 = vld [vmem:[%s768 + $0x44] sm:$0x1]
      %v2420 = vld [vmem:[%s768 + $0x48] sm:$0xf]
      %v2421 = vld [vmem:[%s768 + $0x4c] sm:$0xf]
      %v2422 = vld [vmem:[%s768 + $0x50] sm:$0x1]
      %v2423 = vld [vmem:[%s768 + $0x54] sm:$0xf]
      %v2424 = vld [vmem:[%s768 + $0x58] sm:$0xf]
      %v2425 = vld [vmem:[%s768 + $0x5c] sm:$0x1]
      %v2426 = vld [vmem:[%s768 + $0x60] sm:$0xf]
      %v2427 = vld [vmem:[%s768 + $0x64] sm:$0xf]
      %v2428 = vld [vmem:[%s768 + $0x68] sm:$0x1]
      %v2429 = vld [vmem:[%s768 + $0x6c] sm:$0xf]
      %v2430 = vld [vmem:[%s768 + $0x70] sm:$0xf]
      %v2431 = vld [vmem:[%s768 + $0x74] sm:$0x1]
      %v2432 = vld [vmem:[%s768 + $0x78] sm:$0xf]
      %v2433 = vld [vmem:[%s768 + $0x7c] sm:$0xf]
      %v2434 = vld [vmem:[%s768 + $0x80] sm:$0x1]
      %v2435 = vld [vmem:[%s768 + $0x84] sm:$0xf]
      %v2436 = vld [vmem:[%s768 + $0x88] sm:$0xf]
      %v2437 = vld [vmem:[%s768 + $0x8c] sm:$0x1]
      %v2438 = vld [vmem:[%s768 + $0x90] sm:$0xf]
      %v2439 = vld [vmem:[%s768 + $0x94] sm:$0xf]
      %v2440 = vld [vmem:[%s768 + $0x98] sm:$0x1]
      %v2441 = vld [vmem:[%s768 + $0x9c] sm:$0xf]
      %v2442 = vld [vmem:[%s768 + $0xa0] sm:$0xf]
      %v2443 = vld [vmem:[%s768 + $0xa4] sm:$0x1]
      %v2444 = vld [vmem:[%s768 + $0xa8] sm:$0xf]
      %v2445 = vld [vmem:[%s768 + $0xac] sm:$0xf]
      %v2446 = vld [vmem:[%s768 + $0xb0] sm:$0x1]
      %v2447 = vld [vmem:[%s768 + $0xb4] sm:$0xf]
      %v2448 = vld [vmem:[%s768 + $0xb8] sm:$0xf]
      %v2449 = vld [vmem:[%s768 + $0xbc] sm:$0x1]
      %v2451 = vshrl.u32 %v2402, 16
      %v2453 = vrot.slane %v2451, 4
      %v2454 = vshll.u32 %v2402, 16
      %v2456 = vrot.slane %v2454, 5
      %v2457 = vor.u32 %v2453, %v2456
      %v2458 = vrot.slane %v2457, 4
      %v2460 = vshll.u32 %v2403, 16
      %v2462 = vrot.slane %v2460, 5
      %v2463 = vsel %vm934, %v2458, %v2462
      %v2464 = vshrl.u32 %v2403, 16
      %v2466 = vrot.slane %v2464, 4
      %v2467 = vor.u32 %v2466, %v2462
      %v2468 = vrot.slane %v2467, 4
      %v2470 = vshll.u32 %v2404, 16
      %v2472 = vrot.slane %v2470, 5
      %v2473 = vsel %vm934, %v2468, %v2472
      %v2475 = vshrl.u32 %v2405, 16
      %v2477 = vrot.slane %v2475, 4
      %v2478 = vshll.u32 %v2405, 16
      %v2480 = vrot.slane %v2478, 5
      %v2481 = vor.u32 %v2477, %v2480
      %v2482 = vrot.slane %v2481, 4
      %v2484 = vshll.u32 %v2406, 16
      %v2486 = vrot.slane %v2484, 5
      %v2487 = vsel %vm934, %v2482, %v2486
      %v2488 = vshrl.u32 %v2406, 16
      %v2490 = vrot.slane %v2488, 4
      %v2491 = vor.u32 %v2490, %v2486
      %v2492 = vrot.slane %v2491, 4
      %v2494 = vshll.u32 %v2407, 16
      %v2496 = vrot.slane %v2494, 5
      %v2497 = vsel %vm934, %v2492, %v2496
      %v2499 = vshrl.u32 %v2408, 16
      %v2501 = vrot.slane %v2499, 4
      %v2502 = vshll.u32 %v2408, 16
      %v2504 = vrot.slane %v2502, 5
      %v2505 = vor.u32 %v2501, %v2504
      %v2506 = vrot.slane %v2505, 4
      %v2508 = vshll.u32 %v2409, 16
      %v2510 = vrot.slane %v2508, 5
      %v2511 = vsel %vm934, %v2506, %v2510
      %v2512 = vshrl.u32 %v2409, 16
      %v2514 = vrot.slane %v2512, 4
      %v2515 = vor.u32 %v2514, %v2510
      %v2516 = vrot.slane %v2515, 4
      %v2518 = vshll.u32 %v2410, 16
      %v2520 = vrot.slane %v2518, 5
      %v2521 = vsel %vm934, %v2516, %v2520
      %v2523 = vshrl.u32 %v2411, 16
      %v2525 = vrot.slane %v2523, 4
      %v2526 = vshll.u32 %v2411, 16
      %v2528 = vrot.slane %v2526, 5
      %v2529 = vor.u32 %v2525, %v2528
      %v2530 = vrot.slane %v2529, 4
      %v2532 = vshll.u32 %v2412, 16
      %v2534 = vrot.slane %v2532, 5
      %v2535 = vsel %vm934, %v2530, %v2534
      %v2536 = vshrl.u32 %v2412, 16
      %v2538 = vrot.slane %v2536, 4
      %v2539 = vor.u32 %v2538, %v2534
      %v2540 = vrot.slane %v2539, 4
      %v2542 = vshll.u32 %v2413, 16
      %v2544 = vrot.slane %v2542, 5
      %v2545 = vsel %vm934, %v2540, %v2544
      %v2547 = vshrl.u32 %v2414, 16
      %v2549 = vrot.slane %v2547, 4
      %v2550 = vshll.u32 %v2414, 16
      %v2552 = vrot.slane %v2550, 5
      %v2553 = vor.u32 %v2549, %v2552
      %v2554 = vrot.slane %v2553, 4
      %v2556 = vshll.u32 %v2415, 16
      %v2558 = vrot.slane %v2556, 5
      %v2559 = vsel %vm934, %v2554, %v2558
      %v2560 = vshrl.u32 %v2415, 16
      %v2562 = vrot.slane %v2560, 4
      %v2563 = vor.u32 %v2562, %v2558
      %v2564 = vrot.slane %v2563, 4
      %v2566 = vshll.u32 %v2416, 16
      %v2568 = vrot.slane %v2566, 5
      %v2569 = vsel %vm934, %v2564, %v2568
      %v2571 = vshrl.u32 %v2417, 16
      %v2573 = vrot.slane %v2571, 4
      %v2574 = vshll.u32 %v2417, 16
      %v2576 = vrot.slane %v2574, 5
      %v2577 = vor.u32 %v2573, %v2576
      %v2578 = vrot.slane %v2577, 4
      %v2580 = vshll.u32 %v2418, 16
      %v2582 = vrot.slane %v2580, 5
      %v2583 = vsel %vm934, %v2578, %v2582
      %v2584 = vshrl.u32 %v2418, 16
      %v2586 = vrot.slane %v2584, 4
      %v2587 = vor.u32 %v2586, %v2582
      %v2588 = vrot.slane %v2587, 4
      %v2590 = vshll.u32 %v2419, 16
      %v2592 = vrot.slane %v2590, 5
      %v2593 = vsel %vm934, %v2588, %v2592
      %v2595 = vshrl.u32 %v2420, 16
      %v2597 = vrot.slane %v2595, 4
      %v2598 = vshll.u32 %v2420, 16
      %v2600 = vrot.slane %v2598, 5
      %v2601 = vor.u32 %v2597, %v2600
      %v2602 = vrot.slane %v2601, 4
      %v2604 = vshll.u32 %v2421, 16
      %v2606 = vrot.slane %v2604, 5
      %v2607 = vsel %vm934, %v2602, %v2606
      %v2608 = vshrl.u32 %v2421, 16
      %v2610 = vrot.slane %v2608, 4
      %v2611 = vor.u32 %v2610, %v2606
      %v2612 = vrot.slane %v2611, 4
      %v2614 = vshll.u32 %v2422, 16
      %v2616 = vrot.slane %v2614, 5
      %v2617 = vsel %vm934, %v2612, %v2616
      %v2619 = vshrl.u32 %v2423, 16
      %v2621 = vrot.slane %v2619, 4
      %v2622 = vshll.u32 %v2423, 16
      %v2624 = vrot.slane %v2622, 5
      %v2625 = vor.u32 %v2621, %v2624
      %v2626 = vrot.slane %v2625, 4
      %v2628 = vshll.u32 %v2424, 16
      %v2630 = vrot.slane %v2628, 5
      %v2631 = vsel %vm934, %v2626, %v2630
      %v2632 = vshrl.u32 %v2424, 16
      %v2634 = vrot.slane %v2632, 4
      %v2635 = vor.u32 %v2634, %v2630
      %v2636 = vrot.slane %v2635, 4
      %v2638 = vshll.u32 %v2425, 16
      %v2640 = vrot.slane %v2638, 5
      %v2641 = vsel %vm934, %v2636, %v2640
      %v2643 = vshrl.u32 %v2426, 16
      %v2645 = vrot.slane %v2643, 4
      %v2646 = vshll.u32 %v2426, 16
      %v2648 = vrot.slane %v2646, 5
      %v2649 = vor.u32 %v2645, %v2648
      %v2650 = vrot.slane %v2649, 4
      %v2652 = vshll.u32 %v2427, 16
      %v2654 = vrot.slane %v2652, 5
      %v2655 = vsel %vm934, %v2650, %v2654
      %v2656 = vshrl.u32 %v2427, 16
      %v2658 = vrot.slane %v2656, 4
      %v2659 = vor.u32 %v2658, %v2654
      %v2660 = vrot.slane %v2659, 4
      %v2662 = vshll.u32 %v2428, 16
      %v2664 = vrot.slane %v2662, 5
      %v2665 = vsel %vm934, %v2660, %v2664
      %v2667 = vshrl.u32 %v2429, 16
      %v2669 = vrot.slane %v2667, 4
      %v2670 = vshll.u32 %v2429, 16
      %v2672 = vrot.slane %v2670, 5
      %v2673 = vor.u32 %v2669, %v2672
      %v2674 = vrot.slane %v2673, 4
      %v2676 = vshll.u32 %v2430, 16
      %v2678 = vrot.slane %v2676, 5
      %v2679 = vsel %vm934, %v2674, %v2678
      %v2680 = vshrl.u32 %v2430, 16
      %v2682 = vrot.slane %v2680, 4
      %v2683 = vor.u32 %v2682, %v2678
      %v2684 = vrot.slane %v2683, 4
      %v2686 = vshll.u32 %v2431, 16
      %v2688 = vrot.slane %v2686, 5
      %v2689 = vsel %vm934, %v2684, %v2688
      %v2691 = vshrl.u32 %v2432, 16
      %v2693 = vrot.slane %v2691, 4
      %v2694 = vshll.u32 %v2432, 16
      %v2696 = vrot.slane %v2694, 5
      %v2697 = vor.u32 %v2693, %v2696
      %v2698 = vrot.slane %v2697, 4
      %v2700 = vshll.u32 %v2433, 16
      %v2702 = vrot.slane %v2700, 5
      %v2703 = vsel %vm934, %v2698, %v2702
      %v2704 = vshrl.u32 %v2433, 16
      %v2706 = vrot.slane %v2704, 4
      %v2707 = vor.u32 %v2706, %v2702
      %v2708 = vrot.slane %v2707, 4
      %v2710 = vshll.u32 %v2434, 16
      %v2712 = vrot.slane %v2710, 5
      %v2713 = vsel %vm934, %v2708, %v2712
      %v2715 = vshrl.u32 %v2435, 16
      %v2717 = vrot.slane %v2715, 4
      %v2718 = vshll.u32 %v2435, 16
      %v2720 = vrot.slane %v2718, 5
      %v2721 = vor.u32 %v2717, %v2720
      %v2722 = vrot.slane %v2721, 4
      %v2724 = vshll.u32 %v2436, 16
      %v2726 = vrot.slane %v2724, 5
      %v2727 = vsel %vm934, %v2722, %v2726
      %v2728 = vshrl.u32 %v2436, 16
      %v2730 = vrot.slane %v2728, 4
      %v2731 = vor.u32 %v2730, %v2726
      %v2732 = vrot.slane %v2731, 4
      %v2734 = vshll.u32 %v2437, 16
      %v2736 = vrot.slane %v2734, 5
      %v2737 = vsel %vm934, %v2732, %v2736
      %v2739 = vshrl.u32 %v2438, 16
      %v2741 = vrot.slane %v2739, 4
      %v2742 = vshll.u32 %v2438, 16
      %v2744 = vrot.slane %v2742, 5
      %v2745 = vor.u32 %v2741, %v2744
      %v2746 = vrot.slane %v2745, 4
      %v2748 = vshll.u32 %v2439, 16
      %v2750 = vrot.slane %v2748, 5
      %v2751 = vsel %vm934, %v2746, %v2750
      %v2752 = vshrl.u32 %v2439, 16
      %v2754 = vrot.slane %v2752, 4
      %v2755 = vor.u32 %v2754, %v2750
      %v2756 = vrot.slane %v2755, 4
      %v2758 = vshll.u32 %v2440, 16
      %v2760 = vrot.slane %v2758, 5
      %v2761 = vsel %vm934, %v2756, %v2760
      %v2763 = vshrl.u32 %v2441, 16
      %v2765 = vrot.slane %v2763, 4
      %v2766 = vshll.u32 %v2441, 16
      %v2768 = vrot.slane %v2766, 5
      %v2769 = vor.u32 %v2765, %v2768
      %v2770 = vrot.slane %v2769, 4
      %v2772 = vshll.u32 %v2442, 16
      %v2774 = vrot.slane %v2772, 5
      %v2775 = vsel %vm934, %v2770, %v2774
      %v2776 = vshrl.u32 %v2442, 16
      %v2778 = vrot.slane %v2776, 4
      %v2779 = vor.u32 %v2778, %v2774
      %v2780 = vrot.slane %v2779, 4
      %v2782 = vshll.u32 %v2443, 16
      %v2784 = vrot.slane %v2782, 5
      %v2785 = vsel %vm934, %v2780, %v2784
      %v2787 = vshrl.u32 %v2444, 16
      %v2789 = vrot.slane %v2787, 4
      %v2790 = vshll.u32 %v2444, 16
      %v2792 = vrot.slane %v2790, 5
      %v2793 = vor.u32 %v2789, %v2792
      %v2794 = vrot.slane %v2793, 4
      %v2796 = vshll.u32 %v2445, 16
      %v2798 = vrot.slane %v2796, 5
      %v2799 = vsel %vm934, %v2794, %v2798
      %v2800 = vshrl.u32 %v2445, 16
      %v2802 = vrot.slane %v2800, 4
      %v2803 = vor.u32 %v2802, %v2798
      %v2804 = vrot.slane %v2803, 4
      %v2806 = vshll.u32 %v2446, 16
      %v2808 = vrot.slane %v2806, 5
      %v2809 = vsel %vm934, %v2804, %v2808
      %v2811 = vshrl.u32 %v2447, 16
      %v2813 = vrot.slane %v2811, 4
      %v2814 = vshll.u32 %v2447, 16
      %v2816 = vrot.slane %v2814, 5
      %v2817 = vor.u32 %v2813, %v2816
      %v2818 = vrot.slane %v2817, 4
      %v2820 = vshll.u32 %v2448, 16
      %v2822 = vrot.slane %v2820, 5
      %v2823 = vsel %vm934, %v2818, %v2822
      %v2824 = vshrl.u32 %v2448, 16
      %v2826 = vrot.slane %v2824, 4
      %v2827 = vor.u32 %v2826, %v2822
      %v2828 = vrot.slane %v2827, 4
      %v2830 = vshll.u32 %v2449, 16
      %v2832 = vrot.slane %v2830, 5
      %v2833 = vsel %vm934, %v2828, %v2832
      %s2834 = scalar_lea.vmem %s1, 8
      %v2835 = vld [vmem:[%s2834] sm:$0x3]
      %v2836 = vunpack.c.l.b16 %v2463
      %v2837 = vunpack.c.l.b16 %v2473
      %v2838 = vunpack.c.l.b16 %v2487
      %v2839 = vunpack.c.l.b16 %v2497
      %v2840 = vunpack.c.l.b16 %v2511
      %v2841 = vunpack.c.l.b16 %v2521
      %v2842 = vunpack.c.l.b16 %v2535
      %v2843 = vunpack.c.l.b16 %v2545
      %v2844 = vunpack.c.l.b16 %v2559
      %v2845 = vunpack.c.l.b16 %v2569
      %v2846 = vunpack.c.l.b16 %v2583
      %v2847 = vunpack.c.l.b16 %v2593
      %v2848 = vunpack.c.l.b16 %v2607
      %v2849 = vunpack.c.l.b16 %v2617
      %v2850 = vunpack.c.l.b16 %v2631
      %v2851 = vunpack.c.l.b16 %v2641
      %v2852 = vunpack.c.l.b16 %v2655
      %v2853 = vunpack.c.l.b16 %v2665
      %v2854 = vunpack.c.l.b16 %v2679
      %v2855 = vunpack.c.l.b16 %v2689
      %v2856 = vunpack.c.l.b16 %v2703
      %v2857 = vunpack.c.l.b16 %v2713
      %v2858 = vunpack.c.l.b16 %v2727
      %v2859 = vunpack.c.l.b16 %v2737
      %v2860 = vunpack.c.l.b16 %v2751
      %v2861 = vunpack.c.l.b16 %v2761
      %v2862 = vunpack.c.l.b16 %v2775
      %v2863 = vunpack.c.l.b16 %v2785
      %v2864 = vunpack.c.l.b16 %v2799
      %v2865 = vunpack.c.l.b16 %v2809
      %v2866 = vunpack.c.l.b16 %v2823
      %v2867 = vunpack.c.l.b16 %v2833
      %v2868 = vpack.c.b16 %v2837, %v2836
      %v2869 = vpack.c.b16 %v2839, %v2838
      %v2870 = vpack.c.b16 %v2841, %v2840
      %v2871 = vpack.c.b16 %v2843, %v2842
      %v2872 = vpack.c.b16 %v2845, %v2844
      %v2873 = vpack.c.b16 %v2847, %v2846
      %v2874 = vpack.c.b16 %v2849, %v2848
      %v2875 = vpack.c.b16 %v2851, %v2850
      %v2876 = vpack.c.b16 %v2853, %v2852
      %v2877 = vpack.c.b16 %v2855, %v2854
      %v2878 = vpack.c.b16 %v2857, %v2856
      %v2879 = vpack.c.b16 %v2859, %v2858
      %v2880 = vpack.c.b16 %v2861, %v2860
      %v2881 = vpack.c.b16 %v2863, %v2862
      %v2882 = vpack.c.b16 %v2865, %v2864
      %v2883 = vpack.c.b16 %v2867, %v2866
      %v2885 = vsel %vm1369, %v2868, 0
      %v2888 = vsel %vm1369, %v2869, 0
      %v2891 = vsel %vm1369, %v2870, 0
      %v2894 = vsel %vm1369, %v2871, 0
      %v2897 = vsel %vm1369, %v2872, 0
      %v2900 = vsel %vm1369, %v2873, 0
      %v2903 = vsel %vm1369, %v2874, 0
      %v2906 = vsel %vm1369, %v2875, 0
      %v2909 = vsel %vm1369, %v2876, 0
      %v2912 = vsel %vm1369, %v2877, 0
      %v2915 = vsel %vm1369, %v2878, 0
      %v2918 = vsel %vm1369, %v2879, 0
      %v2921 = vsel %vm1369, %v2880, 0
      %v2924 = vsel %vm1369, %v2881, 0
      %v2927 = vsel %vm1369, %v2882, 0
      %v2930 = vsel %vm1369, %v2883, 0
      %v2933 = vsel %vm1418, %v2835, 0
      %2935 = vmatpush.bf16.msra.mxu0 0
      %2936 = vmatpush.bf16.msra.mxu0 0
      %2937 = vmatpush.bf16.msra.mxu0 0
      %2938 = vmatpush.bf16.msra.mxu0 0
      %2939 = vmatpush.bf16.msra.mxu0 0
      %2940 = vmatpush.bf16.msra.mxu0 0
      %2941 = vmatpush.bf16.msra.mxu0 0
      %2942 = vmatpush.bf16.msra.mxu0 %v2933
      %2943 = vmatmul.bf16.gmra.mxu0 %v2885
      %v2944 = vpop.f32.mrf.mxu0
      %v2945 = vadd.f32 0.0, %v2944
      %v2946 = vpop.f32.mrf.mxu0
      %v2947 = vadd.f32 0.0, %v2946
      %2948 = vmatmul.bf16.gmra.mxu0 %v2888
      %v2949 = vpop.f32.mrf.mxu0
      %v2950 = vadd.f32 0.0, %v2949
      %v2951 = vpop.f32.mrf.mxu0
      %v2952 = vadd.f32 0.0, %v2951
      %2953 = vmatmul.bf16.gmra.mxu0 %v2891
      %v2954 = vpop.f32.mrf.mxu0
      %v2955 = vadd.f32 0.0, %v2954
      %v2956 = vpop.f32.mrf.mxu0
      %v2957 = vadd.f32 0.0, %v2956
      %2958 = vmatmul.bf16.gmra.mxu0 %v2894
      %v2959 = vpop.f32.mrf.mxu0
      %v2960 = vadd.f32 0.0, %v2959
      %v2961 = vpop.f32.mrf.mxu0
      %v2962 = vadd.f32 0.0, %v2961
      %2963 = vmatmul.bf16.gmra.mxu0 %v2897
      %v2964 = vpop.f32.mrf.mxu0
      %v2965 = vadd.f32 0.0, %v2964
      %v2966 = vpop.f32.mrf.mxu0
      %v2967 = vadd.f32 0.0, %v2966
      %2968 = vmatmul.bf16.gmra.mxu0 %v2900
      %v2969 = vpop.f32.mrf.mxu0
      %v2970 = vadd.f32 0.0, %v2969
      %v2971 = vpop.f32.mrf.mxu0
      %v2972 = vadd.f32 0.0, %v2971
      %2973 = vmatmul.bf16.gmra.mxu0 %v2903
      %v2974 = vpop.f32.mrf.mxu0
      %v2975 = vadd.f32 0.0, %v2974
      %v2976 = vpop.f32.mrf.mxu0
      %v2977 = vadd.f32 0.0, %v2976
      %2978 = vmatmul.bf16.gmra.mxu0 %v2906
      %v2979 = vpop.f32.mrf.mxu0
      %v2980 = vadd.f32 0.0, %v2979
      %v2981 = vpop.f32.mrf.mxu0
      %v2982 = vadd.f32 0.0, %v2981
      %2983 = vmatmul.bf16.gmra.mxu0 %v2909
      %v2984 = vpop.f32.mrf.mxu0
      %v2985 = vadd.f32 0.0, %v2984
      %v2986 = vpop.f32.mrf.mxu0
      %v2987 = vadd.f32 0.0, %v2986
      %2988 = vmatmul.bf16.gmra.mxu0 %v2912
      %v2989 = vpop.f32.mrf.mxu0
      %v2990 = vadd.f32 0.0, %v2989
      %v2991 = vpop.f32.mrf.mxu0
      %v2992 = vadd.f32 0.0, %v2991
      %2993 = vmatmul.bf16.gmra.mxu0 %v2915
      %v2994 = vpop.f32.mrf.mxu0
      %v2995 = vadd.f32 0.0, %v2994
      %v2996 = vpop.f32.mrf.mxu0
      %v2997 = vadd.f32 0.0, %v2996
      %2998 = vmatmul.bf16.gmra.mxu0 %v2918
      %v2999 = vpop.f32.mrf.mxu0
      %v3000 = vadd.f32 0.0, %v2999
      %v3001 = vpop.f32.mrf.mxu0
      %v3002 = vadd.f32 0.0, %v3001
      %3003 = vmatmul.bf16.gmra.mxu0 %v2921
      %v3004 = vpop.f32.mrf.mxu0
      %v3005 = vadd.f32 0.0, %v3004
      %v3006 = vpop.f32.mrf.mxu0
      %v3007 = vadd.f32 0.0, %v3006
      %3008 = vmatmul.bf16.gmra.mxu0 %v2924
      %v3009 = vpop.f32.mrf.mxu0
      %v3010 = vadd.f32 0.0, %v3009
      %v3011 = vpop.f32.mrf.mxu0
      %v3012 = vadd.f32 0.0, %v3011
      %3013 = vmatmul.bf16.gmra.mxu0 %v2927
      %v3014 = vpop.f32.mrf.mxu0
      %v3015 = vadd.f32 0.0, %v3014
      %v3016 = vpop.f32.mrf.mxu0
      %v3017 = vadd.f32 0.0, %v3016
      %3018 = vmatmul.bf16.gmra.mxu0 %v2930
      %v3019 = vpop.f32.mrf.mxu0
      %v3020 = vadd.f32 0.0, %v3019
      %v3021 = vpop.f32.mrf.mxu0
      %v3022 = vadd.f32 0.0, %v3021
      %3023 = vdwg.mxu0
      %v3024 = vadd.f32 %v2370, %v2945
      %v3025 = vadd.f32 %v2371, %v2947
      %v3026 = vadd.f32 %v2372, %v2950
      %v3027 = vadd.f32 %v2373, %v2952
      %v3028 = vadd.f32 %v2374, %v2955
      %v3029 = vadd.f32 %v2375, %v2957
      %v3030 = vadd.f32 %v2376, %v2960
      %v3031 = vadd.f32 %v2377, %v2962
      %v3032 = vadd.f32 %v2378, %v2965
      %v3033 = vadd.f32 %v2379, %v2967
      %v3034 = vadd.f32 %v2380, %v2970
      %v3035 = vadd.f32 %v2381, %v2972
      %v3036 = vadd.f32 %v2382, %v2975
      %v3037 = vadd.f32 %v2383, %v2977
      %v3038 = vadd.f32 %v2384, %v2980
      %v3039 = vadd.f32 %v2385, %v2982
      %v3040 = vadd.f32 %v2386, %v2985
      %v3041 = vadd.f32 %v2387, %v2987
      %v3042 = vadd.f32 %v2388, %v2990
      %v3043 = vadd.f32 %v2389, %v2992
      %v3044 = vadd.f32 %v2390, %v2995
      %v3045 = vadd.f32 %v2391, %v2997
      %v3046 = vadd.f32 %v2392, %v3000
      %v3047 = vadd.f32 %v2393, %v3002
      %v3048 = vadd.f32 %v2394, %v3005
      %v3049 = vadd.f32 %v2395, %v3007
      %v3050 = vadd.f32 %v2396, %v3010
      %v3051 = vadd.f32 %v2397, %v3012
      %v3052 = vadd.f32 %v2398, %v3015
      %v3053 = vadd.f32 %v2399, %v3017
      %v3054 = vadd.f32 %v2400, %v3020
      %v3055 = vadd.f32 %v2401, %v3022
      %v3056 = vld [vmem:[%s768] sm:$0xe]
      %v3057 = vld [vmem:[%s768 + $0xc] sm:$0xe]
      %v3058 = vld [vmem:[%s768 + $0x18] sm:$0xe]
      %v3059 = vld [vmem:[%s768 + $0x24] sm:$0xe]
      %v3060 = vld [vmem:[%s768 + $0x30] sm:$0xe]
      %v3061 = vld [vmem:[%s768 + $0x3c] sm:$0xe]
      %v3062 = vld [vmem:[%s768 + $0x48] sm:$0xe]
      %v3063 = vld [vmem:[%s768 + $0x54] sm:$0xe]
      %v3064 = vld [vmem:[%s768 + $0x60] sm:$0xe]
      %v3065 = vld [vmem:[%s768 + $0x6c] sm:$0xe]
      %v3066 = vld [vmem:[%s768 + $0x78] sm:$0xe]
      %v3067 = vld [vmem:[%s768 + $0x84] sm:$0xe]
      %v3068 = vld [vmem:[%s768 + $0x90] sm:$0xe]
      %v3069 = vld [vmem:[%s768 + $0x9c] sm:$0xe]
      %v3070 = vld [vmem:[%s768 + $0xa8] sm:$0xe]
      %v3071 = vld [vmem:[%s768 + $0xb4] sm:$0xe]
      %v3120 = vrot.slane %v3056, 5
      %v3121 = vrot.slane %v3120, 4
      %v3122 = vrot.slane %v2403, 5
      %v3123 = vsel %vm1781, %v3121, %v3122
      %v3124 = vrot.slane %v3122, 4
      %v3125 = vrot.slane %v2404, 5
      %v3126 = vsel %vm1781, %v3124, %v3125
      %v3127 = vrot.slane %v3057, 5
      %v3128 = vrot.slane %v3127, 4
      %v3129 = vrot.slane %v2406, 5
      %v3130 = vsel %vm1781, %v3128, %v3129
      %v3131 = vrot.slane %v3129, 4
      %v3132 = vrot.slane %v2407, 5
      %v3133 = vsel %vm1781, %v3131, %v3132
      %v3134 = vrot.slane %v3058, 5
      %v3135 = vrot.slane %v3134, 4
      %v3136 = vrot.slane %v2409, 5
      %v3137 = vsel %vm1781, %v3135, %v3136
      %v3138 = vrot.slane %v3136, 4
      %v3139 = vrot.slane %v2410, 5
      %v3140 = vsel %vm1781, %v3138, %v3139
      %v3141 = vrot.slane %v3059, 5
      %v3142 = vrot.slane %v3141, 4
      %v3143 = vrot.slane %v2412, 5
      %v3144 = vsel %vm1781, %v3142, %v3143
      %v3145 = vrot.slane %v3143, 4
      %v3146 = vrot.slane %v2413, 5
      %v3147 = vsel %vm1781, %v3145, %v3146
      %v3148 = vrot.slane %v3060, 5
      %v3149 = vrot.slane %v3148, 4
      %v3150 = vrot.slane %v2415, 5
      %v3151 = vsel %vm1781, %v3149, %v3150
      %v3152 = vrot.slane %v3150, 4
      %v3153 = vrot.slane %v2416, 5
      %v3154 = vsel %vm1781, %v3152, %v3153
      %v3155 = vrot.slane %v3061, 5
      %v3156 = vrot.slane %v3155, 4
      %v3157 = vrot.slane %v2418, 5
      %v3158 = vsel %vm1781, %v3156, %v3157
      %v3159 = vrot.slane %v3157, 4
      %v3160 = vrot.slane %v2419, 5
      %v3161 = vsel %vm1781, %v3159, %v3160
      %v3162 = vrot.slane %v3062, 5
      %v3163 = vrot.slane %v3162, 4
      %v3164 = vrot.slane %v2421, 5
      %v3165 = vsel %vm1781, %v3163, %v3164
      %v3166 = vrot.slane %v3164, 4
      %v3167 = vrot.slane %v2422, 5
      %v3168 = vsel %vm1781, %v3166, %v3167
      %v3169 = vrot.slane %v3063, 5
      %v3170 = vrot.slane %v3169, 4
      %v3171 = vrot.slane %v2424, 5
      %v3172 = vsel %vm1781, %v3170, %v3171
      %v3173 = vrot.slane %v3171, 4
      %v3174 = vrot.slane %v2425, 5
      %v3175 = vsel %vm1781, %v3173, %v3174
      %v3176 = vrot.slane %v3064, 5
      %v3177 = vrot.slane %v3176, 4
      %v3178 = vrot.slane %v2427, 5
      %v3179 = vsel %vm1781, %v3177, %v3178
      %v3180 = vrot.slane %v3178, 4
      %v3181 = vrot.slane %v2428, 5
      %v3182 = vsel %vm1781, %v3180, %v3181
      %v3183 = vrot.slane %v3065, 5
      %v3184 = vrot.slane %v3183, 4
      %v3185 = vrot.slane %v2430, 5
      %v3186 = vsel %vm1781, %v3184, %v3185
      %v3187 = vrot.slane %v3185, 4
      %v3188 = vrot.slane %v2431, 5
      %v3189 = vsel %vm1781, %v3187, %v3188
      %v3190 = vrot.slane %v3066, 5
      %v3191 = vrot.slane %v3190, 4
      %v3192 = vrot.slane %v2433, 5
      %v3193 = vsel %vm1781, %v3191, %v3192
      %v3194 = vrot.slane %v3192, 4
      %v3195 = vrot.slane %v2434, 5
      %v3196 = vsel %vm1781, %v3194, %v3195
      %v3197 = vrot.slane %v3067, 5
      %v3198 = vrot.slane %v3197, 4
      %v3199 = vrot.slane %v2436, 5
      %v3200 = vsel %vm1781, %v3198, %v3199
      %v3201 = vrot.slane %v3199, 4
      %v3202 = vrot.slane %v2437, 5
      %v3203 = vsel %vm1781, %v3201, %v3202
      %v3204 = vrot.slane %v3068, 5
      %v3205 = vrot.slane %v3204, 4
      %v3206 = vrot.slane %v2439, 5
      %v3207 = vsel %vm1781, %v3205, %v3206
      %v3208 = vrot.slane %v3206, 4
      %v3209 = vrot.slane %v2440, 5
      %v3210 = vsel %vm1781, %v3208, %v3209
      %v3211 = vrot.slane %v3069, 5
      %v3212 = vrot.slane %v3211, 4
      %v3213 = vrot.slane %v2442, 5
      %v3214 = vsel %vm1781, %v3212, %v3213
      %v3215 = vrot.slane %v3213, 4
      %v3216 = vrot.slane %v2443, 5
      %v3217 = vsel %vm1781, %v3215, %v3216
      %v3218 = vrot.slane %v3070, 5
      %v3219 = vrot.slane %v3218, 4
      %v3220 = vrot.slane %v2445, 5
      %v3221 = vsel %vm1781, %v3219, %v3220
      %v3222 = vrot.slane %v3220, 4
      %v3223 = vrot.slane %v2446, 5
      %v3224 = vsel %vm1781, %v3222, %v3223
      %v3225 = vrot.slane %v3071, 5
      %v3226 = vrot.slane %v3225, 4
      %v3227 = vrot.slane %v2448, 5
      %v3228 = vsel %vm1781, %v3226, %v3227
      %v3229 = vrot.slane %v3227, 4
      %v3230 = vrot.slane %v2449, 5
      %v3231 = vsel %vm1781, %v3229, %v3230
      %s3232 = scalar_lea.vmem %s1, 10
      %v3233 = vld [vmem:[%s3232] sm:$0x3]
      %v3234 = vunpack.c.l.b16 %v3123
      %v3235 = vunpack.c.l.b16 %v3126
      %v3236 = vunpack.c.l.b16 %v3130
      %v3237 = vunpack.c.l.b16 %v3133
      %v3238 = vunpack.c.l.b16 %v3137
      %v3239 = vunpack.c.l.b16 %v3140
      %v3240 = vunpack.c.l.b16 %v3144
      %v3241 = vunpack.c.l.b16 %v3147
      %v3242 = vunpack.c.l.b16 %v3151
      %v3243 = vunpack.c.l.b16 %v3154
      %v3244 = vunpack.c.l.b16 %v3158
      %v3245 = vunpack.c.l.b16 %v3161
      %v3246 = vunpack.c.l.b16 %v3165
      %v3247 = vunpack.c.l.b16 %v3168
      %v3248 = vunpack.c.l.b16 %v3172
      %v3249 = vunpack.c.l.b16 %v3175
      %v3250 = vunpack.c.l.b16 %v3179
      %v3251 = vunpack.c.l.b16 %v3182
      %v3252 = vunpack.c.l.b16 %v3186
      %v3253 = vunpack.c.l.b16 %v3189
      %v3254 = vunpack.c.l.b16 %v3193
      %v3255 = vunpack.c.l.b16 %v3196
      %v3256 = vunpack.c.l.b16 %v3200
      %v3257 = vunpack.c.l.b16 %v3203
      %v3258 = vunpack.c.l.b16 %v3207
      %v3259 = vunpack.c.l.b16 %v3210
      %v3260 = vunpack.c.l.b16 %v3214
      %v3261 = vunpack.c.l.b16 %v3217
      %v3262 = vunpack.c.l.b16 %v3221
      %v3263 = vunpack.c.l.b16 %v3224
      %v3264 = vunpack.c.l.b16 %v3228
      %v3265 = vunpack.c.l.b16 %v3231
      %v3266 = vpack.c.b16 %v3235, %v3234
      %v3267 = vpack.c.b16 %v3237, %v3236
      %v3268 = vpack.c.b16 %v3239, %v3238
      %v3269 = vpack.c.b16 %v3241, %v3240
      %v3270 = vpack.c.b16 %v3243, %v3242
      %v3271 = vpack.c.b16 %v3245, %v3244
      %v3272 = vpack.c.b16 %v3247, %v3246
      %v3273 = vpack.c.b16 %v3249, %v3248
      %v3274 = vpack.c.b16 %v3251, %v3250
      %v3275 = vpack.c.b16 %v3253, %v3252
      %v3276 = vpack.c.b16 %v3255, %v3254
      %v3277 = vpack.c.b16 %v3257, %v3256
      %v3278 = vpack.c.b16 %v3259, %v3258
      %v3279 = vpack.c.b16 %v3261, %v3260
      %v3280 = vpack.c.b16 %v3263, %v3262
      %v3281 = vpack.c.b16 %v3265, %v3264
      %v3283 = vsel %vm1369, %v3266, 0
      %v3286 = vsel %vm1369, %v3267, 0
      %v3289 = vsel %vm1369, %v3268, 0
      %v3292 = vsel %vm1369, %v3269, 0
      %v3295 = vsel %vm1369, %v3270, 0
      %v3298 = vsel %vm1369, %v3271, 0
      %v3301 = vsel %vm1369, %v3272, 0
      %v3304 = vsel %vm1369, %v3273, 0
      %v3307 = vsel %vm1369, %v3274, 0
      %v3310 = vsel %vm1369, %v3275, 0
      %v3313 = vsel %vm1369, %v3276, 0
      %v3316 = vsel %vm1369, %v3277, 0
      %v3319 = vsel %vm1369, %v3278, 0
      %v3322 = vsel %vm1369, %v3279, 0
      %v3325 = vsel %vm1369, %v3280, 0
      %v3328 = vsel %vm1369, %v3281, 0
      %v3331 = vsel %vm1418, %v3233, 0
      %3333 = vmatpush.bf16.msra.mxu0 0
      %3334 = vmatpush.bf16.msra.mxu0 0
      %3335 = vmatpush.bf16.msra.mxu0 0
      %3336 = vmatpush.bf16.msra.mxu0 0
      %3337 = vmatpush.bf16.msra.mxu0 0
      %3338 = vmatpush.bf16.msra.mxu0 0
      %3339 = vmatpush.bf16.msra.mxu0 0
      %3340 = vmatpush.bf16.msra.mxu0 %v3331
      %3341 = vmatmul.bf16.gmra.mxu0 %v3283
      %v3342 = vpop.f32.mrf.mxu0
      %v3343 = vadd.f32 0.0, %v3342
      %v3344 = vpop.f32.mrf.mxu0
      %v3345 = vadd.f32 0.0, %v3344
      %3346 = vmatmul.bf16.gmra.mxu0 %v3286
      %v3347 = vpop.f32.mrf.mxu0
      %v3348 = vadd.f32 0.0, %v3347
      %v3349 = vpop.f32.mrf.mxu0
      %v3350 = vadd.f32 0.0, %v3349
      %3351 = vmatmul.bf16.gmra.mxu0 %v3289
      %v3352 = vpop.f32.mrf.mxu0
      %v3353 = vadd.f32 0.0, %v3352
      %v3354 = vpop.f32.mrf.mxu0
      %v3355 = vadd.f32 0.0, %v3354
      %3356 = vmatmul.bf16.gmra.mxu0 %v3292
      %v3357 = vpop.f32.mrf.mxu0
      %v3358 = vadd.f32 0.0, %v3357
      %v3359 = vpop.f32.mrf.mxu0
      %v3360 = vadd.f32 0.0, %v3359
      %3361 = vmatmul.bf16.gmra.mxu0 %v3295
      %v3362 = vpop.f32.mrf.mxu0
      %v3363 = vadd.f32 0.0, %v3362
      %v3364 = vpop.f32.mrf.mxu0
      %v3365 = vadd.f32 0.0, %v3364
      %3366 = vmatmul.bf16.gmra.mxu0 %v3298
      %v3367 = vpop.f32.mrf.mxu0
      %v3368 = vadd.f32 0.0, %v3367
      %v3369 = vpop.f32.mrf.mxu0
      %v3370 = vadd.f32 0.0, %v3369
      %3371 = vmatmul.bf16.gmra.mxu0 %v3301
      %v3372 = vpop.f32.mrf.mxu0
      %v3373 = vadd.f32 0.0, %v3372
      %v3374 = vpop.f32.mrf.mxu0
      %v3375 = vadd.f32 0.0, %v3374
      %3376 = vmatmul.bf16.gmra.mxu0 %v3304
      %v3377 = vpop.f32.mrf.mxu0
      %v3378 = vadd.f32 0.0, %v3377
      %v3379 = vpop.f32.mrf.mxu0
      %v3380 = vadd.f32 0.0, %v3379
      %3381 = vmatmul.bf16.gmra.mxu0 %v3307
      %v3382 = vpop.f32.mrf.mxu0
      %v3383 = vadd.f32 0.0, %v3382
      %v3384 = vpop.f32.mrf.mxu0
      %v3385 = vadd.f32 0.0, %v3384
      %3386 = vmatmul.bf16.gmra.mxu0 %v3310
      %v3387 = vpop.f32.mrf.mxu0
      %v3388 = vadd.f32 0.0, %v3387
      %v3389 = vpop.f32.mrf.mxu0
      %v3390 = vadd.f32 0.0, %v3389
      %3391 = vmatmul.bf16.gmra.mxu0 %v3313
      %v3392 = vpop.f32.mrf.mxu0
      %v3393 = vadd.f32 0.0, %v3392
      %v3394 = vpop.f32.mrf.mxu0
      %v3395 = vadd.f32 0.0, %v3394
      %3396 = vmatmul.bf16.gmra.mxu0 %v3316
      %v3397 = vpop.f32.mrf.mxu0
      %v3398 = vadd.f32 0.0, %v3397
      %v3399 = vpop.f32.mrf.mxu0
      %v3400 = vadd.f32 0.0, %v3399
      %3401 = vmatmul.bf16.gmra.mxu0 %v3319
      %v3402 = vpop.f32.mrf.mxu0
      %v3403 = vadd.f32 0.0, %v3402
      %v3404 = vpop.f32.mrf.mxu0
      %v3405 = vadd.f32 0.0, %v3404
      %3406 = vmatmul.bf16.gmra.mxu0 %v3322
      %v3407 = vpop.f32.mrf.mxu0
      %v3408 = vadd.f32 0.0, %v3407
      %v3409 = vpop.f32.mrf.mxu0
      %v3410 = vadd.f32 0.0, %v3409
      %3411 = vmatmul.bf16.gmra.mxu0 %v3325
      %v3412 = vpop.f32.mrf.mxu0
      %v3413 = vadd.f32 0.0, %v3412
      %v3414 = vpop.f32.mrf.mxu0
      %v3415 = vadd.f32 0.0, %v3414
      %3416 = vmatmul.bf16.gmra.mxu0 %v3328
      %v3417 = vpop.f32.mrf.mxu0
      %v3418 = vadd.f32 0.0, %v3417
      %v3419 = vpop.f32.mrf.mxu0
      %v3420 = vadd.f32 0.0, %v3419
      %3421 = vdwg.mxu0
      %v3422 = vadd.f32 %v3024, %v3343
      %v3423 = vadd.f32 %v3025, %v3345
      %v3424 = vadd.f32 %v3026, %v3348
      %v3425 = vadd.f32 %v3027, %v3350
      %v3426 = vadd.f32 %v3028, %v3353
      %v3427 = vadd.f32 %v3029, %v3355
      %v3428 = vadd.f32 %v3030, %v3358
      %v3429 = vadd.f32 %v3031, %v3360
      %v3430 = vadd.f32 %v3032, %v3363
      %v3431 = vadd.f32 %v3033, %v3365
      %v3432 = vadd.f32 %v3034, %v3368
      %v3433 = vadd.f32 %v3035, %v3370
      %v3434 = vadd.f32 %v3036, %v3373
      %v3435 = vadd.f32 %v3037, %v3375
      %v3436 = vadd.f32 %v3038, %v3378
      %v3437 = vadd.f32 %v3039, %v3380
      %v3438 = vadd.f32 %v3040, %v3383
      %v3439 = vadd.f32 %v3041, %v3385
      %v3440 = vadd.f32 %v3042, %v3388
      %v3441 = vadd.f32 %v3043, %v3390
      %v3442 = vadd.f32 %v3044, %v3393
      %v3443 = vadd.f32 %v3045, %v3395
      %v3444 = vadd.f32 %v3046, %v3398
      %v3445 = vadd.f32 %v3047, %v3400
      %v3446 = vadd.f32 %v3048, %v3403
      %v3447 = vadd.f32 %v3049, %v3405
      %v3448 = vadd.f32 %v3050, %v3408
      %v3449 = vadd.f32 %v3051, %v3410
      %v3450 = vadd.f32 %v3052, %v3413
      %v3451 = vadd.f32 %v3053, %v3415
      %v3452 = vadd.f32 %v3054, %v3418
      %v3453 = vadd.f32 %v3055, %v3420
      %s3454 = scalar_lea.vmem [#allocation2], 24
      %v3455 = vld [vmem:[%s3454] sm:$0xf]
      %v3456 = vld [vmem:[%s3454 + $0x4] sm:$0xf]
      %v3457 = vld [vmem:[%s3454 + $0xc] sm:$0xf]
      %v3458 = vld [vmem:[%s3454 + $0x10] sm:$0xf]
      %v3459 = vld [vmem:[%s3454 + $0x18] sm:$0xf]
      %v3460 = vld [vmem:[%s3454 + $0x1c] sm:$0xf]
      %v3461 = vld [vmem:[%s3454 + $0x24] sm:$0xf]
      %v3462 = vld [vmem:[%s3454 + $0x28] sm:$0xf]
      %v3463 = vld [vmem:[%s3454 + $0x30] sm:$0xf]
      %v3464 = vld [vmem:[%s3454 + $0x34] sm:$0xf]
      %v3465 = vld [vmem:[%s3454 + $0x3c] sm:$0xf]
      %v3466 = vld [vmem:[%s3454 + $0x40] sm:$0xf]
      %v3467 = vld [vmem:[%s3454 + $0x48] sm:$0xf]
      %v3468 = vld [vmem:[%s3454 + $0x4c] sm:$0xf]
      %v3469 = vld [vmem:[%s3454 + $0x54] sm:$0xf]
      %v3470 = vld [vmem:[%s3454 + $0x58] sm:$0xf]
      %v3471 = vld [vmem:[%s3454 + $0x60] sm:$0xf]
      %v3472 = vld [vmem:[%s3454 + $0x64] sm:$0xf]
      %v3473 = vld [vmem:[%s3454 + $0x6c] sm:$0xf]
      %v3474 = vld [vmem:[%s3454 + $0x70] sm:$0xf]
      %v3475 = vld [vmem:[%s3454 + $0x78] sm:$0xf]
      %v3476 = vld [vmem:[%s3454 + $0x7c] sm:$0xf]
      %v3477 = vld [vmem:[%s3454 + $0x84] sm:$0xf]
      %v3478 = vld [vmem:[%s3454 + $0x88] sm:$0xf]
      %v3479 = vld [vmem:[%s3454 + $0x90] sm:$0xf]
      %v3480 = vld [vmem:[%s3454 + $0x94] sm:$0xf]
      %v3481 = vld [vmem:[%s3454 + $0x9c] sm:$0xf]
      %v3482 = vld [vmem:[%s3454 + $0xa0] sm:$0xf]
      %v3483 = vld [vmem:[%s3454 + $0xa8] sm:$0xf]
      %v3484 = vld [vmem:[%s3454 + $0xac] sm:$0xf]
      %v3485 = vld [vmem:[%s3454 + $0xb4] sm:$0xf]
      %v3486 = vld [vmem:[%s3454 + $0xb8] sm:$0xf]
      %s3487 = scalar_lea.vmem %s1, 12
      %v3488 = vld [vmem:[%s3487] sm:$0x3]
      %v3521 = vunpack.c.l.b16 %v3455
      %v3522 = vunpack.c.l.b16 %v3456
      %v3523 = vunpack.c.l.b16 %v3457
      %v3524 = vunpack.c.l.b16 %v3458
      %v3525 = vunpack.c.l.b16 %v3459
      %v3526 = vunpack.c.l.b16 %v3460
      %v3527 = vunpack.c.l.b16 %v3461
      %v3528 = vunpack.c.l.b16 %v3462
      %v3529 = vunpack.c.l.b16 %v3463
      %v3530 = vunpack.c.l.b16 %v3464
      %v3531 = vunpack.c.l.b16 %v3465
      %v3532 = vunpack.c.l.b16 %v3466
      %v3533 = vunpack.c.l.b16 %v3467
      %v3534 = vunpack.c.l.b16 %v3468
      %v3535 = vunpack.c.l.b16 %v3469
      %v3536 = vunpack.c.l.b16 %v3470
      %v3537 = vunpack.c.l.b16 %v3471
      %v3538 = vunpack.c.l.b16 %v3472
      %v3539 = vunpack.c.l.b16 %v3473
      %v3540 = vunpack.c.l.b16 %v3474
      %v3541 = vunpack.c.l.b16 %v3475
      %v3542 = vunpack.c.l.b16 %v3476
      %v3543 = vunpack.c.l.b16 %v3477
      %v3544 = vunpack.c.l.b16 %v3478
      %v3545 = vunpack.c.l.b16 %v3479
      %v3546 = vunpack.c.l.b16 %v3480
      %v3547 = vunpack.c.l.b16 %v3481
      %v3548 = vunpack.c.l.b16 %v3482
      %v3549 = vunpack.c.l.b16 %v3483
      %v3550 = vunpack.c.l.b16 %v3484
      %v3551 = vunpack.c.l.b16 %v3485
      %v3552 = vunpack.c.l.b16 %v3486
      %v3553 = vpack.c.b16 %v3522, %v3521
      %v3554 = vpack.c.b16 %v3524, %v3523
      %v3555 = vpack.c.b16 %v3526, %v3525
      %v3556 = vpack.c.b16 %v3528, %v3527
      %v3557 = vpack.c.b16 %v3530, %v3529
      %v3558 = vpack.c.b16 %v3532, %v3531
      %v3559 = vpack.c.b16 %v3534, %v3533
      %v3560 = vpack.c.b16 %v3536, %v3535
      %v3561 = vpack.c.b16 %v3538, %v3537
      %v3562 = vpack.c.b16 %v3540, %v3539
      %v3563 = vpack.c.b16 %v3542, %v3541
      %v3564 = vpack.c.b16 %v3544, %v3543
      %v3565 = vpack.c.b16 %v3546, %v3545
      %v3566 = vpack.c.b16 %v3548, %v3547
      %v3567 = vpack.c.b16 %v3550, %v3549
      %v3568 = vpack.c.b16 %v3552, %v3551
      %v3570 = vsel %vm1369, %v3553, 0
      %v3573 = vsel %vm1369, %v3554, 0
      %v3576 = vsel %vm1369, %v3555, 0
      %v3579 = vsel %vm1369, %v3556, 0
      %v3582 = vsel %vm1369, %v3557, 0
      %v3585 = vsel %vm1369, %v3558, 0
      %v3588 = vsel %vm1369, %v3559, 0
      %v3591 = vsel %vm1369, %v3560, 0
      %v3594 = vsel %vm1369, %v3561, 0
      %v3597 = vsel %vm1369, %v3562, 0
      %v3600 = vsel %vm1369, %v3563, 0
      %v3603 = vsel %vm1369, %v3564, 0
      %v3606 = vsel %vm1369, %v3565, 0
      %v3609 = vsel %vm1369, %v3566, 0
      %v3612 = vsel %vm1369, %v3567, 0
      %v3615 = vsel %vm1369, %v3568, 0
      %v3618 = vsel %vm1418, %v3488, 0
      %3620 = vmatpush.bf16.msra.mxu0 0
      %3621 = vmatpush.bf16.msra.mxu0 0
      %3622 = vmatpush.bf16.msra.mxu0 0
      %3623 = vmatpush.bf16.msra.mxu0 0
      %3624 = vmatpush.bf16.msra.mxu0 0
      %3625 = vmatpush.bf16.msra.mxu0 0
      %3626 = vmatpush.bf16.msra.mxu0 0
      %3627 = vmatpush.bf16.msra.mxu0 %v3618
      %3628 = vmatmul.bf16.gmra.mxu0 %v3570
      %v3629 = vpop.f32.mrf.mxu0
      %v3630 = vadd.f32 0.0, %v3629
      %v3631 = vpop.f32.mrf.mxu0
      %v3632 = vadd.f32 0.0, %v3631
      %3633 = vmatmul.bf16.gmra.mxu0 %v3573
      %v3634 = vpop.f32.mrf.mxu0
      %v3635 = vadd.f32 0.0, %v3634
      %v3636 = vpop.f32.mrf.mxu0
      %v3637 = vadd.f32 0.0, %v3636
      %3638 = vmatmul.bf16.gmra.mxu0 %v3576
      %v3639 = vpop.f32.mrf.mxu0
      %v3640 = vadd.f32 0.0, %v3639
      %v3641 = vpop.f32.mrf.mxu0
      %v3642 = vadd.f32 0.0, %v3641
      %3643 = vmatmul.bf16.gmra.mxu0 %v3579
      %v3644 = vpop.f32.mrf.mxu0
      %v3645 = vadd.f32 0.0, %v3644
      %v3646 = vpop.f32.mrf.mxu0
      %v3647 = vadd.f32 0.0, %v3646
      %3648 = vmatmul.bf16.gmra.mxu0 %v3582
      %v3649 = vpop.f32.mrf.mxu0
      %v3650 = vadd.f32 0.0, %v3649
      %v3651 = vpop.f32.mrf.mxu0
      %v3652 = vadd.f32 0.0, %v3651
      %3653 = vmatmul.bf16.gmra.mxu0 %v3585
      %v3654 = vpop.f32.mrf.mxu0
      %v3655 = vadd.f32 0.0, %v3654
      %v3656 = vpop.f32.mrf.mxu0
      %v3657 = vadd.f32 0.0, %v3656
      %3658 = vmatmul.bf16.gmra.mxu0 %v3588
      %v3659 = vpop.f32.mrf.mxu0
      %v3660 = vadd.f32 0.0, %v3659
      %v3661 = vpop.f32.mrf.mxu0
      %v3662 = vadd.f32 0.0, %v3661
      %3663 = vmatmul.bf16.gmra.mxu0 %v3591
      %v3664 = vpop.f32.mrf.mxu0
      %v3665 = vadd.f32 0.0, %v3664
      %v3666 = vpop.f32.mrf.mxu0
      %v3667 = vadd.f32 0.0, %v3666
      %3668 = vmatmul.bf16.gmra.mxu0 %v3594
      %v3669 = vpop.f32.mrf.mxu0
      %v3670 = vadd.f32 0.0, %v3669
      %v3671 = vpop.f32.mrf.mxu0
      %v3672 = vadd.f32 0.0, %v3671
      %3673 = vmatmul.bf16.gmra.mxu0 %v3597
      %v3674 = vpop.f32.mrf.mxu0
      %v3675 = vadd.f32 0.0, %v3674
      %v3676 = vpop.f32.mrf.mxu0
      %v3677 = vadd.f32 0.0, %v3676
      %3678 = vmatmul.bf16.gmra.mxu0 %v3600
      %v3679 = vpop.f32.mrf.mxu0
      %v3680 = vadd.f32 0.0, %v3679
      %v3681 = vpop.f32.mrf.mxu0
      %v3682 = vadd.f32 0.0, %v3681
      %3683 = vmatmul.bf16.gmra.mxu0 %v3603
      %v3684 = vpop.f32.mrf.mxu0
      %v3685 = vadd.f32 0.0, %v3684
      %v3686 = vpop.f32.mrf.mxu0
      %v3687 = vadd.f32 0.0, %v3686
      %3688 = vmatmul.bf16.gmra.mxu0 %v3606
      %v3689 = vpop.f32.mrf.mxu0
      %v3690 = vadd.f32 0.0, %v3689
      %v3691 = vpop.f32.mrf.mxu0
      %v3692 = vadd.f32 0.0, %v3691
      %3693 = vmatmul.bf16.gmra.mxu0 %v3609
      %v3694 = vpop.f32.mrf.mxu0
      %v3695 = vadd.f32 0.0, %v3694
      %v3696 = vpop.f32.mrf.mxu0
      %v3697 = vadd.f32 0.0, %v3696
      %3698 = vmatmul.bf16.gmra.mxu0 %v3612
      %v3699 = vpop.f32.mrf.mxu0
      %v3700 = vadd.f32 0.0, %v3699
      %v3701 = vpop.f32.mrf.mxu0
      %v3702 = vadd.f32 0.0, %v3701
      %3703 = vmatmul.bf16.gmra.mxu0 %v3615
      %v3704 = vpop.f32.mrf.mxu0
      %v3705 = vadd.f32 0.0, %v3704
      %v3706 = vpop.f32.mrf.mxu0
      %v3707 = vadd.f32 0.0, %v3706
      %3708 = vdwg.mxu0
      %v3709 = vadd.f32 %v3422, %v3630
      %v3710 = vadd.f32 %v3423, %v3632
      %v3711 = vadd.f32 %v3424, %v3635
      %v3712 = vadd.f32 %v3425, %v3637
      %v3713 = vadd.f32 %v3426, %v3640
      %v3714 = vadd.f32 %v3427, %v3642
      %v3715 = vadd.f32 %v3428, %v3645
      %v3716 = vadd.f32 %v3429, %v3647
      %v3717 = vadd.f32 %v3430, %v3650
      %v3718 = vadd.f32 %v3431, %v3652
      %v3719 = vadd.f32 %v3432, %v3655
      %v3720 = vadd.f32 %v3433, %v3657
      %v3721 = vadd.f32 %v3434, %v3660
      %v3722 = vadd.f32 %v3435, %v3662
      %v3723 = vadd.f32 %v3436, %v3665
      %v3724 = vadd.f32 %v3437, %v3667
      %v3725 = vadd.f32 %v3438, %v3670
      %v3726 = vadd.f32 %v3439, %v3672
      %v3727 = vadd.f32 %v3440, %v3675
      %v3728 = vadd.f32 %v3441, %v3677
      %v3729 = vadd.f32 %v3442, %v3680
      %v3730 = vadd.f32 %v3443, %v3682
      %v3731 = vadd.f32 %v3444, %v3685
      %v3732 = vadd.f32 %v3445, %v3687
      %v3733 = vadd.f32 %v3446, %v3690
      %v3734 = vadd.f32 %v3447, %v3692
      %v3735 = vadd.f32 %v3448, %v3695
      %v3736 = vadd.f32 %v3449, %v3697
      %v3737 = vadd.f32 %v3450, %v3700
      %v3738 = vadd.f32 %v3451, %v3702
      %v3739 = vadd.f32 %v3452, %v3705
      %v3740 = vadd.f32 %v3453, %v3707
      %v3741 = vld [vmem:[%s3454] sm:$0xf]
      %v3742 = vld [vmem:[%s3454 + $0x4] sm:$0xf]
      %v3743 = vld [vmem:[%s3454 + $0x8] sm:$0x1]
      %v3744 = vld [vmem:[%s3454 + $0xc] sm:$0xf]
      %v3745 = vld [vmem:[%s3454 + $0x10] sm:$0xf]
      %v3746 = vld [vmem:[%s3454 + $0x14] sm:$0x1]
      %v3747 = vld [vmem:[%s3454 + $0x18] sm:$0xf]
      %v3748 = vld [vmem:[%s3454 + $0x1c] sm:$0xf]
      %v3749 = vld [vmem:[%s3454 + $0x20] sm:$0x1]
      %v3750 = vld [vmem:[%s3454 + $0x24] sm:$0xf]
      %v3751 = vld [vmem:[%s3454 + $0x28] sm:$0xf]
      %v3752 = vld [vmem:[%s3454 + $0x2c] sm:$0x1]
      %v3753 = vld [vmem:[%s3454 + $0x30] sm:$0xf]
      %v3754 = vld [vmem:[%s3454 + $0x34] sm:$0xf]
      %v3755 = vld [vmem:[%s3454 + $0x38] sm:$0x1]
      %v3756 = vld [vmem:[%s3454 + $0x3c] sm:$0xf]
      %v3757 = vld [vmem:[%s3454 + $0x40] sm:$0xf]
      %v3758 = vld [vmem:[%s3454 + $0x44] sm:$0x1]
      %v3759 = vld [vmem:[%s3454 + $0x48] sm:$0xf]
      %v3760 = vld [vmem:[%s3454 + $0x4c] sm:$0xf]
      %v3761 = vld [vmem:[%s3454 + $0x50] sm:$0x1]
      %v3762 = vld [vmem:[%s3454 + $0x54] sm:$0xf]
      %v3763 = vld [vmem:[%s3454 + $0x58] sm:$0xf]
      %v3764 = vld [vmem:[%s3454 + $0x5c] sm:$0x1]
      %v3765 = vld [vmem:[%s3454 + $0x60] sm:$0xf]
      %v3766 = vld [vmem:[%s3454 + $0x64] sm:$0xf]
      %v3767 = vld [vmem:[%s3454 + $0x68] sm:$0x1]
      %v3768 = vld [vmem:[%s3454 + $0x6c] sm:$0xf]
      %v3769 = vld [vmem:[%s3454 + $0x70] sm:$0xf]
      %v3770 = vld [vmem:[%s3454 + $0x74] sm:$0x1]
      %v3771 = vld [vmem:[%s3454 + $0x78] sm:$0xf]
      %v3772 = vld [vmem:[%s3454 + $0x7c] sm:$0xf]
      %v3773 = vld [vmem:[%s3454 + $0x80] sm:$0x1]
      %v3774 = vld [vmem:[%s3454 + $0x84] sm:$0xf]
      %v3775 = vld [vmem:[%s3454 + $0x88] sm:$0xf]
      %v3776 = vld [vmem:[%s3454 + $0x8c] sm:$0x1]
      %v3777 = vld [vmem:[%s3454 + $0x90] sm:$0xf]
      %v3778 = vld [vmem:[%s3454 + $0x94] sm:$0xf]
      %v3779 = vld [vmem:[%s3454 + $0x98] sm:$0x1]
      %v3780 = vld [vmem:[%s3454 + $0x9c] sm:$0xf]
      %v3781 = vld [vmem:[%s3454 + $0xa0] sm:$0xf]
      %v3782 = vld [vmem:[%s3454 + $0xa4] sm:$0x1]
      %v3783 = vld [vmem:[%s3454 + $0xa8] sm:$0xf]
      %v3784 = vld [vmem:[%s3454 + $0xac] sm:$0xf]
      %v3785 = vld [vmem:[%s3454 + $0xb0] sm:$0x1]
      %v3786 = vld [vmem:[%s3454 + $0xb4] sm:$0xf]
      %v3787 = vld [vmem:[%s3454 + $0xb8] sm:$0xf]
      %v3788 = vld [vmem:[%s3454 + $0xbc] sm:$0x1]
      %v3790 = vshrl.u32 %v3741, 16
      %v3792 = vrot.slane %v3790, 4
      %v3793 = vshll.u32 %v3741, 16
      %v3795 = vrot.slane %v3793, 5
      %v3796 = vor.u32 %v3792, %v3795
      %v3797 = vrot.slane %v3796, 4
      %v3799 = vshll.u32 %v3742, 16
      %v3801 = vrot.slane %v3799, 5
      %v3802 = vsel %vm934, %v3797, %v3801
      %v3803 = vshrl.u32 %v3742, 16
      %v3805 = vrot.slane %v3803, 4
      %v3806 = vor.u32 %v3805, %v3801
      %v3807 = vrot.slane %v3806, 4
      %v3809 = vshll.u32 %v3743, 16
      %v3811 = vrot.slane %v3809, 5
      %v3812 = vsel %vm934, %v3807, %v3811
      %v3814 = vshrl.u32 %v3744, 16
      %v3816 = vrot.slane %v3814, 4
      %v3817 = vshll.u32 %v3744, 16
      %v3819 = vrot.slane %v3817, 5
      %v3820 = vor.u32 %v3816, %v3819
      %v3821 = vrot.slane %v3820, 4
      %v3823 = vshll.u32 %v3745, 16
      %v3825 = vrot.slane %v3823, 5
      %v3826 = vsel %vm934, %v3821, %v3825
      %v3827 = vshrl.u32 %v3745, 16
      %v3829 = vrot.slane %v3827, 4
      %v3830 = vor.u32 %v3829, %v3825
      %v3831 = vrot.slane %v3830, 4
      %v3833 = vshll.u32 %v3746, 16
      %v3835 = vrot.slane %v3833, 5
      %v3836 = vsel %vm934, %v3831, %v3835
      %v3838 = vshrl.u32 %v3747, 16
      %v3840 = vrot.slane %v3838, 4
      %v3841 = vshll.u32 %v3747, 16
      %v3843 = vrot.slane %v3841, 5
      %v3844 = vor.u32 %v3840, %v3843
      %v3845 = vrot.slane %v3844, 4
      %v3847 = vshll.u32 %v3748, 16
      %v3849 = vrot.slane %v3847, 5
      %v3850 = vsel %vm934, %v3845, %v3849
      %v3851 = vshrl.u32 %v3748, 16
      %v3853 = vrot.slane %v3851, 4
      %v3854 = vor.u32 %v3853, %v3849
      %v3855 = vrot.slane %v3854, 4
      %v3857 = vshll.u32 %v3749, 16
      %v3859 = vrot.slane %v3857, 5
      %v3860 = vsel %vm934, %v3855, %v3859
      %v3862 = vshrl.u32 %v3750, 16
      %v3864 = vrot.slane %v3862, 4
      %v3865 = vshll.u32 %v3750, 16
      %v3867 = vrot.slane %v3865, 5
      %v3868 = vor.u32 %v3864, %v3867
      %v3869 = vrot.slane %v3868, 4
      %v3871 = vshll.u32 %v3751, 16
      %v3873 = vrot.slane %v3871, 5
      %v3874 = vsel %vm934, %v3869, %v3873
      %v3875 = vshrl.u32 %v3751, 16
      %v3877 = vrot.slane %v3875, 4
      %v3878 = vor.u32 %v3877, %v3873
      %v3879 = vrot.slane %v3878, 4
      %v3881 = vshll.u32 %v3752, 16
      %v3883 = vrot.slane %v3881, 5
      %v3884 = vsel %vm934, %v3879, %v3883
      %v3886 = vshrl.u32 %v3753, 16
      %v3888 = vrot.slane %v3886, 4
      %v3889 = vshll.u32 %v3753, 16
      %v3891 = vrot.slane %v3889, 5
      %v3892 = vor.u32 %v3888, %v3891
      %v3893 = vrot.slane %v3892, 4
      %v3895 = vshll.u32 %v3754, 16
      %v3897 = vrot.slane %v3895, 5
      %v3898 = vsel %vm934, %v3893, %v3897
      %v3899 = vshrl.u32 %v3754, 16
      %v3901 = vrot.slane %v3899, 4
      %v3902 = vor.u32 %v3901, %v3897
      %v3903 = vrot.slane %v3902, 4
      %v3905 = vshll.u32 %v3755, 16
      %v3907 = vrot.slane %v3905, 5
      %v3908 = vsel %vm934, %v3903, %v3907
      %v3910 = vshrl.u32 %v3756, 16
      %v3912 = vrot.slane %v3910, 4
      %v3913 = vshll.u32 %v3756, 16
      %v3915 = vrot.slane %v3913, 5
      %v3916 = vor.u32 %v3912, %v3915
      %v3917 = vrot.slane %v3916, 4
      %v3919 = vshll.u32 %v3757, 16
      %v3921 = vrot.slane %v3919, 5
      %v3922 = vsel %vm934, %v3917, %v3921
      %v3923 = vshrl.u32 %v3757, 16
      %v3925 = vrot.slane %v3923, 4
      %v3926 = vor.u32 %v3925, %v3921
      %v3927 = vrot.slane %v3926, 4
      %v3929 = vshll.u32 %v3758, 16
      %v3931 = vrot.slane %v3929, 5
      %v3932 = vsel %vm934, %v3927, %v3931
      %v3934 = vshrl.u32 %v3759, 16
      %v3936 = vrot.slane %v3934, 4
      %v3937 = vshll.u32 %v3759, 16
      %v3939 = vrot.slane %v3937, 5
      %v3940 = vor.u32 %v3936, %v3939
      %v3941 = vrot.slane %v3940, 4
      %v3943 = vshll.u32 %v3760, 16
      %v3945 = vrot.slane %v3943, 5
      %v3946 = vsel %vm934, %v3941, %v3945
      %v3947 = vshrl.u32 %v3760, 16
      %v3949 = vrot.slane %v3947, 4
      %v3950 = vor.u32 %v3949, %v3945
      %v3951 = vrot.slane %v3950, 4
      %v3953 = vshll.u32 %v3761, 16
      %v3955 = vrot.slane %v3953, 5
      %v3956 = vsel %vm934, %v3951, %v3955
      %v3958 = vshrl.u32 %v3762, 16
      %v3960 = vrot.slane %v3958, 4
      %v3961 = vshll.u32 %v3762, 16
      %v3963 = vrot.slane %v3961, 5
      %v3964 = vor.u32 %v3960, %v3963
      %v3965 = vrot.slane %v3964, 4
      %v3967 = vshll.u32 %v3763, 16
      %v3969 = vrot.slane %v3967, 5
      %v3970 = vsel %vm934, %v3965, %v3969
      %v3971 = vshrl.u32 %v3763, 16
      %v3973 = vrot.slane %v3971, 4
      %v3974 = vor.u32 %v3973, %v3969
      %v3975 = vrot.slane %v3974, 4
      %v3977 = vshll.u32 %v3764, 16
      %v3979 = vrot.slane %v3977, 5
      %v3980 = vsel %vm934, %v3975, %v3979
      %v3982 = vshrl.u32 %v3765, 16
      %v3984 = vrot.slane %v3982, 4
      %v3985 = vshll.u32 %v3765, 16
      %v3987 = vrot.slane %v3985, 5
      %v3988 = vor.u32 %v3984, %v3987
      %v3989 = vrot.slane %v3988, 4
      %v3991 = vshll.u32 %v3766, 16
      %v3993 = vrot.slane %v3991, 5
      %v3994 = vsel %vm934, %v3989, %v3993
      %v3995 = vshrl.u32 %v3766, 16
      %v3997 = vrot.slane %v3995, 4
      %v3998 = vor.u32 %v3997, %v3993
      %v3999 = vrot.slane %v3998, 4
      %v4001 = vshll.u32 %v3767, 16
      %v4003 = vrot.slane %v4001, 5
      %v4004 = vsel %vm934, %v3999, %v4003
      %v4006 = vshrl.u32 %v3768, 16
      %v4008 = vrot.slane %v4006, 4
      %v4009 = vshll.u32 %v3768, 16
      %v4011 = vrot.slane %v4009, 5
      %v4012 = vor.u32 %v4008, %v4011
      %v4013 = vrot.slane %v4012, 4
      %v4015 = vshll.u32 %v3769, 16
      %v4017 = vrot.slane %v4015, 5
      %v4018 = vsel %vm934, %v4013, %v4017
      %v4019 = vshrl.u32 %v3769, 16
      %v4021 = vrot.slane %v4019, 4
      %v4022 = vor.u32 %v4021, %v4017
      %v4023 = vrot.slane %v4022, 4
      %v4025 = vshll.u32 %v3770, 16
      %v4027 = vrot.slane %v4025, 5
      %v4028 = vsel %vm934, %v4023, %v4027
      %v4030 = vshrl.u32 %v3771, 16
      %v4032 = vrot.slane %v4030, 4
      %v4033 = vshll.u32 %v3771, 16
      %v4035 = vrot.slane %v4033, 5
      %v4036 = vor.u32 %v4032, %v4035
      %v4037 = vrot.slane %v4036, 4
      %v4039 = vshll.u32 %v3772, 16
      %v4041 = vrot.slane %v4039, 5
      %v4042 = vsel %vm934, %v4037, %v4041
      %v4043 = vshrl.u32 %v3772, 16
      %v4045 = vrot.slane %v4043, 4
      %v4046 = vor.u32 %v4045, %v4041
      %v4047 = vrot.slane %v4046, 4
      %v4049 = vshll.u32 %v3773, 16
      %v4051 = vrot.slane %v4049, 5
      %v4052 = vsel %vm934, %v4047, %v4051
      %v4054 = vshrl.u32 %v3774, 16
      %v4056 = vrot.slane %v4054, 4
      %v4057 = vshll.u32 %v3774, 16
      %v4059 = vrot.slane %v4057, 5
      %v4060 = vor.u32 %v4056, %v4059
      %v4061 = vrot.slane %v4060, 4
      %v4063 = vshll.u32 %v3775, 16
      %v4065 = vrot.slane %v4063, 5
      %v4066 = vsel %vm934, %v4061, %v4065
      %v4067 = vshrl.u32 %v3775, 16
      %v4069 = vrot.slane %v4067, 4
      %v4070 = vor.u32 %v4069, %v4065
      %v4071 = vrot.slane %v4070, 4
      %v4073 = vshll.u32 %v3776, 16
      %v4075 = vrot.slane %v4073, 5
      %v4076 = vsel %vm934, %v4071, %v4075
      %v4078 = vshrl.u32 %v3777, 16
      %v4080 = vrot.slane %v4078, 4
      %v4081 = vshll.u32 %v3777, 16
      %v4083 = vrot.slane %v4081, 5
      %v4084 = vor.u32 %v4080, %v4083
      %v4085 = vrot.slane %v4084, 4
      %v4087 = vshll.u32 %v3778, 16
      %v4089 = vrot.slane %v4087, 5
      %v4090 = vsel %vm934, %v4085, %v4089
      %v4091 = vshrl.u32 %v3778, 16
      %v4093 = vrot.slane %v4091, 4
      %v4094 = vor.u32 %v4093, %v4089
      %v4095 = vrot.slane %v4094, 4
      %v4097 = vshll.u32 %v3779, 16
      %v4099 = vrot.slane %v4097, 5
      %v4100 = vsel %vm934, %v4095, %v4099
      %v4102 = vshrl.u32 %v3780, 16
      %v4104 = vrot.slane %v4102, 4
      %v4105 = vshll.u32 %v3780, 16
      %v4107 = vrot.slane %v4105, 5
      %v4108 = vor.u32 %v4104, %v4107
      %v4109 = vrot.slane %v4108, 4
      %v4111 = vshll.u32 %v3781, 16
      %v4113 = vrot.slane %v4111, 5
      %v4114 = vsel %vm934, %v4109, %v4113
      %v4115 = vshrl.u32 %v3781, 16
      %v4117 = vrot.slane %v4115, 4
      %v4118 = vor.u32 %v4117, %v4113
      %v4119 = vrot.slane %v4118, 4
      %v4121 = vshll.u32 %v3782, 16
      %v4123 = vrot.slane %v4121, 5
      %v4124 = vsel %vm934, %v4119, %v4123
      %v4126 = vshrl.u32 %v3783, 16
      %v4128 = vrot.slane %v4126, 4
      %v4129 = vshll.u32 %v3783, 16
      %v4131 = vrot.slane %v4129, 5
      %v4132 = vor.u32 %v4128, %v4131
      %v4133 = vrot.slane %v4132, 4
      %v4135 = vshll.u32 %v3784, 16
      %v4137 = vrot.slane %v4135, 5
      %v4138 = vsel %vm934, %v4133, %v4137
      %v4139 = vshrl.u32 %v3784, 16
      %v4141 = vrot.slane %v4139, 4
      %v4142 = vor.u32 %v4141, %v4137
      %v4143 = vrot.slane %v4142, 4
      %v4145 = vshll.u32 %v3785, 16
      %v4147 = vrot.slane %v4145, 5
      %v4148 = vsel %vm934, %v4143, %v4147
      %v4150 = vshrl.u32 %v3786, 16
      %v4152 = vrot.slane %v4150, 4
      %v4153 = vshll.u32 %v3786, 16
      %v4155 = vrot.slane %v4153, 5
      %v4156 = vor.u32 %v4152, %v4155
      %v4157 = vrot.slane %v4156, 4
      %v4159 = vshll.u32 %v3787, 16
      %v4161 = vrot.slane %v4159, 5
      %v4162 = vsel %vm934, %v4157, %v4161
      %v4163 = vshrl.u32 %v3787, 16
      %v4165 = vrot.slane %v4163, 4
      %v4166 = vor.u32 %v4165, %v4161
      %v4167 = vrot.slane %v4166, 4
      %v4169 = vshll.u32 %v3788, 16
      %v4171 = vrot.slane %v4169, 5
      %v4172 = vsel %vm934, %v4167, %v4171
      %s4173 = scalar_lea.vmem %s1, 14
      %v4174 = vld [vmem:[%s4173] sm:$0x3]
      %v4175 = vunpack.c.l.b16 %v3802
      %v4176 = vunpack.c.l.b16 %v3812
      %v4177 = vunpack.c.l.b16 %v3826
      %v4178 = vunpack.c.l.b16 %v3836
      %v4179 = vunpack.c.l.b16 %v3850
      %v4180 = vunpack.c.l.b16 %v3860
      %v4181 = vunpack.c.l.b16 %v3874
      %v4182 = vunpack.c.l.b16 %v3884
      %v4183 = vunpack.c.l.b16 %v3898
      %v4184 = vunpack.c.l.b16 %v3908
      %v4185 = vunpack.c.l.b16 %v3922
      %v4186 = vunpack.c.l.b16 %v3932
      %v4187 = vunpack.c.l.b16 %v3946
      %v4188 = vunpack.c.l.b16 %v3956
      %v4189 = vunpack.c.l.b16 %v3970
      %v4190 = vunpack.c.l.b16 %v3980
      %v4191 = vunpack.c.l.b16 %v3994
      %v4192 = vunpack.c.l.b16 %v4004
      %v4193 = vunpack.c.l.b16 %v4018
      %v4194 = vunpack.c.l.b16 %v4028
      %v4195 = vunpack.c.l.b16 %v4042
      %v4196 = vunpack.c.l.b16 %v4052
      %v4197 = vunpack.c.l.b16 %v4066
      %v4198 = vunpack.c.l.b16 %v4076
      %v4199 = vunpack.c.l.b16 %v4090
      %v4200 = vunpack.c.l.b16 %v4100
      %v4201 = vunpack.c.l.b16 %v4114
      %v4202 = vunpack.c.l.b16 %v4124
      %v4203 = vunpack.c.l.b16 %v4138
      %v4204 = vunpack.c.l.b16 %v4148
      %v4205 = vunpack.c.l.b16 %v4162
      %v4206 = vunpack.c.l.b16 %v4172
      %v4207 = vpack.c.b16 %v4176, %v4175
      %v4208 = vpack.c.b16 %v4178, %v4177
      %v4209 = vpack.c.b16 %v4180, %v4179
      %v4210 = vpack.c.b16 %v4182, %v4181
      %v4211 = vpack.c.b16 %v4184, %v4183
      %v4212 = vpack.c.b16 %v4186, %v4185
      %v4213 = vpack.c.b16 %v4188, %v4187
      %v4214 = vpack.c.b16 %v4190, %v4189
      %v4215 = vpack.c.b16 %v4192, %v4191
      %v4216 = vpack.c.b16 %v4194, %v4193
      %v4217 = vpack.c.b16 %v4196, %v4195
      %v4218 = vpack.c.b16 %v4198, %v4197
      %v4219 = vpack.c.b16 %v4200, %v4199
      %v4220 = vpack.c.b16 %v4202, %v4201
      %v4221 = vpack.c.b16 %v4204, %v4203
      %v4222 = vpack.c.b16 %v4206, %v4205
      %v4224 = vsel %vm1369, %v4207, 0
      %v4227 = vsel %vm1369, %v4208, 0
      %v4230 = vsel %vm1369, %v4209, 0
      %v4233 = vsel %vm1369, %v4210, 0
      %v4236 = vsel %vm1369, %v4211, 0
      %v4239 = vsel %vm1369, %v4212, 0
      %v4242 = vsel %vm1369, %v4213, 0
      %v4245 = vsel %vm1369, %v4214, 0
      %v4248 = vsel %vm1369, %v4215, 0
      %v4251 = vsel %vm1369, %v4216, 0
      %v4254 = vsel %vm1369, %v4217, 0
      %v4257 = vsel %vm1369, %v4218, 0
      %v4260 = vsel %vm1369, %v4219, 0
      %v4263 = vsel %vm1369, %v4220, 0
      %v4266 = vsel %vm1369, %v4221, 0
      %v4269 = vsel %vm1369, %v4222, 0
      %v4272 = vsel %vm1418, %v4174, 0
      %4274 = vmatpush.bf16.msra.mxu0 0
      %4275 = vmatpush.bf16.msra.mxu0 0
      %4276 = vmatpush.bf16.msra.mxu0 0
      %4277 = vmatpush.bf16.msra.mxu0 0
      %4278 = vmatpush.bf16.msra.mxu0 0
      %4279 = vmatpush.bf16.msra.mxu0 0
      %4280 = vmatpush.bf16.msra.mxu0 0
      %4281 = vmatpush.bf16.msra.mxu0 %v4272
      %4282 = vmatmul.bf16.gmra.mxu0 %v4224
      %v4283 = vpop.f32.mrf.mxu0
      %v4284 = vadd.f32 0.0, %v4283
      %v4285 = vpop.f32.mrf.mxu0
      %v4286 = vadd.f32 0.0, %v4285
      %4287 = vmatmul.bf16.gmra.mxu0 %v4227
      %v4288 = vpop.f32.mrf.mxu0
      %v4289 = vadd.f32 0.0, %v4288
      %v4290 = vpop.f32.mrf.mxu0
      %v4291 = vadd.f32 0.0, %v4290
      %4292 = vmatmul.bf16.gmra.mxu0 %v4230
      %v4293 = vpop.f32.mrf.mxu0
      %v4294 = vadd.f32 0.0, %v4293
      %v4295 = vpop.f32.mrf.mxu0
      %v4296 = vadd.f32 0.0, %v4295
      %4297 = vmatmul.bf16.gmra.mxu0 %v4233
      %v4298 = vpop.f32.mrf.mxu0
      %v4299 = vadd.f32 0.0, %v4298
      %v4300 = vpop.f32.mrf.mxu0
      %v4301 = vadd.f32 0.0, %v4300
      %4302 = vmatmul.bf16.gmra.mxu0 %v4236
      %v4303 = vpop.f32.mrf.mxu0
      %v4304 = vadd.f32 0.0, %v4303
      %v4305 = vpop.f32.mrf.mxu0
      %v4306 = vadd.f32 0.0, %v4305
      %4307 = vmatmul.bf16.gmra.mxu0 %v4239
      %v4308 = vpop.f32.mrf.mxu0
      %v4309 = vadd.f32 0.0, %v4308
      %v4310 = vpop.f32.mrf.mxu0
      %v4311 = vadd.f32 0.0, %v4310
      %4312 = vmatmul.bf16.gmra.mxu0 %v4242
      %v4313 = vpop.f32.mrf.mxu0
      %v4314 = vadd.f32 0.0, %v4313
      %v4315 = vpop.f32.mrf.mxu0
      %v4316 = vadd.f32 0.0, %v4315
      %4317 = vmatmul.bf16.gmra.mxu0 %v4245
      %v4318 = vpop.f32.mrf.mxu0
      %v4319 = vadd.f32 0.0, %v4318
      %v4320 = vpop.f32.mrf.mxu0
      %v4321 = vadd.f32 0.0, %v4320
      %4322 = vmatmul.bf16.gmra.mxu0 %v4248
      %v4323 = vpop.f32.mrf.mxu0
      %v4324 = vadd.f32 0.0, %v4323
      %v4325 = vpop.f32.mrf.mxu0
      %v4326 = vadd.f32 0.0, %v4325
      %4327 = vmatmul.bf16.gmra.mxu0 %v4251
      %v4328 = vpop.f32.mrf.mxu0
      %v4329 = vadd.f32 0.0, %v4328
      %v4330 = vpop.f32.mrf.mxu0
      %v4331 = vadd.f32 0.0, %v4330
      %4332 = vmatmul.bf16.gmra.mxu0 %v4254
      %v4333 = vpop.f32.mrf.mxu0
      %v4334 = vadd.f32 0.0, %v4333
      %v4335 = vpop.f32.mrf.mxu0
      %v4336 = vadd.f32 0.0, %v4335
      %4337 = vmatmul.bf16.gmra.mxu0 %v4257
      %v4338 = vpop.f32.mrf.mxu0
      %v4339 = vadd.f32 0.0, %v4338
      %v4340 = vpop.f32.mrf.mxu0
      %v4341 = vadd.f32 0.0, %v4340
      %4342 = vmatmul.bf16.gmra.mxu0 %v4260
      %v4343 = vpop.f32.mrf.mxu0
      %v4344 = vadd.f32 0.0, %v4343
      %v4345 = vpop.f32.mrf.mxu0
      %v4346 = vadd.f32 0.0, %v4345
      %4347 = vmatmul.bf16.gmra.mxu0 %v4263
      %v4348 = vpop.f32.mrf.mxu0
      %v4349 = vadd.f32 0.0, %v4348
      %v4350 = vpop.f32.mrf.mxu0
      %v4351 = vadd.f32 0.0, %v4350
      %4352 = vmatmul.bf16.gmra.mxu0 %v4266
      %v4353 = vpop.f32.mrf.mxu0
      %v4354 = vadd.f32 0.0, %v4353
      %v4355 = vpop.f32.mrf.mxu0
      %v4356 = vadd.f32 0.0, %v4355
      %4357 = vmatmul.bf16.gmra.mxu0 %v4269
      %v4358 = vpop.f32.mrf.mxu0
      %v4359 = vadd.f32 0.0, %v4358
      %v4360 = vpop.f32.mrf.mxu0
      %v4361 = vadd.f32 0.0, %v4360
      %4362 = vdwg.mxu0
      %v4363 = vadd.f32 %v3709, %v4284
      %v4364 = vadd.f32 %v3710, %v4286
      %v4365 = vadd.f32 %v3711, %v4289
      %v4366 = vadd.f32 %v3712, %v4291
      %v4367 = vadd.f32 %v3713, %v4294
      %v4368 = vadd.f32 %v3714, %v4296
      %v4369 = vadd.f32 %v3715, %v4299
      %v4370 = vadd.f32 %v3716, %v4301
      %v4371 = vadd.f32 %v3717, %v4304
      %v4372 = vadd.f32 %v3718, %v4306
      %v4373 = vadd.f32 %v3719, %v4309
      %v4374 = vadd.f32 %v3720, %v4311
      %v4375 = vadd.f32 %v3721, %v4314
      %v4376 = vadd.f32 %v3722, %v4316
      %v4377 = vadd.f32 %v3723, %v4319
      %v4378 = vadd.f32 %v3724, %v4321
      %v4379 = vadd.f32 %v3725, %v4324
      %v4380 = vadd.f32 %v3726, %v4326
      %v4381 = vadd.f32 %v3727, %v4329
      %v4382 = vadd.f32 %v3728, %v4331
      %v4383 = vadd.f32 %v3729, %v4334
      %v4384 = vadd.f32 %v3730, %v4336
      %v4385 = vadd.f32 %v3731, %v4339
      %v4386 = vadd.f32 %v3732, %v4341
      %v4387 = vadd.f32 %v3733, %v4344
      %v4388 = vadd.f32 %v3734, %v4346
      %v4389 = vadd.f32 %v3735, %v4349
      %v4390 = vadd.f32 %v3736, %v4351
      %v4391 = vadd.f32 %v3737, %v4354
      %v4392 = vadd.f32 %v3738, %v4356
      %v4393 = vadd.f32 %v3739, %v4359
      %v4394 = vadd.f32 %v3740, %v4361
      %v4395 = vld [vmem:[%s3454] sm:$0xe]
      %v4396 = vld [vmem:[%s3454 + $0xc] sm:$0xe]
      %v4397 = vld [vmem:[%s3454 + $0x18] sm:$0xe]
      %v4398 = vld [vmem:[%s3454 + $0x24] sm:$0xe]
      %v4399 = vld [vmem:[%s3454 + $0x30] sm:$0xe]
      %v4400 = vld [vmem:[%s3454 + $0x3c] sm:$0xe]
      %v4401 = vld [vmem:[%s3454 + $0x48] sm:$0xe]
      %v4402 = vld [vmem:[%s3454 + $0x54] sm:$0xe]
      %v4403 = vld [vmem:[%s3454 + $0x60] sm:$0xe]
      %v4404 = vld [vmem:[%s3454 + $0x6c] sm:$0xe]
      %v4405 = vld [vmem:[%s3454 + $0x78] sm:$0xe]
      %v4406 = vld [vmem:[%s3454 + $0x84] sm:$0xe]
      %v4407 = vld [vmem:[%s3454 + $0x90] sm:$0xe]
      %v4408 = vld [vmem:[%s3454 + $0x9c] sm:$0xe]
      %v4409 = vld [vmem:[%s3454 + $0xa8] sm:$0xe]
      %v4410 = vld [vmem:[%s3454 + $0xb4] sm:$0xe]
      %v4459 = vrot.slane %v4395, 5
      %v4460 = vrot.slane %v4459, 4
      %v4461 = vrot.slane %v3742, 5
      %v4462 = vsel %vm1781, %v4460, %v4461
      %v4463 = vrot.slane %v4461, 4
      %v4464 = vrot.slane %v3743, 5
      %v4465 = vsel %vm1781, %v4463, %v4464
      %v4466 = vrot.slane %v4396, 5
      %v4467 = vrot.slane %v4466, 4
      %v4468 = vrot.slane %v3745, 5
      %v4469 = vsel %vm1781, %v4467, %v4468
      %v4470 = vrot.slane %v4468, 4
      %v4471 = vrot.slane %v3746, 5
      %v4472 = vsel %vm1781, %v4470, %v4471
      %v4473 = vrot.slane %v4397, 5
      %v4474 = vrot.slane %v4473, 4
      %v4475 = vrot.slane %v3748, 5
      %v4476 = vsel %vm1781, %v4474, %v4475
      %v4477 = vrot.slane %v4475, 4
      %v4478 = vrot.slane %v3749, 5
      %v4479 = vsel %vm1781, %v4477, %v4478
      %v4480 = vrot.slane %v4398, 5
      %v4481 = vrot.slane %v4480, 4
      %v4482 = vrot.slane %v3751, 5
      %v4483 = vsel %vm1781, %v4481, %v4482
      %v4484 = vrot.slane %v4482, 4
      %v4485 = vrot.slane %v3752, 5
      %v4486 = vsel %vm1781, %v4484, %v4485
      %v4487 = vrot.slane %v4399, 5
      %v4488 = vrot.slane %v4487, 4
      %v4489 = vrot.slane %v3754, 5
      %v4490 = vsel %vm1781, %v4488, %v4489
      %v4491 = vrot.slane %v4489, 4
      %v4492 = vrot.slane %v3755, 5
      %v4493 = vsel %vm1781, %v4491, %v4492
      %v4494 = vrot.slane %v4400, 5
      %v4495 = vrot.slane %v4494, 4
      %v4496 = vrot.slane %v3757, 5
      %v4497 = vsel %vm1781, %v4495, %v4496
      %v4498 = vrot.slane %v4496, 4
      %v4499 = vrot.slane %v3758, 5
      %v4500 = vsel %vm1781, %v4498, %v4499
      %v4501 = vrot.slane %v4401, 5
      %v4502 = vrot.slane %v4501, 4
      %v4503 = vrot.slane %v3760, 5
      %v4504 = vsel %vm1781, %v4502, %v4503
      %v4505 = vrot.slane %v4503, 4
      %v4506 = vrot.slane %v3761, 5
      %v4507 = vsel %vm1781, %v4505, %v4506
      %v4508 = vrot.slane %v4402, 5
      %v4509 = vrot.slane %v4508, 4
      %v4510 = vrot.slane %v3763, 5
      %v4511 = vsel %vm1781, %v4509, %v4510
      %v4512 = vrot.slane %v4510, 4
      %v4513 = vrot.slane %v3764, 5
      %v4514 = vsel %vm1781, %v4512, %v4513
      %v4515 = vrot.slane %v4403, 5
      %v4516 = vrot.slane %v4515, 4
      %v4517 = vrot.slane %v3766, 5
      %v4518 = vsel %vm1781, %v4516, %v4517
      %v4519 = vrot.slane %v4517, 4
      %v4520 = vrot.slane %v3767, 5
      %v4521 = vsel %vm1781, %v4519, %v4520
      %v4522 = vrot.slane %v4404, 5
      %v4523 = vrot.slane %v4522, 4
      %v4524 = vrot.slane %v3769, 5
      %v4525 = vsel %vm1781, %v4523, %v4524
      %v4526 = vrot.slane %v4524, 4
      %v4527 = vrot.slane %v3770, 5
      %v4528 = vsel %vm1781, %v4526, %v4527
      %v4529 = vrot.slane %v4405, 5
      %v4530 = vrot.slane %v4529, 4
      %v4531 = vrot.slane %v3772, 5
      %v4532 = vsel %vm1781, %v4530, %v4531
      %v4533 = vrot.slane %v4531, 4
      %v4534 = vrot.slane %v3773, 5
      %v4535 = vsel %vm1781, %v4533, %v4534
      %v4536 = vrot.slane %v4406, 5
      %v4537 = vrot.slane %v4536, 4
      %v4538 = vrot.slane %v3775, 5
      %v4539 = vsel %vm1781, %v4537, %v4538
      %v4540 = vrot.slane %v4538, 4
      %v4541 = vrot.slane %v3776, 5
      %v4542 = vsel %vm1781, %v4540, %v4541
      %v4543 = vrot.slane %v4407, 5
      %v4544 = vrot.slane %v4543, 4
      %v4545 = vrot.slane %v3778, 5
      %v4546 = vsel %vm1781, %v4544, %v4545
      %v4547 = vrot.slane %v4545, 4
      %v4548 = vrot.slane %v3779, 5
      %v4549 = vsel %vm1781, %v4547, %v4548
      %v4550 = vrot.slane %v4408, 5
      %v4551 = vrot.slane %v4550, 4
      %v4552 = vrot.slane %v3781, 5
      %v4553 = vsel %vm1781, %v4551, %v4552
      %v4554 = vrot.slane %v4552, 4
      %v4555 = vrot.slane %v3782, 5
      %v4556 = vsel %vm1781, %v4554, %v4555
      %v4557 = vrot.slane %v4409, 5
      %v4558 = vrot.slane %v4557, 4
      %v4559 = vrot.slane %v3784, 5
      %v4560 = vsel %vm1781, %v4558, %v4559
      %v4561 = vrot.slane %v4559, 4
      %v4562 = vrot.slane %v3785, 5
      %v4563 = vsel %vm1781, %v4561, %v4562
      %v4564 = vrot.slane %v4410, 5
      %v4565 = vrot.slane %v4564, 4
      %v4566 = vrot.slane %v3787, 5
      %v4567 = vsel %vm1781, %v4565, %v4566
      %v4568 = vrot.slane %v4566, 4
      %v4569 = vrot.slane %v3788, 5
      %v4570 = vsel %vm1781, %v4568, %v4569
      %s4571 = scalar_lea.vmem %s1, 16
      %v4572 = vld [vmem:[%s4571] sm:$0x3]
      %v4573 = vunpack.c.l.b16 %v4462
      %v4574 = vunpack.c.l.b16 %v4465
      %v4575 = vunpack.c.l.b16 %v4469
      %v4576 = vunpack.c.l.b16 %v4472
      %v4577 = vunpack.c.l.b16 %v4476
      %v4578 = vunpack.c.l.b16 %v4479
      %v4579 = vunpack.c.l.b16 %v4483
      %v4580 = vunpack.c.l.b16 %v4486
      %v4581 = vunpack.c.l.b16 %v4490
      %v4582 = vunpack.c.l.b16 %v4493
      %v4583 = vunpack.c.l.b16 %v4497
      %v4584 = vunpack.c.l.b16 %v4500
      %v4585 = vunpack.c.l.b16 %v4504
      %v4586 = vunpack.c.l.b16 %v4507
      %v4587 = vunpack.c.l.b16 %v4511
      %v4588 = vunpack.c.l.b16 %v4514
      %v4589 = vunpack.c.l.b16 %v4518
      %v4590 = vunpack.c.l.b16 %v4521
      %v4591 = vunpack.c.l.b16 %v4525
      %v4592 = vunpack.c.l.b16 %v4528
      %v4593 = vunpack.c.l.b16 %v4532
      %v4594 = vunpack.c.l.b16 %v4535
      %v4595 = vunpack.c.l.b16 %v4539
      %v4596 = vunpack.c.l.b16 %v4542
      %v4597 = vunpack.c.l.b16 %v4546
      %v4598 = vunpack.c.l.b16 %v4549
      %v4599 = vunpack.c.l.b16 %v4553
      %v4600 = vunpack.c.l.b16 %v4556
      %v4601 = vunpack.c.l.b16 %v4560
      %v4602 = vunpack.c.l.b16 %v4563
      %v4603 = vunpack.c.l.b16 %v4567
      %v4604 = vunpack.c.l.b16 %v4570
      %v4605 = vpack.c.b16 %v4574, %v4573
      %v4606 = vpack.c.b16 %v4576, %v4575
      %v4607 = vpack.c.b16 %v4578, %v4577
      %v4608 = vpack.c.b16 %v4580, %v4579
      %v4609 = vpack.c.b16 %v4582, %v4581
      %v4610 = vpack.c.b16 %v4584, %v4583
      %v4611 = vpack.c.b16 %v4586, %v4585
      %v4612 = vpack.c.b16 %v4588, %v4587
      %v4613 = vpack.c.b16 %v4590, %v4589
      %v4614 = vpack.c.b16 %v4592, %v4591
      %v4615 = vpack.c.b16 %v4594, %v4593
      %v4616 = vpack.c.b16 %v4596, %v4595
      %v4617 = vpack.c.b16 %v4598, %v4597
      %v4618 = vpack.c.b16 %v4600, %v4599
      %v4619 = vpack.c.b16 %v4602, %v4601
      %v4620 = vpack.c.b16 %v4604, %v4603
      %v4622 = vsel %vm1369, %v4605, 0
      %v4625 = vsel %vm1369, %v4606, 0
      %v4628 = vsel %vm1369, %v4607, 0
      %v4631 = vsel %vm1369, %v4608, 0
      %v4634 = vsel %vm1369, %v4609, 0
      %v4637 = vsel %vm1369, %v4610, 0
      %v4640 = vsel %vm1369, %v4611, 0
      %v4643 = vsel %vm1369, %v4612, 0
      %v4646 = vsel %vm1369, %v4613, 0
      %v4649 = vsel %vm1369, %v4614, 0
      %v4652 = vsel %vm1369, %v4615, 0
      %v4655 = vsel %vm1369, %v4616, 0
      %v4658 = vsel %vm1369, %v4617, 0
      %v4661 = vsel %vm1369, %v4618, 0
      %v4664 = vsel %vm1369, %v4619, 0
      %v4667 = vsel %vm1369, %v4620, 0
      %v4670 = vsel %vm1418, %v4572, 0
      %4672 = vmatpush.bf16.msra.mxu0 0
      %4673 = vmatpush.bf16.msra.mxu0 0
      %4674 = vmatpush.bf16.msra.mxu0 0
      %4675 = vmatpush.bf16.msra.mxu0 0
      %4676 = vmatpush.bf16.msra.mxu0 0
      %4677 = vmatpush.bf16.msra.mxu0 0
      %4678 = vmatpush.bf16.msra.mxu0 0
      %4679 = vmatpush.bf16.msra.mxu0 %v4670
      %4680 = vmatmul.bf16.gmra.mxu0 %v4622
      %v4681 = vpop.f32.mrf.mxu0
      %v4682 = vadd.f32 0.0, %v4681
      %v4683 = vpop.f32.mrf.mxu0
      %v4684 = vadd.f32 0.0, %v4683
      %4685 = vmatmul.bf16.gmra.mxu0 %v4625
      %v4686 = vpop.f32.mrf.mxu0
      %v4687 = vadd.f32 0.0, %v4686
      %v4688 = vpop.f32.mrf.mxu0
      %v4689 = vadd.f32 0.0, %v4688
      %4690 = vmatmul.bf16.gmra.mxu0 %v4628
      %v4691 = vpop.f32.mrf.mxu0
      %v4692 = vadd.f32 0.0, %v4691
      %v4693 = vpop.f32.mrf.mxu0
      %v4694 = vadd.f32 0.0, %v4693
      %4695 = vmatmul.bf16.gmra.mxu0 %v4631
      %v4696 = vpop.f32.mrf.mxu0
      %v4697 = vadd.f32 0.0, %v4696
      %v4698 = vpop.f32.mrf.mxu0
      %v4699 = vadd.f32 0.0, %v4698
      %4700 = vmatmul.bf16.gmra.mxu0 %v4634
      %v4701 = vpop.f32.mrf.mxu0
      %v4702 = vadd.f32 0.0, %v4701
      %v4703 = vpop.f32.mrf.mxu0
      %v4704 = vadd.f32 0.0, %v4703
      %4705 = vmatmul.bf16.gmra.mxu0 %v4637
      %v4706 = vpop.f32.mrf.mxu0
      %v4707 = vadd.f32 0.0, %v4706
      %v4708 = vpop.f32.mrf.mxu0
      %v4709 = vadd.f32 0.0, %v4708
      %4710 = vmatmul.bf16.gmra.mxu0 %v4640
      %v4711 = vpop.f32.mrf.mxu0
      %v4712 = vadd.f32 0.0, %v4711
      %v4713 = vpop.f32.mrf.mxu0
      %v4714 = vadd.f32 0.0, %v4713
      %4715 = vmatmul.bf16.gmra.mxu0 %v4643
      %v4716 = vpop.f32.mrf.mxu0
      %v4717 = vadd.f32 0.0, %v4716
      %v4718 = vpop.f32.mrf.mxu0
      %v4719 = vadd.f32 0.0, %v4718
      %4720 = vmatmul.bf16.gmra.mxu0 %v4646
      %v4721 = vpop.f32.mrf.mxu0
      %v4722 = vadd.f32 0.0, %v4721
      %v4723 = vpop.f32.mrf.mxu0
      %v4724 = vadd.f32 0.0, %v4723
      %4725 = vmatmul.bf16.gmra.mxu0 %v4649
      %v4726 = vpop.f32.mrf.mxu0
      %v4727 = vadd.f32 0.0, %v4726
      %v4728 = vpop.f32.mrf.mxu0
      %v4729 = vadd.f32 0.0, %v4728
      %4730 = vmatmul.bf16.gmra.mxu0 %v4652
      %v4731 = vpop.f32.mrf.mxu0
      %v4732 = vadd.f32 0.0, %v4731
      %v4733 = vpop.f32.mrf.mxu0
      %v4734 = vadd.f32 0.0, %v4733
      %4735 = vmatmul.bf16.gmra.mxu0 %v4655
      %v4736 = vpop.f32.mrf.mxu0
      %v4737 = vadd.f32 0.0, %v4736
      %v4738 = vpop.f32.mrf.mxu0
      %v4739 = vadd.f32 0.0, %v4738
      %4740 = vmatmul.bf16.gmra.mxu0 %v4658
      %v4741 = vpop.f32.mrf.mxu0
      %v4742 = vadd.f32 0.0, %v4741
      %v4743 = vpop.f32.mrf.mxu0
      %v4744 = vadd.f32 0.0, %v4743
      %4745 = vmatmul.bf16.gmra.mxu0 %v4661
      %v4746 = vpop.f32.mrf.mxu0
      %v4747 = vadd.f32 0.0, %v4746
      %v4748 = vpop.f32.mrf.mxu0
      %v4749 = vadd.f32 0.0, %v4748
      %4750 = vmatmul.bf16.gmra.mxu0 %v4664
      %v4751 = vpop.f32.mrf.mxu0
      %v4752 = vadd.f32 0.0, %v4751
      %v4753 = vpop.f32.mrf.mxu0
      %v4754 = vadd.f32 0.0, %v4753
      %4755 = vmatmul.bf16.gmra.mxu0 %v4667
      %v4756 = vpop.f32.mrf.mxu0
      %v4757 = vadd.f32 0.0, %v4756
      %v4758 = vpop.f32.mrf.mxu0
      %v4759 = vadd.f32 0.0, %v4758
      %4760 = vdwg.mxu0
      %v4761 = vadd.f32 %v4363, %v4682
      %v4762 = vadd.f32 %v4364, %v4684
      %v4763 = vadd.f32 %v4365, %v4687
      %v4764 = vadd.f32 %v4366, %v4689
      %v4765 = vadd.f32 %v4367, %v4692
      %v4766 = vadd.f32 %v4368, %v4694
      %v4767 = vadd.f32 %v4369, %v4697
      %v4768 = vadd.f32 %v4370, %v4699
      %v4769 = vadd.f32 %v4371, %v4702
      %v4770 = vadd.f32 %v4372, %v4704
      %v4771 = vadd.f32 %v4373, %v4707
      %v4772 = vadd.f32 %v4374, %v4709
      %v4773 = vadd.f32 %v4375, %v4712
      %v4774 = vadd.f32 %v4376, %v4714
      %v4775 = vadd.f32 %v4377, %v4717
      %v4776 = vadd.f32 %v4378, %v4719
      %v4777 = vadd.f32 %v4379, %v4722
      %v4778 = vadd.f32 %v4380, %v4724
      %v4779 = vadd.f32 %v4381, %v4727
      %v4780 = vadd.f32 %v4382, %v4729
      %v4781 = vadd.f32 %v4383, %v4732
      %v4782 = vadd.f32 %v4384, %v4734
      %v4783 = vadd.f32 %v4385, %v4737
      %v4784 = vadd.f32 %v4386, %v4739
      %v4785 = vadd.f32 %v4387, %v4742
      %v4786 = vadd.f32 %v4388, %v4744
      %v4787 = vadd.f32 %v4389, %v4747
      %v4788 = vadd.f32 %v4390, %v4749
      %v4789 = vadd.f32 %v4391, %v4752
      %v4790 = vadd.f32 %v4392, %v4754
      %v4791 = vadd.f32 %v4393, %v4757
      %v4792 = vadd.f32 %v4394, %v4759
      %v4793 = vmax.f32 %v4761, 0.0
      %v4794 = vmax.f32 %v4762, 0.0
      %v4795 = vmax.f32 %v4763, 0.0
      %v4796 = vmax.f32 %v4764, 0.0
      %v4797 = vmax.f32 %v4765, 0.0
      %v4798 = vmax.f32 %v4766, 0.0
      %v4799 = vmax.f32 %v4767, 0.0
      %v4800 = vmax.f32 %v4768, 0.0
      %v4801 = vmax.f32 %v4769, 0.0
      %v4802 = vmax.f32 %v4770, 0.0
      %v4803 = vmax.f32 %v4771, 0.0
      %v4804 = vmax.f32 %v4772, 0.0
      %v4805 = vmax.f32 %v4773, 0.0
      %v4806 = vmax.f32 %v4774, 0.0
      %v4807 = vmax.f32 %v4775, 0.0
      %v4808 = vmax.f32 %v4776, 0.0
      %v4809 = vmax.f32 %v4777, 0.0
      %v4810 = vmax.f32 %v4778, 0.0
      %v4811 = vmax.f32 %v4779, 0.0
      %v4812 = vmax.f32 %v4780, 0.0
      %v4813 = vmax.f32 %v4781, 0.0
      %v4814 = vmax.f32 %v4782, 0.0
      %v4815 = vmax.f32 %v4783, 0.0
      %v4816 = vmax.f32 %v4784, 0.0
      %v4817 = vmax.f32 %v4785, 0.0
      %v4818 = vmax.f32 %v4786, 0.0
      %v4819 = vmax.f32 %v4787, 0.0
      %v4820 = vmax.f32 %v4788, 0.0
      %v4821 = vmax.f32 %v4789, 0.0
      %v4822 = vmax.f32 %v4790, 0.0
      %v4823 = vmax.f32 %v4791, 0.0
      %v4824 = vmax.f32 %v4792, 0.0
      %v4825 = vpack.c.bf16 %v4793, %v4793
      %v4826 = vpack.c.bf16 %v4794, %v4794
      %v4827 = vpack.c.bf16 %v4795, %v4795
      %v4828 = vpack.c.bf16 %v4796, %v4796
      %v4829 = vpack.c.bf16 %v4797, %v4797
      %v4830 = vpack.c.bf16 %v4798, %v4798
      %v4831 = vpack.c.bf16 %v4799, %v4799
      %v4832 = vpack.c.bf16 %v4800, %v4800
      %v4833 = vpack.c.bf16 %v4801, %v4801
      %v4834 = vpack.c.bf16 %v4802, %v4802
      %v4835 = vpack.c.bf16 %v4803, %v4803
      %v4836 = vpack.c.bf16 %v4804, %v4804
      %v4837 = vpack.c.bf16 %v4805, %v4805
      %v4838 = vpack.c.bf16 %v4806, %v4806
      %v4839 = vpack.c.bf16 %v4807, %v4807
      %v4840 = vpack.c.bf16 %v4808, %v4808
      %v4841 = vpack.c.bf16 %v4809, %v4809
      %v4842 = vpack.c.bf16 %v4810, %v4810
      %v4843 = vpack.c.bf16 %v4811, %v4811
      %v4844 = vpack.c.bf16 %v4812, %v4812
      %v4845 = vpack.c.bf16 %v4813, %v4813
      %v4846 = vpack.c.bf16 %v4814, %v4814
      %v4847 = vpack.c.bf16 %v4815, %v4815
      %v4848 = vpack.c.bf16 %v4816, %v4816
      %v4849 = vpack.c.bf16 %v4817, %v4817
      %v4850 = vpack.c.bf16 %v4818, %v4818
      %v4851 = vpack.c.bf16 %v4819, %v4819
      %v4852 = vpack.c.bf16 %v4820, %v4820
      %v4853 = vpack.c.bf16 %v4821, %v4821
      %v4854 = vpack.c.bf16 %v4822, %v4822
      %v4855 = vpack.c.bf16 %v4823, %v4823
      %v4856 = vpack.c.bf16 %v4824, %v4824
      %v4858 = vshrl.u32 %v4825, 16
      %v4860 = vrot.slane %v4858, 7
      %v4861 = vshll.u32 %v4825, 16
      %v4863 = vor.u32 %v4860, %v4861
      %v4864 = vrot.slane %v4860, 4
      %v4866 = vshrl.u32 %v4826, 16
      %v4868 = vrot.slane %v4866, 7
      %v4869 = vshll.u32 %v4826, 16
      %v4871 = vor.u32 %v4868, %v4869
      %v4872 = vsel %vm447, %v4864, %v4871
      %v4873 = vrot.slane %v4868, 4
      %v4875 = vshrl.u32 %v4827, 16
      %v4877 = vrot.slane %v4875, 7
      %v4878 = vshll.u32 %v4827, 16
      %v4880 = vor.u32 %v4877, %v4878
      %v4881 = vrot.slane %v4877, 4
      %v4883 = vshrl.u32 %v4828, 16
      %v4885 = vrot.slane %v4883, 7
      %v4886 = vshll.u32 %v4828, 16
      %v4888 = vor.u32 %v4885, %v4886
      %v4889 = vsel %vm447, %v4881, %v4888
      %v4890 = vrot.slane %v4885, 4
      %v4892 = vshrl.u32 %v4829, 16
      %v4894 = vrot.slane %v4892, 7
      %v4895 = vshll.u32 %v4829, 16
      %v4897 = vor.u32 %v4894, %v4895
      %v4898 = vrot.slane %v4894, 4
      %v4900 = vshrl.u32 %v4830, 16
      %v4902 = vrot.slane %v4900, 7
      %v4903 = vshll.u32 %v4830, 16
      %v4905 = vor.u32 %v4902, %v4903
      %v4906 = vsel %vm447, %v4898, %v4905
      %v4907 = vrot.slane %v4902, 4
      %v4909 = vshrl.u32 %v4831, 16
      %v4911 = vrot.slane %v4909, 7
      %v4912 = vshll.u32 %v4831, 16
      %v4914 = vor.u32 %v4911, %v4912
      %v4915 = vrot.slane %v4911, 4
      %v4917 = vshrl.u32 %v4832, 16
      %v4919 = vrot.slane %v4917, 7
      %v4920 = vshll.u32 %v4832, 16
      %v4922 = vor.u32 %v4919, %v4920
      %v4923 = vsel %vm447, %v4915, %v4922
      %v4924 = vrot.slane %v4919, 4
      %v4926 = vshrl.u32 %v4833, 16
      %v4928 = vrot.slane %v4926, 7
      %v4929 = vshll.u32 %v4833, 16
      %v4931 = vor.u32 %v4928, %v4929
      %v4932 = vrot.slane %v4928, 4
      %v4934 = vshrl.u32 %v4834, 16
      %v4936 = vrot.slane %v4934, 7
      %v4937 = vshll.u32 %v4834, 16
      %v4939 = vor.u32 %v4936, %v4937
      %v4940 = vsel %vm447, %v4932, %v4939
      %v4941 = vrot.slane %v4936, 4
      %v4943 = vshrl.u32 %v4835, 16
      %v4945 = vrot.slane %v4943, 7
      %v4946 = vshll.u32 %v4835, 16
      %v4948 = vor.u32 %v4945, %v4946
      %v4949 = vrot.slane %v4945, 4
      %v4951 = vshrl.u32 %v4836, 16
      %v4953 = vrot.slane %v4951, 7
      %v4954 = vshll.u32 %v4836, 16
      %v4956 = vor.u32 %v4953, %v4954
      %v4957 = vsel %vm447, %v4949, %v4956
      %v4958 = vrot.slane %v4953, 4
      %v4960 = vshrl.u32 %v4837, 16
      %v4962 = vrot.slane %v4960, 7
      %v4963 = vshll.u32 %v4837, 16
      %v4965 = vor.u32 %v4962, %v4963
      %v4966 = vrot.slane %v4962, 4
      %v4968 = vshrl.u32 %v4838, 16
      %v4970 = vrot.slane %v4968, 7
      %v4971 = vshll.u32 %v4838, 16
      %v4973 = vor.u32 %v4970, %v4971
      %v4974 = vsel %vm447, %v4966, %v4973
      %v4975 = vrot.slane %v4970, 4
      %v4977 = vshrl.u32 %v4839, 16
      %v4979 = vrot.slane %v4977, 7
      %v4980 = vshll.u32 %v4839, 16
      %v4982 = vor.u32 %v4979, %v4980
      %v4983 = vrot.slane %v4979, 4
      %v4985 = vshrl.u32 %v4840, 16
      %v4987 = vrot.slane %v4985, 7
      %v4988 = vshll.u32 %v4840, 16
      %v4990 = vor.u32 %v4987, %v4988
      %v4991 = vsel %vm447, %v4983, %v4990
      %v4992 = vrot.slane %v4987, 4
      %v4994 = vshrl.u32 %v4841, 16
      %v4996 = vrot.slane %v4994, 7
      %v4997 = vshll.u32 %v4841, 16
      %v4999 = vor.u32 %v4996, %v4997
      %v5000 = vrot.slane %v4996, 4
      %v5002 = vshrl.u32 %v4842, 16
      %v5004 = vrot.slane %v5002, 7
      %v5005 = vshll.u32 %v4842, 16
      %v5007 = vor.u32 %v5004, %v5005
      %v5008 = vsel %vm447, %v5000, %v5007
      %v5009 = vrot.slane %v5004, 4
      %v5011 = vshrl.u32 %v4843, 16
      %v5013 = vrot.slane %v5011, 7
      %v5014 = vshll.u32 %v4843, 16
      %v5016 = vor.u32 %v5013, %v5014
      %v5017 = vrot.slane %v5013, 4
      %v5019 = vshrl.u32 %v4844, 16
      %v5021 = vrot.slane %v5019, 7
      %v5022 = vshll.u32 %v4844, 16
      %v5024 = vor.u32 %v5021, %v5022
      %v5025 = vsel %vm447, %v5017, %v5024
      %v5026 = vrot.slane %v5021, 4
      %v5028 = vshrl.u32 %v4845, 16
      %v5030 = vrot.slane %v5028, 7
      %v5031 = vshll.u32 %v4845, 16
      %v5033 = vor.u32 %v5030, %v5031
      %v5034 = vrot.slane %v5030, 4
      %v5036 = vshrl.u32 %v4846, 16
      %v5038 = vrot.slane %v5036, 7
      %v5039 = vshll.u32 %v4846, 16
      %v5041 = vor.u32 %v5038, %v5039
      %v5042 = vsel %vm447, %v5034, %v5041
      %v5043 = vrot.slane %v5038, 4
      %v5045 = vshrl.u32 %v4847, 16
      %v5047 = vrot.slane %v5045, 7
      %v5048 = vshll.u32 %v4847, 16
      %v5050 = vor.u32 %v5047, %v5048
      %v5051 = vrot.slane %v5047, 4
      %v5053 = vshrl.u32 %v4848, 16
      %v5055 = vrot.slane %v5053, 7
      %v5056 = vshll.u32 %v4848, 16
      %v5058 = vor.u32 %v5055, %v5056
      %v5059 = vsel %vm447, %v5051, %v5058
      %v5060 = vrot.slane %v5055, 4
      %v5062 = vshrl.u32 %v4849, 16
      %v5064 = vrot.slane %v5062, 7
      %v5065 = vshll.u32 %v4849, 16
      %v5067 = vor.u32 %v5064, %v5065
      %v5068 = vrot.slane %v5064, 4
      %v5070 = vshrl.u32 %v4850, 16
      %v5072 = vrot.slane %v5070, 7
      %v5073 = vshll.u32 %v4850, 16
      %v5075 = vor.u32 %v5072, %v5073
      %v5076 = vsel %vm447, %v5068, %v5075
      %v5077 = vrot.slane %v5072, 4
      %v5079 = vshrl.u32 %v4851, 16
      %v5081 = vrot.slane %v5079, 7
      %v5082 = vshll.u32 %v4851, 16
      %v5084 = vor.u32 %v5081, %v5082
      %v5085 = vrot.slane %v5081, 4
      %v5087 = vshrl.u32 %v4852, 16
      %v5089 = vrot.slane %v5087, 7
      %v5090 = vshll.u32 %v4852, 16
      %v5092 = vor.u32 %v5089, %v5090
      %v5093 = vsel %vm447, %v5085, %v5092
      %v5094 = vrot.slane %v5089, 4
      %v5096 = vshrl.u32 %v4853, 16
      %v5098 = vrot.slane %v5096, 7
      %v5099 = vshll.u32 %v4853, 16
      %v5101 = vor.u32 %v5098, %v5099
      %v5102 = vrot.slane %v5098, 4
      %v5104 = vshrl.u32 %v4854, 16
      %v5106 = vrot.slane %v5104, 7
      %v5107 = vshll.u32 %v4854, 16
      %v5109 = vor.u32 %v5106, %v5107
      %v5110 = vsel %vm447, %v5102, %v5109
      %v5111 = vrot.slane %v5106, 4
      %v5113 = vshrl.u32 %v4855, 16
      %v5115 = vrot.slane %v5113, 7
      %v5116 = vshll.u32 %v4855, 16
      %v5118 = vor.u32 %v5115, %v5116
      %v5119 = vrot.slane %v5115, 4
      %v5121 = vshrl.u32 %v4856, 16
      %v5123 = vrot.slane %v5121, 7
      %v5124 = vshll.u32 %v4856, 16
      %v5126 = vor.u32 %v5123, %v5124
      %v5127 = vsel %vm447, %v5119, %v5126
      %v5128 = vrot.slane %v5123, 4
      %s5177 = scalar_lea.vmem [#allocation3], 12
      %vm5178 = vcmask 60416
      %vm5179 = vmand %vm5178, %vm238
      %v5180 = vld [vmem:[%s5177] sm:$0xf]
      %v5181 = vsel %vm5179, %v4863, %v5180
      %5182 = vst [vmem:[%s5177] sm:$0xf] %v5181
      %5183 = vst.msk [vmem:[%s5177 + $0x4] sm:$0xf] %vm294, %v4872
      %v5184 = vld [vmem:[%s5177 + $0x8] sm:$0x1]
      %v5185 = vsel %vm304, %v4873, %v5184
      %5186 = vst [vmem:[%s5177 + $0x8] sm:$0x1] %v5185
      %v5187 = vld [vmem:[%s5177 + $0xc] sm:$0xf]
      %v5188 = vsel %vm5179, %v4880, %v5187
      %5189 = vst [vmem:[%s5177 + $0xc] sm:$0xf] %v5188
      %5190 = vst.msk [vmem:[%s5177 + $0x10] sm:$0xf] %vm294, %v4889
      %v5191 = vld [vmem:[%s5177 + $0x14] sm:$0x1]
      %v5192 = vsel %vm304, %v4890, %v5191
      %5193 = vst [vmem:[%s5177 + $0x14] sm:$0x1] %v5192
      %v5194 = vld [vmem:[%s5177 + $0x18] sm:$0xf]
      %v5195 = vsel %vm5179, %v4897, %v5194
      %5196 = vst [vmem:[%s5177 + $0x18] sm:$0xf] %v5195
      %5197 = vst.msk [vmem:[%s5177 + $0x1c] sm:$0xf] %vm294, %v4906
      %v5198 = vld [vmem:[%s5177 + $0x20] sm:$0x1]
      %v5199 = vsel %vm304, %v4907, %v5198
      %5200 = vst [vmem:[%s5177 + $0x20] sm:$0x1] %v5199
      %v5201 = vld [vmem:[%s5177 + $0x24] sm:$0xf]
      %v5202 = vsel %vm5179, %v4914, %v5201
      %5203 = vst [vmem:[%s5177 + $0x24] sm:$0xf] %v5202
      %5204 = vst.msk [vmem:[%s5177 + $0x28] sm:$0xf] %vm294, %v4923
      %v5205 = vld [vmem:[%s5177 + $0x2c] sm:$0x1]
      %v5206 = vsel %vm304, %v4924, %v5205
      %5207 = vst [vmem:[%s5177 + $0x2c] sm:$0x1] %v5206
      %v5208 = vld [vmem:[%s5177 + $0x30] sm:$0xf]
      %v5209 = vsel %vm5179, %v4931, %v5208
      %5210 = vst [vmem:[%s5177 + $0x30] sm:$0xf] %v5209
      %5211 = vst.msk [vmem:[%s5177 + $0x34] sm:$0xf] %vm294, %v4940
      %v5212 = vld [vmem:[%s5177 + $0x38] sm:$0x1]
      %v5213 = vsel %vm304, %v4941, %v5212
      %5214 = vst [vmem:[%s5177 + $0x38] sm:$0x1] %v5213
      %v5215 = vld [vmem:[%s5177 + $0x3c] sm:$0xf]
      %v5216 = vsel %vm5179, %v4948, %v5215
      %5217 = vst [vmem:[%s5177 + $0x3c] sm:$0xf] %v5216
      %5218 = vst.msk [vmem:[%s5177 + $0x40] sm:$0xf] %vm294, %v4957
      %v5219 = vld [vmem:[%s5177 + $0x44] sm:$0x1]
      %v5220 = vsel %vm304, %v4958, %v5219
      %5221 = vst [vmem:[%s5177 + $0x44] sm:$0x1] %v5220
      %v5222 = vld [vmem:[%s5177 + $0x48] sm:$0xf]
      %v5223 = vsel %vm5179, %v4965, %v5222
      %5224 = vst [vmem:[%s5177 + $0x48] sm:$0xf] %v5223
      %5225 = vst.msk [vmem:[%s5177 + $0x4c] sm:$0xf] %vm294, %v4974
      %v5226 = vld [vmem:[%s5177 + $0x50] sm:$0x1]
      %v5227 = vsel %vm304, %v4975, %v5226
      %5228 = vst [vmem:[%s5177 + $0x50] sm:$0x1] %v5227
      %v5229 = vld [vmem:[%s5177 + $0x54] sm:$0xf]
      %v5230 = vsel %vm5179, %v4982, %v5229
      %5231 = vst [vmem:[%s5177 + $0x54] sm:$0xf] %v5230
      %5232 = vst.msk [vmem:[%s5177 + $0x58] sm:$0xf] %vm294, %v4991
      %v5233 = vld [vmem:[%s5177 + $0x5c] sm:$0x1]
      %v5234 = vsel %vm304, %v4992, %v5233
      %5235 = vst [vmem:[%s5177 + $0x5c] sm:$0x1] %v5234
      %v5236 = vld [vmem:[%s5177 + $0x60] sm:$0xf]
      %v5237 = vsel %vm5179, %v4999, %v5236
      %5238 = vst [vmem:[%s5177 + $0x60] sm:$0xf] %v5237
      %5239 = vst.msk [vmem:[%s5177 + $0x64] sm:$0xf] %vm294, %v5008
      %v5240 = vld [vmem:[%s5177 + $0x68] sm:$0x1]
      %v5241 = vsel %vm304, %v5009, %v5240
      %5242 = vst [vmem:[%s5177 + $0x68] sm:$0x1] %v5241
      %v5243 = vld [vmem:[%s5177 + $0x6c] sm:$0xf]
      %v5244 = vsel %vm5179, %v5016, %v5243
      %5245 = vst [vmem:[%s5177 + $0x6c] sm:$0xf] %v5244
      %5246 = vst.msk [vmem:[%s5177 + $0x70] sm:$0xf] %vm294, %v5025
      %v5247 = vld [vmem:[%s5177 + $0x74] sm:$0x1]
      %v5248 = vsel %vm304, %v5026, %v5247
      %5249 = vst [vmem:[%s5177 + $0x74] sm:$0x1] %v5248
      %v5250 = vld [vmem:[%s5177 + $0x78] sm:$0xf]
      %v5251 = vsel %vm5179, %v5033, %v5250
      %5252 = vst [vmem:[%s5177 + $0x78] sm:$0xf] %v5251
      %5253 = vst.msk [vmem:[%s5177 + $0x7c] sm:$0xf] %vm294, %v5042
      %v5254 = vld [vmem:[%s5177 + $0x80] sm:$0x1]
      %v5255 = vsel %vm304, %v5043, %v5254
      %5256 = vst [vmem:[%s5177 + $0x80] sm:$0x1] %v5255
      %v5257 = vld [vmem:[%s5177 + $0x84] sm:$0xf]
      %v5258 = vsel %vm5179, %v5050, %v5257
      %5259 = vst [vmem:[%s5177 + $0x84] sm:$0xf] %v5258
      %5260 = vst.msk [vmem:[%s5177 + $0x88] sm:$0xf] %vm294, %v5059
      %v5261 = vld [vmem:[%s5177 + $0x8c] sm:$0x1]
      %v5262 = vsel %vm304, %v5060, %v5261
      %5263 = vst [vmem:[%s5177 + $0x8c] sm:$0x1] %v5262
      %v5264 = vld [vmem:[%s5177 + $0x90] sm:$0xf]
      %v5265 = vsel %vm5179, %v5067, %v5264
      %5266 = vst [vmem:[%s5177 + $0x90] sm:$0xf] %v5265
      %5267 = vst.msk [vmem:[%s5177 + $0x94] sm:$0xf] %vm294, %v5076
      %v5268 = vld [vmem:[%s5177 + $0x98] sm:$0x1]
      %v5269 = vsel %vm304, %v5077, %v5268
      %5270 = vst [vmem:[%s5177 + $0x98] sm:$0x1] %v5269
      %v5271 = vld [vmem:[%s5177 + $0x9c] sm:$0xf]
      %v5272 = vsel %vm5179, %v5084, %v5271
      %5273 = vst [vmem:[%s5177 + $0x9c] sm:$0xf] %v5272
      %5274 = vst.msk [vmem:[%s5177 + $0xa0] sm:$0xf] %vm294, %v5093
      %v5275 = vld [vmem:[%s5177 + $0xa4] sm:$0x1]
      %v5276 = vsel %vm304, %v5094, %v5275
      %5277 = vst [vmem:[%s5177 + $0xa4] sm:$0x1] %v5276
      %v5278 = vld [vmem:[%s5177 + $0xa8] sm:$0xf]
      %v5279 = vsel %vm5179, %v5101, %v5278
      %5280 = vst [vmem:[%s5177 + $0xa8] sm:$0xf] %v5279
      %5281 = vst.msk [vmem:[%s5177 + $0xac] sm:$0xf] %vm294, %v5110
      %v5282 = vld [vmem:[%s5177 + $0xb0] sm:$0x1]
      %v5283 = vsel %vm304, %v5111, %v5282
      %5284 = vst [vmem:[%s5177 + $0xb0] sm:$0x1] %v5283
      %v5285 = vld [vmem:[%s5177 + $0xb4] sm:$0xf]
      %v5286 = vsel %vm5179, %v5118, %v5285
      %5287 = vst [vmem:[%s5177 + $0xb4] sm:$0xf] %v5286
      %5288 = vst.msk [vmem:[%s5177 + $0xb8] sm:$0xf] %vm294, %v5127
      %v5289 = vld [vmem:[%s5177 + $0xbc] sm:$0x1]
      %v5290 = vsel %vm304, %v5128, %v5289
      %5291 = vst [vmem:[%s5177 + $0xbc] sm:$0x1] %v5290
      %v5292 = vld [vmem:[#allocation3] sm:$0xf]
      %v5293 = vld [vmem:[#allocation3 + $0x4] sm:$0xf]
      %v5294 = vld [vmem:[#allocation3 + $0xc] sm:$0xf]
      %v5295 = vld [vmem:[#allocation3 + $0x10] sm:$0xf]
      %v5296 = vld [vmem:[#allocation3 + $0x18] sm:$0xf]
      %v5297 = vld [vmem:[#allocation3 + $0x1c] sm:$0xf]
      %v5298 = vld [vmem:[#allocation3 + $0x24] sm:$0xf]
      %v5299 = vld [vmem:[#allocation3 + $0x28] sm:$0xf]
      %v5300 = vld [vmem:[#allocation3 + $0x30] sm:$0xf]
      %v5301 = vld [vmem:[#allocation3 + $0x34] sm:$0xf]
      %v5302 = vld [vmem:[#allocation3 + $0x3c] sm:$0xf]
      %v5303 = vld [vmem:[#allocation3 + $0x40] sm:$0xf]
      %v5304 = vld [vmem:[#allocation3 + $0x48] sm:$0xf]
      %v5305 = vld [vmem:[#allocation3 + $0x4c] sm:$0xf]
      %v5306 = vld [vmem:[#allocation3 + $0x54] sm:$0xf]
      %v5307 = vld [vmem:[#allocation3 + $0x58] sm:$0xf]
      %v5308 = vld [vmem:[#allocation3 + $0x60] sm:$0xf]
      %v5309 = vld [vmem:[#allocation3 + $0x64] sm:$0xf]
      %v5310 = vld [vmem:[#allocation3 + $0x6c] sm:$0xf]
      %v5311 = vld [vmem:[#allocation3 + $0x70] sm:$0xf]
      %v5312 = vld [vmem:[#allocation3 + $0x78] sm:$0xf]
      %v5313 = vld [vmem:[#allocation3 + $0x7c] sm:$0xf]
      %v5314 = vld [vmem:[#allocation3 + $0x84] sm:$0xf]
      %v5315 = vld [vmem:[#allocation3 + $0x88] sm:$0xf]
      %v5316 = vld [vmem:[#allocation3 + $0x90] sm:$0xf]
      %v5317 = vld [vmem:[#allocation3 + $0x94] sm:$0xf]
      %v5318 = vld [vmem:[#allocation3 + $0x9c] sm:$0xf]
      %v5319 = vld [vmem:[#allocation3 + $0xa0] sm:$0xf]
      %v5320 = vld [vmem:[#allocation3 + $0xa8] sm:$0xf]
      %v5321 = vld [vmem:[#allocation3 + $0xac] sm:$0xf]
      %v5322 = vld [vmem:[#allocation3 + $0xb4] sm:$0xf]
      %v5323 = vld [vmem:[#allocation3 + $0xb8] sm:$0xf]
      %v5324 = vld [vmem:[%s2] sm:$0xf]
      %v5325 = vld [vmem:[#allocation3 + $0x8] sm:$0x1]
      %v5326 = vld [vmem:[#allocation3 + $0x14] sm:$0x1]
      %v5327 = vld [vmem:[#allocation3 + $0x20] sm:$0x1]
      %v5328 = vld [vmem:[#allocation3 + $0x2c] sm:$0x1]
      %v5329 = vld [vmem:[#allocation3 + $0x38] sm:$0x1]
      %v5330 = vld [vmem:[#allocation3 + $0x44] sm:$0x1]
      %v5331 = vld [vmem:[#allocation3 + $0x50] sm:$0x1]
      %v5332 = vld [vmem:[#allocation3 + $0x5c] sm:$0x1]
      %v5333 = vld [vmem:[#allocation3 + $0x68] sm:$0x1]
      %v5334 = vld [vmem:[#allocation3 + $0x74] sm:$0x1]
      %v5335 = vld [vmem:[#allocation3 + $0x80] sm:$0x1]
      %v5336 = vld [vmem:[#allocation3 + $0x8c] sm:$0x1]
      %v5337 = vld [vmem:[#allocation3 + $0x98] sm:$0x1]
      %v5338 = vld [vmem:[#allocation3 + $0xa4] sm:$0x1]
      %v5339 = vld [vmem:[#allocation3 + $0xb0] sm:$0x1]
      %v5340 = vld [vmem:[#allocation3 + $0xbc] sm:$0x1]
      %v5342 = vshrl.u32 %v5292, 16
      %v5344 = vrot.slane %v5342, 4
      %v5345 = vshll.u32 %v5292, 16
      %v5347 = vrot.slane %v5345, 5
      %v5348 = vor.u32 %v5344, %v5347
      %v5349 = vrot.slane %v5348, 4
      %v5351 = vshll.u32 %v5293, 16
      %v5353 = vrot.slane %v5351, 5
      %v5354 = vsel %vm934, %v5349, %v5353
      %v5355 = vshrl.u32 %v5293, 16
      %v5357 = vrot.slane %v5355, 4
      %v5358 = vor.u32 %v5357, %v5353
      %v5359 = vrot.slane %v5358, 4
      %v5361 = vshll.u32 %v5325, 16
      %v5363 = vrot.slane %v5361, 5
      %v5364 = vsel %vm934, %v5359, %v5363
      %v5366 = vshrl.u32 %v5294, 16
      %v5368 = vrot.slane %v5366, 4
      %v5369 = vshll.u32 %v5294, 16
      %v5371 = vrot.slane %v5369, 5
      %v5372 = vor.u32 %v5368, %v5371
      %v5373 = vrot.slane %v5372, 4
      %v5375 = vshll.u32 %v5295, 16
      %v5377 = vrot.slane %v5375, 5
      %v5378 = vsel %vm934, %v5373, %v5377
      %v5379 = vshrl.u32 %v5295, 16
      %v5381 = vrot.slane %v5379, 4
      %v5382 = vor.u32 %v5381, %v5377
      %v5383 = vrot.slane %v5382, 4
      %v5385 = vshll.u32 %v5326, 16
      %v5387 = vrot.slane %v5385, 5
      %v5388 = vsel %vm934, %v5383, %v5387
      %v5390 = vshrl.u32 %v5296, 16
      %v5392 = vrot.slane %v5390, 4
      %v5393 = vshll.u32 %v5296, 16
      %v5395 = vrot.slane %v5393, 5
      %v5396 = vor.u32 %v5392, %v5395
      %v5397 = vrot.slane %v5396, 4
      %v5399 = vshll.u32 %v5297, 16
      %v5401 = vrot.slane %v5399, 5
      %v5402 = vsel %vm934, %v5397, %v5401
      %v5403 = vshrl.u32 %v5297, 16
      %v5405 = vrot.slane %v5403, 4
      %v5406 = vor.u32 %v5405, %v5401
      %v5407 = vrot.slane %v5406, 4
      %v5409 = vshll.u32 %v5327, 16
      %v5411 = vrot.slane %v5409, 5
      %v5412 = vsel %vm934, %v5407, %v5411
      %v5414 = vshrl.u32 %v5298, 16
      %v5416 = vrot.slane %v5414, 4
      %v5417 = vshll.u32 %v5298, 16
      %v5419 = vrot.slane %v5417, 5
      %v5420 = vor.u32 %v5416, %v5419
      %v5421 = vrot.slane %v5420, 4
      %v5423 = vshll.u32 %v5299, 16
      %v5425 = vrot.slane %v5423, 5
      %v5426 = vsel %vm934, %v5421, %v5425
      %v5427 = vshrl.u32 %v5299, 16
      %v5429 = vrot.slane %v5427, 4
      %v5430 = vor.u32 %v5429, %v5425
      %v5431 = vrot.slane %v5430, 4
      %v5433 = vshll.u32 %v5328, 16
      %v5435 = vrot.slane %v5433, 5
      %v5436 = vsel %vm934, %v5431, %v5435
      %v5438 = vshrl.u32 %v5300, 16
      %v5440 = vrot.slane %v5438, 4
      %v5441 = vshll.u32 %v5300, 16
      %v5443 = vrot.slane %v5441, 5
      %v5444 = vor.u32 %v5440, %v5443
      %v5445 = vrot.slane %v5444, 4
      %v5447 = vshll.u32 %v5301, 16
      %v5449 = vrot.slane %v5447, 5
      %v5450 = vsel %vm934, %v5445, %v5449
      %v5451 = vshrl.u32 %v5301, 16
      %v5453 = vrot.slane %v5451, 4
      %v5454 = vor.u32 %v5453, %v5449
      %v5455 = vrot.slane %v5454, 4
      %v5457 = vshll.u32 %v5329, 16
      %v5459 = vrot.slane %v5457, 5
      %v5460 = vsel %vm934, %v5455, %v5459
      %v5462 = vshrl.u32 %v5302, 16
      %v5464 = vrot.slane %v5462, 4
      %v5465 = vshll.u32 %v5302, 16
      %v5467 = vrot.slane %v5465, 5
      %v5468 = vor.u32 %v5464, %v5467
      %v5469 = vrot.slane %v5468, 4
      %v5471 = vshll.u32 %v5303, 16
      %v5473 = vrot.slane %v5471, 5
      %v5474 = vsel %vm934, %v5469, %v5473
      %v5475 = vshrl.u32 %v5303, 16
      %v5477 = vrot.slane %v5475, 4
      %v5478 = vor.u32 %v5477, %v5473
      %v5479 = vrot.slane %v5478, 4
      %v5481 = vshll.u32 %v5330, 16
      %v5483 = vrot.slane %v5481, 5
      %v5484 = vsel %vm934, %v5479, %v5483
      %v5486 = vshrl.u32 %v5304, 16
      %v5488 = vrot.slane %v5486, 4
      %v5489 = vshll.u32 %v5304, 16
      %v5491 = vrot.slane %v5489, 5
      %v5492 = vor.u32 %v5488, %v5491
      %v5493 = vrot.slane %v5492, 4
      %v5495 = vshll.u32 %v5305, 16
      %v5497 = vrot.slane %v5495, 5
      %v5498 = vsel %vm934, %v5493, %v5497
      %v5499 = vshrl.u32 %v5305, 16
      %v5501 = vrot.slane %v5499, 4
      %v5502 = vor.u32 %v5501, %v5497
      %v5503 = vrot.slane %v5502, 4
      %v5505 = vshll.u32 %v5331, 16
      %v5507 = vrot.slane %v5505, 5
      %v5508 = vsel %vm934, %v5503, %v5507
      %v5510 = vshrl.u32 %v5306, 16
      %v5512 = vrot.slane %v5510, 4
      %v5513 = vshll.u32 %v5306, 16
      %v5515 = vrot.slane %v5513, 5
      %v5516 = vor.u32 %v5512, %v5515
      %v5517 = vrot.slane %v5516, 4
      %v5519 = vshll.u32 %v5307, 16
      %v5521 = vrot.slane %v5519, 5
      %v5522 = vsel %vm934, %v5517, %v5521
      %v5523 = vshrl.u32 %v5307, 16
      %v5525 = vrot.slane %v5523, 4
      %v5526 = vor.u32 %v5525, %v5521
      %v5527 = vrot.slane %v5526, 4
      %v5529 = vshll.u32 %v5332, 16
      %v5531 = vrot.slane %v5529, 5
      %v5532 = vsel %vm934, %v5527, %v5531
      %v5534 = vshrl.u32 %v5308, 16
      %v5536 = vrot.slane %v5534, 4
      %v5537 = vshll.u32 %v5308, 16
      %v5539 = vrot.slane %v5537, 5
      %v5540 = vor.u32 %v5536, %v5539
      %v5541 = vrot.slane %v5540, 4
      %v5543 = vshll.u32 %v5309, 16
      %v5545 = vrot.slane %v5543, 5
      %v5546 = vsel %vm934, %v5541, %v5545
      %v5547 = vshrl.u32 %v5309, 16
      %v5549 = vrot.slane %v5547, 4
      %v5550 = vor.u32 %v5549, %v5545
      %v5551 = vrot.slane %v5550, 4
      %v5553 = vshll.u32 %v5333, 16
      %v5555 = vrot.slane %v5553, 5
      %v5556 = vsel %vm934, %v5551, %v5555
      %v5558 = vshrl.u32 %v5310, 16
      %v5560 = vrot.slane %v5558, 4
      %v5561 = vshll.u32 %v5310, 16
      %v5563 = vrot.slane %v5561, 5
      %v5564 = vor.u32 %v5560, %v5563
      %v5565 = vrot.slane %v5564, 4
      %v5567 = vshll.u32 %v5311, 16
      %v5569 = vrot.slane %v5567, 5
      %v5570 = vsel %vm934, %v5565, %v5569
      %v5571 = vshrl.u32 %v5311, 16
      %v5573 = vrot.slane %v5571, 4
      %v5574 = vor.u32 %v5573, %v5569
      %v5575 = vrot.slane %v5574, 4
      %v5577 = vshll.u32 %v5334, 16
      %v5579 = vrot.slane %v5577, 5
      %v5580 = vsel %vm934, %v5575, %v5579
      %v5582 = vshrl.u32 %v5312, 16
      %v5584 = vrot.slane %v5582, 4
      %v5585 = vshll.u32 %v5312, 16
      %v5587 = vrot.slane %v5585, 5
      %v5588 = vor.u32 %v5584, %v5587
      %v5589 = vrot.slane %v5588, 4
      %v5591 = vshll.u32 %v5313, 16
      %v5593 = vrot.slane %v5591, 5
      %v5594 = vsel %vm934, %v5589, %v5593
      %v5595 = vshrl.u32 %v5313, 16
      %v5597 = vrot.slane %v5595, 4
      %v5598 = vor.u32 %v5597, %v5593
      %v5599 = vrot.slane %v5598, 4
      %v5601 = vshll.u32 %v5335, 16
      %v5603 = vrot.slane %v5601, 5
      %v5604 = vsel %vm934, %v5599, %v5603
      %v5606 = vshrl.u32 %v5314, 16
      %v5608 = vrot.slane %v5606, 4
      %v5609 = vshll.u32 %v5314, 16
      %v5611 = vrot.slane %v5609, 5
      %v5612 = vor.u32 %v5608, %v5611
      %v5613 = vrot.slane %v5612, 4
      %v5615 = vshll.u32 %v5315, 16
      %v5617 = vrot.slane %v5615, 5
      %v5618 = vsel %vm934, %v5613, %v5617
      %v5619 = vshrl.u32 %v5315, 16
      %v5621 = vrot.slane %v5619, 4
      %v5622 = vor.u32 %v5621, %v5617
      %v5623 = vrot.slane %v5622, 4
      %v5625 = vshll.u32 %v5336, 16
      %v5627 = vrot.slane %v5625, 5
      %v5628 = vsel %vm934, %v5623, %v5627
      %v5630 = vshrl.u32 %v5316, 16
      %v5632 = vrot.slane %v5630, 4
      %v5633 = vshll.u32 %v5316, 16
      %v5635 = vrot.slane %v5633, 5
      %v5636 = vor.u32 %v5632, %v5635
      %v5637 = vrot.slane %v5636, 4
      %v5639 = vshll.u32 %v5317, 16
      %v5641 = vrot.slane %v5639, 5
      %v5642 = vsel %vm934, %v5637, %v5641
      %v5643 = vshrl.u32 %v5317, 16
      %v5645 = vrot.slane %v5643, 4
      %v5646 = vor.u32 %v5645, %v5641
      %v5647 = vrot.slane %v5646, 4
      %v5649 = vshll.u32 %v5337, 16
      %v5651 = vrot.slane %v5649, 5
      %v5652 = vsel %vm934, %v5647, %v5651
      %v5654 = vshrl.u32 %v5318, 16
      %v5656 = vrot.slane %v5654, 4
      %v5657 = vshll.u32 %v5318, 16
      %v5659 = vrot.slane %v5657, 5
      %v5660 = vor.u32 %v5656, %v5659
      %v5661 = vrot.slane %v5660, 4
      %v5663 = vshll.u32 %v5319, 16
      %v5665 = vrot.slane %v5663, 5
      %v5666 = vsel %vm934, %v5661, %v5665
      %v5667 = vshrl.u32 %v5319, 16
      %v5669 = vrot.slane %v5667, 4
      %v5670 = vor.u32 %v5669, %v5665
      %v5671 = vrot.slane %v5670, 4
      %v5673 = vshll.u32 %v5338, 16
      %v5675 = vrot.slane %v5673, 5
      %v5676 = vsel %vm934, %v5671, %v5675
      %v5678 = vshrl.u32 %v5320, 16
      %v5680 = vrot.slane %v5678, 4
      %v5681 = vshll.u32 %v5320, 16
      %v5683 = vrot.slane %v5681, 5
      %v5684 = vor.u32 %v5680, %v5683
      %v5685 = vrot.slane %v5684, 4
      %v5687 = vshll.u32 %v5321, 16
      %v5689 = vrot.slane %v5687, 5
      %v5690 = vsel %vm934, %v5685, %v5689
      %v5691 = vshrl.u32 %v5321, 16
      %v5693 = vrot.slane %v5691, 4
      %v5694 = vor.u32 %v5693, %v5689
      %v5695 = vrot.slane %v5694, 4
      %v5697 = vshll.u32 %v5339, 16
      %v5699 = vrot.slane %v5697, 5
      %v5700 = vsel %vm934, %v5695, %v5699
      %v5702 = vshrl.u32 %v5322, 16
      %v5704 = vrot.slane %v5702, 4
      %v5705 = vshll.u32 %v5322, 16
      %v5707 = vrot.slane %v5705, 5
      %v5708 = vor.u32 %v5704, %v5707
      %v5709 = vrot.slane %v5708, 4
      %v5711 = vshll.u32 %v5323, 16
      %v5713 = vrot.slane %v5711, 5
      %v5714 = vsel %vm934, %v5709, %v5713
      %v5715 = vshrl.u32 %v5323, 16
      %v5717 = vrot.slane %v5715, 4
      %v5718 = vor.u32 %v5717, %v5713
      %v5719 = vrot.slane %v5718, 4
      %v5721 = vshll.u32 %v5340, 16
      %v5723 = vrot.slane %v5721, 5
      %v5724 = vsel %vm934, %v5719, %v5723
      %s5725 = scalar_lea.vmem %s2, 4
      %v5726 = vld [vmem:[%s5725] sm:$0xf]
      %v5727 = vunpack.c.l.b16 %v5354
      %v5728 = vunpack.c.l.b16 %v5364
      %v5729 = vunpack.c.l.b16 %v5378
      %v5730 = vunpack.c.l.b16 %v5388
      %v5731 = vunpack.c.l.b16 %v5402
      %v5732 = vunpack.c.l.b16 %v5412
      %v5733 = vunpack.c.l.b16 %v5426
      %v5734 = vunpack.c.l.b16 %v5436
      %v5735 = vunpack.c.l.b16 %v5450
      %v5736 = vunpack.c.l.b16 %v5460
      %v5737 = vunpack.c.l.b16 %v5474
      %v5738 = vunpack.c.l.b16 %v5484
      %v5739 = vunpack.c.l.b16 %v5498
      %v5740 = vunpack.c.l.b16 %v5508
      %v5741 = vunpack.c.l.b16 %v5522
      %v5742 = vunpack.c.l.b16 %v5532
      %v5743 = vunpack.c.l.b16 %v5546
      %v5744 = vunpack.c.l.b16 %v5556
      %v5745 = vunpack.c.l.b16 %v5570
      %v5746 = vunpack.c.l.b16 %v5580
      %v5747 = vunpack.c.l.b16 %v5594
      %v5748 = vunpack.c.l.b16 %v5604
      %v5749 = vunpack.c.l.b16 %v5618
      %v5750 = vunpack.c.l.b16 %v5628
      %v5751 = vunpack.c.l.b16 %v5642
      %v5752 = vunpack.c.l.b16 %v5652
      %v5753 = vunpack.c.l.b16 %v5666
      %v5754 = vunpack.c.l.b16 %v5676
      %v5755 = vunpack.c.l.b16 %v5690
      %v5756 = vunpack.c.l.b16 %v5700
      %v5757 = vunpack.c.l.b16 %v5714
      %v5758 = vunpack.c.l.b16 %v5724
      %v5759 = vpack.c.b16 %v5728, %v5727
      %v5760 = vpack.c.b16 %v5730, %v5729
      %v5761 = vpack.c.b16 %v5732, %v5731
      %v5762 = vpack.c.b16 %v5734, %v5733
      %v5763 = vpack.c.b16 %v5736, %v5735
      %v5764 = vpack.c.b16 %v5738, %v5737
      %v5765 = vpack.c.b16 %v5740, %v5739
      %v5766 = vpack.c.b16 %v5742, %v5741
      %v5767 = vpack.c.b16 %v5744, %v5743
      %v5768 = vpack.c.b16 %v5746, %v5745
      %v5769 = vpack.c.b16 %v5748, %v5747
      %v5770 = vpack.c.b16 %v5750, %v5749
      %v5771 = vpack.c.b16 %v5752, %v5751
      %v5772 = vpack.c.b16 %v5754, %v5753
      %v5773 = vpack.c.b16 %v5756, %v5755
      %v5774 = vpack.c.b16 %v5758, %v5757
      %vm5775 = vcmask 64512
      %v5777 = vsel %vm5775, %v5759, 0
      %v5780 = vsel %vm5775, %v5760, 0
      %v5783 = vsel %vm5775, %v5761, 0
      %v5786 = vsel %vm5775, %v5762, 0
      %v5789 = vsel %vm5775, %v5763, 0
      %v5792 = vsel %vm5775, %v5764, 0
      %v5795 = vsel %vm5775, %v5765, 0
      %v5798 = vsel %vm5775, %v5766, 0
      %v5801 = vsel %vm5775, %v5767, 0
      %v5804 = vsel %vm5775, %v5768, 0
      %v5807 = vsel %vm5775, %v5769, 0
      %v5810 = vsel %vm5775, %v5770, 0
      %v5813 = vsel %vm5775, %v5771, 0
      %v5816 = vsel %vm5775, %v5772, 0
      %v5819 = vsel %vm5775, %v5773, 0
      %v5822 = vsel %vm5775, %v5774, 0
      %vm5824 = vcmask 1043456
      %v5826 = vsel %vm5824, %v5726, 0
      %5828 = vmatpush.bf16.msra.mxu0 0
      %5829 = vmatpush.bf16.msra.mxu0 0
      %5830 = vmatpush.bf16.msra.mxu0 0
      %5831 = vmatpush.bf16.msra.mxu0 0
      %5832 = vmatpush.bf16.msra.mxu0 0
      %5833 = vmatpush.bf16.msra.mxu0 0
      %5834 = vmatpush.bf16.msra.mxu0 0
      %5835 = vmatpush.bf16.msra.mxu0 %v5826
      %5836 = vmatmul.bf16.gmra.mxu0 %v5777
      %v5837 = vpop.f32.mrf.mxu0
      %v5838 = vadd.f32 0.0, %v5837
      %v5839 = vpop.f32.mrf.mxu0
      %v5840 = vadd.f32 0.0, %v5839
      %5841 = vmatmul.bf16.gmra.mxu0 %v5780
      %v5842 = vpop.f32.mrf.mxu0
      %v5843 = vadd.f32 0.0, %v5842
      %v5844 = vpop.f32.mrf.mxu0
      %v5845 = vadd.f32 0.0, %v5844
      %5846 = vmatmul.bf16.gmra.mxu0 %v5783
      %v5847 = vpop.f32.mrf.mxu0
      %v5848 = vadd.f32 0.0, %v5847
      %v5849 = vpop.f32.mrf.mxu0
      %v5850 = vadd.f32 0.0, %v5849
      %5851 = vmatmul.bf16.gmra.mxu0 %v5786
      %v5852 = vpop.f32.mrf.mxu0
      %v5853 = vadd.f32 0.0, %v5852
      %v5854 = vpop.f32.mrf.mxu0
      %v5855 = vadd.f32 0.0, %v5854
      %5856 = vmatmul.bf16.gmra.mxu0 %v5789
      %v5857 = vpop.f32.mrf.mxu0
      %v5858 = vadd.f32 0.0, %v5857
      %v5859 = vpop.f32.mrf.mxu0
      %v5860 = vadd.f32 0.0, %v5859
      %5861 = vmatmul.bf16.gmra.mxu0 %v5792
      %v5862 = vpop.f32.mrf.mxu0
      %v5863 = vadd.f32 0.0, %v5862
      %v5864 = vpop.f32.mrf.mxu0
      %v5865 = vadd.f32 0.0, %v5864
      %5866 = vmatmul.bf16.gmra.mxu0 %v5795
      %v5867 = vpop.f32.mrf.mxu0
      %v5868 = vadd.f32 0.0, %v5867
      %v5869 = vpop.f32.mrf.mxu0
      %v5870 = vadd.f32 0.0, %v5869
      %5871 = vmatmul.bf16.gmra.mxu0 %v5798
      %v5872 = vpop.f32.mrf.mxu0
      %v5873 = vadd.f32 0.0, %v5872
      %v5874 = vpop.f32.mrf.mxu0
      %v5875 = vadd.f32 0.0, %v5874
      %5876 = vmatmul.bf16.gmra.mxu0 %v5801
      %v5877 = vpop.f32.mrf.mxu0
      %v5878 = vadd.f32 0.0, %v5877
      %v5879 = vpop.f32.mrf.mxu0
      %v5880 = vadd.f32 0.0, %v5879
      %5881 = vmatmul.bf16.gmra.mxu0 %v5804
      %v5882 = vpop.f32.mrf.mxu0
      %v5883 = vadd.f32 0.0, %v5882
      %v5884 = vpop.f32.mrf.mxu0
      %v5885 = vadd.f32 0.0, %v5884
      %5886 = vmatmul.bf16.gmra.mxu0 %v5807
      %v5887 = vpop.f32.mrf.mxu0
      %v5888 = vadd.f32 0.0, %v5887
      %v5889 = vpop.f32.mrf.mxu0
      %v5890 = vadd.f32 0.0, %v5889
      %5891 = vmatmul.bf16.gmra.mxu0 %v5810
      %v5892 = vpop.f32.mrf.mxu0
      %v5893 = vadd.f32 0.0, %v5892
      %v5894 = vpop.f32.mrf.mxu0
      %v5895 = vadd.f32 0.0, %v5894
      %5896 = vmatmul.bf16.gmra.mxu0 %v5813
      %v5897 = vpop.f32.mrf.mxu0
      %v5898 = vadd.f32 0.0, %v5897
      %v5899 = vpop.f32.mrf.mxu0
      %v5900 = vadd.f32 0.0, %v5899
      %5901 = vmatmul.bf16.gmra.mxu0 %v5816
      %v5902 = vpop.f32.mrf.mxu0
      %v5903 = vadd.f32 0.0, %v5902
      %v5904 = vpop.f32.mrf.mxu0
      %v5905 = vadd.f32 0.0, %v5904
      %5906 = vmatmul.bf16.gmra.mxu0 %v5819
      %v5907 = vpop.f32.mrf.mxu0
      %v5908 = vadd.f32 0.0, %v5907
      %v5909 = vpop.f32.mrf.mxu0
      %v5910 = vadd.f32 0.0, %v5909
      %5911 = vmatmul.bf16.gmra.mxu0 %v5822
      %v5912 = vpop.f32.mrf.mxu0
      %v5913 = vadd.f32 0.0, %v5912
      %v5914 = vpop.f32.mrf.mxu0
      %v5915 = vadd.f32 0.0, %v5914
      %5916 = vdwg.mxu0
      %v5949 = vunpack.c.l.b16 %v5292
      %v5950 = vunpack.c.l.b16 %v5293
      %v5951 = vunpack.c.l.b16 %v5294
      %v5952 = vunpack.c.l.b16 %v5295
      %v5953 = vunpack.c.l.b16 %v5296
      %v5954 = vunpack.c.l.b16 %v5297
      %v5955 = vunpack.c.l.b16 %v5298
      %v5956 = vunpack.c.l.b16 %v5299
      %v5957 = vunpack.c.l.b16 %v5300
      %v5958 = vunpack.c.l.b16 %v5301
      %v5959 = vunpack.c.l.b16 %v5302
      %v5960 = vunpack.c.l.b16 %v5303
      %v5961 = vunpack.c.l.b16 %v5304
      %v5962 = vunpack.c.l.b16 %v5305
      %v5963 = vunpack.c.l.b16 %v5306
      %v5964 = vunpack.c.l.b16 %v5307
      %v5965 = vunpack.c.l.b16 %v5308
      %v5966 = vunpack.c.l.b16 %v5309
      %v5967 = vunpack.c.l.b16 %v5310
      %v5968 = vunpack.c.l.b16 %v5311
      %v5969 = vunpack.c.l.b16 %v5312
      %v5970 = vunpack.c.l.b16 %v5313
      %v5971 = vunpack.c.l.b16 %v5314
      %v5972 = vunpack.c.l.b16 %v5315
      %v5973 = vunpack.c.l.b16 %v5316
      %v5974 = vunpack.c.l.b16 %v5317
      %v5975 = vunpack.c.l.b16 %v5318
      %v5976 = vunpack.c.l.b16 %v5319
      %v5977 = vunpack.c.l.b16 %v5320
      %v5978 = vunpack.c.l.b16 %v5321
      %v5979 = vunpack.c.l.b16 %v5322
      %v5980 = vunpack.c.l.b16 %v5323
      %v5981 = vpack.c.b16 %v5950, %v5949
      %v5982 = vpack.c.b16 %v5952, %v5951
      %v5983 = vpack.c.b16 %v5954, %v5953
      %v5984 = vpack.c.b16 %v5956, %v5955
      %v5985 = vpack.c.b16 %v5958, %v5957
      %v5986 = vpack.c.b16 %v5960, %v5959
      %v5987 = vpack.c.b16 %v5962, %v5961
      %v5988 = vpack.c.b16 %v5964, %v5963
      %v5989 = vpack.c.b16 %v5966, %v5965
      %v5990 = vpack.c.b16 %v5968, %v5967
      %v5991 = vpack.c.b16 %v5970, %v5969
      %v5992 = vpack.c.b16 %v5972, %v5971
      %v5993 = vpack.c.b16 %v5974, %v5973
      %v5994 = vpack.c.b16 %v5976, %v5975
      %v5995 = vpack.c.b16 %v5978, %v5977
      %v5996 = vpack.c.b16 %v5980, %v5979
      %v5998 = vsel %vm5775, %v5981, 0
      %v6001 = vsel %vm5775, %v5982, 0
      %v6004 = vsel %vm5775, %v5983, 0
      %v6007 = vsel %vm5775, %v5984, 0
      %v6010 = vsel %vm5775, %v5985, 0
      %v6013 = vsel %vm5775, %v5986, 0
      %v6016 = vsel %vm5775, %v5987, 0
      %v6019 = vsel %vm5775, %v5988, 0
      %v6022 = vsel %vm5775, %v5989, 0
      %v6025 = vsel %vm5775, %v5990, 0
      %v6028 = vsel %vm5775, %v5991, 0
      %v6031 = vsel %vm5775, %v5992, 0
      %v6034 = vsel %vm5775, %v5993, 0
      %v6037 = vsel %vm5775, %v5994, 0
      %v6040 = vsel %vm5775, %v5995, 0
      %v6043 = vsel %vm5775, %v5996, 0
      %v6046 = vsel %vm5824, %v5324, 0
      %6048 = vmatpush.bf16.msra.mxu0 0
      %6049 = vmatpush.bf16.msra.mxu0 0
      %6050 = vmatpush.bf16.msra.mxu0 0
      %6051 = vmatpush.bf16.msra.mxu0 0
      %6052 = vmatpush.bf16.msra.mxu0 0
      %6053 = vmatpush.bf16.msra.mxu0 0
      %6054 = vmatpush.bf16.msra.mxu0 0
      %6055 = vmatpush.bf16.msra.mxu0 %v6046
      %6056 = vmatmul.bf16.gmra.mxu0 %v5998
      %v6057 = vpop.f32.mrf.mxu0
      %v6058 = vadd.f32 %v5838, %v6057
      %v6059 = vpop.f32.mrf.mxu0
      %v6060 = vadd.f32 %v5840, %v6059
      %6061 = vmatmul.bf16.gmra.mxu0 %v6001
      %v6062 = vpop.f32.mrf.mxu0
      %v6063 = vadd.f32 %v5843, %v6062
      %v6064 = vpop.f32.mrf.mxu0
      %v6065 = vadd.f32 %v5845, %v6064
      %6066 = vmatmul.bf16.gmra.mxu0 %v6004
      %v6067 = vpop.f32.mrf.mxu0
      %v6068 = vadd.f32 %v5848, %v6067
      %v6069 = vpop.f32.mrf.mxu0
      %v6070 = vadd.f32 %v5850, %v6069
      %6071 = vmatmul.bf16.gmra.mxu0 %v6007
      %v6072 = vpop.f32.mrf.mxu0
      %v6073 = vadd.f32 %v5853, %v6072
      %v6074 = vpop.f32.mrf.mxu0
      %v6075 = vadd.f32 %v5855, %v6074
      %6076 = vmatmul.bf16.gmra.mxu0 %v6010
      %v6077 = vpop.f32.mrf.mxu0
      %v6078 = vadd.f32 %v5858, %v6077
      %v6079 = vpop.f32.mrf.mxu0
      %v6080 = vadd.f32 %v5860, %v6079
      %6081 = vmatmul.bf16.gmra.mxu0 %v6013
      %v6082 = vpop.f32.mrf.mxu0
      %v6083 = vadd.f32 %v5863, %v6082
      %v6084 = vpop.f32.mrf.mxu0
      %v6085 = vadd.f32 %v5865, %v6084
      %6086 = vmatmul.bf16.gmra.mxu0 %v6016
      %v6087 = vpop.f32.mrf.mxu0
      %v6088 = vadd.f32 %v5868, %v6087
      %v6089 = vpop.f32.mrf.mxu0
      %v6090 = vadd.f32 %v5870, %v6089
      %6091 = vmatmul.bf16.gmra.mxu0 %v6019
      %v6092 = vpop.f32.mrf.mxu0
      %v6093 = vadd.f32 %v5873, %v6092
      %v6094 = vpop.f32.mrf.mxu0
      %v6095 = vadd.f32 %v5875, %v6094
      %6096 = vmatmul.bf16.gmra.mxu0 %v6022
      %v6097 = vpop.f32.mrf.mxu0
      %v6098 = vadd.f32 %v5878, %v6097
      %v6099 = vpop.f32.mrf.mxu0
      %v6100 = vadd.f32 %v5880, %v6099
      %6101 = vmatmul.bf16.gmra.mxu0 %v6025
      %v6102 = vpop.f32.mrf.mxu0
      %v6103 = vadd.f32 %v5883, %v6102
      %v6104 = vpop.f32.mrf.mxu0
      %v6105 = vadd.f32 %v5885, %v6104
      %6106 = vmatmul.bf16.gmra.mxu0 %v6028
      %v6107 = vpop.f32.mrf.mxu0
      %v6108 = vadd.f32 %v5888, %v6107
      %v6109 = vpop.f32.mrf.mxu0
      %v6110 = vadd.f32 %v5890, %v6109
      %6111 = vmatmul.bf16.gmra.mxu0 %v6031
      %v6112 = vpop.f32.mrf.mxu0
      %v6113 = vadd.f32 %v5893, %v6112
      %v6114 = vpop.f32.mrf.mxu0
      %v6115 = vadd.f32 %v5895, %v6114
      %6116 = vmatmul.bf16.gmra.mxu0 %v6034
      %v6117 = vpop.f32.mrf.mxu0
      %v6118 = vadd.f32 %v5898, %v6117
      %v6119 = vpop.f32.mrf.mxu0
      %v6120 = vadd.f32 %v5900, %v6119
      %6121 = vmatmul.bf16.gmra.mxu0 %v6037
      %v6122 = vpop.f32.mrf.mxu0
      %v6123 = vadd.f32 %v5903, %v6122
      %v6124 = vpop.f32.mrf.mxu0
      %v6125 = vadd.f32 %v5905, %v6124
      %6126 = vmatmul.bf16.gmra.mxu0 %v6040
      %v6127 = vpop.f32.mrf.mxu0
      %v6128 = vadd.f32 %v5908, %v6127
      %v6129 = vpop.f32.mrf.mxu0
      %v6130 = vadd.f32 %v5910, %v6129
      %6131 = vmatmul.bf16.gmra.mxu0 %v6043
      %v6132 = vpop.f32.mrf.mxu0
      %v6133 = vadd.f32 %v5913, %v6132
      %v6134 = vpop.f32.mrf.mxu0
      %v6135 = vadd.f32 %v5915, %v6134
      %6136 = vdwg.mxu0
      %v6137 = vld [vmem:[#allocation3] sm:$0xe]
      %v6138 = vld [vmem:[#allocation3 + $0xc] sm:$0xe]
      %v6139 = vld [vmem:[#allocation3 + $0x18] sm:$0xe]
      %v6140 = vld [vmem:[#allocation3 + $0x24] sm:$0xe]
      %v6141 = vld [vmem:[#allocation3 + $0x30] sm:$0xe]
      %v6142 = vld [vmem:[#allocation3 + $0x3c] sm:$0xe]
      %v6143 = vld [vmem:[#allocation3 + $0x48] sm:$0xe]
      %v6144 = vld [vmem:[#allocation3 + $0x54] sm:$0xe]
      %v6145 = vld [vmem:[#allocation3 + $0x60] sm:$0xe]
      %v6146 = vld [vmem:[#allocation3 + $0x6c] sm:$0xe]
      %v6147 = vld [vmem:[#allocation3 + $0x78] sm:$0xe]
      %v6148 = vld [vmem:[#allocation3 + $0x84] sm:$0xe]
      %v6149 = vld [vmem:[#allocation3 + $0x90] sm:$0xe]
      %v6150 = vld [vmem:[#allocation3 + $0x9c] sm:$0xe]
      %v6151 = vld [vmem:[#allocation3 + $0xa8] sm:$0xe]
      %v6152 = vld [vmem:[#allocation3 + $0xb4] sm:$0xe]
      %v6185 = vrot.slane %v6137, 5
      %v6186 = vrot.slane %v6185, 4
      %v6187 = vrot.slane %v5293, 5
      %v6188 = vsel %vm1781, %v6186, %v6187
      %v6189 = vrot.slane %v6187, 4
      %v6190 = vrot.slane %v5325, 5
      %v6191 = vsel %vm1781, %v6189, %v6190
      %v6192 = vrot.slane %v6138, 5
      %v6193 = vrot.slane %v6192, 4
      %v6194 = vrot.slane %v5295, 5
      %v6195 = vsel %vm1781, %v6193, %v6194
      %v6196 = vrot.slane %v6194, 4
      %v6197 = vrot.slane %v5326, 5
      %v6198 = vsel %vm1781, %v6196, %v6197
      %v6199 = vrot.slane %v6139, 5
      %v6200 = vrot.slane %v6199, 4
      %v6201 = vrot.slane %v5297, 5
      %v6202 = vsel %vm1781, %v6200, %v6201
      %v6203 = vrot.slane %v6201, 4
      %v6204 = vrot.slane %v5327, 5
      %v6205 = vsel %vm1781, %v6203, %v6204
      %v6206 = vrot.slane %v6140, 5
      %v6207 = vrot.slane %v6206, 4
      %v6208 = vrot.slane %v5299, 5
      %v6209 = vsel %vm1781, %v6207, %v6208
      %v6210 = vrot.slane %v6208, 4
      %v6211 = vrot.slane %v5328, 5
      %v6212 = vsel %vm1781, %v6210, %v6211
      %v6213 = vrot.slane %v6141, 5
      %v6214 = vrot.slane %v6213, 4
      %v6215 = vrot.slane %v5301, 5
      %v6216 = vsel %vm1781, %v6214, %v6215
      %v6217 = vrot.slane %v6215, 4
      %v6218 = vrot.slane %v5329, 5
      %v6219 = vsel %vm1781, %v6217, %v6218
      %v6220 = vrot.slane %v6142, 5
      %v6221 = vrot.slane %v6220, 4
      %v6222 = vrot.slane %v5303, 5
      %v6223 = vsel %vm1781, %v6221, %v6222
      %v6224 = vrot.slane %v6222, 4
      %v6225 = vrot.slane %v5330, 5
      %v6226 = vsel %vm1781, %v6224, %v6225
      %v6227 = vrot.slane %v6143, 5
      %v6228 = vrot.slane %v6227, 4
      %v6229 = vrot.slane %v5305, 5
      %v6230 = vsel %vm1781, %v6228, %v6229
      %v6231 = vrot.slane %v6229, 4
      %v6232 = vrot.slane %v5331, 5
      %v6233 = vsel %vm1781, %v6231, %v6232
      %v6234 = vrot.slane %v6144, 5
      %v6235 = vrot.slane %v6234, 4
      %v6236 = vrot.slane %v5307, 5
      %v6237 = vsel %vm1781, %v6235, %v6236
      %v6238 = vrot.slane %v6236, 4
      %v6239 = vrot.slane %v5332, 5
      %v6240 = vsel %vm1781, %v6238, %v6239
      %v6241 = vrot.slane %v6145, 5
      %v6242 = vrot.slane %v6241, 4
      %v6243 = vrot.slane %v5309, 5
      %v6244 = vsel %vm1781, %v6242, %v6243
      %v6245 = vrot.slane %v6243, 4
      %v6246 = vrot.slane %v5333, 5
      %v6247 = vsel %vm1781, %v6245, %v6246
      %v6248 = vrot.slane %v6146, 5
      %v6249 = vrot.slane %v6248, 4
      %v6250 = vrot.slane %v5311, 5
      %v6251 = vsel %vm1781, %v6249, %v6250
      %v6252 = vrot.slane %v6250, 4
      %v6253 = vrot.slane %v5334, 5
      %v6254 = vsel %vm1781, %v6252, %v6253
      %v6255 = vrot.slane %v6147, 5
      %v6256 = vrot.slane %v6255, 4
      %v6257 = vrot.slane %v5313, 5
      %v6258 = vsel %vm1781, %v6256, %v6257
      %v6259 = vrot.slane %v6257, 4
      %v6260 = vrot.slane %v5335, 5
      %v6261 = vsel %vm1781, %v6259, %v6260
      %v6262 = vrot.slane %v6148, 5
      %v6263 = vrot.slane %v6262, 4
      %v6264 = vrot.slane %v5315, 5
      %v6265 = vsel %vm1781, %v6263, %v6264
      %v6266 = vrot.slane %v6264, 4
      %v6267 = vrot.slane %v5336, 5
      %v6268 = vsel %vm1781, %v6266, %v6267
      %v6269 = vrot.slane %v6149, 5
      %v6270 = vrot.slane %v6269, 4
      %v6271 = vrot.slane %v5317, 5
      %v6272 = vsel %vm1781, %v6270, %v6271
      %v6273 = vrot.slane %v6271, 4
      %v6274 = vrot.slane %v5337, 5
      %v6275 = vsel %vm1781, %v6273, %v6274
      %v6276 = vrot.slane %v6150, 5
      %v6277 = vrot.slane %v6276, 4
      %v6278 = vrot.slane %v5319, 5
      %v6279 = vsel %vm1781, %v6277, %v6278
      %v6280 = vrot.slane %v6278, 4
      %v6281 = vrot.slane %v5338, 5
      %v6282 = vsel %vm1781, %v6280, %v6281
      %v6283 = vrot.slane %v6151, 5
      %v6284 = vrot.slane %v6283, 4
      %v6285 = vrot.slane %v5321, 5
      %v6286 = vsel %vm1781, %v6284, %v6285
      %v6287 = vrot.slane %v6285, 4
      %v6288 = vrot.slane %v5339, 5
      %v6289 = vsel %vm1781, %v6287, %v6288
      %v6290 = vrot.slane %v6152, 5
      %v6291 = vrot.slane %v6290, 4
      %v6292 = vrot.slane %v5323, 5
      %v6293 = vsel %vm1781, %v6291, %v6292
      %v6294 = vrot.slane %v6292, 4
      %v6295 = vrot.slane %v5340, 5
      %v6296 = vsel %vm1781, %v6294, %v6295
      %s6297 = scalar_lea.vmem %s2, 8
      %v6298 = vld [vmem:[%s6297] sm:$0xf]
      %v6299 = vunpack.c.l.b16 %v6188
      %v6300 = vunpack.c.l.b16 %v6191
      %v6301 = vunpack.c.l.b16 %v6195
      %v6302 = vunpack.c.l.b16 %v6198
      %v6303 = vunpack.c.l.b16 %v6202
      %v6304 = vunpack.c.l.b16 %v6205
      %v6305 = vunpack.c.l.b16 %v6209
      %v6306 = vunpack.c.l.b16 %v6212
      %v6307 = vunpack.c.l.b16 %v6216
      %v6308 = vunpack.c.l.b16 %v6219
      %v6309 = vunpack.c.l.b16 %v6223
      %v6310 = vunpack.c.l.b16 %v6226
      %v6311 = vunpack.c.l.b16 %v6230
      %v6312 = vunpack.c.l.b16 %v6233
      %v6313 = vunpack.c.l.b16 %v6237
      %v6314 = vunpack.c.l.b16 %v6240
      %v6315 = vunpack.c.l.b16 %v6244
      %v6316 = vunpack.c.l.b16 %v6247
      %v6317 = vunpack.c.l.b16 %v6251
      %v6318 = vunpack.c.l.b16 %v6254
      %v6319 = vunpack.c.l.b16 %v6258
      %v6320 = vunpack.c.l.b16 %v6261
      %v6321 = vunpack.c.l.b16 %v6265
      %v6322 = vunpack.c.l.b16 %v6268
      %v6323 = vunpack.c.l.b16 %v6272
      %v6324 = vunpack.c.l.b16 %v6275
      %v6325 = vunpack.c.l.b16 %v6279
      %v6326 = vunpack.c.l.b16 %v6282
      %v6327 = vunpack.c.l.b16 %v6286
      %v6328 = vunpack.c.l.b16 %v6289
      %v6329 = vunpack.c.l.b16 %v6293
      %v6330 = vunpack.c.l.b16 %v6296
      %v6331 = vpack.c.b16 %v6300, %v6299
      %v6332 = vpack.c.b16 %v6302, %v6301
      %v6333 = vpack.c.b16 %v6304, %v6303
      %v6334 = vpack.c.b16 %v6306, %v6305
      %v6335 = vpack.c.b16 %v6308, %v6307
      %v6336 = vpack.c.b16 %v6310, %v6309
      %v6337 = vpack.c.b16 %v6312, %v6311
      %v6338 = vpack.c.b16 %v6314, %v6313
      %v6339 = vpack.c.b16 %v6316, %v6315
      %v6340 = vpack.c.b16 %v6318, %v6317
      %v6341 = vpack.c.b16 %v6320, %v6319
      %v6342 = vpack.c.b16 %v6322, %v6321
      %v6343 = vpack.c.b16 %v6324, %v6323
      %v6344 = vpack.c.b16 %v6326, %v6325
      %v6345 = vpack.c.b16 %v6328, %v6327
      %v6346 = vpack.c.b16 %v6330, %v6329
      %v6348 = vsel %vm5775, %v6331, 0
      %v6351 = vsel %vm5775, %v6332, 0
      %v6354 = vsel %vm5775, %v6333, 0
      %v6357 = vsel %vm5775, %v6334, 0
      %v6360 = vsel %vm5775, %v6335, 0
      %v6363 = vsel %vm5775, %v6336, 0
      %v6366 = vsel %vm5775, %v6337, 0
      %v6369 = vsel %vm5775, %v6338, 0
      %v6372 = vsel %vm5775, %v6339, 0
      %v6375 = vsel %vm5775, %v6340, 0
      %v6378 = vsel %vm5775, %v6341, 0
      %v6381 = vsel %vm5775, %v6342, 0
      %v6384 = vsel %vm5775, %v6343, 0
      %v6387 = vsel %vm5775, %v6344, 0
      %v6390 = vsel %vm5775, %v6345, 0
      %v6393 = vsel %vm5775, %v6346, 0
      %v6396 = vsel %vm5824, %v6298, 0
      %6398 = vmatpush.bf16.msra.mxu0 0
      %6399 = vmatpush.bf16.msra.mxu0 0
      %6400 = vmatpush.bf16.msra.mxu0 0
      %6401 = vmatpush.bf16.msra.mxu0 0
      %6402 = vmatpush.bf16.msra.mxu0 0
      %6403 = vmatpush.bf16.msra.mxu0 0
      %6404 = vmatpush.bf16.msra.mxu0 0
      %6405 = vmatpush.bf16.msra.mxu0 %v6396
      %6406 = vmatmul.bf16.gmra.mxu0 %v6348
      %v6407 = vpop.f32.mrf.mxu0
      %v6408 = vadd.f32 0.0, %v6407
      %v6409 = vpop.f32.mrf.mxu0
      %v6410 = vadd.f32 0.0, %v6409
      %6411 = vmatmul.bf16.gmra.mxu0 %v6351
      %v6412 = vpop.f32.mrf.mxu0
      %v6413 = vadd.f32 0.0, %v6412
      %v6414 = vpop.f32.mrf.mxu0
      %v6415 = vadd.f32 0.0, %v6414
      %6416 = vmatmul.bf16.gmra.mxu0 %v6354
      %v6417 = vpop.f32.mrf.mxu0
      %v6418 = vadd.f32 0.0, %v6417
      %v6419 = vpop.f32.mrf.mxu0
      %v6420 = vadd.f32 0.0, %v6419
      %6421 = vmatmul.bf16.gmra.mxu0 %v6357
      %v6422 = vpop.f32.mrf.mxu0
      %v6423 = vadd.f32 0.0, %v6422
      %v6424 = vpop.f32.mrf.mxu0
      %v6425 = vadd.f32 0.0, %v6424
      %6426 = vmatmul.bf16.gmra.mxu0 %v6360
      %v6427 = vpop.f32.mrf.mxu0
      %v6428 = vadd.f32 0.0, %v6427
      %v6429 = vpop.f32.mrf.mxu0
      %v6430 = vadd.f32 0.0, %v6429
      %6431 = vmatmul.bf16.gmra.mxu0 %v6363
      %v6432 = vpop.f32.mrf.mxu0
      %v6433 = vadd.f32 0.0, %v6432
      %v6434 = vpop.f32.mrf.mxu0
      %v6435 = vadd.f32 0.0, %v6434
      %6436 = vmatmul.bf16.gmra.mxu0 %v6366
      %v6437 = vpop.f32.mrf.mxu0
      %v6438 = vadd.f32 0.0, %v6437
      %v6439 = vpop.f32.mrf.mxu0
      %v6440 = vadd.f32 0.0, %v6439
      %6441 = vmatmul.bf16.gmra.mxu0 %v6369
      %v6442 = vpop.f32.mrf.mxu0
      %v6443 = vadd.f32 0.0, %v6442
      %v6444 = vpop.f32.mrf.mxu0
      %v6445 = vadd.f32 0.0, %v6444
      %6446 = vmatmul.bf16.gmra.mxu0 %v6372
      %v6447 = vpop.f32.mrf.mxu0
      %v6448 = vadd.f32 0.0, %v6447
      %v6449 = vpop.f32.mrf.mxu0
      %v6450 = vadd.f32 0.0, %v6449
      %6451 = vmatmul.bf16.gmra.mxu0 %v6375
      %v6452 = vpop.f32.mrf.mxu0
      %v6453 = vadd.f32 0.0, %v6452
      %v6454 = vpop.f32.mrf.mxu0
      %v6455 = vadd.f32 0.0, %v6454
      %6456 = vmatmul.bf16.gmra.mxu0 %v6378
      %v6457 = vpop.f32.mrf.mxu0
      %v6458 = vadd.f32 0.0, %v6457
      %v6459 = vpop.f32.mrf.mxu0
      %v6460 = vadd.f32 0.0, %v6459
      %6461 = vmatmul.bf16.gmra.mxu0 %v6381
      %v6462 = vpop.f32.mrf.mxu0
      %v6463 = vadd.f32 0.0, %v6462
      %v6464 = vpop.f32.mrf.mxu0
      %v6465 = vadd.f32 0.0, %v6464
      %6466 = vmatmul.bf16.gmra.mxu0 %v6384
      %v6467 = vpop.f32.mrf.mxu0
      %v6468 = vadd.f32 0.0, %v6467
      %v6469 = vpop.f32.mrf.mxu0
      %v6470 = vadd.f32 0.0, %v6469
      %6471 = vmatmul.bf16.gmra.mxu0 %v6387
      %v6472 = vpop.f32.mrf.mxu0
      %v6473 = vadd.f32 0.0, %v6472
      %v6474 = vpop.f32.mrf.mxu0
      %v6475 = vadd.f32 0.0, %v6474
      %6476 = vmatmul.bf16.gmra.mxu0 %v6390
      %v6477 = vpop.f32.mrf.mxu0
      %v6478 = vadd.f32 0.0, %v6477
      %v6479 = vpop.f32.mrf.mxu0
      %v6480 = vadd.f32 0.0, %v6479
      %6481 = vmatmul.bf16.gmra.mxu0 %v6393
      %v6482 = vpop.f32.mrf.mxu0
      %v6483 = vadd.f32 0.0, %v6482
      %v6484 = vpop.f32.mrf.mxu0
      %v6485 = vadd.f32 0.0, %v6484
      %6486 = vdwg.mxu0
      %v6487 = vadd.f32 %v6058, %v6408
      %v6488 = vadd.f32 %v6060, %v6410
      %v6489 = vadd.f32 %v6063, %v6413
      %v6490 = vadd.f32 %v6065, %v6415
      %v6491 = vadd.f32 %v6068, %v6418
      %v6492 = vadd.f32 %v6070, %v6420
      %v6493 = vadd.f32 %v6073, %v6423
      %v6494 = vadd.f32 %v6075, %v6425
      %v6495 = vadd.f32 %v6078, %v6428
      %v6496 = vadd.f32 %v6080, %v6430
      %v6497 = vadd.f32 %v6083, %v6433
      %v6498 = vadd.f32 %v6085, %v6435
      %v6499 = vadd.f32 %v6088, %v6438
      %v6500 = vadd.f32 %v6090, %v6440
      %v6501 = vadd.f32 %v6093, %v6443
      %v6502 = vadd.f32 %v6095, %v6445
      %v6503 = vadd.f32 %v6098, %v6448
      %v6504 = vadd.f32 %v6100, %v6450
      %v6505 = vadd.f32 %v6103, %v6453
      %v6506 = vadd.f32 %v6105, %v6455
      %v6507 = vadd.f32 %v6108, %v6458
      %v6508 = vadd.f32 %v6110, %v6460
      %v6509 = vadd.f32 %v6113, %v6463
      %v6510 = vadd.f32 %v6115, %v6465
      %v6511 = vadd.f32 %v6118, %v6468
      %v6512 = vadd.f32 %v6120, %v6470
      %v6513 = vadd.f32 %v6123, %v6473
      %v6514 = vadd.f32 %v6125, %v6475
      %v6515 = vadd.f32 %v6128, %v6478
      %v6516 = vadd.f32 %v6130, %v6480
      %v6517 = vadd.f32 %v6133, %v6483
      %v6518 = vadd.f32 %v6135, %v6485
      %v6519 = vld [vmem:[%s5177] sm:$0xf]
      %v6520 = vld [vmem:[%s5177 + $0x4] sm:$0xf]
      %v6521 = vld [vmem:[%s5177 + $0xc] sm:$0xf]
      %v6522 = vld [vmem:[%s5177 + $0x10] sm:$0xf]
      %v6523 = vld [vmem:[%s5177 + $0x18] sm:$0xf]
      %v6524 = vld [vmem:[%s5177 + $0x1c] sm:$0xf]
      %v6525 = vld [vmem:[%s5177 + $0x24] sm:$0xf]
      %v6526 = vld [vmem:[%s5177 + $0x28] sm:$0xf]
      %v6527 = vld [vmem:[%s5177 + $0x30] sm:$0xf]
      %v6528 = vld [vmem:[%s5177 + $0x34] sm:$0xf]
      %v6529 = vld [vmem:[%s5177 + $0x3c] sm:$0xf]
      %v6530 = vld [vmem:[%s5177 + $0x40] sm:$0xf]
      %v6531 = vld [vmem:[%s5177 + $0x48] sm:$0xf]
      %v6532 = vld [vmem:[%s5177 + $0x4c] sm:$0xf]
      %v6533 = vld [vmem:[%s5177 + $0x54] sm:$0xf]
      %v6534 = vld [vmem:[%s5177 + $0x58] sm:$0xf]
      %v6535 = vld [vmem:[%s5177 + $0x60] sm:$0xf]
      %v6536 = vld [vmem:[%s5177 + $0x64] sm:$0xf]
      %v6537 = vld [vmem:[%s5177 + $0x6c] sm:$0xf]
      %v6538 = vld [vmem:[%s5177 + $0x70] sm:$0xf]
      %v6539 = vld [vmem:[%s5177 + $0x78] sm:$0xf]
      %v6540 = vld [vmem:[%s5177 + $0x7c] sm:$0xf]
      %v6541 = vld [vmem:[%s5177 + $0x84] sm:$0xf]
      %v6542 = vld [vmem:[%s5177 + $0x88] sm:$0xf]
      %v6543 = vld [vmem:[%s5177 + $0x90] sm:$0xf]
      %v6544 = vld [vmem:[%s5177 + $0x94] sm:$0xf]
      %v6545 = vld [vmem:[%s5177 + $0x9c] sm:$0xf]
      %v6546 = vld [vmem:[%s5177 + $0xa0] sm:$0xf]
      %v6547 = vld [vmem:[%s5177 + $0xa8] sm:$0xf]
      %v6548 = vld [vmem:[%s5177 + $0xac] sm:$0xf]
      %v6549 = vld [vmem:[%s5177 + $0xb4] sm:$0xf]
      %v6550 = vld [vmem:[%s5177 + $0xb8] sm:$0xf]
      %s6551 = scalar_lea.vmem %s2, 12
      %v6552 = vld [vmem:[%s6551] sm:$0xf]
      %v6585 = vunpack.c.l.b16 %v6519
      %v6586 = vunpack.c.l.b16 %v6520
      %v6587 = vunpack.c.l.b16 %v6521
      %v6588 = vunpack.c.l.b16 %v6522
      %v6589 = vunpack.c.l.b16 %v6523
      %v6590 = vunpack.c.l.b16 %v6524
      %v6591 = vunpack.c.l.b16 %v6525
      %v6592 = vunpack.c.l.b16 %v6526
      %v6593 = vunpack.c.l.b16 %v6527
      %v6594 = vunpack.c.l.b16 %v6528
      %v6595 = vunpack.c.l.b16 %v6529
      %v6596 = vunpack.c.l.b16 %v6530
      %v6597 = vunpack.c.l.b16 %v6531
      %v6598 = vunpack.c.l.b16 %v6532
      %v6599 = vunpack.c.l.b16 %v6533
      %v6600 = vunpack.c.l.b16 %v6534
      %v6601 = vunpack.c.l.b16 %v6535
      %v6602 = vunpack.c.l.b16 %v6536
      %v6603 = vunpack.c.l.b16 %v6537
      %v6604 = vunpack.c.l.b16 %v6538
      %v6605 = vunpack.c.l.b16 %v6539
      %v6606 = vunpack.c.l.b16 %v6540
      %v6607 = vunpack.c.l.b16 %v6541
      %v6608 = vunpack.c.l.b16 %v6542
      %v6609 = vunpack.c.l.b16 %v6543
      %v6610 = vunpack.c.l.b16 %v6544
      %v6611 = vunpack.c.l.b16 %v6545
      %v6612 = vunpack.c.l.b16 %v6546
      %v6613 = vunpack.c.l.b16 %v6547
      %v6614 = vunpack.c.l.b16 %v6548
      %v6615 = vunpack.c.l.b16 %v6549
      %v6616 = vunpack.c.l.b16 %v6550
      %v6617 = vpack.c.b16 %v6586, %v6585
      %v6618 = vpack.c.b16 %v6588, %v6587
      %v6619 = vpack.c.b16 %v6590, %v6589
      %v6620 = vpack.c.b16 %v6592, %v6591
      %v6621 = vpack.c.b16 %v6594, %v6593
      %v6622 = vpack.c.b16 %v6596, %v6595
      %v6623 = vpack.c.b16 %v6598, %v6597
      %v6624 = vpack.c.b16 %v6600, %v6599
      %v6625 = vpack.c.b16 %v6602, %v6601
      %v6626 = vpack.c.b16 %v6604, %v6603
      %v6627 = vpack.c.b16 %v6606, %v6605
      %v6628 = vpack.c.b16 %v6608, %v6607
      %v6629 = vpack.c.b16 %v6610, %v6609
      %v6630 = vpack.c.b16 %v6612, %v6611
      %v6631 = vpack.c.b16 %v6614, %v6613
      %v6632 = vpack.c.b16 %v6616, %v6615
      %v6634 = vsel %vm5775, %v6617, 0
      %v6637 = vsel %vm5775, %v6618, 0
      %v6640 = vsel %vm5775, %v6619, 0
      %v6643 = vsel %vm5775, %v6620, 0
      %v6646 = vsel %vm5775, %v6621, 0
      %v6649 = vsel %vm5775, %v6622, 0
      %v6652 = vsel %vm5775, %v6623, 0
      %v6655 = vsel %vm5775, %v6624, 0
      %v6658 = vsel %vm5775, %v6625, 0
      %v6661 = vsel %vm5775, %v6626, 0
      %v6664 = vsel %vm5775, %v6627, 0
      %v6667 = vsel %vm5775, %v6628, 0
      %v6670 = vsel %vm5775, %v6629, 0
      %v6673 = vsel %vm5775, %v6630, 0
      %v6676 = vsel %vm5775, %v6631, 0
      %v6679 = vsel %vm5775, %v6632, 0
      %v6682 = vsel %vm5824, %v6552, 0
      %6684 = vmatpush.bf16.msra.mxu0 0
      %6685 = vmatpush.bf16.msra.mxu0 0
      %6686 = vmatpush.bf16.msra.mxu0 0
      %6687 = vmatpush.bf16.msra.mxu0 0
      %6688 = vmatpush.bf16.msra.mxu0 0
      %6689 = vmatpush.bf16.msra.mxu0 0
      %6690 = vmatpush.bf16.msra.mxu0 0
      %6691 = vmatpush.bf16.msra.mxu0 %v6682
      %6692 = vmatmul.bf16.gmra.mxu0 %v6634
      %v6693 = vpop.f32.mrf.mxu0
      %v6694 = vadd.f32 0.0, %v6693
      %v6695 = vpop.f32.mrf.mxu0
      %v6696 = vadd.f32 0.0, %v6695
      %6697 = vmatmul.bf16.gmra.mxu0 %v6637
      %v6698 = vpop.f32.mrf.mxu0
      %v6699 = vadd.f32 0.0, %v6698
      %v6700 = vpop.f32.mrf.mxu0
      %v6701 = vadd.f32 0.0, %v6700
      %6702 = vmatmul.bf16.gmra.mxu0 %v6640
      %v6703 = vpop.f32.mrf.mxu0
      %v6704 = vadd.f32 0.0, %v6703
      %v6705 = vpop.f32.mrf.mxu0
      %v6706 = vadd.f32 0.0, %v6705
      %6707 = vmatmul.bf16.gmra.mxu0 %v6643
      %v6708 = vpop.f32.mrf.mxu0
      %v6709 = vadd.f32 0.0, %v6708
      %v6710 = vpop.f32.mrf.mxu0
      %v6711 = vadd.f32 0.0, %v6710
      %6712 = vmatmul.bf16.gmra.mxu0 %v6646
      %v6713 = vpop.f32.mrf.mxu0
      %v6714 = vadd.f32 0.0, %v6713
      %v6715 = vpop.f32.mrf.mxu0
      %v6716 = vadd.f32 0.0, %v6715
      %6717 = vmatmul.bf16.gmra.mxu0 %v6649
      %v6718 = vpop.f32.mrf.mxu0
      %v6719 = vadd.f32 0.0, %v6718
      %v6720 = vpop.f32.mrf.mxu0
      %v6721 = vadd.f32 0.0, %v6720
      %6722 = vmatmul.bf16.gmra.mxu0 %v6652
      %v6723 = vpop.f32.mrf.mxu0
      %v6724 = vadd.f32 0.0, %v6723
      %v6725 = vpop.f32.mrf.mxu0
      %v6726 = vadd.f32 0.0, %v6725
      %6727 = vmatmul.bf16.gmra.mxu0 %v6655
      %v6728 = vpop.f32.mrf.mxu0
      %v6729 = vadd.f32 0.0, %v6728
      %v6730 = vpop.f32.mrf.mxu0
      %v6731 = vadd.f32 0.0, %v6730
      %6732 = vmatmul.bf16.gmra.mxu0 %v6658
      %v6733 = vpop.f32.mrf.mxu0
      %v6734 = vadd.f32 0.0, %v6733
      %v6735 = vpop.f32.mrf.mxu0
      %v6736 = vadd.f32 0.0, %v6735
      %6737 = vmatmul.bf16.gmra.mxu0 %v6661
      %v6738 = vpop.f32.mrf.mxu0
      %v6739 = vadd.f32 0.0, %v6738
      %v6740 = vpop.f32.mrf.mxu0
      %v6741 = vadd.f32 0.0, %v6740
      %6742 = vmatmul.bf16.gmra.mxu0 %v6664
      %v6743 = vpop.f32.mrf.mxu0
      %v6744 = vadd.f32 0.0, %v6743
      %v6745 = vpop.f32.mrf.mxu0
      %v6746 = vadd.f32 0.0, %v6745
      %6747 = vmatmul.bf16.gmra.mxu0 %v6667
      %v6748 = vpop.f32.mrf.mxu0
      %v6749 = vadd.f32 0.0, %v6748
      %v6750 = vpop.f32.mrf.mxu0
      %v6751 = vadd.f32 0.0, %v6750
      %6752 = vmatmul.bf16.gmra.mxu0 %v6670
      %v6753 = vpop.f32.mrf.mxu0
      %v6754 = vadd.f32 0.0, %v6753
      %v6755 = vpop.f32.mrf.mxu0
      %v6756 = vadd.f32 0.0, %v6755
      %6757 = vmatmul.bf16.gmra.mxu0 %v6673
      %v6758 = vpop.f32.mrf.mxu0
      %v6759 = vadd.f32 0.0, %v6758
      %v6760 = vpop.f32.mrf.mxu0
      %v6761 = vadd.f32 0.0, %v6760
      %6762 = vmatmul.bf16.gmra.mxu0 %v6676
      %v6763 = vpop.f32.mrf.mxu0
      %v6764 = vadd.f32 0.0, %v6763
      %v6765 = vpop.f32.mrf.mxu0
      %v6766 = vadd.f32 0.0, %v6765
      %6767 = vmatmul.bf16.gmra.mxu0 %v6679
      %v6768 = vpop.f32.mrf.mxu0
      %v6769 = vadd.f32 0.0, %v6768
      %v6770 = vpop.f32.mrf.mxu0
      %v6771 = vadd.f32 0.0, %v6770
      %6772 = vdwg.mxu0
      %v6773 = vadd.f32 %v6487, %v6694
      %v6774 = vadd.f32 %v6488, %v6696
      %v6775 = vadd.f32 %v6489, %v6699
      %v6776 = vadd.f32 %v6490, %v6701
      %v6777 = vadd.f32 %v6491, %v6704
      %v6778 = vadd.f32 %v6492, %v6706
      %v6779 = vadd.f32 %v6493, %v6709
      %v6780 = vadd.f32 %v6494, %v6711
      %v6781 = vadd.f32 %v6495, %v6714
      %v6782 = vadd.f32 %v6496, %v6716
      %v6783 = vadd.f32 %v6497, %v6719
      %v6784 = vadd.f32 %v6498, %v6721
      %v6785 = vadd.f32 %v6499, %v6724
      %v6786 = vadd.f32 %v6500, %v6726
      %v6787 = vadd.f32 %v6501, %v6729
      %v6788 = vadd.f32 %v6502, %v6731
      %v6789 = vadd.f32 %v6503, %v6734
      %v6790 = vadd.f32 %v6504, %v6736
      %v6791 = vadd.f32 %v6505, %v6739
      %v6792 = vadd.f32 %v6506, %v6741
      %v6793 = vadd.f32 %v6507, %v6744
      %v6794 = vadd.f32 %v6508, %v6746
      %v6795 = vadd.f32 %v6509, %v6749
      %v6796 = vadd.f32 %v6510, %v6751
      %v6797 = vadd.f32 %v6511, %v6754
      %v6798 = vadd.f32 %v6512, %v6756
      %v6799 = vadd.f32 %v6513, %v6759
      %v6800 = vadd.f32 %v6514, %v6761
      %v6801 = vadd.f32 %v6515, %v6764
      %v6802 = vadd.f32 %v6516, %v6766
      %v6803 = vadd.f32 %v6517, %v6769
      %v6804 = vadd.f32 %v6518, %v6771
      %v6805 = vld [vmem:[%s5177] sm:$0xf]
      %v6806 = vld [vmem:[%s5177 + $0x4] sm:$0xf]
      %v6807 = vld [vmem:[%s5177 + $0x8] sm:$0x1]
      %v6808 = vld [vmem:[%s5177 + $0xc] sm:$0xf]
      %v6809 = vld [vmem:[%s5177 + $0x10] sm:$0xf]
      %v6810 = vld [vmem:[%s5177 + $0x14] sm:$0x1]
      %v6811 = vld [vmem:[%s5177 + $0x18] sm:$0xf]
      %v6812 = vld [vmem:[%s5177 + $0x1c] sm:$0xf]
      %v6813 = vld [vmem:[%s5177 + $0x20] sm:$0x1]
      %v6814 = vld [vmem:[%s5177 + $0x24] sm:$0xf]
      %v6815 = vld [vmem:[%s5177 + $0x28] sm:$0xf]
      %v6816 = vld [vmem:[%s5177 + $0x2c] sm:$0x1]
      %v6817 = vld [vmem:[%s5177 + $0x30] sm:$0xf]
      %v6818 = vld [vmem:[%s5177 + $0x34] sm:$0xf]
      %v6819 = vld [vmem:[%s5177 + $0x38] sm:$0x1]
      %v6820 = vld [vmem:[%s5177 + $0x3c] sm:$0xf]
      %v6821 = vld [vmem:[%s5177 + $0x40] sm:$0xf]
      %v6822 = vld [vmem:[%s5177 + $0x44] sm:$0x1]
      %v6823 = vld [vmem:[%s5177 + $0x48] sm:$0xf]
      %v6824 = vld [vmem:[%s5177 + $0x4c] sm:$0xf]
      %v6825 = vld [vmem:[%s5177 + $0x50] sm:$0x1]
      %v6826 = vld [vmem:[%s5177 + $0x54] sm:$0xf]
      %v6827 = vld [vmem:[%s5177 + $0x58] sm:$0xf]
      %v6828 = vld [vmem:[%s5177 + $0x5c] sm:$0x1]
      %v6829 = vld [vmem:[%s5177 + $0x60] sm:$0xf]
      %v6830 = vld [vmem:[%s5177 + $0x64] sm:$0xf]
      %v6831 = vld [vmem:[%s5177 + $0x68] sm:$0x1]
      %v6832 = vld [vmem:[%s5177 + $0x6c] sm:$0xf]
      %v6833 = vld [vmem:[%s5177 + $0x70] sm:$0xf]
      %v6834 = vld [vmem:[%s5177 + $0x74] sm:$0x1]
      %v6835 = vld [vmem:[%s5177 + $0x78] sm:$0xf]
      %v6836 = vld [vmem:[%s5177 + $0x7c] sm:$0xf]
      %v6837 = vld [vmem:[%s5177 + $0x80] sm:$0x1]
      %v6838 = vld [vmem:[%s5177 + $0x84] sm:$0xf]
      %v6839 = vld [vmem:[%s5177 + $0x88] sm:$0xf]
      %v6840 = vld [vmem:[%s5177 + $0x8c] sm:$0x1]
      %v6841 = vld [vmem:[%s5177 + $0x90] sm:$0xf]
      %v6842 = vld [vmem:[%s5177 + $0x94] sm:$0xf]
      %v6843 = vld [vmem:[%s5177 + $0x98] sm:$0x1]
      %v6844 = vld [vmem:[%s5177 + $0x9c] sm:$0xf]
      %v6845 = vld [vmem:[%s5177 + $0xa0] sm:$0xf]
      %v6846 = vld [vmem:[%s5177 + $0xa4] sm:$0x1]
      %v6847 = vld [vmem:[%s5177 + $0xa8] sm:$0xf]
      %v6848 = vld [vmem:[%s5177 + $0xac] sm:$0xf]
      %v6849 = vld [vmem:[%s5177 + $0xb0] sm:$0x1]
      %v6850 = vld [vmem:[%s5177 + $0xb4] sm:$0xf]
      %v6851 = vld [vmem:[%s5177 + $0xb8] sm:$0xf]
      %v6852 = vld [vmem:[%s5177 + $0xbc] sm:$0x1]
      %v6854 = vshrl.u32 %v6805, 16
      %v6856 = vrot.slane %v6854, 4
      %v6857 = vshll.u32 %v6805, 16
      %v6859 = vrot.slane %v6857, 5
      %v6860 = vor.u32 %v6856, %v6859
      %v6861 = vrot.slane %v6860, 4
      %v6863 = vshll.u32 %v6806, 16
      %v6865 = vrot.slane %v6863, 5
      %v6866 = vsel %vm934, %v6861, %v6865
      %v6867 = vshrl.u32 %v6806, 16
      %v6869 = vrot.slane %v6867, 4
      %v6870 = vor.u32 %v6869, %v6865
      %v6871 = vrot.slane %v6870, 4
      %v6873 = vshll.u32 %v6807, 16
      %v6875 = vrot.slane %v6873, 5
      %v6876 = vsel %vm934, %v6871, %v6875
      %v6878 = vshrl.u32 %v6808, 16
      %v6880 = vrot.slane %v6878, 4
      %v6881 = vshll.u32 %v6808, 16
      %v6883 = vrot.slane %v6881, 5
      %v6884 = vor.u32 %v6880, %v6883
      %v6885 = vrot.slane %v6884, 4
      %v6887 = vshll.u32 %v6809, 16
      %v6889 = vrot.slane %v6887, 5
      %v6890 = vsel %vm934, %v6885, %v6889
      %v6891 = vshrl.u32 %v6809, 16
      %v6893 = vrot.slane %v6891, 4
      %v6894 = vor.u32 %v6893, %v6889
      %v6895 = vrot.slane %v6894, 4
      %v6897 = vshll.u32 %v6810, 16
      %v6899 = vrot.slane %v6897, 5
      %v6900 = vsel %vm934, %v6895, %v6899
      %v6902 = vshrl.u32 %v6811, 16
      %v6904 = vrot.slane %v6902, 4
      %v6905 = vshll.u32 %v6811, 16
      %v6907 = vrot.slane %v6905, 5
      %v6908 = vor.u32 %v6904, %v6907
      %v6909 = vrot.slane %v6908, 4
      %v6911 = vshll.u32 %v6812, 16
      %v6913 = vrot.slane %v6911, 5
      %v6914 = vsel %vm934, %v6909, %v6913
      %v6915 = vshrl.u32 %v6812, 16
      %v6917 = vrot.slane %v6915, 4
      %v6918 = vor.u32 %v6917, %v6913
      %v6919 = vrot.slane %v6918, 4
      %v6921 = vshll.u32 %v6813, 16
      %v6923 = vrot.slane %v6921, 5
      %v6924 = vsel %vm934, %v6919, %v6923
      %v6926 = vshrl.u32 %v6814, 16
      %v6928 = vrot.slane %v6926, 4
      %v6929 = vshll.u32 %v6814, 16
      %v6931 = vrot.slane %v6929, 5
      %v6932 = vor.u32 %v6928, %v6931
      %v6933 = vrot.slane %v6932, 4
      %v6935 = vshll.u32 %v6815, 16
      %v6937 = vrot.slane %v6935, 5
      %v6938 = vsel %vm934, %v6933, %v6937
      %v6939 = vshrl.u32 %v6815, 16
      %v6941 = vrot.slane %v6939, 4
      %v6942 = vor.u32 %v6941, %v6937
      %v6943 = vrot.slane %v6942, 4
      %v6945 = vshll.u32 %v6816, 16
      %v6947 = vrot.slane %v6945, 5
      %v6948 = vsel %vm934, %v6943, %v6947
      %v6950 = vshrl.u32 %v6817, 16
      %v6952 = vrot.slane %v6950, 4
      %v6953 = vshll.u32 %v6817, 16
      %v6955 = vrot.slane %v6953, 5
      %v6956 = vor.u32 %v6952, %v6955
      %v6957 = vrot.slane %v6956, 4
      %v6959 = vshll.u32 %v6818, 16
      %v6961 = vrot.slane %v6959, 5
      %v6962 = vsel %vm934, %v6957, %v6961
      %v6963 = vshrl.u32 %v6818, 16
      %v6965 = vrot.slane %v6963, 4
      %v6966 = vor.u32 %v6965, %v6961
      %v6967 = vrot.slane %v6966, 4
      %v6969 = vshll.u32 %v6819, 16
      %v6971 = vrot.slane %v6969, 5
      %v6972 = vsel %vm934, %v6967, %v6971
      %v6974 = vshrl.u32 %v6820, 16
      %v6976 = vrot.slane %v6974, 4
      %v6977 = vshll.u32 %v6820, 16
      %v6979 = vrot.slane %v6977, 5
      %v6980 = vor.u32 %v6976, %v6979
      %v6981 = vrot.slane %v6980, 4
      %v6983 = vshll.u32 %v6821, 16
      %v6985 = vrot.slane %v6983, 5
      %v6986 = vsel %vm934, %v6981, %v6985
      %v6987 = vshrl.u32 %v6821, 16
      %v6989 = vrot.slane %v6987, 4
      %v6990 = vor.u32 %v6989, %v6985
      %v6991 = vrot.slane %v6990, 4
      %v6993 = vshll.u32 %v6822, 16
      %v6995 = vrot.slane %v6993, 5
      %v6996 = vsel %vm934, %v6991, %v6995
      %v6998 = vshrl.u32 %v6823, 16
      %v7000 = vrot.slane %v6998, 4
      %v7001 = vshll.u32 %v6823, 16
      %v7003 = vrot.slane %v7001, 5
      %v7004 = vor.u32 %v7000, %v7003
      %v7005 = vrot.slane %v7004, 4
      %v7007 = vshll.u32 %v6824, 16
      %v7009 = vrot.slane %v7007, 5
      %v7010 = vsel %vm934, %v7005, %v7009
      %v7011 = vshrl.u32 %v6824, 16
      %v7013 = vrot.slane %v7011, 4
      %v7014 = vor.u32 %v7013, %v7009
      %v7015 = vrot.slane %v7014, 4
      %v7017 = vshll.u32 %v6825, 16
      %v7019 = vrot.slane %v7017, 5
      %v7020 = vsel %vm934, %v7015, %v7019
      %v7022 = vshrl.u32 %v6826, 16
      %v7024 = vrot.slane %v7022, 4
      %v7025 = vshll.u32 %v6826, 16
      %v7027 = vrot.slane %v7025, 5
      %v7028 = vor.u32 %v7024, %v7027
      %v7029 = vrot.slane %v7028, 4
      %v7031 = vshll.u32 %v6827, 16
      %v7033 = vrot.slane %v7031, 5
      %v7034 = vsel %vm934, %v7029, %v7033
      %v7035 = vshrl.u32 %v6827, 16
      %v7037 = vrot.slane %v7035, 4
      %v7038 = vor.u32 %v7037, %v7033
      %v7039 = vrot.slane %v7038, 4
      %v7041 = vshll.u32 %v6828, 16
      %v7043 = vrot.slane %v7041, 5
      %v7044 = vsel %vm934, %v7039, %v7043
      %v7046 = vshrl.u32 %v6829, 16
      %v7048 = vrot.slane %v7046, 4
      %v7049 = vshll.u32 %v6829, 16
      %v7051 = vrot.slane %v7049, 5
      %v7052 = vor.u32 %v7048, %v7051
      %v7053 = vrot.slane %v7052, 4
      %v7055 = vshll.u32 %v6830, 16
      %v7057 = vrot.slane %v7055, 5
      %v7058 = vsel %vm934, %v7053, %v7057
      %v7059 = vshrl.u32 %v6830, 16
      %v7061 = vrot.slane %v7059, 4
      %v7062 = vor.u32 %v7061, %v7057
      %v7063 = vrot.slane %v7062, 4
      %v7065 = vshll.u32 %v6831, 16
      %v7067 = vrot.slane %v7065, 5
      %v7068 = vsel %vm934, %v7063, %v7067
      %v7070 = vshrl.u32 %v6832, 16
      %v7072 = vrot.slane %v7070, 4
      %v7073 = vshll.u32 %v6832, 16
      %v7075 = vrot.slane %v7073, 5
      %v7076 = vor.u32 %v7072, %v7075
      %v7077 = vrot.slane %v7076, 4
      %v7079 = vshll.u32 %v6833, 16
      %v7081 = vrot.slane %v7079, 5
      %v7082 = vsel %vm934, %v7077, %v7081
      %v7083 = vshrl.u32 %v6833, 16
      %v7085 = vrot.slane %v7083, 4
      %v7086 = vor.u32 %v7085, %v7081
      %v7087 = vrot.slane %v7086, 4
      %v7089 = vshll.u32 %v6834, 16
      %v7091 = vrot.slane %v7089, 5
      %v7092 = vsel %vm934, %v7087, %v7091
      %v7094 = vshrl.u32 %v6835, 16
      %v7096 = vrot.slane %v7094, 4
      %v7097 = vshll.u32 %v6835, 16
      %v7099 = vrot.slane %v7097, 5
      %v7100 = vor.u32 %v7096, %v7099
      %v7101 = vrot.slane %v7100, 4
      %v7103 = vshll.u32 %v6836, 16
      %v7105 = vrot.slane %v7103, 5
      %v7106 = vsel %vm934, %v7101, %v7105
      %v7107 = vshrl.u32 %v6836, 16
      %v7109 = vrot.slane %v7107, 4
      %v7110 = vor.u32 %v7109, %v7105
      %v7111 = vrot.slane %v7110, 4
      %v7113 = vshll.u32 %v6837, 16
      %v7115 = vrot.slane %v7113, 5
      %v7116 = vsel %vm934, %v7111, %v7115
      %v7118 = vshrl.u32 %v6838, 16
      %v7120 = vrot.slane %v7118, 4
      %v7121 = vshll.u32 %v6838, 16
      %v7123 = vrot.slane %v7121, 5
      %v7124 = vor.u32 %v7120, %v7123
      %v7125 = vrot.slane %v7124, 4
      %v7127 = vshll.u32 %v6839, 16
      %v7129 = vrot.slane %v7127, 5
      %v7130 = vsel %vm934, %v7125, %v7129
      %v7131 = vshrl.u32 %v6839, 16
      %v7133 = vrot.slane %v7131, 4
      %v7134 = vor.u32 %v7133, %v7129
      %v7135 = vrot.slane %v7134, 4
      %v7137 = vshll.u32 %v6840, 16
      %v7139 = vrot.slane %v7137, 5
      %v7140 = vsel %vm934, %v7135, %v7139
      %v7142 = vshrl.u32 %v6841, 16
      %v7144 = vrot.slane %v7142, 4
      %v7145 = vshll.u32 %v6841, 16
      %v7147 = vrot.slane %v7145, 5
      %v7148 = vor.u32 %v7144, %v7147
      %v7149 = vrot.slane %v7148, 4
      %v7151 = vshll.u32 %v6842, 16
      %v7153 = vrot.slane %v7151, 5
      %v7154 = vsel %vm934, %v7149, %v7153
      %v7155 = vshrl.u32 %v6842, 16
      %v7157 = vrot.slane %v7155, 4
      %v7158 = vor.u32 %v7157, %v7153
      %v7159 = vrot.slane %v7158, 4
      %v7161 = vshll.u32 %v6843, 16
      %v7163 = vrot.slane %v7161, 5
      %v7164 = vsel %vm934, %v7159, %v7163
      %v7166 = vshrl.u32 %v6844, 16
      %v7168 = vrot.slane %v7166, 4
      %v7169 = vshll.u32 %v6844, 16
      %v7171 = vrot.slane %v7169, 5
      %v7172 = vor.u32 %v7168, %v7171
      %v7173 = vrot.slane %v7172, 4
      %v7175 = vshll.u32 %v6845, 16
      %v7177 = vrot.slane %v7175, 5
      %v7178 = vsel %vm934, %v7173, %v7177
      %v7179 = vshrl.u32 %v6845, 16
      %v7181 = vrot.slane %v7179, 4
      %v7182 = vor.u32 %v7181, %v7177
      %v7183 = vrot.slane %v7182, 4
      %v7185 = vshll.u32 %v6846, 16
      %v7187 = vrot.slane %v7185, 5
      %v7188 = vsel %vm934, %v7183, %v7187
      %v7190 = vshrl.u32 %v6847, 16
      %v7192 = vrot.slane %v7190, 4
      %v7193 = vshll.u32 %v6847, 16
      %v7195 = vrot.slane %v7193, 5
      %v7196 = vor.u32 %v7192, %v7195
      %v7197 = vrot.slane %v7196, 4
      %v7199 = vshll.u32 %v6848, 16
      %v7201 = vrot.slane %v7199, 5
      %v7202 = vsel %vm934, %v7197, %v7201
      %v7203 = vshrl.u32 %v6848, 16
      %v7205 = vrot.slane %v7203, 4
      %v7206 = vor.u32 %v7205, %v7201
      %v7207 = vrot.slane %v7206, 4
      %v7209 = vshll.u32 %v6849, 16
      %v7211 = vrot.slane %v7209, 5
      %v7212 = vsel %vm934, %v7207, %v7211
      %v7214 = vshrl.u32 %v6850, 16
      %v7216 = vrot.slane %v7214, 4
      %v7217 = vshll.u32 %v6850, 16
      %v7219 = vrot.slane %v7217, 5
      %v7220 = vor.u32 %v7216, %v7219
      %v7221 = vrot.slane %v7220, 4
      %v7223 = vshll.u32 %v6851, 16
      %v7225 = vrot.slane %v7223, 5
      %v7226 = vsel %vm934, %v7221, %v7225
      %v7227 = vshrl.u32 %v6851, 16
      %v7229 = vrot.slane %v7227, 4
      %v7230 = vor.u32 %v7229, %v7225
      %v7231 = vrot.slane %v7230, 4
      %v7233 = vshll.u32 %v6852, 16
      %v7235 = vrot.slane %v7233, 5
      %v7236 = vsel %vm934, %v7231, %v7235
      %s7237 = scalar_lea.vmem %s2, 16
      %v7238 = vld [vmem:[%s7237] sm:$0xf]
      %v7239 = vunpack.c.l.b16 %v6866
      %v7240 = vunpack.c.l.b16 %v6876
      %v7241 = vunpack.c.l.b16 %v6890
      %v7242 = vunpack.c.l.b16 %v6900
      %v7243 = vunpack.c.l.b16 %v6914
      %v7244 = vunpack.c.l.b16 %v6924
      %v7245 = vunpack.c.l.b16 %v6938
      %v7246 = vunpack.c.l.b16 %v6948
      %v7247 = vunpack.c.l.b16 %v6962
      %v7248 = vunpack.c.l.b16 %v6972
      %v7249 = vunpack.c.l.b16 %v6986
      %v7250 = vunpack.c.l.b16 %v6996
      %v7251 = vunpack.c.l.b16 %v7010
      %v7252 = vunpack.c.l.b16 %v7020
      %v7253 = vunpack.c.l.b16 %v7034
      %v7254 = vunpack.c.l.b16 %v7044
      %v7255 = vunpack.c.l.b16 %v7058
      %v7256 = vunpack.c.l.b16 %v7068
      %v7257 = vunpack.c.l.b16 %v7082
      %v7258 = vunpack.c.l.b16 %v7092
      %v7259 = vunpack.c.l.b16 %v7106
      %v7260 = vunpack.c.l.b16 %v7116
      %v7261 = vunpack.c.l.b16 %v7130
      %v7262 = vunpack.c.l.b16 %v7140
      %v7263 = vunpack.c.l.b16 %v7154
      %v7264 = vunpack.c.l.b16 %v7164
      %v7265 = vunpack.c.l.b16 %v7178
      %v7266 = vunpack.c.l.b16 %v7188
      %v7267 = vunpack.c.l.b16 %v7202
      %v7268 = vunpack.c.l.b16 %v7212
      %v7269 = vunpack.c.l.b16 %v7226
      %v7270 = vunpack.c.l.b16 %v7236
      %v7271 = vpack.c.b16 %v7240, %v7239
      %v7272 = vpack.c.b16 %v7242, %v7241
      %v7273 = vpack.c.b16 %v7244, %v7243
      %v7274 = vpack.c.b16 %v7246, %v7245
      %v7275 = vpack.c.b16 %v7248, %v7247
      %v7276 = vpack.c.b16 %v7250, %v7249
      %v7277 = vpack.c.b16 %v7252, %v7251
      %v7278 = vpack.c.b16 %v7254, %v7253
      %v7279 = vpack.c.b16 %v7256, %v7255
      %v7280 = vpack.c.b16 %v7258, %v7257
      %v7281 = vpack.c.b16 %v7260, %v7259
      %v7282 = vpack.c.b16 %v7262, %v7261
      %v7283 = vpack.c.b16 %v7264, %v7263
      %v7284 = vpack.c.b16 %v7266, %v7265
      %v7285 = vpack.c.b16 %v7268, %v7267
      %v7286 = vpack.c.b16 %v7270, %v7269
      %v7288 = vsel %vm5775, %v7271, 0
      %v7291 = vsel %vm5775, %v7272, 0
      %v7294 = vsel %vm5775, %v7273, 0
      %v7297 = vsel %vm5775, %v7274, 0
      %v7300 = vsel %vm5775, %v7275, 0
      %v7303 = vsel %vm5775, %v7276, 0
      %v7306 = vsel %vm5775, %v7277, 0
      %v7309 = vsel %vm5775, %v7278, 0
      %v7312 = vsel %vm5775, %v7279, 0
      %v7315 = vsel %vm5775, %v7280, 0
      %v7318 = vsel %vm5775, %v7281, 0
      %v7321 = vsel %vm5775, %v7282, 0
      %v7324 = vsel %vm5775, %v7283, 0
      %v7327 = vsel %vm5775, %v7284, 0
      %v7330 = vsel %vm5775, %v7285, 0
      %v7333 = vsel %vm5775, %v7286, 0
      %v7336 = vsel %vm5824, %v7238, 0
      %7338 = vmatpush.bf16.msra.mxu0 0
      %7339 = vmatpush.bf16.msra.mxu0 0
      %7340 = vmatpush.bf16.msra.mxu0 0
      %7341 = vmatpush.bf16.msra.mxu0 0
      %7342 = vmatpush.bf16.msra.mxu0 0
      %7343 = vmatpush.bf16.msra.mxu0 0
      %7344 = vmatpush.bf16.msra.mxu0 0
      %7345 = vmatpush.bf16.msra.mxu0 %v7336
      %7346 = vmatmul.bf16.gmra.mxu0 %v7288
      %v7347 = vpop.f32.mrf.mxu0
      %v7348 = vadd.f32 0.0, %v7347
      %v7349 = vpop.f32.mrf.mxu0
      %v7350 = vadd.f32 0.0, %v7349
      %7351 = vmatmul.bf16.gmra.mxu0 %v7291
      %v7352 = vpop.f32.mrf.mxu0
      %v7353 = vadd.f32 0.0, %v7352
      %v7354 = vpop.f32.mrf.mxu0
      %v7355 = vadd.f32 0.0, %v7354
      %7356 = vmatmul.bf16.gmra.mxu0 %v7294
      %v7357 = vpop.f32.mrf.mxu0
      %v7358 = vadd.f32 0.0, %v7357
      %v7359 = vpop.f32.mrf.mxu0
      %v7360 = vadd.f32 0.0, %v7359
      %7361 = vmatmul.bf16.gmra.mxu0 %v7297
      %v7362 = vpop.f32.mrf.mxu0
      %v7363 = vadd.f32 0.0, %v7362
      %v7364 = vpop.f32.mrf.mxu0
      %v7365 = vadd.f32 0.0, %v7364
      %7366 = vmatmul.bf16.gmra.mxu0 %v7300
      %v7367 = vpop.f32.mrf.mxu0
      %v7368 = vadd.f32 0.0, %v7367
      %v7369 = vpop.f32.mrf.mxu0
      %v7370 = vadd.f32 0.0, %v7369
      %7371 = vmatmul.bf16.gmra.mxu0 %v7303
      %v7372 = vpop.f32.mrf.mxu0
      %v7373 = vadd.f32 0.0, %v7372
      %v7374 = vpop.f32.mrf.mxu0
      %v7375 = vadd.f32 0.0, %v7374
      %7376 = vmatmul.bf16.gmra.mxu0 %v7306
      %v7377 = vpop.f32.mrf.mxu0
      %v7378 = vadd.f32 0.0, %v7377
      %v7379 = vpop.f32.mrf.mxu0
      %v7380 = vadd.f32 0.0, %v7379
      %7381 = vmatmul.bf16.gmra.mxu0 %v7309
      %v7382 = vpop.f32.mrf.mxu0
      %v7383 = vadd.f32 0.0, %v7382
      %v7384 = vpop.f32.mrf.mxu0
      %v7385 = vadd.f32 0.0, %v7384
      %7386 = vmatmul.bf16.gmra.mxu0 %v7312
      %v7387 = vpop.f32.mrf.mxu0
      %v7388 = vadd.f32 0.0, %v7387
      %v7389 = vpop.f32.mrf.mxu0
      %v7390 = vadd.f32 0.0, %v7389
      %7391 = vmatmul.bf16.gmra.mxu0 %v7315
      %v7392 = vpop.f32.mrf.mxu0
      %v7393 = vadd.f32 0.0, %v7392
      %v7394 = vpop.f32.mrf.mxu0
      %v7395 = vadd.f32 0.0, %v7394
      %7396 = vmatmul.bf16.gmra.mxu0 %v7318
      %v7397 = vpop.f32.mrf.mxu0
      %v7398 = vadd.f32 0.0, %v7397
      %v7399 = vpop.f32.mrf.mxu0
      %v7400 = vadd.f32 0.0, %v7399
      %7401 = vmatmul.bf16.gmra.mxu0 %v7321
      %v7402 = vpop.f32.mrf.mxu0
      %v7403 = vadd.f32 0.0, %v7402
      %v7404 = vpop.f32.mrf.mxu0
      %v7405 = vadd.f32 0.0, %v7404
      %7406 = vmatmul.bf16.gmra.mxu0 %v7324
      %v7407 = vpop.f32.mrf.mxu0
      %v7408 = vadd.f32 0.0, %v7407
      %v7409 = vpop.f32.mrf.mxu0
      %v7410 = vadd.f32 0.0, %v7409
      %7411 = vmatmul.bf16.gmra.mxu0 %v7327
      %v7412 = vpop.f32.mrf.mxu0
      %v7413 = vadd.f32 0.0, %v7412
      %v7414 = vpop.f32.mrf.mxu0
      %v7415 = vadd.f32 0.0, %v7414
      %7416 = vmatmul.bf16.gmra.mxu0 %v7330
      %v7417 = vpop.f32.mrf.mxu0
      %v7418 = vadd.f32 0.0, %v7417
      %v7419 = vpop.f32.mrf.mxu0
      %v7420 = vadd.f32 0.0, %v7419
      %7421 = vmatmul.bf16.gmra.mxu0 %v7333
      %v7422 = vpop.f32.mrf.mxu0
      %v7423 = vadd.f32 0.0, %v7422
      %v7424 = vpop.f32.mrf.mxu0
      %v7425 = vadd.f32 0.0, %v7424
      %7426 = vdwg.mxu0
      %v7427 = vadd.f32 %v6773, %v7348
      %v7428 = vadd.f32 %v6774, %v7350
      %v7429 = vadd.f32 %v6775, %v7353
      %v7430 = vadd.f32 %v6776, %v7355
      %v7431 = vadd.f32 %v6777, %v7358
      %v7432 = vadd.f32 %v6778, %v7360
      %v7433 = vadd.f32 %v6779, %v7363
      %v7434 = vadd.f32 %v6780, %v7365
      %v7435 = vadd.f32 %v6781, %v7368
      %v7436 = vadd.f32 %v6782, %v7370
      %v7437 = vadd.f32 %v6783, %v7373
      %v7438 = vadd.f32 %v6784, %v7375
      %v7439 = vadd.f32 %v6785, %v7378
      %v7440 = vadd.f32 %v6786, %v7380
      %v7441 = vadd.f32 %v6787, %v7383
      %v7442 = vadd.f32 %v6788, %v7385
      %v7443 = vadd.f32 %v6789, %v7388
      %v7444 = vadd.f32 %v6790, %v7390
      %v7445 = vadd.f32 %v6791, %v7393
      %v7446 = vadd.f32 %v6792, %v7395
      %v7447 = vadd.f32 %v6793, %v7398
      %v7448 = vadd.f32 %v6794, %v7400
      %v7449 = vadd.f32 %v6795, %v7403
      %v7450 = vadd.f32 %v6796, %v7405
      %v7451 = vadd.f32 %v6797, %v7408
      %v7452 = vadd.f32 %v6798, %v7410
      %v7453 = vadd.f32 %v6799, %v7413
      %v7454 = vadd.f32 %v6800, %v7415
      %v7455 = vadd.f32 %v6801, %v7418
      %v7456 = vadd.f32 %v6802, %v7420
      %v7457 = vadd.f32 %v6803, %v7423
      %v7458 = vadd.f32 %v6804, %v7425
      %v7459 = vld [vmem:[%s5177] sm:$0xe]
      %v7460 = vld [vmem:[%s5177 + $0xc] sm:$0xe]
      %v7461 = vld [vmem:[%s5177 + $0x18] sm:$0xe]
      %v7462 = vld [vmem:[%s5177 + $0x24] sm:$0xe]
      %v7463 = vld [vmem:[%s5177 + $0x30] sm:$0xe]
      %v7464 = vld [vmem:[%s5177 + $0x3c] sm:$0xe]
      %v7465 = vld [vmem:[%s5177 + $0x48] sm:$0xe]
      %v7466 = vld [vmem:[%s5177 + $0x54] sm:$0xe]
      %v7467 = vld [vmem:[%s5177 + $0x60] sm:$0xe]
      %v7468 = vld [vmem:[%s5177 + $0x6c] sm:$0xe]
      %v7469 = vld [vmem:[%s5177 + $0x78] sm:$0xe]
      %v7470 = vld [vmem:[%s5177 + $0x84] sm:$0xe]
      %v7471 = vld [vmem:[%s5177 + $0x90] sm:$0xe]
      %v7472 = vld [vmem:[%s5177 + $0x9c] sm:$0xe]
      %v7473 = vld [vmem:[%s5177 + $0xa8] sm:$0xe]
      %v7474 = vld [vmem:[%s5177 + $0xb4] sm:$0xe]
      %v7523 = vrot.slane %v7459, 5
      %v7524 = vrot.slane %v7523, 4
      %v7525 = vrot.slane %v6806, 5
      %v7526 = vsel %vm1781, %v7524, %v7525
      %v7527 = vrot.slane %v7525, 4
      %v7528 = vrot.slane %v6807, 5
      %v7529 = vsel %vm1781, %v7527, %v7528
      %v7530 = vrot.slane %v7460, 5
      %v7531 = vrot.slane %v7530, 4
      %v7532 = vrot.slane %v6809, 5
      %v7533 = vsel %vm1781, %v7531, %v7532
      %v7534 = vrot.slane %v7532, 4
      %v7535 = vrot.slane %v6810, 5
      %v7536 = vsel %vm1781, %v7534, %v7535
      %v7537 = vrot.slane %v7461, 5
      %v7538 = vrot.slane %v7537, 4
      %v7539 = vrot.slane %v6812, 5
      %v7540 = vsel %vm1781, %v7538, %v7539
      %v7541 = vrot.slane %v7539, 4
      %v7542 = vrot.slane %v6813, 5
      %v7543 = vsel %vm1781, %v7541, %v7542
      %v7544 = vrot.slane %v7462, 5
      %v7545 = vrot.slane %v7544, 4
      %v7546 = vrot.slane %v6815, 5
      %v7547 = vsel %vm1781, %v7545, %v7546
      %v7548 = vrot.slane %v7546, 4
      %v7549 = vrot.slane %v6816, 5
      %v7550 = vsel %vm1781, %v7548, %v7549
      %v7551 = vrot.slane %v7463, 5
      %v7552 = vrot.slane %v7551, 4
      %v7553 = vrot.slane %v6818, 5
      %v7554 = vsel %vm1781, %v7552, %v7553
      %v7555 = vrot.slane %v7553, 4
      %v7556 = vrot.slane %v6819, 5
      %v7557 = vsel %vm1781, %v7555, %v7556
      %v7558 = vrot.slane %v7464, 5
      %v7559 = vrot.slane %v7558, 4
      %v7560 = vrot.slane %v6821, 5
      %v7561 = vsel %vm1781, %v7559, %v7560
      %v7562 = vrot.slane %v7560, 4
      %v7563 = vrot.slane %v6822, 5
      %v7564 = vsel %vm1781, %v7562, %v7563
      %v7565 = vrot.slane %v7465, 5
      %v7566 = vrot.slane %v7565, 4
      %v7567 = vrot.slane %v6824, 5
      %v7568 = vsel %vm1781, %v7566, %v7567
      %v7569 = vrot.slane %v7567, 4
      %v7570 = vrot.slane %v6825, 5
      %v7571 = vsel %vm1781, %v7569, %v7570
      %v7572 = vrot.slane %v7466, 5
      %v7573 = vrot.slane %v7572, 4
      %v7574 = vrot.slane %v6827, 5
      %v7575 = vsel %vm1781, %v7573, %v7574
      %v7576 = vrot.slane %v7574, 4
      %v7577 = vrot.slane %v6828, 5
      %v7578 = vsel %vm1781, %v7576, %v7577
      %v7579 = vrot.slane %v7467, 5
      %v7580 = vrot.slane %v7579, 4
      %v7581 = vrot.slane %v6830, 5
      %v7582 = vsel %vm1781, %v7580, %v7581
      %v7583 = vrot.slane %v7581, 4
      %v7584 = vrot.slane %v6831, 5
      %v7585 = vsel %vm1781, %v7583, %v7584
      %v7586 = vrot.slane %v7468, 5
      %v7587 = vrot.slane %v7586, 4
      %v7588 = vrot.slane %v6833, 5
      %v7589 = vsel %vm1781, %v7587, %v7588
      %v7590 = vrot.slane %v7588, 4
      %v7591 = vrot.slane %v6834, 5
      %v7592 = vsel %vm1781, %v7590, %v7591
      %v7593 = vrot.slane %v7469, 5
      %v7594 = vrot.slane %v7593, 4
      %v7595 = vrot.slane %v6836, 5
      %v7596 = vsel %vm1781, %v7594, %v7595
      %v7597 = vrot.slane %v7595, 4
      %v7598 = vrot.slane %v6837, 5
      %v7599 = vsel %vm1781, %v7597, %v7598
      %v7600 = vrot.slane %v7470, 5
      %v7601 = vrot.slane %v7600, 4
      %v7602 = vrot.slane %v6839, 5
      %v7603 = vsel %vm1781, %v7601, %v7602
      %v7604 = vrot.slane %v7602, 4
      %v7605 = vrot.slane %v6840, 5
      %v7606 = vsel %vm1781, %v7604, %v7605
      %v7607 = vrot.slane %v7471, 5
      %v7608 = vrot.slane %v7607, 4
      %v7609 = vrot.slane %v6842, 5
      %v7610 = vsel %vm1781, %v7608, %v7609
      %v7611 = vrot.slane %v7609, 4
      %v7612 = vrot.slane %v6843, 5
      %v7613 = vsel %vm1781, %v7611, %v7612
      %v7614 = vrot.slane %v7472, 5
      %v7615 = vrot.slane %v7614, 4
      %v7616 = vrot.slane %v6845, 5
      %v7617 = vsel %vm1781, %v7615, %v7616
      %v7618 = vrot.slane %v7616, 4
      %v7619 = vrot.slane %v6846, 5
      %v7620 = vsel %vm1781, %v7618, %v7619
      %v7621 = vrot.slane %v7473, 5
      %v7622 = vrot.slane %v7621, 4
      %v7623 = vrot.slane %v6848, 5
      %v7624 = vsel %vm1781, %v7622, %v7623
      %v7625 = vrot.slane %v7623, 4
      %v7626 = vrot.slane %v6849, 5
      %v7627 = vsel %vm1781, %v7625, %v7626
      %v7628 = vrot.slane %v7474, 5
      %v7629 = vrot.slane %v7628, 4
      %v7630 = vrot.slane %v6851, 5
      %v7631 = vsel %vm1781, %v7629, %v7630
      %v7632 = vrot.slane %v7630, 4
      %v7633 = vrot.slane %v6852, 5
      %v7634 = vsel %vm1781, %v7632, %v7633
      %s7635 = scalar_lea.vmem %s2, 20
      %v7636 = vld [vmem:[%s7635] sm:$0xf]
      %v7637 = vunpack.c.l.b16 %v7526
      %v7638 = vunpack.c.l.b16 %v7529
      %v7639 = vunpack.c.l.b16 %v7533
      %v7640 = vunpack.c.l.b16 %v7536
      %v7641 = vunpack.c.l.b16 %v7540
      %v7642 = vunpack.c.l.b16 %v7543
      %v7643 = vunpack.c.l.b16 %v7547
      %v7644 = vunpack.c.l.b16 %v7550
      %v7645 = vunpack.c.l.b16 %v7554
      %v7646 = vunpack.c.l.b16 %v7557
      %v7647 = vunpack.c.l.b16 %v7561
      %v7648 = vunpack.c.l.b16 %v7564
      %v7649 = vunpack.c.l.b16 %v7568
      %v7650 = vunpack.c.l.b16 %v7571
      %v7651 = vunpack.c.l.b16 %v7575
      %v7652 = vunpack.c.l.b16 %v7578
      %v7653 = vunpack.c.l.b16 %v7582
      %v7654 = vunpack.c.l.b16 %v7585
      %v7655 = vunpack.c.l.b16 %v7589
      %v7656 = vunpack.c.l.b16 %v7592
      %v7657 = vunpack.c.l.b16 %v7596
      %v7658 = vunpack.c.l.b16 %v7599
      %v7659 = vunpack.c.l.b16 %v7603
      %v7660 = vunpack.c.l.b16 %v7606
      %v7661 = vunpack.c.l.b16 %v7610
      %v7662 = vunpack.c.l.b16 %v7613
      %v7663 = vunpack.c.l.b16 %v7617
      %v7664 = vunpack.c.l.b16 %v7620
      %v7665 = vunpack.c.l.b16 %v7624
      %v7666 = vunpack.c.l.b16 %v7627
      %v7667 = vunpack.c.l.b16 %v7631
      %v7668 = vunpack.c.l.b16 %v7634
      %v7669 = vpack.c.b16 %v7638, %v7637
      %v7670 = vpack.c.b16 %v7640, %v7639
      %v7671 = vpack.c.b16 %v7642, %v7641
      %v7672 = vpack.c.b16 %v7644, %v7643
      %v7673 = vpack.c.b16 %v7646, %v7645
      %v7674 = vpack.c.b16 %v7648, %v7647
      %v7675 = vpack.c.b16 %v7650, %v7649
      %v7676 = vpack.c.b16 %v7652, %v7651
      %v7677 = vpack.c.b16 %v7654, %v7653
      %v7678 = vpack.c.b16 %v7656, %v7655
      %v7679 = vpack.c.b16 %v7658, %v7657
      %v7680 = vpack.c.b16 %v7660, %v7659
      %v7681 = vpack.c.b16 %v7662, %v7661
      %v7682 = vpack.c.b16 %v7664, %v7663
      %v7683 = vpack.c.b16 %v7666, %v7665
      %v7684 = vpack.c.b16 %v7668, %v7667
      %v7686 = vsel %vm5775, %v7669, 0
      %v7689 = vsel %vm5775, %v7670, 0
      %v7692 = vsel %vm5775, %v7671, 0
      %v7695 = vsel %vm5775, %v7672, 0
      %v7698 = vsel %vm5775, %v7673, 0
      %v7701 = vsel %vm5775, %v7674, 0
      %v7704 = vsel %vm5775, %v7675, 0
      %v7707 = vsel %vm5775, %v7676, 0
      %v7710 = vsel %vm5775, %v7677, 0
      %v7713 = vsel %vm5775, %v7678, 0
      %v7716 = vsel %vm5775, %v7679, 0
      %v7719 = vsel %vm5775, %v7680, 0
      %v7722 = vsel %vm5775, %v7681, 0
      %v7725 = vsel %vm5775, %v7682, 0
      %v7728 = vsel %vm5775, %v7683, 0
      %v7731 = vsel %vm5775, %v7684, 0
      %v7734 = vsel %vm5824, %v7636, 0
      %7736 = vmatpush.bf16.msra.mxu0 0
      %7737 = vmatpush.bf16.msra.mxu0 0
      %7738 = vmatpush.bf16.msra.mxu0 0
      %7739 = vmatpush.bf16.msra.mxu0 0
      %7740 = vmatpush.bf16.msra.mxu0 0
      %7741 = vmatpush.bf16.msra.mxu0 0
      %7742 = vmatpush.bf16.msra.mxu0 0
      %7743 = vmatpush.bf16.msra.mxu0 %v7734
      %7744 = vmatmul.bf16.gmra.mxu0 %v7686
      %v7745 = vpop.f32.mrf.mxu0
      %v7746 = vadd.f32 0.0, %v7745
      %v7747 = vpop.f32.mrf.mxu0
      %v7748 = vadd.f32 0.0, %v7747
      %7749 = vmatmul.bf16.gmra.mxu0 %v7689
      %v7750 = vpop.f32.mrf.mxu0
      %v7751 = vadd.f32 0.0, %v7750
      %v7752 = vpop.f32.mrf.mxu0
      %v7753 = vadd.f32 0.0, %v7752
      %7754 = vmatmul.bf16.gmra.mxu0 %v7692
      %v7755 = vpop.f32.mrf.mxu0
      %v7756 = vadd.f32 0.0, %v7755
      %v7757 = vpop.f32.mrf.mxu0
      %v7758 = vadd.f32 0.0, %v7757
      %7759 = vmatmul.bf16.gmra.mxu0 %v7695
      %v7760 = vpop.f32.mrf.mxu0
      %v7761 = vadd.f32 0.0, %v7760
      %v7762 = vpop.f32.mrf.mxu0
      %v7763 = vadd.f32 0.0, %v7762
      %7764 = vmatmul.bf16.gmra.mxu0 %v7698
      %v7765 = vpop.f32.mrf.mxu0
      %v7766 = vadd.f32 0.0, %v7765
      %v7767 = vpop.f32.mrf.mxu0
      %v7768 = vadd.f32 0.0, %v7767
      %7769 = vmatmul.bf16.gmra.mxu0 %v7701
      %v7770 = vpop.f32.mrf.mxu0
      %v7771 = vadd.f32 0.0, %v7770
      %v7772 = vpop.f32.mrf.mxu0
      %v7773 = vadd.f32 0.0, %v7772
      %7774 = vmatmul.bf16.gmra.mxu0 %v7704
      %v7775 = vpop.f32.mrf.mxu0
      %v7776 = vadd.f32 0.0, %v7775
      %v7777 = vpop.f32.mrf.mxu0
      %v7778 = vadd.f32 0.0, %v7777
      %7779 = vmatmul.bf16.gmra.mxu0 %v7707
      %v7780 = vpop.f32.mrf.mxu0
      %v7781 = vadd.f32 0.0, %v7780
      %v7782 = vpop.f32.mrf.mxu0
      %v7783 = vadd.f32 0.0, %v7782
      %7784 = vmatmul.bf16.gmra.mxu0 %v7710
      %v7785 = vpop.f32.mrf.mxu0
      %v7786 = vadd.f32 0.0, %v7785
      %v7787 = vpop.f32.mrf.mxu0
      %v7788 = vadd.f32 0.0, %v7787
      %7789 = vmatmul.bf16.gmra.mxu0 %v7713
      %v7790 = vpop.f32.mrf.mxu0
      %v7791 = vadd.f32 0.0, %v7790
      %v7792 = vpop.f32.mrf.mxu0
      %v7793 = vadd.f32 0.0, %v7792
      %7794 = vmatmul.bf16.gmra.mxu0 %v7716
      %v7795 = vpop.f32.mrf.mxu0
      %v7796 = vadd.f32 0.0, %v7795
      %v7797 = vpop.f32.mrf.mxu0
      %v7798 = vadd.f32 0.0, %v7797
      %7799 = vmatmul.bf16.gmra.mxu0 %v7719
      %v7800 = vpop.f32.mrf.mxu0
      %v7801 = vadd.f32 0.0, %v7800
      %v7802 = vpop.f32.mrf.mxu0
      %v7803 = vadd.f32 0.0, %v7802
      %7804 = vmatmul.bf16.gmra.mxu0 %v7722
      %v7805 = vpop.f32.mrf.mxu0
      %v7806 = vadd.f32 0.0, %v7805
      %v7807 = vpop.f32.mrf.mxu0
      %v7808 = vadd.f32 0.0, %v7807
      %7809 = vmatmul.bf16.gmra.mxu0 %v7725
      %v7810 = vpop.f32.mrf.mxu0
      %v7811 = vadd.f32 0.0, %v7810
      %v7812 = vpop.f32.mrf.mxu0
      %v7813 = vadd.f32 0.0, %v7812
      %7814 = vmatmul.bf16.gmra.mxu0 %v7728
      %v7815 = vpop.f32.mrf.mxu0
      %v7816 = vadd.f32 0.0, %v7815
      %v7817 = vpop.f32.mrf.mxu0
      %v7818 = vadd.f32 0.0, %v7817
      %7819 = vmatmul.bf16.gmra.mxu0 %v7731
      %v7820 = vpop.f32.mrf.mxu0
      %v7821 = vadd.f32 0.0, %v7820
      %v7822 = vpop.f32.mrf.mxu0
      %v7823 = vadd.f32 0.0, %v7822
      %7824 = vdwg.mxu0
      %v7825 = vadd.f32 %v7427, %v7746
      %v7826 = vadd.f32 %v7428, %v7748
      %v7827 = vadd.f32 %v7429, %v7751
      %v7828 = vadd.f32 %v7430, %v7753
      %v7829 = vadd.f32 %v7431, %v7756
      %v7830 = vadd.f32 %v7432, %v7758
      %v7831 = vadd.f32 %v7433, %v7761
      %v7832 = vadd.f32 %v7434, %v7763
      %v7833 = vadd.f32 %v7435, %v7766
      %v7834 = vadd.f32 %v7436, %v7768
      %v7835 = vadd.f32 %v7437, %v7771
      %v7836 = vadd.f32 %v7438, %v7773
      %v7837 = vadd.f32 %v7439, %v7776
      %v7838 = vadd.f32 %v7440, %v7778
      %v7839 = vadd.f32 %v7441, %v7781
      %v7840 = vadd.f32 %v7442, %v7783
      %v7841 = vadd.f32 %v7443, %v7786
      %v7842 = vadd.f32 %v7444, %v7788
      %v7843 = vadd.f32 %v7445, %v7791
      %v7844 = vadd.f32 %v7446, %v7793
      %v7845 = vadd.f32 %v7447, %v7796
      %v7846 = vadd.f32 %v7448, %v7798
      %v7847 = vadd.f32 %v7449, %v7801
      %v7848 = vadd.f32 %v7450, %v7803
      %v7849 = vadd.f32 %v7451, %v7806
      %v7850 = vadd.f32 %v7452, %v7808
      %v7851 = vadd.f32 %v7453, %v7811
      %v7852 = vadd.f32 %v7454, %v7813
      %v7853 = vadd.f32 %v7455, %v7816
      %v7854 = vadd.f32 %v7456, %v7818
      %v7855 = vadd.f32 %v7457, %v7821
      %v7856 = vadd.f32 %v7458, %v7823
      %s7857 = scalar_lea.vmem [#allocation3], 24
      %v7858 = vld [vmem:[%s7857] sm:$0xf]
      %v7859 = vld [vmem:[%s7857 + $0x4] sm:$0xf]
      %v7860 = vld [vmem:[%s7857 + $0xc] sm:$0xf]
      %v7861 = vld [vmem:[%s7857 + $0x10] sm:$0xf]
      %v7862 = vld [vmem:[%s7857 + $0x18] sm:$0xf]
      %v7863 = vld [vmem:[%s7857 + $0x1c] sm:$0xf]
      %v7864 = vld [vmem:[%s7857 + $0x24] sm:$0xf]
      %v7865 = vld [vmem:[%s7857 + $0x28] sm:$0xf]
      %v7866 = vld [vmem:[%s7857 + $0x30] sm:$0xf]
      %v7867 = vld [vmem:[%s7857 + $0x34] sm:$0xf]
      %v7868 = vld [vmem:[%s7857 + $0x3c] sm:$0xf]
      %v7869 = vld [vmem:[%s7857 + $0x40] sm:$0xf]
      %v7870 = vld [vmem:[%s7857 + $0x48] sm:$0xf]
      %v7871 = vld [vmem:[%s7857 + $0x4c] sm:$0xf]
      %v7872 = vld [vmem:[%s7857 + $0x54] sm:$0xf]
      %v7873 = vld [vmem:[%s7857 + $0x58] sm:$0xf]
      %v7874 = vld [vmem:[%s7857 + $0x60] sm:$0xf]
      %v7875 = vld [vmem:[%s7857 + $0x64] sm:$0xf]
      %v7876 = vld [vmem:[%s7857 + $0x6c] sm:$0xf]
      %v7877 = vld [vmem:[%s7857 + $0x70] sm:$0xf]
      %v7878 = vld [vmem:[%s7857 + $0x78] sm:$0xf]
      %v7879 = vld [vmem:[%s7857 + $0x7c] sm:$0xf]
      %v7880 = vld [vmem:[%s7857 + $0x84] sm:$0xf]
      %v7881 = vld [vmem:[%s7857 + $0x88] sm:$0xf]
      %v7882 = vld [vmem:[%s7857 + $0x90] sm:$0xf]
      %v7883 = vld [vmem:[%s7857 + $0x94] sm:$0xf]
      %v7884 = vld [vmem:[%s7857 + $0x9c] sm:$0xf]
      %v7885 = vld [vmem:[%s7857 + $0xa0] sm:$0xf]
      %v7886 = vld [vmem:[%s7857 + $0xa8] sm:$0xf]
      %v7887 = vld [vmem:[%s7857 + $0xac] sm:$0xf]
      %v7888 = vld [vmem:[%s7857 + $0xb4] sm:$0xf]
      %v7889 = vld [vmem:[%s7857 + $0xb8] sm:$0xf]
      %s7890 = scalar_lea.vmem %s2, 24
      %v7891 = vld [vmem:[%s7890] sm:$0xf]
      %v7924 = vunpack.c.l.b16 %v7858
      %v7925 = vunpack.c.l.b16 %v7859
      %v7926 = vunpack.c.l.b16 %v7860
      %v7927 = vunpack.c.l.b16 %v7861
      %v7928 = vunpack.c.l.b16 %v7862
      %v7929 = vunpack.c.l.b16 %v7863
      %v7930 = vunpack.c.l.b16 %v7864
      %v7931 = vunpack.c.l.b16 %v7865
      %v7932 = vunpack.c.l.b16 %v7866
      %v7933 = vunpack.c.l.b16 %v7867
      %v7934 = vunpack.c.l.b16 %v7868
      %v7935 = vunpack.c.l.b16 %v7869
      %v7936 = vunpack.c.l.b16 %v7870
      %v7937 = vunpack.c.l.b16 %v7871
      %v7938 = vunpack.c.l.b16 %v7872
      %v7939 = vunpack.c.l.b16 %v7873
      %v7940 = vunpack.c.l.b16 %v7874
      %v7941 = vunpack.c.l.b16 %v7875
      %v7942 = vunpack.c.l.b16 %v7876
      %v7943 = vunpack.c.l.b16 %v7877
      %v7944 = vunpack.c.l.b16 %v7878
      %v7945 = vunpack.c.l.b16 %v7879
      %v7946 = vunpack.c.l.b16 %v7880
      %v7947 = vunpack.c.l.b16 %v7881
      %v7948 = vunpack.c.l.b16 %v7882
      %v7949 = vunpack.c.l.b16 %v7883
      %v7950 = vunpack.c.l.b16 %v7884
      %v7951 = vunpack.c.l.b16 %v7885
      %v7952 = vunpack.c.l.b16 %v7886
      %v7953 = vunpack.c.l.b16 %v7887
      %v7954 = vunpack.c.l.b16 %v7888
      %v7955 = vunpack.c.l.b16 %v7889
      %v7956 = vpack.c.b16 %v7925, %v7924
      %v7957 = vpack.c.b16 %v7927, %v7926
      %v7958 = vpack.c.b16 %v7929, %v7928
      %v7959 = vpack.c.b16 %v7931, %v7930
      %v7960 = vpack.c.b16 %v7933, %v7932
      %v7961 = vpack.c.b16 %v7935, %v7934
      %v7962 = vpack.c.b16 %v7937, %v7936
      %v7963 = vpack.c.b16 %v7939, %v7938
      %v7964 = vpack.c.b16 %v7941, %v7940
      %v7965 = vpack.c.b16 %v7943, %v7942
      %v7966 = vpack.c.b16 %v7945, %v7944
      %v7967 = vpack.c.b16 %v7947, %v7946
      %v7968 = vpack.c.b16 %v7949, %v7948
      %v7969 = vpack.c.b16 %v7951, %v7950
      %v7970 = vpack.c.b16 %v7953, %v7952
      %v7971 = vpack.c.b16 %v7955, %v7954
      %v7973 = vsel %vm5775, %v7956, 0
      %v7976 = vsel %vm5775, %v7957, 0
      %v7979 = vsel %vm5775, %v7958, 0
      %v7982 = vsel %vm5775, %v7959, 0
      %v7985 = vsel %vm5775, %v7960, 0
      %v7988 = vsel %vm5775, %v7961, 0
      %v7991 = vsel %vm5775, %v7962, 0
      %v7994 = vsel %vm5775, %v7963, 0
      %v7997 = vsel %vm5775, %v7964, 0
      %v8000 = vsel %vm5775, %v7965, 0
      %v8003 = vsel %vm5775, %v7966, 0
      %v8006 = vsel %vm5775, %v7967, 0
      %v8009 = vsel %vm5775, %v7968, 0
      %v8012 = vsel %vm5775, %v7969, 0
      %v8015 = vsel %vm5775, %v7970, 0
      %v8018 = vsel %vm5775, %v7971, 0
      %v8021 = vsel %vm5824, %v7891, 0
      %8023 = vmatpush.bf16.msra.mxu0 0
      %8024 = vmatpush.bf16.msra.mxu0 0
      %8025 = vmatpush.bf16.msra.mxu0 0
      %8026 = vmatpush.bf16.msra.mxu0 0
      %8027 = vmatpush.bf16.msra.mxu0 0
      %8028 = vmatpush.bf16.msra.mxu0 0
      %8029 = vmatpush.bf16.msra.mxu0 0
      %8030 = vmatpush.bf16.msra.mxu0 %v8021
      %8031 = vmatmul.bf16.gmra.mxu0 %v7973
      %v8032 = vpop.f32.mrf.mxu0
      %v8033 = vadd.f32 0.0, %v8032
      %v8034 = vpop.f32.mrf.mxu0
      %v8035 = vadd.f32 0.0, %v8034
      %8036 = vmatmul.bf16.gmra.mxu0 %v7976
      %v8037 = vpop.f32.mrf.mxu0
      %v8038 = vadd.f32 0.0, %v8037
      %v8039 = vpop.f32.mrf.mxu0
      %v8040 = vadd.f32 0.0, %v8039
      %8041 = vmatmul.bf16.gmra.mxu0 %v7979
      %v8042 = vpop.f32.mrf.mxu0
      %v8043 = vadd.f32 0.0, %v8042
      %v8044 = vpop.f32.mrf.mxu0
      %v8045 = vadd.f32 0.0, %v8044
      %8046 = vmatmul.bf16.gmra.mxu0 %v7982
      %v8047 = vpop.f32.mrf.mxu0
      %v8048 = vadd.f32 0.0, %v8047
      %v8049 = vpop.f32.mrf.mxu0
      %v8050 = vadd.f32 0.0, %v8049
      %8051 = vmatmul.bf16.gmra.mxu0 %v7985
      %v8052 = vpop.f32.mrf.mxu0
      %v8053 = vadd.f32 0.0, %v8052
      %v8054 = vpop.f32.mrf.mxu0
      %v8055 = vadd.f32 0.0, %v8054
      %8056 = vmatmul.bf16.gmra.mxu0 %v7988
      %v8057 = vpop.f32.mrf.mxu0
      %v8058 = vadd.f32 0.0, %v8057
      %v8059 = vpop.f32.mrf.mxu0
      %v8060 = vadd.f32 0.0, %v8059
      %8061 = vmatmul.bf16.gmra.mxu0 %v7991
      %v8062 = vpop.f32.mrf.mxu0
      %v8063 = vadd.f32 0.0, %v8062
      %v8064 = vpop.f32.mrf.mxu0
      %v8065 = vadd.f32 0.0, %v8064
      %8066 = vmatmul.bf16.gmra.mxu0 %v7994
      %v8067 = vpop.f32.mrf.mxu0
      %v8068 = vadd.f32 0.0, %v8067
      %v8069 = vpop.f32.mrf.mxu0
      %v8070 = vadd.f32 0.0, %v8069
      %8071 = vmatmul.bf16.gmra.mxu0 %v7997
      %v8072 = vpop.f32.mrf.mxu0
      %v8073 = vadd.f32 0.0, %v8072
      %v8074 = vpop.f32.mrf.mxu0
      %v8075 = vadd.f32 0.0, %v8074
      %8076 = vmatmul.bf16.gmra.mxu0 %v8000
      %v8077 = vpop.f32.mrf.mxu0
      %v8078 = vadd.f32 0.0, %v8077
      %v8079 = vpop.f32.mrf.mxu0
      %v8080 = vadd.f32 0.0, %v8079
      %8081 = vmatmul.bf16.gmra.mxu0 %v8003
      %v8082 = vpop.f32.mrf.mxu0
      %v8083 = vadd.f32 0.0, %v8082
      %v8084 = vpop.f32.mrf.mxu0
      %v8085 = vadd.f32 0.0, %v8084
      %8086 = vmatmul.bf16.gmra.mxu0 %v8006
      %v8087 = vpop.f32.mrf.mxu0
      %v8088 = vadd.f32 0.0, %v8087
      %v8089 = vpop.f32.mrf.mxu0
      %v8090 = vadd.f32 0.0, %v8089
      %8091 = vmatmul.bf16.gmra.mxu0 %v8009
      %v8092 = vpop.f32.mrf.mxu0
      %v8093 = vadd.f32 0.0, %v8092
      %v8094 = vpop.f32.mrf.mxu0
      %v8095 = vadd.f32 0.0, %v8094
      %8096 = vmatmul.bf16.gmra.mxu0 %v8012
      %v8097 = vpop.f32.mrf.mxu0
      %v8098 = vadd.f32 0.0, %v8097
      %v8099 = vpop.f32.mrf.mxu0
      %v8100 = vadd.f32 0.0, %v8099
      %8101 = vmatmul.bf16.gmra.mxu0 %v8015
      %v8102 = vpop.f32.mrf.mxu0
      %v8103 = vadd.f32 0.0, %v8102
      %v8104 = vpop.f32.mrf.mxu0
      %v8105 = vadd.f32 0.0, %v8104
      %8106 = vmatmul.bf16.gmra.mxu0 %v8018
      %v8107 = vpop.f32.mrf.mxu0
      %v8108 = vadd.f32 0.0, %v8107
      %v8109 = vpop.f32.mrf.mxu0
      %v8110 = vadd.f32 0.0, %v8109
      %8111 = vdwg.mxu0
      %v8112 = vadd.f32 %v7825, %v8033
      %v8113 = vadd.f32 %v7826, %v8035
      %v8114 = vadd.f32 %v7827, %v8038
      %v8115 = vadd.f32 %v7828, %v8040
      %v8116 = vadd.f32 %v7829, %v8043
      %v8117 = vadd.f32 %v7830, %v8045
      %v8118 = vadd.f32 %v7831, %v8048
      %v8119 = vadd.f32 %v7832, %v8050
      %v8120 = vadd.f32 %v7833, %v8053
      %v8121 = vadd.f32 %v7834, %v8055
      %v8122 = vadd.f32 %v7835, %v8058
      %v8123 = vadd.f32 %v7836, %v8060
      %v8124 = vadd.f32 %v7837, %v8063
      %v8125 = vadd.f32 %v7838, %v8065
      %v8126 = vadd.f32 %v7839, %v8068
      %v8127 = vadd.f32 %v7840, %v8070
      %v8128 = vadd.f32 %v7841, %v8073
      %v8129 = vadd.f32 %v7842, %v8075
      %v8130 = vadd.f32 %v7843, %v8078
      %v8131 = vadd.f32 %v7844, %v8080
      %v8132 = vadd.f32 %v7845, %v8083
      %v8133 = vadd.f32 %v7846, %v8085
      %v8134 = vadd.f32 %v7847, %v8088
      %v8135 = vadd.f32 %v7848, %v8090
      %v8136 = vadd.f32 %v7849, %v8093
      %v8137 = vadd.f32 %v7850, %v8095
      %v8138 = vadd.f32 %v7851, %v8098
      %v8139 = vadd.f32 %v7852, %v8100
      %v8140 = vadd.f32 %v7853, %v8103
      %v8141 = vadd.f32 %v7854, %v8105
      %v8142 = vadd.f32 %v7855, %v8108
      %v8143 = vadd.f32 %v7856, %v8110
      %v8144 = vld [vmem:[%s7857] sm:$0xf]
      %v8145 = vld [vmem:[%s7857 + $0x4] sm:$0xf]
      %v8146 = vld [vmem:[%s7857 + $0x8] sm:$0x1]
      %v8147 = vld [vmem:[%s7857 + $0xc] sm:$0xf]
      %v8148 = vld [vmem:[%s7857 + $0x10] sm:$0xf]
      %v8149 = vld [vmem:[%s7857 + $0x14] sm:$0x1]
      %v8150 = vld [vmem:[%s7857 + $0x18] sm:$0xf]
      %v8151 = vld [vmem:[%s7857 + $0x1c] sm:$0xf]
      %v8152 = vld [vmem:[%s7857 + $0x20] sm:$0x1]
      %v8153 = vld [vmem:[%s7857 + $0x24] sm:$0xf]
      %v8154 = vld [vmem:[%s7857 + $0x28] sm:$0xf]
      %v8155 = vld [vmem:[%s7857 + $0x2c] sm:$0x1]
      %v8156 = vld [vmem:[%s7857 + $0x30] sm:$0xf]
      %v8157 = vld [vmem:[%s7857 + $0x34] sm:$0xf]
      %v8158 = vld [vmem:[%s7857 + $0x38] sm:$0x1]
      %v8159 = vld [vmem:[%s7857 + $0x3c] sm:$0xf]
      %v8160 = vld [vmem:[%s7857 + $0x40] sm:$0xf]
      %v8161 = vld [vmem:[%s7857 + $0x44] sm:$0x1]
      %v8162 = vld [vmem:[%s7857 + $0x48] sm:$0xf]
      %v8163 = vld [vmem:[%s7857 + $0x4c] sm:$0xf]
      %v8164 = vld [vmem:[%s7857 + $0x50] sm:$0x1]
      %v8165 = vld [vmem:[%s7857 + $0x54] sm:$0xf]
      %v8166 = vld [vmem:[%s7857 + $0x58] sm:$0xf]
      %v8167 = vld [vmem:[%s7857 + $0x5c] sm:$0x1]
      %v8168 = vld [vmem:[%s7857 + $0x60] sm:$0xf]
      %v8169 = vld [vmem:[%s7857 + $0x64] sm:$0xf]
      %v8170 = vld [vmem:[%s7857 + $0x68] sm:$0x1]
      %v8171 = vld [vmem:[%s7857 + $0x6c] sm:$0xf]
      %v8172 = vld [vmem:[%s7857 + $0x70] sm:$0xf]
      %v8173 = vld [vmem:[%s7857 + $0x74] sm:$0x1]
      %v8174 = vld [vmem:[%s7857 + $0x78] sm:$0xf]
      %v8175 = vld [vmem:[%s7857 + $0x7c] sm:$0xf]
      %v8176 = vld [vmem:[%s7857 + $0x80] sm:$0x1]
      %v8177 = vld [vmem:[%s7857 + $0x84] sm:$0xf]
      %v8178 = vld [vmem:[%s7857 + $0x88] sm:$0xf]
      %v8179 = vld [vmem:[%s7857 + $0x8c] sm:$0x1]
      %v8180 = vld [vmem:[%s7857 + $0x90] sm:$0xf]
      %v8181 = vld [vmem:[%s7857 + $0x94] sm:$0xf]
      %v8182 = vld [vmem:[%s7857 + $0x98] sm:$0x1]
      %v8183 = vld [vmem:[%s7857 + $0x9c] sm:$0xf]
      %v8184 = vld [vmem:[%s7857 + $0xa0] sm:$0xf]
      %v8185 = vld [vmem:[%s7857 + $0xa4] sm:$0x1]
      %v8186 = vld [vmem:[%s7857 + $0xa8] sm:$0xf]
      %v8187 = vld [vmem:[%s7857 + $0xac] sm:$0xf]
      %v8188 = vld [vmem:[%s7857 + $0xb0] sm:$0x1]
      %v8189 = vld [vmem:[%s7857 + $0xb4] sm:$0xf]
      %v8190 = vld [vmem:[%s7857 + $0xb8] sm:$0xf]
      %v8191 = vld [vmem:[%s7857 + $0xbc] sm:$0x1]
      %v8193 = vshrl.u32 %v8144, 16
      %v8195 = vrot.slane %v8193, 4
      %v8196 = vshll.u32 %v8144, 16
      %v8198 = vrot.slane %v8196, 5
      %v8199 = vor.u32 %v8195, %v8198
      %v8200 = vrot.slane %v8199, 4
      %v8202 = vshll.u32 %v8145, 16
      %v8204 = vrot.slane %v8202, 5
      %v8205 = vsel %vm934, %v8200, %v8204
      %v8206 = vshrl.u32 %v8145, 16
      %v8208 = vrot.slane %v8206, 4
      %v8209 = vor.u32 %v8208, %v8204
      %v8210 = vrot.slane %v8209, 4
      %v8212 = vshll.u32 %v8146, 16
      %v8214 = vrot.slane %v8212, 5
      %v8215 = vsel %vm934, %v8210, %v8214
      %v8217 = vshrl.u32 %v8147, 16
      %v8219 = vrot.slane %v8217, 4
      %v8220 = vshll.u32 %v8147, 16
      %v8222 = vrot.slane %v8220, 5
      %v8223 = vor.u32 %v8219, %v8222
      %v8224 = vrot.slane %v8223, 4
      %v8226 = vshll.u32 %v8148, 16
      %v8228 = vrot.slane %v8226, 5
      %v8229 = vsel %vm934, %v8224, %v8228
      %v8230 = vshrl.u32 %v8148, 16
      %v8232 = vrot.slane %v8230, 4
      %v8233 = vor.u32 %v8232, %v8228
      %v8234 = vrot.slane %v8233, 4
      %v8236 = vshll.u32 %v8149, 16
      %v8238 = vrot.slane %v8236, 5
      %v8239 = vsel %vm934, %v8234, %v8238
      %v8241 = vshrl.u32 %v8150, 16
      %v8243 = vrot.slane %v8241, 4
      %v8244 = vshll.u32 %v8150, 16
      %v8246 = vrot.slane %v8244, 5
      %v8247 = vor.u32 %v8243, %v8246
      %v8248 = vrot.slane %v8247, 4
      %v8250 = vshll.u32 %v8151, 16
      %v8252 = vrot.slane %v8250, 5
      %v8253 = vsel %vm934, %v8248, %v8252
      %v8254 = vshrl.u32 %v8151, 16
      %v8256 = vrot.slane %v8254, 4
      %v8257 = vor.u32 %v8256, %v8252
      %v8258 = vrot.slane %v8257, 4
      %v8260 = vshll.u32 %v8152, 16
      %v8262 = vrot.slane %v8260, 5
      %v8263 = vsel %vm934, %v8258, %v8262
      %v8265 = vshrl.u32 %v8153, 16
      %v8267 = vrot.slane %v8265, 4
      %v8268 = vshll.u32 %v8153, 16
      %v8270 = vrot.slane %v8268, 5
      %v8271 = vor.u32 %v8267, %v8270
      %v8272 = vrot.slane %v8271, 4
      %v8274 = vshll.u32 %v8154, 16
      %v8276 = vrot.slane %v8274, 5
      %v8277 = vsel %vm934, %v8272, %v8276
      %v8278 = vshrl.u32 %v8154, 16
      %v8280 = vrot.slane %v8278, 4
      %v8281 = vor.u32 %v8280, %v8276
      %v8282 = vrot.slane %v8281, 4
      %v8284 = vshll.u32 %v8155, 16
      %v8286 = vrot.slane %v8284, 5
      %v8287 = vsel %vm934, %v8282, %v8286
      %v8289 = vshrl.u32 %v8156, 16
      %v8291 = vrot.slane %v8289, 4
      %v8292 = vshll.u32 %v8156, 16
      %v8294 = vrot.slane %v8292, 5
      %v8295 = vor.u32 %v8291, %v8294
      %v8296 = vrot.slane %v8295, 4
      %v8298 = vshll.u32 %v8157, 16
      %v8300 = vrot.slane %v8298, 5
      %v8301 = vsel %vm934, %v8296, %v8300
      %v8302 = vshrl.u32 %v8157, 16
      %v8304 = vrot.slane %v8302, 4
      %v8305 = vor.u32 %v8304, %v8300
      %v8306 = vrot.slane %v8305, 4
      %v8308 = vshll.u32 %v8158, 16
      %v8310 = vrot.slane %v8308, 5
      %v8311 = vsel %vm934, %v8306, %v8310
      %v8313 = vshrl.u32 %v8159, 16
      %v8315 = vrot.slane %v8313, 4
      %v8316 = vshll.u32 %v8159, 16
      %v8318 = vrot.slane %v8316, 5
      %v8319 = vor.u32 %v8315, %v8318
      %v8320 = vrot.slane %v8319, 4
      %v8322 = vshll.u32 %v8160, 16
      %v8324 = vrot.slane %v8322, 5
      %v8325 = vsel %vm934, %v8320, %v8324
      %v8326 = vshrl.u32 %v8160, 16
      %v8328 = vrot.slane %v8326, 4
      %v8329 = vor.u32 %v8328, %v8324
      %v8330 = vrot.slane %v8329, 4
      %v8332 = vshll.u32 %v8161, 16
      %v8334 = vrot.slane %v8332, 5
      %v8335 = vsel %vm934, %v8330, %v8334
      %v8337 = vshrl.u32 %v8162, 16
      %v8339 = vrot.slane %v8337, 4
      %v8340 = vshll.u32 %v8162, 16
      %v8342 = vrot.slane %v8340, 5
      %v8343 = vor.u32 %v8339, %v8342
      %v8344 = vrot.slane %v8343, 4
      %v8346 = vshll.u32 %v8163, 16
      %v8348 = vrot.slane %v8346, 5
      %v8349 = vsel %vm934, %v8344, %v8348
      %v8350 = vshrl.u32 %v8163, 16
      %v8352 = vrot.slane %v8350, 4
      %v8353 = vor.u32 %v8352, %v8348
      %v8354 = vrot.slane %v8353, 4
      %v8356 = vshll.u32 %v8164, 16
      %v8358 = vrot.slane %v8356, 5
      %v8359 = vsel %vm934, %v8354, %v8358
      %v8361 = vshrl.u32 %v8165, 16
      %v8363 = vrot.slane %v8361, 4
      %v8364 = vshll.u32 %v8165, 16
      %v8366 = vrot.slane %v8364, 5
      %v8367 = vor.u32 %v8363, %v8366
      %v8368 = vrot.slane %v8367, 4
      %v8370 = vshll.u32 %v8166, 16
      %v8372 = vrot.slane %v8370, 5
      %v8373 = vsel %vm934, %v8368, %v8372
      %v8374 = vshrl.u32 %v8166, 16
      %v8376 = vrot.slane %v8374, 4
      %v8377 = vor.u32 %v8376, %v8372
      %v8378 = vrot.slane %v8377, 4
      %v8380 = vshll.u32 %v8167, 16
      %v8382 = vrot.slane %v8380, 5
      %v8383 = vsel %vm934, %v8378, %v8382
      %v8385 = vshrl.u32 %v8168, 16
      %v8387 = vrot.slane %v8385, 4
      %v8388 = vshll.u32 %v8168, 16
      %v8390 = vrot.slane %v8388, 5
      %v8391 = vor.u32 %v8387, %v8390
      %v8392 = vrot.slane %v8391, 4
      %v8394 = vshll.u32 %v8169, 16
      %v8396 = vrot.slane %v8394, 5
      %v8397 = vsel %vm934, %v8392, %v8396
      %v8398 = vshrl.u32 %v8169, 16
      %v8400 = vrot.slane %v8398, 4
      %v8401 = vor.u32 %v8400, %v8396
      %v8402 = vrot.slane %v8401, 4
      %v8404 = vshll.u32 %v8170, 16
      %v8406 = vrot.slane %v8404, 5
      %v8407 = vsel %vm934, %v8402, %v8406
      %v8409 = vshrl.u32 %v8171, 16
      %v8411 = vrot.slane %v8409, 4
      %v8412 = vshll.u32 %v8171, 16
      %v8414 = vrot.slane %v8412, 5
      %v8415 = vor.u32 %v8411, %v8414
      %v8416 = vrot.slane %v8415, 4
      %v8418 = vshll.u32 %v8172, 16
      %v8420 = vrot.slane %v8418, 5
      %v8421 = vsel %vm934, %v8416, %v8420
      %v8422 = vshrl.u32 %v8172, 16
      %v8424 = vrot.slane %v8422, 4
      %v8425 = vor.u32 %v8424, %v8420
      %v8426 = vrot.slane %v8425, 4
      %v8428 = vshll.u32 %v8173, 16
      %v8430 = vrot.slane %v8428, 5
      %v8431 = vsel %vm934, %v8426, %v8430
      %v8433 = vshrl.u32 %v8174, 16
      %v8435 = vrot.slane %v8433, 4
      %v8436 = vshll.u32 %v8174, 16
      %v8438 = vrot.slane %v8436, 5
      %v8439 = vor.u32 %v8435, %v8438
      %v8440 = vrot.slane %v8439, 4
      %v8442 = vshll.u32 %v8175, 16
      %v8444 = vrot.slane %v8442, 5
      %v8445 = vsel %vm934, %v8440, %v8444
      %v8446 = vshrl.u32 %v8175, 16
      %v8448 = vrot.slane %v8446, 4
      %v8449 = vor.u32 %v8448, %v8444
      %v8450 = vrot.slane %v8449, 4
      %v8452 = vshll.u32 %v8176, 16
      %v8454 = vrot.slane %v8452, 5
      %v8455 = vsel %vm934, %v8450, %v8454
      %v8457 = vshrl.u32 %v8177, 16
      %v8459 = vrot.slane %v8457, 4
      %v8460 = vshll.u32 %v8177, 16
      %v8462 = vrot.slane %v8460, 5
      %v8463 = vor.u32 %v8459, %v8462
      %v8464 = vrot.slane %v8463, 4
      %v8466 = vshll.u32 %v8178, 16
      %v8468 = vrot.slane %v8466, 5
      %v8469 = vsel %vm934, %v8464, %v8468
      %v8470 = vshrl.u32 %v8178, 16
      %v8472 = vrot.slane %v8470, 4
      %v8473 = vor.u32 %v8472, %v8468
      %v8474 = vrot.slane %v8473, 4
      %v8476 = vshll.u32 %v8179, 16
      %v8478 = vrot.slane %v8476, 5
      %v8479 = vsel %vm934, %v8474, %v8478
      %v8481 = vshrl.u32 %v8180, 16
      %v8483 = vrot.slane %v8481, 4
      %v8484 = vshll.u32 %v8180, 16
      %v8486 = vrot.slane %v8484, 5
      %v8487 = vor.u32 %v8483, %v8486
      %v8488 = vrot.slane %v8487, 4
      %v8490 = vshll.u32 %v8181, 16
      %v8492 = vrot.slane %v8490, 5
      %v8493 = vsel %vm934, %v8488, %v8492
      %v8494 = vshrl.u32 %v8181, 16
      %v8496 = vrot.slane %v8494, 4
      %v8497 = vor.u32 %v8496, %v8492
      %v8498 = vrot.slane %v8497, 4
      %v8500 = vshll.u32 %v8182, 16
      %v8502 = vrot.slane %v8500, 5
      %v8503 = vsel %vm934, %v8498, %v8502
      %v8505 = vshrl.u32 %v8183, 16
      %v8507 = vrot.slane %v8505, 4
      %v8508 = vshll.u32 %v8183, 16
      %v8510 = vrot.slane %v8508, 5
      %v8511 = vor.u32 %v8507, %v8510
      %v8512 = vrot.slane %v8511, 4
      %v8514 = vshll.u32 %v8184, 16
      %v8516 = vrot.slane %v8514, 5
      %v8517 = vsel %vm934, %v8512, %v8516
      %v8518 = vshrl.u32 %v8184, 16
      %v8520 = vrot.slane %v8518, 4
      %v8521 = vor.u32 %v8520, %v8516
      %v8522 = vrot.slane %v8521, 4
      %v8524 = vshll.u32 %v8185, 16
      %v8526 = vrot.slane %v8524, 5
      %v8527 = vsel %vm934, %v8522, %v8526
      %v8529 = vshrl.u32 %v8186, 16
      %v8531 = vrot.slane %v8529, 4
      %v8532 = vshll.u32 %v8186, 16
      %v8534 = vrot.slane %v8532, 5
      %v8535 = vor.u32 %v8531, %v8534
      %v8536 = vrot.slane %v8535, 4
      %v8538 = vshll.u32 %v8187, 16
      %v8540 = vrot.slane %v8538, 5
      %v8541 = vsel %vm934, %v8536, %v8540
      %v8542 = vshrl.u32 %v8187, 16
      %v8544 = vrot.slane %v8542, 4
      %v8545 = vor.u32 %v8544, %v8540
      %v8546 = vrot.slane %v8545, 4
      %v8548 = vshll.u32 %v8188, 16
      %v8550 = vrot.slane %v8548, 5
      %v8551 = vsel %vm934, %v8546, %v8550
      %v8553 = vshrl.u32 %v8189, 16
      %v8555 = vrot.slane %v8553, 4
      %v8556 = vshll.u32 %v8189, 16
      %v8558 = vrot.slane %v8556, 5
      %v8559 = vor.u32 %v8555, %v8558
      %v8560 = vrot.slane %v8559, 4
      %v8562 = vshll.u32 %v8190, 16
      %v8564 = vrot.slane %v8562, 5
      %v8565 = vsel %vm934, %v8560, %v8564
      %v8566 = vshrl.u32 %v8190, 16
      %v8568 = vrot.slane %v8566, 4
      %v8569 = vor.u32 %v8568, %v8564
      %v8570 = vrot.slane %v8569, 4
      %v8572 = vshll.u32 %v8191, 16
      %v8574 = vrot.slane %v8572, 5
      %v8575 = vsel %vm934, %v8570, %v8574
      %s8576 = scalar_lea.vmem %s2, 28
      %v8577 = vld [vmem:[%s8576] sm:$0xf]
      %v8578 = vunpack.c.l.b16 %v8205
      %v8579 = vunpack.c.l.b16 %v8215
      %v8580 = vunpack.c.l.b16 %v8229
      %v8581 = vunpack.c.l.b16 %v8239
      %v8582 = vunpack.c.l.b16 %v8253
      %v8583 = vunpack.c.l.b16 %v8263
      %v8584 = vunpack.c.l.b16 %v8277
      %v8585 = vunpack.c.l.b16 %v8287
      %v8586 = vunpack.c.l.b16 %v8301
      %v8587 = vunpack.c.l.b16 %v8311
      %v8588 = vunpack.c.l.b16 %v8325
      %v8589 = vunpack.c.l.b16 %v8335
      %v8590 = vunpack.c.l.b16 %v8349
      %v8591 = vunpack.c.l.b16 %v8359
      %v8592 = vunpack.c.l.b16 %v8373
      %v8593 = vunpack.c.l.b16 %v8383
      %v8594 = vunpack.c.l.b16 %v8397
      %v8595 = vunpack.c.l.b16 %v8407
      %v8596 = vunpack.c.l.b16 %v8421
      %v8597 = vunpack.c.l.b16 %v8431
      %v8598 = vunpack.c.l.b16 %v8445
      %v8599 = vunpack.c.l.b16 %v8455
      %v8600 = vunpack.c.l.b16 %v8469
      %v8601 = vunpack.c.l.b16 %v8479
      %v8602 = vunpack.c.l.b16 %v8493
      %v8603 = vunpack.c.l.b16 %v8503
      %v8604 = vunpack.c.l.b16 %v8517
      %v8605 = vunpack.c.l.b16 %v8527
      %v8606 = vunpack.c.l.b16 %v8541
      %v8607 = vunpack.c.l.b16 %v8551
      %v8608 = vunpack.c.l.b16 %v8565
      %v8609 = vunpack.c.l.b16 %v8575
      %v8610 = vpack.c.b16 %v8579, %v8578
      %v8611 = vpack.c.b16 %v8581, %v8580
      %v8612 = vpack.c.b16 %v8583, %v8582
      %v8613 = vpack.c.b16 %v8585, %v8584
      %v8614 = vpack.c.b16 %v8587, %v8586
      %v8615 = vpack.c.b16 %v8589, %v8588
      %v8616 = vpack.c.b16 %v8591, %v8590
      %v8617 = vpack.c.b16 %v8593, %v8592
      %v8618 = vpack.c.b16 %v8595, %v8594
      %v8619 = vpack.c.b16 %v8597, %v8596
      %v8620 = vpack.c.b16 %v8599, %v8598
      %v8621 = vpack.c.b16 %v8601, %v8600
      %v8622 = vpack.c.b16 %v8603, %v8602
      %v8623 = vpack.c.b16 %v8605, %v8604
      %v8624 = vpack.c.b16 %v8607, %v8606
      %v8625 = vpack.c.b16 %v8609, %v8608
      %v8627 = vsel %vm5775, %v8610, 0
      %v8630 = vsel %vm5775, %v8611, 0
      %v8633 = vsel %vm5775, %v8612, 0
      %v8636 = vsel %vm5775, %v8613, 0
      %v8639 = vsel %vm5775, %v8614, 0
      %v8642 = vsel %vm5775, %v8615, 0
      %v8645 = vsel %vm5775, %v8616, 0
      %v8648 = vsel %vm5775, %v8617, 0
      %v8651 = vsel %vm5775, %v8618, 0
      %v8654 = vsel %vm5775, %v8619, 0
      %v8657 = vsel %vm5775, %v8620, 0
      %v8660 = vsel %vm5775, %v8621, 0
      %v8663 = vsel %vm5775, %v8622, 0
      %v8666 = vsel %vm5775, %v8623, 0
      %v8669 = vsel %vm5775, %v8624, 0
      %v8672 = vsel %vm5775, %v8625, 0
      %v8675 = vsel %vm5824, %v8577, 0
      %8677 = vmatpush.bf16.msra.mxu0 0
      %8678 = vmatpush.bf16.msra.mxu0 0
      %8679 = vmatpush.bf16.msra.mxu0 0
      %8680 = vmatpush.bf16.msra.mxu0 0
      %8681 = vmatpush.bf16.msra.mxu0 0
      %8682 = vmatpush.bf16.msra.mxu0 0
      %8683 = vmatpush.bf16.msra.mxu0 0
      %8684 = vmatpush.bf16.msra.mxu0 %v8675
      %8685 = vmatmul.bf16.gmra.mxu0 %v8627
      %v8686 = vpop.f32.mrf.mxu0
      %v8687 = vadd.f32 0.0, %v8686
      %v8688 = vpop.f32.mrf.mxu0
      %v8689 = vadd.f32 0.0, %v8688
      %8690 = vmatmul.bf16.gmra.mxu0 %v8630
      %v8691 = vpop.f32.mrf.mxu0
      %v8692 = vadd.f32 0.0, %v8691
      %v8693 = vpop.f32.mrf.mxu0
      %v8694 = vadd.f32 0.0, %v8693
      %8695 = vmatmul.bf16.gmra.mxu0 %v8633
      %v8696 = vpop.f32.mrf.mxu0
      %v8697 = vadd.f32 0.0, %v8696
      %v8698 = vpop.f32.mrf.mxu0
      %v8699 = vadd.f32 0.0, %v8698
      %8700 = vmatmul.bf16.gmra.mxu0 %v8636
      %v8701 = vpop.f32.mrf.mxu0
      %v8702 = vadd.f32 0.0, %v8701
      %v8703 = vpop.f32.mrf.mxu0
      %v8704 = vadd.f32 0.0, %v8703
      %8705 = vmatmul.bf16.gmra.mxu0 %v8639
      %v8706 = vpop.f32.mrf.mxu0
      %v8707 = vadd.f32 0.0, %v8706
      %v8708 = vpop.f32.mrf.mxu0
      %v8709 = vadd.f32 0.0, %v8708
      %8710 = vmatmul.bf16.gmra.mxu0 %v8642
      %v8711 = vpop.f32.mrf.mxu0
      %v8712 = vadd.f32 0.0, %v8711
      %v8713 = vpop.f32.mrf.mxu0
      %v8714 = vadd.f32 0.0, %v8713
      %8715 = vmatmul.bf16.gmra.mxu0 %v8645
      %v8716 = vpop.f32.mrf.mxu0
      %v8717 = vadd.f32 0.0, %v8716
      %v8718 = vpop.f32.mrf.mxu0
      %v8719 = vadd.f32 0.0, %v8718
      %8720 = vmatmul.bf16.gmra.mxu0 %v8648
      %v8721 = vpop.f32.mrf.mxu0
      %v8722 = vadd.f32 0.0, %v8721
      %v8723 = vpop.f32.mrf.mxu0
      %v8724 = vadd.f32 0.0, %v8723
      %8725 = vmatmul.bf16.gmra.mxu0 %v8651
      %v8726 = vpop.f32.mrf.mxu0
      %v8727 = vadd.f32 0.0, %v8726
      %v8728 = vpop.f32.mrf.mxu0
      %v8729 = vadd.f32 0.0, %v8728
      %8730 = vmatmul.bf16.gmra.mxu0 %v8654
      %v8731 = vpop.f32.mrf.mxu0
      %v8732 = vadd.f32 0.0, %v8731
      %v8733 = vpop.f32.mrf.mxu0
      %v8734 = vadd.f32 0.0, %v8733
      %8735 = vmatmul.bf16.gmra.mxu0 %v8657
      %v8736 = vpop.f32.mrf.mxu0
      %v8737 = vadd.f32 0.0, %v8736
      %v8738 = vpop.f32.mrf.mxu0
      %v8739 = vadd.f32 0.0, %v8738
      %8740 = vmatmul.bf16.gmra.mxu0 %v8660
      %v8741 = vpop.f32.mrf.mxu0
      %v8742 = vadd.f32 0.0, %v8741
      %v8743 = vpop.f32.mrf.mxu0
      %v8744 = vadd.f32 0.0, %v8743
      %8745 = vmatmul.bf16.gmra.mxu0 %v8663
      %v8746 = vpop.f32.mrf.mxu0
      %v8747 = vadd.f32 0.0, %v8746
      %v8748 = vpop.f32.mrf.mxu0
      %v8749 = vadd.f32 0.0, %v8748
      %8750 = vmatmul.bf16.gmra.mxu0 %v8666
      %v8751 = vpop.f32.mrf.mxu0
      %v8752 = vadd.f32 0.0, %v8751
      %v8753 = vpop.f32.mrf.mxu0
      %v8754 = vadd.f32 0.0, %v8753
      %8755 = vmatmul.bf16.gmra.mxu0 %v8669
      %v8756 = vpop.f32.mrf.mxu0
      %v8757 = vadd.f32 0.0, %v8756
      %v8758 = vpop.f32.mrf.mxu0
      %v8759 = vadd.f32 0.0, %v8758
      %8760 = vmatmul.bf16.gmra.mxu0 %v8672
      %v8761 = vpop.f32.mrf.mxu0
      %v8762 = vadd.f32 0.0, %v8761
      %v8763 = vpop.f32.mrf.mxu0
      %v8764 = vadd.f32 0.0, %v8763
      %8765 = vdwg.mxu0
      %v8766 = vadd.f32 %v8112, %v8687
      %v8767 = vadd.f32 %v8113, %v8689
      %v8768 = vadd.f32 %v8114, %v8692
      %v8769 = vadd.f32 %v8115, %v8694
      %v8770 = vadd.f32 %v8116, %v8697
      %v8771 = vadd.f32 %v8117, %v8699
      %v8772 = vadd.f32 %v8118, %v8702
      %v8773 = vadd.f32 %v8119, %v8704
      %v8774 = vadd.f32 %v8120, %v8707
      %v8775 = vadd.f32 %v8121, %v8709
      %v8776 = vadd.f32 %v8122, %v8712
      %v8777 = vadd.f32 %v8123, %v8714
      %v8778 = vadd.f32 %v8124, %v8717
      %v8779 = vadd.f32 %v8125, %v8719
      %v8780 = vadd.f32 %v8126, %v8722
      %v8781 = vadd.f32 %v8127, %v8724
      %v8782 = vadd.f32 %v8128, %v8727
      %v8783 = vadd.f32 %v8129, %v8729
      %v8784 = vadd.f32 %v8130, %v8732
      %v8785 = vadd.f32 %v8131, %v8734
      %v8786 = vadd.f32 %v8132, %v8737
      %v8787 = vadd.f32 %v8133, %v8739
      %v8788 = vadd.f32 %v8134, %v8742
      %v8789 = vadd.f32 %v8135, %v8744
      %v8790 = vadd.f32 %v8136, %v8747
      %v8791 = vadd.f32 %v8137, %v8749
      %v8792 = vadd.f32 %v8138, %v8752
      %v8793 = vadd.f32 %v8139, %v8754
      %v8794 = vadd.f32 %v8140, %v8757
      %v8795 = vadd.f32 %v8141, %v8759
      %v8796 = vadd.f32 %v8142, %v8762
      %v8797 = vadd.f32 %v8143, %v8764
      %v8798 = vld [vmem:[%s7857] sm:$0xe]
      %v8799 = vld [vmem:[%s7857 + $0xc] sm:$0xe]
      %v8800 = vld [vmem:[%s7857 + $0x18] sm:$0xe]
      %v8801 = vld [vmem:[%s7857 + $0x24] sm:$0xe]
      %v8802 = vld [vmem:[%s7857 + $0x30] sm:$0xe]
      %v8803 = vld [vmem:[%s7857 + $0x3c] sm:$0xe]
      %v8804 = vld [vmem:[%s7857 + $0x48] sm:$0xe]
      %v8805 = vld [vmem:[%s7857 + $0x54] sm:$0xe]
      %v8806 = vld [vmem:[%s7857 + $0x60] sm:$0xe]
      %v8807 = vld [vmem:[%s7857 + $0x6c] sm:$0xe]
      %v8808 = vld [vmem:[%s7857 + $0x78] sm:$0xe]
      %v8809 = vld [vmem:[%s7857 + $0x84] sm:$0xe]
      %v8810 = vld [vmem:[%s7857 + $0x90] sm:$0xe]
      %v8811 = vld [vmem:[%s7857 + $0x9c] sm:$0xe]
      %v8812 = vld [vmem:[%s7857 + $0xa8] sm:$0xe]
      %v8813 = vld [vmem:[%s7857 + $0xb4] sm:$0xe]
      %v8862 = vrot.slane %v8798, 5
      %v8863 = vrot.slane %v8862, 4
      %v8864 = vrot.slane %v8145, 5
      %v8865 = vsel %vm1781, %v8863, %v8864
      %v8866 = vrot.slane %v8864, 4
      %v8867 = vrot.slane %v8146, 5
      %v8868 = vsel %vm1781, %v8866, %v8867
      %v8869 = vrot.slane %v8799, 5
      %v8870 = vrot.slane %v8869, 4
      %v8871 = vrot.slane %v8148, 5
      %v8872 = vsel %vm1781, %v8870, %v8871
      %v8873 = vrot.slane %v8871, 4
      %v8874 = vrot.slane %v8149, 5
      %v8875 = vsel %vm1781, %v8873, %v8874
      %v8876 = vrot.slane %v8800, 5
      %v8877 = vrot.slane %v8876, 4
      %v8878 = vrot.slane %v8151, 5
      %v8879 = vsel %vm1781, %v8877, %v8878
      %v8880 = vrot.slane %v8878, 4
      %v8881 = vrot.slane %v8152, 5
      %v8882 = vsel %vm1781, %v8880, %v8881
      %v8883 = vrot.slane %v8801, 5
      %v8884 = vrot.slane %v8883, 4
      %v8885 = vrot.slane %v8154, 5
      %v8886 = vsel %vm1781, %v8884, %v8885
      %v8887 = vrot.slane %v8885, 4
      %v8888 = vrot.slane %v8155, 5
      %v8889 = vsel %vm1781, %v8887, %v8888
      %v8890 = vrot.slane %v8802, 5
      %v8891 = vrot.slane %v8890, 4
      %v8892 = vrot.slane %v8157, 5
      %v8893 = vsel %vm1781, %v8891, %v8892
      %v8894 = vrot.slane %v8892, 4
      %v8895 = vrot.slane %v8158, 5
      %v8896 = vsel %vm1781, %v8894, %v8895
      %v8897 = vrot.slane %v8803, 5
      %v8898 = vrot.slane %v8897, 4
      %v8899 = vrot.slane %v8160, 5
      %v8900 = vsel %vm1781, %v8898, %v8899
      %v8901 = vrot.slane %v8899, 4
      %v8902 = vrot.slane %v8161, 5
      %v8903 = vsel %vm1781, %v8901, %v8902
      %v8904 = vrot.slane %v8804, 5
      %v8905 = vrot.slane %v8904, 4
      %v8906 = vrot.slane %v8163, 5
      %v8907 = vsel %vm1781, %v8905, %v8906
      %v8908 = vrot.slane %v8906, 4
      %v8909 = vrot.slane %v8164, 5
      %v8910 = vsel %vm1781, %v8908, %v8909
      %v8911 = vrot.slane %v8805, 5
      %v8912 = vrot.slane %v8911, 4
      %v8913 = vrot.slane %v8166, 5
      %v8914 = vsel %vm1781, %v8912, %v8913
      %v8915 = vrot.slane %v8913, 4
      %v8916 = vrot.slane %v8167, 5
      %v8917 = vsel %vm1781, %v8915, %v8916
      %v8918 = vrot.slane %v8806, 5
      %v8919 = vrot.slane %v8918, 4
      %v8920 = vrot.slane %v8169, 5
      %v8921 = vsel %vm1781, %v8919, %v8920
      %v8922 = vrot.slane %v8920, 4
      %v8923 = vrot.slane %v8170, 5
      %v8924 = vsel %vm1781, %v8922, %v8923
      %v8925 = vrot.slane %v8807, 5
      %v8926 = vrot.slane %v8925, 4
      %v8927 = vrot.slane %v8172, 5
      %v8928 = vsel %vm1781, %v8926, %v8927
      %v8929 = vrot.slane %v8927, 4
      %v8930 = vrot.slane %v8173, 5
      %v8931 = vsel %vm1781, %v8929, %v8930
      %v8932 = vrot.slane %v8808, 5
      %v8933 = vrot.slane %v8932, 4
      %v8934 = vrot.slane %v8175, 5
      %v8935 = vsel %vm1781, %v8933, %v8934
      %v8936 = vrot.slane %v8934, 4
      %v8937 = vrot.slane %v8176, 5
      %v8938 = vsel %vm1781, %v8936, %v8937
      %v8939 = vrot.slane %v8809, 5
      %v8940 = vrot.slane %v8939, 4
      %v8941 = vrot.slane %v8178, 5
      %v8942 = vsel %vm1781, %v8940, %v8941
      %v8943 = vrot.slane %v8941, 4
      %v8944 = vrot.slane %v8179, 5
      %v8945 = vsel %vm1781, %v8943, %v8944
      %v8946 = vrot.slane %v8810, 5
      %v8947 = vrot.slane %v8946, 4
      %v8948 = vrot.slane %v8181, 5
      %v8949 = vsel %vm1781, %v8947, %v8948
      %v8950 = vrot.slane %v8948, 4
      %v8951 = vrot.slane %v8182, 5
      %v8952 = vsel %vm1781, %v8950, %v8951
      %v8953 = vrot.slane %v8811, 5
      %v8954 = vrot.slane %v8953, 4
      %v8955 = vrot.slane %v8184, 5
      %v8956 = vsel %vm1781, %v8954, %v8955
      %v8957 = vrot.slane %v8955, 4
      %v8958 = vrot.slane %v8185, 5
      %v8959 = vsel %vm1781, %v8957, %v8958
      %v8960 = vrot.slane %v8812, 5
      %v8961 = vrot.slane %v8960, 4
      %v8962 = vrot.slane %v8187, 5
      %v8963 = vsel %vm1781, %v8961, %v8962
      %v8964 = vrot.slane %v8962, 4
      %v8965 = vrot.slane %v8188, 5
      %v8966 = vsel %vm1781, %v8964, %v8965
      %v8967 = vrot.slane %v8813, 5
      %v8968 = vrot.slane %v8967, 4
      %v8969 = vrot.slane %v8190, 5
      %v8970 = vsel %vm1781, %v8968, %v8969
      %v8971 = vrot.slane %v8969, 4
      %v8972 = vrot.slane %v8191, 5
      %v8973 = vsel %vm1781, %v8971, %v8972
      %s8974 = scalar_lea.vmem %s2, 32
      %v8975 = vld [vmem:[%s8974] sm:$0xf]
      %v8976 = vunpack.c.l.b16 %v8865
      %v8977 = vunpack.c.l.b16 %v8868
      %v8978 = vunpack.c.l.b16 %v8872
      %v8979 = vunpack.c.l.b16 %v8875
      %v8980 = vunpack.c.l.b16 %v8879
      %v8981 = vunpack.c.l.b16 %v8882
      %v8982 = vunpack.c.l.b16 %v8886
      %v8983 = vunpack.c.l.b16 %v8889
      %v8984 = vunpack.c.l.b16 %v8893
      %v8985 = vunpack.c.l.b16 %v8896
      %v8986 = vunpack.c.l.b16 %v8900
      %v8987 = vunpack.c.l.b16 %v8903
      %v8988 = vunpack.c.l.b16 %v8907
      %v8989 = vunpack.c.l.b16 %v8910
      %v8990 = vunpack.c.l.b16 %v8914
      %v8991 = vunpack.c.l.b16 %v8917
      %v8992 = vunpack.c.l.b16 %v8921
      %v8993 = vunpack.c.l.b16 %v8924
      %v8994 = vunpack.c.l.b16 %v8928
      %v8995 = vunpack.c.l.b16 %v8931
      %v8996 = vunpack.c.l.b16 %v8935
      %v8997 = vunpack.c.l.b16 %v8938
      %v8998 = vunpack.c.l.b16 %v8942
      %v8999 = vunpack.c.l.b16 %v8945
      %v9000 = vunpack.c.l.b16 %v8949
      %v9001 = vunpack.c.l.b16 %v8952
      %v9002 = vunpack.c.l.b16 %v8956
      %v9003 = vunpack.c.l.b16 %v8959
      %v9004 = vunpack.c.l.b16 %v8963
      %v9005 = vunpack.c.l.b16 %v8966
      %v9006 = vunpack.c.l.b16 %v8970
      %v9007 = vunpack.c.l.b16 %v8973
      %v9008 = vpack.c.b16 %v8977, %v8976
      %v9009 = vpack.c.b16 %v8979, %v8978
      %v9010 = vpack.c.b16 %v8981, %v8980
      %v9011 = vpack.c.b16 %v8983, %v8982
      %v9012 = vpack.c.b16 %v8985, %v8984
      %v9013 = vpack.c.b16 %v8987, %v8986
      %v9014 = vpack.c.b16 %v8989, %v8988
      %v9015 = vpack.c.b16 %v8991, %v8990
      %v9016 = vpack.c.b16 %v8993, %v8992
      %v9017 = vpack.c.b16 %v8995, %v8994
      %v9018 = vpack.c.b16 %v8997, %v8996
      %v9019 = vpack.c.b16 %v8999, %v8998
      %v9020 = vpack.c.b16 %v9001, %v9000
      %v9021 = vpack.c.b16 %v9003, %v9002
      %v9022 = vpack.c.b16 %v9005, %v9004
      %v9023 = vpack.c.b16 %v9007, %v9006
      %v9025 = vsel %vm5775, %v9008, 0
      %v9028 = vsel %vm5775, %v9009, 0
      %v9031 = vsel %vm5775, %v9010, 0
      %v9034 = vsel %vm5775, %v9011, 0
      %v9037 = vsel %vm5775, %v9012, 0
      %v9040 = vsel %vm5775, %v9013, 0
      %v9043 = vsel %vm5775, %v9014, 0
      %v9046 = vsel %vm5775, %v9015, 0
      %v9049 = vsel %vm5775, %v9016, 0
      %v9052 = vsel %vm5775, %v9017, 0
      %v9055 = vsel %vm5775, %v9018, 0
      %v9058 = vsel %vm5775, %v9019, 0
      %v9061 = vsel %vm5775, %v9020, 0
      %v9064 = vsel %vm5775, %v9021, 0
      %v9067 = vsel %vm5775, %v9022, 0
      %v9070 = vsel %vm5775, %v9023, 0
      %v9073 = vsel %vm5824, %v8975, 0
      %9075 = vmatpush.bf16.msra.mxu0 0
      %9076 = vmatpush.bf16.msra.mxu0 0
      %9077 = vmatpush.bf16.msra.mxu0 0
      %9078 = vmatpush.bf16.msra.mxu0 0
      %9079 = vmatpush.bf16.msra.mxu0 0
      %9080 = vmatpush.bf16.msra.mxu0 0
      %9081 = vmatpush.bf16.msra.mxu0 0
      %9082 = vmatpush.bf16.msra.mxu0 %v9073
      %9083 = vmatmul.bf16.gmra.mxu0 %v9025
      %v9084 = vpop.f32.mrf.mxu0
      %v9085 = vadd.f32 0.0, %v9084
      %v9086 = vpop.f32.mrf.mxu0
      %v9087 = vadd.f32 0.0, %v9086
      %9088 = vmatmul.bf16.gmra.mxu0 %v9028
      %v9089 = vpop.f32.mrf.mxu0
      %v9090 = vadd.f32 0.0, %v9089
      %v9091 = vpop.f32.mrf.mxu0
      %v9092 = vadd.f32 0.0, %v9091
      %9093 = vmatmul.bf16.gmra.mxu0 %v9031
      %v9094 = vpop.f32.mrf.mxu0
      %v9095 = vadd.f32 0.0, %v9094
      %v9096 = vpop.f32.mrf.mxu0
      %v9097 = vadd.f32 0.0, %v9096
      %9098 = vmatmul.bf16.gmra.mxu0 %v9034
      %v9099 = vpop.f32.mrf.mxu0
      %v9100 = vadd.f32 0.0, %v9099
      %v9101 = vpop.f32.mrf.mxu0
      %v9102 = vadd.f32 0.0, %v9101
      %9103 = vmatmul.bf16.gmra.mxu0 %v9037
      %v9104 = vpop.f32.mrf.mxu0
      %v9105 = vadd.f32 0.0, %v9104
      %v9106 = vpop.f32.mrf.mxu0
      %v9107 = vadd.f32 0.0, %v9106
      %9108 = vmatmul.bf16.gmra.mxu0 %v9040
      %v9109 = vpop.f32.mrf.mxu0
      %v9110 = vadd.f32 0.0, %v9109
      %v9111 = vpop.f32.mrf.mxu0
      %v9112 = vadd.f32 0.0, %v9111
      %9113 = vmatmul.bf16.gmra.mxu0 %v9043
      %v9114 = vpop.f32.mrf.mxu0
      %v9115 = vadd.f32 0.0, %v9114
      %v9116 = vpop.f32.mrf.mxu0
      %v9117 = vadd.f32 0.0, %v9116
      %9118 = vmatmul.bf16.gmra.mxu0 %v9046
      %v9119 = vpop.f32.mrf.mxu0
      %v9120 = vadd.f32 0.0, %v9119
      %v9121 = vpop.f32.mrf.mxu0
      %v9122 = vadd.f32 0.0, %v9121
      %9123 = vmatmul.bf16.gmra.mxu0 %v9049
      %v9124 = vpop.f32.mrf.mxu0
      %v9125 = vadd.f32 0.0, %v9124
      %v9126 = vpop.f32.mrf.mxu0
      %v9127 = vadd.f32 0.0, %v9126
      %9128 = vmatmul.bf16.gmra.mxu0 %v9052
      %v9129 = vpop.f32.mrf.mxu0
      %v9130 = vadd.f32 0.0, %v9129
      %v9131 = vpop.f32.mrf.mxu0
      %v9132 = vadd.f32 0.0, %v9131
      %9133 = vmatmul.bf16.gmra.mxu0 %v9055
      %v9134 = vpop.f32.mrf.mxu0
      %v9135 = vadd.f32 0.0, %v9134
      %v9136 = vpop.f32.mrf.mxu0
      %v9137 = vadd.f32 0.0, %v9136
      %9138 = vmatmul.bf16.gmra.mxu0 %v9058
      %v9139 = vpop.f32.mrf.mxu0
      %v9140 = vadd.f32 0.0, %v9139
      %v9141 = vpop.f32.mrf.mxu0
      %v9142 = vadd.f32 0.0, %v9141
      %9143 = vmatmul.bf16.gmra.mxu0 %v9061
      %v9144 = vpop.f32.mrf.mxu0
      %v9145 = vadd.f32 0.0, %v9144
      %v9146 = vpop.f32.mrf.mxu0
      %v9147 = vadd.f32 0.0, %v9146
      %9148 = vmatmul.bf16.gmra.mxu0 %v9064
      %v9149 = vpop.f32.mrf.mxu0
      %v9150 = vadd.f32 0.0, %v9149
      %v9151 = vpop.f32.mrf.mxu0
      %v9152 = vadd.f32 0.0, %v9151
      %9153 = vmatmul.bf16.gmra.mxu0 %v9067
      %v9154 = vpop.f32.mrf.mxu0
      %v9155 = vadd.f32 0.0, %v9154
      %v9156 = vpop.f32.mrf.mxu0
      %v9157 = vadd.f32 0.0, %v9156
      %9158 = vmatmul.bf16.gmra.mxu0 %v9070
      %v9159 = vpop.f32.mrf.mxu0
      %v9160 = vadd.f32 0.0, %v9159
      %v9161 = vpop.f32.mrf.mxu0
      %v9162 = vadd.f32 0.0, %v9161
      %9163 = vdwg.mxu0
      %v9164 = vadd.f32 %v8766, %v9085
      %v9165 = vadd.f32 %v8767, %v9087
      %v9166 = vadd.f32 %v8768, %v9090
      %v9167 = vadd.f32 %v8769, %v9092
      %v9168 = vadd.f32 %v8770, %v9095
      %v9169 = vadd.f32 %v8771, %v9097
      %v9170 = vadd.f32 %v8772, %v9100
      %v9171 = vadd.f32 %v8773, %v9102
      %v9172 = vadd.f32 %v8774, %v9105
      %v9173 = vadd.f32 %v8775, %v9107
      %v9174 = vadd.f32 %v8776, %v9110
      %v9175 = vadd.f32 %v8777, %v9112
      %v9176 = vadd.f32 %v8778, %v9115
      %v9177 = vadd.f32 %v8779, %v9117
      %v9178 = vadd.f32 %v8780, %v9120
      %v9179 = vadd.f32 %v8781, %v9122
      %v9180 = vadd.f32 %v8782, %v9125
      %v9181 = vadd.f32 %v8783, %v9127
      %v9182 = vadd.f32 %v8784, %v9130
      %v9183 = vadd.f32 %v8785, %v9132
      %v9184 = vadd.f32 %v8786, %v9135
      %v9185 = vadd.f32 %v8787, %v9137
      %v9186 = vadd.f32 %v8788, %v9140
      %v9187 = vadd.f32 %v8789, %v9142
      %v9188 = vadd.f32 %v8790, %v9145
      %v9189 = vadd.f32 %v8791, %v9147
      %v9190 = vadd.f32 %v8792, %v9150
      %v9191 = vadd.f32 %v8793, %v9152
      %v9192 = vadd.f32 %v8794, %v9155
      %v9193 = vadd.f32 %v8795, %v9157
      %v9194 = vadd.f32 %v8796, %v9160
      %v9195 = vadd.f32 %v8797, %v9162
      %v9196 = vmax.f32 %v9164, 0.0
      %v9197 = vmax.f32 %v9165, 0.0
      %v9198 = vmax.f32 %v9166, 0.0
      %v9199 = vmax.f32 %v9167, 0.0
      %v9200 = vmax.f32 %v9168, 0.0
      %v9201 = vmax.f32 %v9169, 0.0
      %v9202 = vmax.f32 %v9170, 0.0
      %v9203 = vmax.f32 %v9171, 0.0
      %v9204 = vmax.f32 %v9172, 0.0
      %v9205 = vmax.f32 %v9173, 0.0
      %v9206 = vmax.f32 %v9174, 0.0
      %v9207 = vmax.f32 %v9175, 0.0
      %v9208 = vmax.f32 %v9176, 0.0
      %v9209 = vmax.f32 %v9177, 0.0
      %v9210 = vmax.f32 %v9178, 0.0
      %v9211 = vmax.f32 %v9179, 0.0
      %v9212 = vmax.f32 %v9180, 0.0
      %v9213 = vmax.f32 %v9181, 0.0
      %v9214 = vmax.f32 %v9182, 0.0
      %v9215 = vmax.f32 %v9183, 0.0
      %v9216 = vmax.f32 %v9184, 0.0
      %v9217 = vmax.f32 %v9185, 0.0
      %v9218 = vmax.f32 %v9186, 0.0
      %v9219 = vmax.f32 %v9187, 0.0
      %v9220 = vmax.f32 %v9188, 0.0
      %v9221 = vmax.f32 %v9189, 0.0
      %v9222 = vmax.f32 %v9190, 0.0
      %v9223 = vmax.f32 %v9191, 0.0
      %v9224 = vmax.f32 %v9192, 0.0
      %v9225 = vmax.f32 %v9193, 0.0
      %v9226 = vmax.f32 %v9194, 0.0
      %v9227 = vmax.f32 %v9195, 0.0
      %9228 = vst.msk [vmem:[%s170] sm:$0xff] %vm5775, %v9196
      %9229 = vst.msk [vmem:[%s170 + $0x8] sm:$0xff] %vm5775, %v9197
      %9230 = vst.msk [vmem:[%s170 + $0x10] sm:$0xff] %vm5775, %v9198
      %9231 = vst.msk [vmem:[%s170 + $0x18] sm:$0xff] %vm5775, %v9199
      %9232 = vst.msk [vmem:[%s170 + $0x20] sm:$0xff] %vm5775, %v9200
      %9233 = vst.msk [vmem:[%s170 + $0x28] sm:$0xff] %vm5775, %v9201
      %9234 = vst.msk [vmem:[%s170 + $0x30] sm:$0xff] %vm5775, %v9202
      %9235 = vst.msk [vmem:[%s170 + $0x38] sm:$0xff] %vm5775, %v9203
      %9236 = vst.msk [vmem:[%s170 + $0x40] sm:$0xff] %vm5775, %v9204
      %9237 = vst.msk [vmem:[%s170 + $0x48] sm:$0xff] %vm5775, %v9205
      %9238 = vst.msk [vmem:[%s170 + $0x50] sm:$0xff] %vm5775, %v9206
      %9239 = vst.msk [vmem:[%s170 + $0x58] sm:$0xff] %vm5775, %v9207
      %9240 = vst.msk [vmem:[%s170 + $0x60] sm:$0xff] %vm5775, %v9208
      %9241 = vst.msk [vmem:[%s170 + $0x68] sm:$0xff] %vm5775, %v9209
      %9242 = vst.msk [vmem:[%s170 + $0x70] sm:$0xff] %vm5775, %v9210
      %9243 = vst.msk [vmem:[%s170 + $0x78] sm:$0xff] %vm5775, %v9211
      %9244 = vst.msk [vmem:[%s170 + $0x80] sm:$0xff] %vm5775, %v9212
      %9245 = vst.msk [vmem:[%s170 + $0x88] sm:$0xff] %vm5775, %v9213
      %9246 = vst.msk [vmem:[%s170 + $0x90] sm:$0xff] %vm5775, %v9214
      %9247 = vst.msk [vmem:[%s170 + $0x98] sm:$0xff] %vm5775, %v9215
      %9248 = vst.msk [vmem:[%s170 + $0xa0] sm:$0xff] %vm5775, %v9216
      %9249 = vst.msk [vmem:[%s170 + $0xa8] sm:$0xff] %vm5775, %v9217
      %9250 = vst.msk [vmem:[%s170 + $0xb0] sm:$0xff] %vm5775, %v9218
      %9251 = vst.msk [vmem:[%s170 + $0xb8] sm:$0xff] %vm5775, %v9219
      %9252 = vst.msk [vmem:[%s170 + $0xc0] sm:$0xff] %vm5775, %v9220
      %9253 = vst.msk [vmem:[%s170 + $0xc8] sm:$0xff] %vm5775, %v9221
      %9254 = vst.msk [vmem:[%s170 + $0xd0] sm:$0xff] %vm5775, %v9222
      %9255 = vst.msk [vmem:[%s170 + $0xd8] sm:$0xff] %vm5775, %v9223
      %9256 = vst.msk [vmem:[%s170 + $0xe0] sm:$0xff] %vm5775, %v9224
      %9257 = vst.msk [vmem:[%s170 + $0xe8] sm:$0xff] %vm5775, %v9225
      %9258 = vst.msk [vmem:[%s170 + $0xf0] sm:$0xff] %vm5775, %v9226
      %9259 = vst.msk [vmem:[%s170 + $0xf8] sm:$0xff] %vm5775, %v9227
      %p9260 = scmp.lt.s32.totalorder %s14, 1
      %s9261 = scalar_select %p9260, %s14, 1
      %s9262 = smul.addr %s9261, 32
      %s9263 = smul.addr %s9262, 8
      %s9264 = scalar_lea.vmem %s3, %s9263
      // Predicated region
      $region33: #{tpu_custom_call.1} parent=31 // pred_check
        %p9265 = pneg %p100
      $region34: #{tpu_custom_call.1} parent=31 // pred_check_branch
        %9267 = sbr.rel (%p9265) target = $region36
      $region35: #{tpu_custom_call.1} parent=31 // pred_region
        _
      $region36: #{tpu_custom_call.1} parent=31 // pred_fallthru
        _
    $region32: #{tpu_custom_call.1} parent=5 // pred_fallthru
      _
    %p9268 = scmp.le.s32.totalorder 2, %s9
    // Predicated region
    $region37: #{tpu_custom_call.1} parent=5 // pred_check
      %p9269 = pneg %p9268
    $region38: #{tpu_custom_call.1} parent=5 // pred_check_branch
      %9271 = sbr.rel (%p9269) target = $region40
    $region39: #{tpu_custom_call.1} parent=5 // pred_region
      %s9272 = ssub.s32 %s9, 2
      // Predicated region
      $region41: #{tpu_custom_call.1} parent=39 // pred_check
        %p9273 = pneg %p106
      $region42: #{tpu_custom_call.1} parent=39 // pred_check_branch
        %9275 = sbr.rel (%p9273) target = $region44
      $region43: #{tpu_custom_call.1} parent=39 // pred_region
        %p9276 = scmp.lt.s32.totalorder %s15, 1
        %s9277 = scalar_select %p9276, %s15, 1
        %s9278 = smul.addr %s9277, 32
        %s9279 = smul.addr %s9278, 8
        %s9280 = scalar_lea.vmem %s3, %s9279
      $region44: #{tpu_custom_call.1} parent=39 // pred_fallthru
        _
    $region40: #{tpu_custom_call.1} parent=5 // pred_fallthru
      _
  $region6: #{tpu_custom_call.1} parent=0 // loop_footer
    %s13 = sadd.s32 1, %s9
  $region7: #{tpu_custom_call.1} parent=0 // loop_footer_branch
    %8 = sbr.rel target = $region3
  $region8: #{tpu_custom_call.1} parent=0 // loop_exit
    _

</llo_original>
